<compile_context>
chip_gen: v5e
topology: v5e:2x2
jax: 0.10.0
libtpu: 0.0.40
codegen_flags: <defaults>
</compile_context>

<pallas_src>
import functools

import numpy as np
import jax
import jax.numpy as jnp
from jax import lax
from jax.experimental import pallas as pl
from jax.experimental.pallas import tpu as pltpu

RELU6_SCALE = 1.7133749


def _act(v):
    # VPReLU6: relu6(x) * 1.7133749
    return jnp.clip(v, 0.0, 6.0) * RELU6_SCALE


# ------------------------------ fused kernel --------------------------------
# One grid step = one batch element; everything between reading x and writing the
# final projected output stays on-chip.

def _fused_kernel(x_ref, w1_ref, b1_ref, w2_ref, b2_ref, w3_ref, b3_ref,
                  o_ref, h1p_ref, h2f_ref, *,
                  H, W, Ho, Wo, stride, beta, vpalpha, residual):
    Cexp = w1_ref.shape[0]

    # ---- input activation: VPReLU6(x) * beta (f32, reused by the residual add) ----
    xv = x_ref[0]                                          # (Cin, H*W)
    a = jnp.clip(xv, 0.0, 6.0) * (RELU6_SCALE * beta)

    # ---- stage 1: expand 1x1 conv (bf16 MXU, f32 accumulate) + VPReLU6 -------------
    h1 = jnp.dot(w1_ref[...], a.astype(jnp.bfloat16),
                 preferred_element_type=jnp.float32)       # (Cexp, H*W)
    h1 = _act(h1 + b1_ref[...])                            # bias (Cexp,1) broadcasts

    # ---- stage 2: depthwise 3x3, padding=1, stride, + VPReLU6 ----------------------
    # zero-padded (Cexp, H+2, W+2) buffer lives in VMEM scratch; rows are scattered
    # with plain slice stores (no HBM pad copy, no in-kernel reshape needed).
    h1p_ref[...] = jnp.zeros_like(h1p_ref)
    for h in range(H):
        h1p_ref[:, h + 1, 1:W + 1] = h1[:, h * W:(h + 1) * W]

    w2v = w2_ref[...]                                      # (Cexp, 9) per-channel taps
    b2v = b2_ref[...]                                      # (Cexp, 1)
    zero_row = jnp.zeros((Cexp, Wo), jnp.float32)
    # TODO(synk): the per-output-row unrolled loop is fine at test scale (H<=32); for
    # production spatial sizes, tile H on the grid (with a 1-row halo) instead.
    for i in range(Ho):
        acc = zero_row
        for kh in range(3):
            row = h1p_ref[:, i * stride + kh, :]           # (Cexp, W+2)
            for kw in range(3):
                # stride==1 -> contiguous lane slice; stride==2 falls back to a
                # strided lane slice (not exercised by the test).
                seg = row[:, kw:kw + (Wo - 1) * stride + 1:stride]   # (Cexp, Wo)
                acc = acc + seg * w2v[:, kh * 3 + kw:kh * 3 + kw + 1]
        h2f_ref[:, i * Wo:(i + 1) * Wo] = _act(acc + b2v)

    # ---- stage 3: project 1x1 conv (bf16 MXU) * VPalpha, fused residual ------------
    out = jnp.dot(w3_ref[...], h2f_ref[...].astype(jnp.bfloat16),
                  preferred_element_type=jnp.float32)      # (Cout, Ho*Wo)
    out = (out + b3_ref[...]) * vpalpha
    if residual:
        out = out + a          # recomputed activated input: no HBM round-trip
    o_ref[0] = out


# ----------------------------- parameter setup -----------------------------

def standardize(w, gain, eps=1e-4):
    """WSConv2D.standardized_weights (torch.var is unbiased -> ddof=1)."""
    fan_in = float(np.prod(w.shape[1:]))
    mean = jnp.mean(w, axis=(1, 2, 3), keepdims=True)
    var = jnp.var(w, axis=(1, 2, 3), keepdims=True, ddof=1)
    scale = lax.rsqrt(jnp.maximum(var * fan_in, eps))
    return (w - mean) * scale * gain


def init_params(key, inC, outC, expansion):
    Cexp = expansion * inC
    ks = jax.random.split(key, 6)

    def xavier(k, shape):  # torch OIHW layout
        fan_out = shape[0] * shape[2] * shape[3]
        fan_in = shape[1] * shape[2] * shape[3]
        std = float(np.sqrt(2.0 / (fan_in + fan_out)))
        return jax.random.normal(k, shape, jnp.float32) * std

    return dict(
        w1=xavier(ks[0], (Cexp, inC, 1, 1)),
        b1=jax.random.normal(ks[1], (Cexp,), jnp.float32) * 0.05,
        g1=jnp.ones((Cexp, 1, 1, 1), jnp.float32),
        w2=xavier(ks[2], (Cexp, 1, 3, 3)),
        b2=jax.random.normal(ks[3], (Cexp,), jnp.float32) * 0.05,
        g2=jnp.ones((Cexp, 1, 1, 1), jnp.float32),
        w3=xavier(ks[4], (outC, Cexp, 1, 1)),
        b3=jax.random.normal(ks[5], (outC,), jnp.float32) * 0.05,
        g3=jnp.ones((outC, 1, 1, 1), jnp.float32),
    )


# ----------------------------- forward wrapper -----------------------------

def bottleneck_forward(x_nchw, params, *, stride, expansion, beta=1.0, vpalpha=0.2):
    N, Cin, H, W = x_nchw.shape
    Cexp = expansion * Cin
    Cout = params['w3'].shape[0]
    residual = (Cin == Cout) and (stride == 1)
    Ho = (H + 2 - 3) // stride + 1
    Wo = (W + 2 - 3) // stride + 1

    # Weight standardization is tiny glue; done once in plain JAX.  The 1x1-conv
    # weights are pre-cast to bf16 so the in-kernel dots hit the native MXU path.
    w1 = standardize(params['w1'], params['g1']).reshape(Cexp, Cin).astype(jnp.bfloat16)
    w2 = standardize(params['w2'], params['g2']).reshape(Cexp, 9)          # DW taps, f32
    w3 = standardize(params['w3'], params['g3']).reshape(Cout, Cexp).astype(jnp.bfloat16)
    b1 = params['b1'].reshape(Cexp, 1)
    b2 = params['b2'].reshape(Cexp, 1)
    b3 = params['b3'].reshape(Cout, 1)

    # NCHW -> (N, C, H*W): a free reshape (no transpose); lane axis = H*W (>= 128).
    x3 = x_nchw.astype(jnp.float32).reshape(N, Cin, H * W)

    out = pl.pallas_call(
        functools.partial(_fused_kernel, H=H, W=W, Ho=Ho, Wo=Wo, stride=stride,
                          beta=beta, vpalpha=vpalpha, residual=residual),
        grid=(N,),
        in_specs=[
            pl.BlockSpec((1, Cin, H * W), lambda n: (n, 0, 0)),
            pl.BlockSpec((Cexp, Cin), lambda n: (0, 0)),
            pl.BlockSpec((Cexp, 1), lambda n: (0, 0)),
            pl.BlockSpec((Cexp, 9), lambda n: (0, 0)),
            pl.BlockSpec((Cexp, 1), lambda n: (0, 0)),
            pl.BlockSpec((Cout, Cexp), lambda n: (0, 0)),
            pl.BlockSpec((Cout, 1), lambda n: (0, 0)),
        ],
        out_specs=pl.BlockSpec((1, Cout, Ho * Wo), lambda n: (n, 0, 0)),
        out_shape=jax.ShapeDtypeStruct((N, Cout, Ho * Wo), jnp.float32),
        scratch_shapes=[
            pltpu.VMEM((Cexp, H + 2, W + 2), jnp.float32),   # zero-padded expanded act
            pltpu.VMEM((Cexp, Ho * Wo), jnp.float32),        # flat depthwise output
        ],
        compiler_params=pltpu.CompilerParams(
            dimension_semantics=("parallel",),
            vmem_limit_bytes=32 * 1024 * 1024,
        ),
    )(x3, w1, b1, w2, b2, w3, b3)

    return out.reshape(N, Cout, Ho, Wo)


# ----------------------------- pure-JAX reference --------------------------
# Matches the module's math; the two 1x1 convs use the same bf16-input / f32-accumulate
# numerics as the kernel's MXU dots so the comparison is tight.

def ref_forward(x_nchw, params, *, stride, expansion, beta=1.0, vpalpha=0.2):
    N, Cin, H, W = x_nchw.shape
    Cexp = expansion * Cin
    Cout = params['w3'].shape[0]

    w1 = standardize(params['w1'], params['g1']).reshape(Cexp, Cin)
    w2 = standardize(params['w2'], params['g2']).reshape(Cexp, 3, 3)
    w3 = standardize(params['w3'], params['g3']).reshape(Cout, Cexp)

    xa = jnp.clip(x_nchw.astype(jnp.float32), 0.0, 6.0) * (RELU6_SCALE * beta)

    h1 = jnp.einsum('oc,nchw->nohw', w1.astype(jnp.bfloat16), xa.astype(jnp.bfloat16),
                    preferred_element_type=jnp.float32)
    h1 = _act(h1 + params['b1'][None, :, None, None])

    Ho = (H + 2 - 3) // stride + 1
    Wo = (W + 2 - 3) // stride + 1
    hp = jnp.pad(h1, ((0, 0), (0, 0), (1, 1), (1, 1)))
    acc = jnp.zeros((N, Cexp, Ho, Wo), jnp.float32)
    for kh in range(3):
        for kw in range(3):
            patch = hp[:, :, kh:kh + (Ho - 1) * stride + 1:stride,
                       kw:kw + (Wo - 1) * stride + 1:stride]
            acc = acc + patch * w2[:, kh, kw][None, :, None, None]
    h2 = _act(acc + params['b2'][None, :, None, None])

    out = jnp.einsum('oc,nchw->nohw', w3.astype(jnp.bfloat16), h2.astype(jnp.bfloat16),
                     preferred_element_type=jnp.float32)
    out = (out + params['b3'][None, :, None, None]) * vpalpha
    if Cin == Cout and stride == 1:
        out = out + xa
    return out


if __name__ == "__main__":
    key = jax.random.PRNGKey(0)
    kx, kp = jax.random.split(key)

    N, Cin, H, W = 2, 4, 16, 16
    expansion, stride, outC = 2, 1, 4
    beta, vpalpha = 1.0, 0.2

    x = jax.random.normal(kx, (N, Cin, H, W), jnp.float32)
    params = init_params(kp, Cin, outC, expansion)

    out = bottleneck_forward(x, params, stride=stride, expansion=expansion,
                             beta=beta, vpalpha=vpalpha)
    out = jax.block_until_ready(out)

    ref = jax.block_until_ready(
        ref_forward(x, params, stride=stride, expansion=expansion,
                    beta=beta, vpalpha=vpalpha))

    assert out.shape == (N, outC, H, W)
    # tolerance sized for bf16-input MXU matmuls (both sides use the same rounding,
    # only accumulation order differs)
    np.testing.assert_allclose(np.asarray(out), np.asarray(ref),
                               atol=1e-2, rtol=1e-2)
    print("KERNEL_OK")
</pallas_src>

<mosaic_0001>
module attributes {stable_mosaic.version = 11 : i64} {
  func.func @_fused_kernel(%arg0: i32, %arg1: memref<1x4x256xf32, #tpu.memory_space<vmem>>, %arg2: memref<8x4xbf16, #tpu.memory_space<vmem>>, %arg3: memref<8x1xf32, #tpu.memory_space<vmem>>, %arg4: memref<8x9xf32, #tpu.memory_space<vmem>>, %arg5: memref<8x1xf32, #tpu.memory_space<vmem>>, %arg6: memref<4x8xbf16, #tpu.memory_space<vmem>>, %arg7: memref<4x1xf32, #tpu.memory_space<vmem>>, %arg8: memref<1x4x256xf32, #tpu.memory_space<vmem>>, %arg9: memref<8x18x18xf32, #tpu.memory_space<vmem>>, %arg10: memref<8x256xf32, #tpu.memory_space<vmem>>) attributes {dimension_semantics = [#tpu.dimension_semantics<parallel>], iteration_bounds = array<i64: 2>, scalar_prefetch = 0 : i64, scratch_operands = 2 : i64, tpu.core_type = #tpu.core_type<tc>, window_params = [{transform_indices = @transform_0, window_bounds = array<i64: 1, 4, 256>}, {pipeline_mode = #tpu.pipeline_mode<synchronous>, transform_indices = @transform_1, window_bounds = array<i64: 8, 4>}, {pipeline_mode = #tpu.pipeline_mode<synchronous>, transform_indices = @transform_2, window_bounds = array<i64: 8, 1>}, {pipeline_mode = #tpu.pipeline_mode<synchronous>, transform_indices = @transform_3, window_bounds = array<i64: 8, 9>}, {pipeline_mode = #tpu.pipeline_mode<synchronous>, transform_indices = @transform_4, window_bounds = array<i64: 8, 1>}, {pipeline_mode = #tpu.pipeline_mode<synchronous>, transform_indices = @transform_5, window_bounds = array<i64: 4, 8>}, {pipeline_mode = #tpu.pipeline_mode<synchronous>, transform_indices = @transform_6, window_bounds = array<i64: 4, 1>}, {transform_indices = @transform_7, window_bounds = array<i64: 1, 4, 256>}]} {
    %c0 = arith.constant 0 : index
    %c0_0 = arith.constant 0 : index
    %c0_1 = arith.constant 0 : index
    %0 = vector.load %arg1[%c0, %c0_0, %c0_1] : memref<1x4x256xf32, #tpu.memory_space<vmem>>, vector<1x4x256xf32>
    %1 = vector.shape_cast %0 : vector<1x4x256xf32> to vector<4x256xf32>
    %cst = arith.constant 0.000000e+00 : f32
    %cst_2 = arith.constant 6.000000e+00 : f32
    %2 = vector.broadcast %cst : f32 to vector<4x256xf32>
    %3 = arith.maximumf %2, %1 : vector<4x256xf32>
    %4 = vector.broadcast %cst_2 : f32 to vector<4x256xf32>
    %5 = arith.minimumf %4, %3 : vector<4x256xf32>
    %cst_3 = arith.constant 1.71337485 : f32
    %6 = vector.broadcast %cst_3 : f32 to vector<4x256xf32>
    %7 = arith.mulf %5, %6 : vector<4x256xf32>
    %c0_4 = arith.constant 0 : index
    %c0_5 = arith.constant 0 : index
    %8 = vector.load %arg2[%c0_4, %c0_5] : memref<8x4xbf16, #tpu.memory_space<vmem>>, vector<8x4xbf16>
    %9 = arith.truncf %7 : vector<4x256xf32> to vector<4x256xbf16>
    %cst_6 = arith.constant dense<0.000000e+00> : vector<8x256xf32>
    %10 = tpu.matmul %8, %9, %cst_6 {dimension_numbers = #tpu.dot_dimension_numbers<[1], [0], [0], [1], [0, 0, 1, 1], [], []>} : vector<8x4xbf16>, vector<4x256xbf16>, vector<8x256xf32> -> vector<8x256xf32>
    %c0_7 = arith.constant 0 : index
    %c0_8 = arith.constant 0 : index
    %11 = vector.load %arg3[%c0_7, %c0_8] : memref<8x1xf32, #tpu.memory_space<vmem>>, vector<8x1xf32>
    %12 = vector.broadcast %11 : vector<8x1xf32> to vector<8x256xf32>
    %13 = arith.addf %10, %12 : vector<8x256xf32>
    %cst_9 = arith.constant 0.000000e+00 : f32
    %cst_10 = arith.constant 6.000000e+00 : f32
    %14 = vector.broadcast %cst_9 : f32 to vector<8x256xf32>
    %15 = arith.maximumf %14, %13 : vector<8x256xf32>
    %16 = vector.broadcast %cst_10 : f32 to vector<8x256xf32>
    %17 = arith.minimumf %16, %15 : vector<8x256xf32>
    %cst_11 = arith.constant 1.71337485 : f32
    %18 = vector.broadcast %cst_11 : f32 to vector<8x256xf32>
    %19 = arith.mulf %17, %18 : vector<8x256xf32>
    %cst_12 = arith.constant 0.000000e+00 : f32
    %20 = vector.broadcast %cst_12 : f32 to vector<8x18x18xf32>
    %c0_13 = arith.constant 0 : index
    %c0_14 = arith.constant 0 : index
    %c0_15 = arith.constant 0 : index
    %21 = vector.load %arg9[%c0_13, %c0_14, %c0_15] : memref<8x18x18xf32, #tpu.memory_space<vmem>>, vector<8x18x18xf32>
    tpu.vector_store %arg9[%c0_13, %c0_14, %c0_15], %20 {strides = array<i32>} : memref<8x18x18xf32, #tpu.memory_space<vmem>>, vector<8x18x18xf32>,
    %22 = vector.extract_strided_slice %19 {offsets = [0, 0], sizes = [8, 16], strides = [1, 1]} : vector<8x256xf32> to vector<8x16xf32>
    %c0_16 = arith.constant 0 : index
    %c1 = arith.constant 1 : index
    %c1_17 = arith.constant 1 : index
    %23 = vector.load %arg9[%c0_16, %c1, %c1_17] : memref<8x18x18xf32, #tpu.memory_space<vmem>>, vector<8x1x16xf32>
    %24 = vector.shape_cast %23 : vector<8x1x16xf32> to vector<8x16xf32>
    %25 = vector.shape_cast %22 : vector<8x16xf32> to vector<8x1x16xf32>
    tpu.vector_store %arg9[%c0_16, %c1, %c1_17], %25 {strides = array<i32>} : memref<8x18x18xf32, #tpu.memory_space<vmem>>, vector<8x1x16xf32>,
    %26 = vector.extract_strided_slice %19 {offsets = [0, 16], sizes = [8, 16], strides = [1, 1]} : vector<8x256xf32> to vector<8x16xf32>
    %c0_18 = arith.constant 0 : index
    %c2 = arith.constant 2 : index
    %c1_19 = arith.constant 1 : index
    %27 = vector.load %arg9[%c0_18, %c2, %c1_19] : memref<8x18x18xf32, #tpu.memory_space<vmem>>, vector<8x1x16xf32>
    %28 = vector.shape_cast %27 : vector<8x1x16xf32> to vector<8x16xf32>
    %29 = vector.shape_cast %26 : vector<8x16xf32> to vector<8x1x16xf32>
    tpu.vector_store %arg9[%c0_18, %c2, %c1_19], %29 {strides = array<i32>} : memref<8x18x18xf32, #tpu.memory_space<vmem>>, vector<8x1x16xf32>,
    %30 = vector.extract_strided_slice %19 {offsets = [0, 32], sizes = [8, 16], strides = [1, 1]} : vector<8x256xf32> to vector<8x16xf32>
    %c0_20 = arith.constant 0 : index
    %c3 = arith.constant 3 : index
    %c1_21 = arith.constant 1 : index
    %31 = vector.load %arg9[%c0_20, %c3, %c1_21] : memref<8x18x18xf32, #tpu.memory_space<vmem>>, vector<8x1x16xf32>
    %32 = vector.shape_cast %31 : vector<8x1x16xf32> to vector<8x16xf32>
    %33 = vector.shape_cast %30 : vector<8x16xf32> to vector<8x1x16xf32>
    tpu.vector_store %arg9[%c0_20, %c3, %c1_21], %33 {strides = array<i32>} : memref<8x18x18xf32, #tpu.memory_space<vmem>>, vector<8x1x16xf32>,
    %34 = vector.extract_strided_slice %19 {offsets = [0, 48], sizes = [8, 16], strides = [1, 1]} : vector<8x256xf32> to vector<8x16xf32>
    %c0_22 = arith.constant 0 : index
    %c4 = arith.constant 4 : index
    %c1_23 = arith.constant 1 : index
    %35 = vector.load %arg9[%c0_22, %c4, %c1_23] : memref<8x18x18xf32, #tpu.memory_space<vmem>>, vector<8x1x16xf32>
    %36 = vector.shape_cast %35 : vector<8x1x16xf32> to vector<8x16xf32>
    %37 = vector.shape_cast %34 : vector<8x16xf32> to vector<8x1x16xf32>
    tpu.vector_store %arg9[%c0_22, %c4, %c1_23], %37 {strides = array<i32>} : memref<8x18x18xf32, #tpu.memory_space<vmem>>, vector<8x1x16xf32>,
    %38 = vector.extract_strided_slice %19 {offsets = [0, 64], sizes = [8, 16], strides = [1, 1]} : vector<8x256xf32> to vector<8x16xf32>
    %c0_24 = arith.constant 0 : index
    %c5 = arith.constant 5 : index
    %c1_25 = arith.constant 1 : index
    %39 = vector.load %arg9[%c0_24, %c5, %c1_25] : memref<8x18x18xf32, #tpu.memory_space<vmem>>, vector<8x1x16xf32>
    %40 = vector.shape_cast %39 : vector<8x1x16xf32> to vector<8x16xf32>
    %41 = vector.shape_cast %38 : vector<8x16xf32> to vector<8x1x16xf32>
    tpu.vector_store %arg9[%c0_24, %c5, %c1_25], %41 {strides = array<i32>} : memref<8x18x18xf32, #tpu.memory_space<vmem>>, vector<8x1x16xf32>,
    %42 = vector.extract_strided_slice %19 {offsets = [0, 80], sizes = [8, 16], strides = [1, 1]} : vector<8x256xf32> to vector<8x16xf32>
    %c0_26 = arith.constant 0 : index
    %c6 = arith.constant 6 : index
    %c1_27 = arith.constant 1 : index
    %43 = vector.load %arg9[%c0_26, %c6, %c1_27] : memref<8x18x18xf32, #tpu.memory_space<vmem>>, vector<8x1x16xf32>
    %44 = vector.shape_cast %43 : vector<8x1x16xf32> to vector<8x16xf32>
    %45 = vector.shape_cast %42 : vector<8x16xf32> to vector<8x1x16xf32>
    tpu.vector_store %arg9[%c0_26, %c6, %c1_27], %45 {strides = array<i32>} : memref<8x18x18xf32, #tpu.memory_space<vmem>>, vector<8x1x16xf32>,
    %46 = vector.extract_strided_slice %19 {offsets = [0, 96], sizes = [8, 16], strides = [1, 1]} : vector<8x256xf32> to vector<8x16xf32>
    %c0_28 = arith.constant 0 : index
    %c7 = arith.constant 7 : index
    %c1_29 = arith.constant 1 : index
    %47 = vector.load %arg9[%c0_28, %c7, %c1_29] : memref<8x18x18xf32, #tpu.memory_space<vmem>>, vector<8x1x16xf32>
    %48 = vector.shape_cast %47 : vector<8x1x16xf32> to vector<8x16xf32>
    %49 = vector.shape_cast %46 : vector<8x16xf32> to vector<8x1x16xf32>
    tpu.vector_store %arg9[%c0_28, %c7, %c1_29], %49 {strides = array<i32>} : memref<8x18x18xf32, #tpu.memory_space<vmem>>, vector<8x1x16xf32>,
    %50 = vector.extract_strided_slice %19 {offsets = [0, 112], sizes = [8, 16], strides = [1, 1]} : vector<8x256xf32> to vector<8x16xf32>
    %c0_30 = arith.constant 0 : index
    %c8 = arith.constant 8 : index
    %c1_31 = arith.constant 1 : index
    %51 = vector.load %arg9[%c0_30, %c8, %c1_31] : memref<8x18x18xf32, #tpu.memory_space<vmem>>, vector<8x1x16xf32>
    %52 = vector.shape_cast %51 : vector<8x1x16xf32> to vector<8x16xf32>
    %53 = vector.shape_cast %50 : vector<8x16xf32> to vector<8x1x16xf32>
    tpu.vector_store %arg9[%c0_30, %c8, %c1_31], %53 {strides = array<i32>} : memref<8x18x18xf32, #tpu.memory_space<vmem>>, vector<8x1x16xf32>,
    %54 = vector.extract_strided_slice %19 {offsets = [0, 128], sizes = [8, 16], strides = [1, 1]} : vector<8x256xf32> to vector<8x16xf32>
    %c0_32 = arith.constant 0 : index
    %c9 = arith.constant 9 : index
    %c1_33 = arith.constant 1 : index
    %55 = vector.load %arg9[%c0_32, %c9, %c1_33] : memref<8x18x18xf32, #tpu.memory_space<vmem>>, vector<8x1x16xf32>
    %56 = vector.shape_cast %55 : vector<8x1x16xf32> to vector<8x16xf32>
    %57 = vector.shape_cast %54 : vector<8x16xf32> to vector<8x1x16xf32>
    tpu.vector_store %arg9[%c0_32, %c9, %c1_33], %57 {strides = array<i32>} : memref<8x18x18xf32, #tpu.memory_space<vmem>>, vector<8x1x16xf32>,
    %58 = vector.extract_strided_slice %19 {offsets = [0, 144], sizes = [8, 16], strides = [1, 1]} : vector<8x256xf32> to vector<8x16xf32>
    %c0_34 = arith.constant 0 : index
    %c10 = arith.constant 10 : index
    %c1_35 = arith.constant 1 : index
    %59 = vector.load %arg9[%c0_34, %c10, %c1_35] : memref<8x18x18xf32, #tpu.memory_space<vmem>>, vector<8x1x16xf32>
    %60 = vector.shape_cast %59 : vector<8x1x16xf32> to vector<8x16xf32>
    %61 = vector.shape_cast %58 : vector<8x16xf32> to vector<8x1x16xf32>
    tpu.vector_store %arg9[%c0_34, %c10, %c1_35], %61 {strides = array<i32>} : memref<8x18x18xf32, #tpu.memory_space<vmem>>, vector<8x1x16xf32>,
    %62 = vector.extract_strided_slice %19 {offsets = [0, 160], sizes = [8, 16], strides = [1, 1]} : vector<8x256xf32> to vector<8x16xf32>
    %c0_36 = arith.constant 0 : index
    %c11 = arith.constant 11 : index
    %c1_37 = arith.constant 1 : index
    %63 = vector.load %arg9[%c0_36, %c11, %c1_37] : memref<8x18x18xf32, #tpu.memory_space<vmem>>, vector<8x1x16xf32>
    %64 = vector.shape_cast %63 : vector<8x1x16xf32> to vector<8x16xf32>
    %65 = vector.shape_cast %62 : vector<8x16xf32> to vector<8x1x16xf32>
    tpu.vector_store %arg9[%c0_36, %c11, %c1_37], %65 {strides = array<i32>} : memref<8x18x18xf32, #tpu.memory_space<vmem>>, vector<8x1x16xf32>,
    %66 = vector.extract_strided_slice %19 {offsets = [0, 176], sizes = [8, 16], strides = [1, 1]} : vector<8x256xf32> to vector<8x16xf32>
    %c0_38 = arith.constant 0 : index
    %c12 = arith.constant 12 : index
    %c1_39 = arith.constant 1 : index
    %67 = vector.load %arg9[%c0_38, %c12, %c1_39] : memref<8x18x18xf32, #tpu.memory_space<vmem>>, vector<8x1x16xf32>
    %68 = vector.shape_cast %67 : vector<8x1x16xf32> to vector<8x16xf32>
    %69 = vector.shape_cast %66 : vector<8x16xf32> to vector<8x1x16xf32>
    tpu.vector_store %arg9[%c0_38, %c12, %c1_39], %69 {strides = array<i32>} : memref<8x18x18xf32, #tpu.memory_space<vmem>>, vector<8x1x16xf32>,
    %70 = vector.extract_strided_slice %19 {offsets = [0, 192], sizes = [8, 16], strides = [1, 1]} : vector<8x256xf32> to vector<8x16xf32>
    %c0_40 = arith.constant 0 : index
    %c13 = arith.constant 13 : index
    %c1_41 = arith.constant 1 : index
    %71 = vector.load %arg9[%c0_40, %c13, %c1_41] : memref<8x18x18xf32, #tpu.memory_space<vmem>>, vector<8x1x16xf32>
    %72 = vector.shape_cast %71 : vector<8x1x16xf32> to vector<8x16xf32>
    %73 = vector.shape_cast %70 : vector<8x16xf32> to vector<8x1x16xf32>
    tpu.vector_store %arg9[%c0_40, %c13, %c1_41], %73 {strides = array<i32>} : memref<8x18x18xf32, #tpu.memory_space<vmem>>, vector<8x1x16xf32>,
    %74 = vector.extract_strided_slice %19 {offsets = [0, 208], sizes = [8, 16], strides = [1, 1]} : vector<8x256xf32> to vector<8x16xf32>
    %c0_42 = arith.constant 0 : index
    %c14 = arith.constant 14 : index
    %c1_43 = arith.constant 1 : index
    %75 = vector.load %arg9[%c0_42, %c14, %c1_43] : memref<8x18x18xf32, #tpu.memory_space<vmem>>, vector<8x1x16xf32>
    %76 = vector.shape_cast %75 : vector<8x1x16xf32> to vector<8x16xf32>
    %77 = vector.shape_cast %74 : vector<8x16xf32> to vector<8x1x16xf32>
    tpu.vector_store %arg9[%c0_42, %c14, %c1_43], %77 {strides = array<i32>} : memref<8x18x18xf32, #tpu.memory_space<vmem>>, vector<8x1x16xf32>,
    %78 = vector.extract_strided_slice %19 {offsets = [0, 224], sizes = [8, 16], strides = [1, 1]} : vector<8x256xf32> to vector<8x16xf32>
    %c0_44 = arith.constant 0 : index
    %c15 = arith.constant 15 : index
    %c1_45 = arith.constant 1 : index
    %79 = vector.load %arg9[%c0_44, %c15, %c1_45] : memref<8x18x18xf32, #tpu.memory_space<vmem>>, vector<8x1x16xf32>
    %80 = vector.shape_cast %79 : vector<8x1x16xf32> to vector<8x16xf32>
    %81 = vector.shape_cast %78 : vector<8x16xf32> to vector<8x1x16xf32>
    tpu.vector_store %arg9[%c0_44, %c15, %c1_45], %81 {strides = array<i32>} : memref<8x18x18xf32, #tpu.memory_space<vmem>>, vector<8x1x16xf32>,
    %82 = vector.extract_strided_slice %19 {offsets = [0, 240], sizes = [8, 16], strides = [1, 1]} : vector<8x256xf32> to vector<8x16xf32>
    %c0_46 = arith.constant 0 : index
    %c16 = arith.constant 16 : index
    %c1_47 = arith.constant 1 : index
    %83 = vector.load %arg9[%c0_46, %c16, %c1_47] : memref<8x18x18xf32, #tpu.memory_space<vmem>>, vector<8x1x16xf32>
    %84 = vector.shape_cast %83 : vector<8x1x16xf32> to vector<8x16xf32>
    %85 = vector.shape_cast %82 : vector<8x16xf32> to vector<8x1x16xf32>
    tpu.vector_store %arg9[%c0_46, %c16, %c1_47], %85 {strides = array<i32>} : memref<8x18x18xf32, #tpu.memory_space<vmem>>, vector<8x1x16xf32>,
    %c0_48 = arith.constant 0 : index
    %c0_49 = arith.constant 0 : index
    %86 = vector.load %arg4[%c0_48, %c0_49] : memref<8x9xf32, #tpu.memory_space<vmem>>, vector<8x9xf32>
    %c0_50 = arith.constant 0 : index
    %c0_51 = arith.constant 0 : index
    %87 = vector.load %arg5[%c0_50, %c0_51] : memref<8x1xf32, #tpu.memory_space<vmem>>, vector<8x1xf32>
    %cst_52 = arith.constant 0.000000e+00 : f32
    %88 = vector.broadcast %cst_52 : f32 to vector<8x16xf32>
    %c0_53 = arith.constant 0 : index
    %c0_54 = arith.constant 0 : index
    %c0_55 = arith.constant 0 : index
    %89 = vector.load %arg9[%c0_53, %c0_54, %c0_55] : memref<8x18x18xf32, #tpu.memory_space<vmem>>, vector<8x1x18xf32>
    %90 = vector.shape_cast %89 : vector<8x1x18xf32> to vector<8x18xf32>
    %91 = vector.extract_strided_slice %90 {offsets = [0, 0], sizes = [8, 16], strides = [1, 1]} : vector<8x18xf32> to vector<8x16xf32>
    %92 = vector.extract_strided_slice %86 {offsets = [0, 0], sizes = [8, 1], strides = [1, 1]} : vector<8x9xf32> to vector<8x1xf32>
    %93 = vector.broadcast %92 : vector<8x1xf32> to vector<8x16xf32>
    %94 = arith.mulf %91, %93 : vector<8x16xf32>
    %95 = arith.addf %88, %94 : vector<8x16xf32>
    %96 = vector.extract_strided_slice %90 {offsets = [0, 1], sizes = [8, 16], strides = [1, 1]} : vector<8x18xf32> to vector<8x16xf32>
    %97 = vector.extract_strided_slice %86 {offsets = [0, 1], sizes = [8, 1], strides = [1, 1]} : vector<8x9xf32> to vector<8x1xf32>
    %98 = vector.broadcast %97 : vector<8x1xf32> to vector<8x16xf32>
    %99 = arith.mulf %96, %98 : vector<8x16xf32>
    %100 = arith.addf %95, %99 : vector<8x16xf32>
    %101 = vector.extract_strided_slice %90 {offsets = [0, 2], sizes = [8, 16], strides = [1, 1]} : vector<8x18xf32> to vector<8x16xf32>
    %102 = vector.extract_strided_slice %86 {offsets = [0, 2], sizes = [8, 1], strides = [1, 1]} : vector<8x9xf32> to vector<8x1xf32>
    %103 = vector.broadcast %102 : vector<8x1xf32> to vector<8x16xf32>
    %104 = arith.mulf %101, %103 : vector<8x16xf32>
    %105 = arith.addf %100, %104 : vector<8x16xf32>
    %c0_56 = arith.constant 0 : index
    %c1_57 = arith.constant 1 : index
    %c0_58 = arith.constant 0 : index
    %106 = vector.load %arg9[%c0_56, %c1_57, %c0_58] : memref<8x18x18xf32, #tpu.memory_space<vmem>>, vector<8x1x18xf32>
    %107 = vector.shape_cast %106 : vector<8x1x18xf32> to vector<8x18xf32>
    %108 = vector.extract_strided_slice %107 {offsets = [0, 0], sizes = [8, 16], strides = [1, 1]} : vector<8x18xf32> to vector<8x16xf32>
    %109 = vector.extract_strided_slice %86 {offsets = [0, 3], sizes = [8, 1], strides = [1, 1]} : vector<8x9xf32> to vector<8x1xf32>
    %110 = vector.broadcast %109 : vector<8x1xf32> to vector<8x16xf32>
    %111 = arith.mulf %108, %110 : vector<8x16xf32>
    %112 = arith.addf %105, %111 : vector<8x16xf32>
    %113 = vector.extract_strided_slice %107 {offsets = [0, 1], sizes = [8, 16], strides = [1, 1]} : vector<8x18xf32> to vector<8x16xf32>
    %114 = vector.extract_strided_slice %86 {offsets = [0, 4], sizes = [8, 1], strides = [1, 1]} : vector<8x9xf32> to vector<8x1xf32>
    %115 = vector.broadcast %114 : vector<8x1xf32> to vector<8x16xf32>
    %116 = arith.mulf %113, %115 : vector<8x16xf32>
    %117 = arith.addf %112, %116 : vector<8x16xf32>
    %118 = vector.extract_strided_slice %107 {offsets = [0, 2], sizes = [8, 16], strides = [1, 1]} : vector<8x18xf32> to vector<8x16xf32>
    %119 = vector.extract_strided_slice %86 {offsets = [0, 5], sizes = [8, 1], strides = [1, 1]} : vector<8x9xf32> to vector<8x1xf32>
    %120 = vector.broadcast %119 : vector<8x1xf32> to vector<8x16xf32>
    %121 = arith.mulf %118, %120 : vector<8x16xf32>
    %122 = arith.addf %117, %121 : vector<8x16xf32>
    %c0_59 = arith.constant 0 : index
    %c2_60 = arith.constant 2 : index
    %c0_61 = arith.constant 0 : index
    %123 = vector.load %arg9[%c0_59, %c2_60, %c0_61] : memref<8x18x18xf32, #tpu.memory_space<vmem>>, vector<8x1x18xf32>
    %124 = vector.shape_cast %123 : vector<8x1x18xf32> to vector<8x18xf32>
    %125 = vector.extract_strided_slice %124 {offsets = [0, 0], sizes = [8, 16], strides = [1, 1]} : vector<8x18xf32> to vector<8x16xf32>
    %126 = vector.extract_strided_slice %86 {offsets = [0, 6], sizes = [8, 1], strides = [1, 1]} : vector<8x9xf32> to vector<8x1xf32>
    %127 = vector.broadcast %126 : vector<8x1xf32> to vector<8x16xf32>
    %128 = arith.mulf %125, %127 : vector<8x16xf32>
    %129 = arith.addf %122, %128 : vector<8x16xf32>
    %130 = vector.extract_strided_slice %124 {offsets = [0, 1], sizes = [8, 16], strides = [1, 1]} : vector<8x18xf32> to vector<8x16xf32>
    %131 = vector.extract_strided_slice %86 {offsets = [0, 7], sizes = [8, 1], strides = [1, 1]} : vector<8x9xf32> to vector<8x1xf32>
    %132 = vector.broadcast %131 : vector<8x1xf32> to vector<8x16xf32>
    %133 = arith.mulf %130, %132 : vector<8x16xf32>
    %134 = arith.addf %129, %133 : vector<8x16xf32>
    %135 = vector.extract_strided_slice %124 {offsets = [0, 2], sizes = [8, 16], strides = [1, 1]} : vector<8x18xf32> to vector<8x16xf32>
    %136 = vector.extract_strided_slice %86 {offsets = [0, 8], sizes = [8, 1], strides = [1, 1]} : vector<8x9xf32> to vector<8x1xf32>
    %137 = vector.broadcast %136 : vector<8x1xf32> to vector<8x16xf32>
    %138 = arith.mulf %135, %137 : vector<8x16xf32>
    %139 = arith.addf %134, %138 : vector<8x16xf32>
    %140 = vector.broadcast %87 : vector<8x1xf32> to vector<8x16xf32>
    %141 = arith.addf %139, %140 : vector<8x16xf32>
    %cst_62 = arith.constant 0.000000e+00 : f32
    %cst_63 = arith.constant 6.000000e+00 : f32
    %142 = vector.broadcast %cst_62 : f32 to vector<8x16xf32>
    %143 = arith.maximumf %142, %141 : vector<8x16xf32>
    %144 = vector.broadcast %cst_63 : f32 to vector<8x16xf32>
    %145 = arith.minimumf %144, %143 : vector<8x16xf32>
    %cst_64 = arith.constant 1.71337485 : f32
    %146 = vector.broadcast %cst_64 : f32 to vector<8x16xf32>
    %147 = arith.mulf %145, %146 : vector<8x16xf32>
    %c0_65 = arith.constant 0 : index
    %c0_66 = arith.constant 0 : index
    %148 = vector.load %arg10[%c0_65, %c0_66] : memref<8x256xf32, #tpu.memory_space<vmem>>, vector<8x16xf32>
    tpu.vector_store %arg10[%c0_65, %c0_66], %147 {strides = array<i32>} : memref<8x256xf32, #tpu.memory_space<vmem>>, vector<8x16xf32>,
    %c0_67 = arith.constant 0 : index
    %c1_68 = arith.constant 1 : index
    %c0_69 = arith.constant 0 : index
    %149 = vector.load %arg9[%c0_67, %c1_68, %c0_69] : memref<8x18x18xf32, #tpu.memory_space<vmem>>, vector<8x1x18xf32>
    %150 = vector.shape_cast %149 : vector<8x1x18xf32> to vector<8x18xf32>
    %151 = vector.extract_strided_slice %150 {offsets = [0, 0], sizes = [8, 16], strides = [1, 1]} : vector<8x18xf32> to vector<8x16xf32>
    %152 = vector.extract_strided_slice %86 {offsets = [0, 0], sizes = [8, 1], strides = [1, 1]} : vector<8x9xf32> to vector<8x1xf32>
    %153 = vector.broadcast %152 : vector<8x1xf32> to vector<8x16xf32>
    %154 = arith.mulf %151, %153 : vector<8x16xf32>
    %155 = arith.addf %88, %154 : vector<8x16xf32>
    %156 = vector.extract_strided_slice %150 {offsets = [0, 1], sizes = [8, 16], strides = [1, 1]} : vector<8x18xf32> to vector<8x16xf32>
    %157 = vector.extract_strided_slice %86 {offsets = [0, 1], sizes = [8, 1], strides = [1, 1]} : vector<8x9xf32> to vector<8x1xf32>
    %158 = vector.broadcast %157 : vector<8x1xf32> to vector<8x16xf32>
    %159 = arith.mulf %156, %158 : vector<8x16xf32>
    %160 = arith.addf %155, %159 : vector<8x16xf32>
    %161 = vector.extract_strided_slice %150 {offsets = [0, 2], sizes = [8, 16], strides = [1, 1]} : vector<8x18xf32> to vector<8x16xf32>
    %162 = vector.extract_strided_slice %86 {offsets = [0, 2], sizes = [8, 1], strides = [1, 1]} : vector<8x9xf32> to vector<8x1xf32>
    %163 = vector.broadcast %162 : vector<8x1xf32> to vector<8x16xf32>
    %164 = arith.mulf %161, %163 : vector<8x16xf32>
    %165 = arith.addf %160, %164 : vector<8x16xf32>
    %c0_70 = arith.constant 0 : index
    %c2_71 = arith.constant 2 : index
    %c0_72 = arith.constant 0 : index
    %166 = vector.load %arg9[%c0_70, %c2_71, %c0_72] : memref<8x18x18xf32, #tpu.memory_space<vmem>>, vector<8x1x18xf32>
    %167 = vector.shape_cast %166 : vector<8x1x18xf32> to vector<8x18xf32>
    %168 = vector.extract_strided_slice %167 {offsets = [0, 0], sizes = [8, 16], strides = [1, 1]} : vector<8x18xf32> to vector<8x16xf32>
    %169 = vector.extract_strided_slice %86 {offsets = [0, 3], sizes = [8, 1], strides = [1, 1]} : vector<8x9xf32> to vector<8x1xf32>
    %170 = vector.broadcast %169 : vector<8x1xf32> to vector<8x16xf32>
    %171 = arith.mulf %168, %170 : vector<8x16xf32>
    %172 = arith.addf %165, %171 : vector<8x16xf32>
    %173 = vector.extract_strided_slice %167 {offsets = [0, 1], sizes = [8, 16], strides = [1, 1]} : vector<8x18xf32> to vector<8x16xf32>
    %174 = vector.extract_strided_slice %86 {offsets = [0, 4], sizes = [8, 1], strides = [1, 1]} : vector<8x9xf32> to vector<8x1xf32>
    %175 = vector.broadcast %174 : vector<8x1xf32> to vector<8x16xf32>
    %176 = arith.mulf %173, %175 : vector<8x16xf32>
    %177 = arith.addf %172, %176 : vector<8x16xf32>
    %178 = vector.extract_strided_slice %167 {offsets = [0, 2], sizes = [8, 16], strides = [1, 1]} : vector<8x18xf32> to vector<8x16xf32>
    %179 = vector.extract_strided_slice %86 {offsets = [0, 5], sizes = [8, 1], strides = [1, 1]} : vector<8x9xf32> to vector<8x1xf32>
    %180 = vector.broadcast %179 : vector<8x1xf32> to vector<8x16xf32>
    %181 = arith.mulf %178, %180 : vector<8x16xf32>
    %182 = arith.addf %177, %181 : vector<8x16xf32>
    %c0_73 = arith.constant 0 : index
    %c3_74 = arith.constant 3 : index
    %c0_75 = arith.constant 0 : index
    %183 = vector.load %arg9[%c0_73, %c3_74, %c0_75] : memref<8x18x18xf32, #tpu.memory_space<vmem>>, vector<8x1x18xf32>
    %184 = vector.shape_cast %183 : vector<8x1x18xf32> to vector<8x18xf32>
    %185 = vector.extract_strided_slice %184 {offsets = [0, 0], sizes = [8, 16], strides = [1, 1]} : vector<8x18xf32> to vector<8x16xf32>
    %186 = vector.extract_strided_slice %86 {offsets = [0, 6], sizes = [8, 1], strides = [1, 1]} : vector<8x9xf32> to vector<8x1xf32>
    %187 = vector.broadcast %186 : vector<8x1xf32> to vector<8x16xf32>
    %188 = arith.mulf %185, %187 : vector<8x16xf32>
    %189 = arith.addf %182, %188 : vector<8x16xf32>
    %190 = vector.extract_strided_slice %184 {offsets = [0, 1], sizes = [8, 16], strides = [1, 1]} : vector<8x18xf32> to vector<8x16xf32>
    %191 = vector.extract_strided_slice %86 {offsets = [0, 7], sizes = [8, 1], strides = [1, 1]} : vector<8x9xf32> to vector<8x1xf32>
    %192 = vector.broadcast %191 : vector<8x1xf32> to vector<8x16xf32>
    %193 = arith.mulf %190, %192 : vector<8x16xf32>
    %194 = arith.addf %189, %193 : vector<8x16xf32>
    %195 = vector.extract_strided_slice %184 {offsets = [0, 2], sizes = [8, 16], strides = [1, 1]} : vector<8x18xf32> to vector<8x16xf32>
    %196 = vector.extract_strided_slice %86 {offsets = [0, 8], sizes = [8, 1], strides = [1, 1]} : vector<8x9xf32> to vector<8x1xf32>
    %197 = vector.broadcast %196 : vector<8x1xf32> to vector<8x16xf32>
    %198 = arith.mulf %195, %197 : vector<8x16xf32>
    %199 = arith.addf %194, %198 : vector<8x16xf32>
    %200 = vector.broadcast %87 : vector<8x1xf32> to vector<8x16xf32>
    %201 = arith.addf %199, %200 : vector<8x16xf32>
    %cst_76 = arith.constant 0.000000e+00 : f32
    %cst_77 = arith.constant 6.000000e+00 : f32
    %202 = vector.broadcast %cst_76 : f32 to vector<8x16xf32>
    %203 = arith.maximumf %202, %201 : vector<8x16xf32>
    %204 = vector.broadcast %cst_77 : f32 to vector<8x16xf32>
    %205 = arith.minimumf %204, %203 : vector<8x16xf32>
    %cst_78 = arith.constant 1.71337485 : f32
    %206 = vector.broadcast %cst_78 : f32 to vector<8x16xf32>
    %207 = arith.mulf %205, %206 : vector<8x16xf32>
    %c0_79 = arith.constant 0 : index
    %c16_80 = arith.constant 16 : index
    %208 = vector.load %arg10[%c0_79, %c16_80] : memref<8x256xf32, #tpu.memory_space<vmem>>, vector<8x16xf32>
    tpu.vector_store %arg10[%c0_79, %c16_80], %207 {strides = array<i32>} : memref<8x256xf32, #tpu.memory_space<vmem>>, vector<8x16xf32>,
    %c0_81 = arith.constant 0 : index
    %c2_82 = arith.constant 2 : index
    %c0_83 = arith.constant 0 : index
    %209 = vector.load %arg9[%c0_81, %c2_82, %c0_83] : memref<8x18x18xf32, #tpu.memory_space<vmem>>, vector<8x1x18xf32>
    %210 = vector.shape_cast %209 : vector<8x1x18xf32> to vector<8x18xf32>
    %211 = vector.extract_strided_slice %210 {offsets = [0, 0], sizes = [8, 16], strides = [1, 1]} : vector<8x18xf32> to vector<8x16xf32>
    %212 = vector.extract_strided_slice %86 {offsets = [0, 0], sizes = [8, 1], strides = [1, 1]} : vector<8x9xf32> to vector<8x1xf32>
    %213 = vector.broadcast %212 : vector<8x1xf32> to vector<8x16xf32>
    %214 = arith.mulf %211, %213 : vector<8x16xf32>
    %215 = arith.addf %88, %214 : vector<8x16xf32>
    %216 = vector.extract_strided_slice %210 {offsets = [0, 1], sizes = [8, 16], strides = [1, 1]} : vector<8x18xf32> to vector<8x16xf32>
    %217 = vector.extract_strided_slice %86 {offsets = [0, 1], sizes = [8, 1], strides = [1, 1]} : vector<8x9xf32> to vector<8x1xf32>
    %218 = vector.broadcast %217 : vector<8x1xf32> to vector<8x16xf32>
    %219 = arith.mulf %216, %218 : vector<8x16xf32>
    %220 = arith.addf %215, %219 : vector<8x16xf32>
    %221 = vector.extract_strided_slice %210 {offsets = [0, 2], sizes = [8, 16], strides = [1, 1]} : vector<8x18xf32> to vector<8x16xf32>
    %222 = vector.extract_strided_slice %86 {offsets = [0, 2], sizes = [8, 1], strides = [1, 1]} : vector<8x9xf32> to vector<8x1xf32>
    %223 = vector.broadcast %222 : vector<8x1xf32> to vector<8x16xf32>
    %224 = arith.mulf %221, %223 : vector<8x16xf32>
    %225 = arith.addf %220, %224 : vector<8x16xf32>
    %c0_84 = arith.constant 0 : index
    %c3_85 = arith.constant 3 : index
    %c0_86 = arith.constant 0 : index
    %226 = vector.load %arg9[%c0_84, %c3_85, %c0_86] : memref<8x18x18xf32, #tpu.memory_space<vmem>>, vector<8x1x18xf32>
    %227 = vector.shape_cast %226 : vector<8x1x18xf32> to vector<8x18xf32>
    %228 = vector.extract_strided_slice %227 {offsets = [0, 0], sizes = [8, 16], strides = [1, 1]} : vector<8x18xf32> to vector<8x16xf32>
    %229 = vector.extract_strided_slice %86 {offsets = [0, 3], sizes = [8, 1], strides = [1, 1]} : vector<8x9xf32> to vector<8x1xf32>
    %230 = vector.broadcast %229 : vector<8x1xf32> to vector<8x16xf32>
    %231 = arith.mulf %228, %230 : vector<8x16xf32>
    %232 = arith.addf %225, %231 : vector<8x16xf32>
    %233 = vector.extract_strided_slice %227 {offsets = [0, 1], sizes = [8, 16], strides = [1, 1]} : vector<8x18xf32> to vector<8x16xf32>
    %234 = vector.extract_strided_slice %86 {offsets = [0, 4], sizes = [8, 1], strides = [1, 1]} : vector<8x9xf32> to vector<8x1xf32>
    %235 = vector.broadcast %234 : vector<8x1xf32> to vector<8x16xf32>
    %236 = arith.mulf %233, %235 : vector<8x16xf32>
    %237 = arith.addf %232, %236 : vector<8x16xf32>
    %238 = vector.extract_strided_slice %227 {offsets = [0, 2], sizes = [8, 16], strides = [1, 1]} : vector<8x18xf32> to vector<8x16xf32>
    %239 = vector.extract_strided_slice %86 {offsets = [0, 5], sizes = [8, 1], strides = [1, 1]} : vector<8x9xf32> to vector<8x1xf32>
    %240 = vector.broadcast %239 : vector<8x1xf32> to vector<8x16xf32>
    %241 = arith.mulf %238, %240 : vector<8x16xf32>
    %242 = arith.addf %237, %241 : vector<8x16xf32>
    %c0_87 = arith.constant 0 : index
    %c4_88 = arith.constant 4 : index
    %c0_89 = arith.constant 0 : index
    %243 = vector.load %arg9[%c0_87, %c4_88, %c0_89] : memref<8x18x18xf32, #tpu.memory_space<vmem>>, vector<8x1x18xf32>
    %244 = vector.shape_cast %243 : vector<8x1x18xf32> to vector<8x18xf32>
    %245 = vector.extract_strided_slice %244 {offsets = [0, 0], sizes = [8, 16], strides = [1, 1]} : vector<8x18xf32> to vector<8x16xf32>
    %246 = vector.extract_strided_slice %86 {offsets = [0, 6], sizes = [8, 1], strides = [1, 1]} : vector<8x9xf32> to vector<8x1xf32>
    %247 = vector.broadcast %246 : vector<8x1xf32> to vector<8x16xf32>
    %248 = arith.mulf %245, %247 : vector<8x16xf32>
    %249 = arith.addf %242, %248 : vector<8x16xf32>
    %250 = vector.extract_strided_slice %244 {offsets = [0, 1], sizes = [8, 16], strides = [1, 1]} : vector<8x18xf32> to vector<8x16xf32>
    %251 = vector.extract_strided_slice %86 {offsets = [0, 7], sizes = [8, 1], strides = [1, 1]} : vector<8x9xf32> to vector<8x1xf32>
    %252 = vector.broadcast %251 : vector<8x1xf32> to vector<8x16xf32>
    %253 = arith.mulf %250, %252 : vector<8x16xf32>
    %254 = arith.addf %249, %253 : vector<8x16xf32>
    %255 = vector.extract_strided_slice %244 {offsets = [0, 2], sizes = [8, 16], strides = [1, 1]} : vector<8x18xf32> to vector<8x16xf32>
    %256 = vector.extract_strided_slice %86 {offsets = [0, 8], sizes = [8, 1], strides = [1, 1]} : vector<8x9xf32> to vector<8x1xf32>
    %257 = vector.broadcast %256 : vector<8x1xf32> to vector<8x16xf32>
    %258 = arith.mulf %255, %257 : vector<8x16xf32>
    %259 = arith.addf %254, %258 : vector<8x16xf32>
    %260 = vector.broadcast %87 : vector<8x1xf32> to vector<8x16xf32>
    %261 = arith.addf %259, %260 : vector<8x16xf32>
    %cst_90 = arith.constant 0.000000e+00 : f32
    %cst_91 = arith.constant 6.000000e+00 : f32
    %262 = vector.broadcast %cst_90 : f32 to vector<8x16xf32>
    %263 = arith.maximumf %262, %261 : vector<8x16xf32>
    %264 = vector.broadcast %cst_91 : f32 to vector<8x16xf32>
    %265 = arith.minimumf %264, %263 : vector<8x16xf32>
    %cst_92 = arith.constant 1.71337485 : f32
    %266 = vector.broadcast %cst_92 : f32 to vector<8x16xf32>
    %267 = arith.mulf %265, %266 : vector<8x16xf32>
    %c0_93 = arith.constant 0 : index
    %c32 = arith.constant 32 : index
    %268 = vector.load %arg10[%c0_93, %c32] : memref<8x256xf32, #tpu.memory_space<vmem>>, vector<8x16xf32>
    tpu.vector_store %arg10[%c0_93, %c32], %267 {strides = array<i32>} : memref<8x256xf32, #tpu.memory_space<vmem>>, vector<8x16xf32>,
    %c0_94 = arith.constant 0 : index
    %c3_95 = arith.constant 3 : index
    %c0_96 = arith.constant 0 : index
    %269 = vector.load %arg9[%c0_94, %c3_95, %c0_96] : memref<8x18x18xf32, #tpu.memory_space<vmem>>, vector<8x1x18xf32>
    %270 = vector.shape_cast %269 : vector<8x1x18xf32> to vector<8x18xf32>
    %271 = vector.extract_strided_slice %270 {offsets = [0, 0], sizes = [8, 16], strides = [1, 1]} : vector<8x18xf32> to vector<8x16xf32>
    %272 = vector.extract_strided_slice %86 {offsets = [0, 0], sizes = [8, 1], strides = [1, 1]} : vector<8x9xf32> to vector<8x1xf32>
    %273 = vector.broadcast %272 : vector<8x1xf32> to vector<8x16xf32>
    %274 = arith.mulf %271, %273 : vector<8x16xf32>
    %275 = arith.addf %88, %274 : vector<8x16xf32>
    %276 = vector.extract_strided_slice %270 {offsets = [0, 1], sizes = [8, 16], strides = [1, 1]} : vector<8x18xf32> to vector<8x16xf32>
    %277 = vector.extract_strided_slice %86 {offsets = [0, 1], sizes = [8, 1], strides = [1, 1]} : vector<8x9xf32> to vector<8x1xf32>
    %278 = vector.broadcast %277 : vector<8x1xf32> to vector<8x16xf32>
    %279 = arith.mulf %276, %278 : vector<8x16xf32>
    %280 = arith.addf %275, %279 : vector<8x16xf32>
    %281 = vector.extract_strided_slice %270 {offsets = [0, 2], sizes = [8, 16], strides = [1, 1]} : vector<8x18xf32> to vector<8x16xf32>
    %282 = vector.extract_strided_slice %86 {offsets = [0, 2], sizes = [8, 1], strides = [1, 1]} : vector<8x9xf32> to vector<8x1xf32>
    %283 = vector.broadcast %282 : vector<8x1xf32> to vector<8x16xf32>
    %284 = arith.mulf %281, %283 : vector<8x16xf32>
    %285 = arith.addf %280, %284 : vector<8x16xf32>
    %c0_97 = arith.constant 0 : index
    %c4_98 = arith.constant 4 : index
    %c0_99 = arith.constant 0 : index
    %286 = vector.load %arg9[%c0_97, %c4_98, %c0_99] : memref<8x18x18xf32, #tpu.memory_space<vmem>>, vector<8x1x18xf32>
    %287 = vector.shape_cast %286 : vector<8x1x18xf32> to vector<8x18xf32>
    %288 = vector.extract_strided_slice %287 {offsets = [0, 0], sizes = [8, 16], strides = [1, 1]} : vector<8x18xf32> to vector<8x16xf32>
    %289 = vector.extract_strided_slice %86 {offsets = [0, 3], sizes = [8, 1], strides = [1, 1]} : vector<8x9xf32> to vector<8x1xf32>
    %290 = vector.broadcast %289 : vector<8x1xf32> to vector<8x16xf32>
    %291 = arith.mulf %288, %290 : vector<8x16xf32>
    %292 = arith.addf %285, %291 : vector<8x16xf32>
    %293 = vector.extract_strided_slice %287 {offsets = [0, 1], sizes = [8, 16], strides = [1, 1]} : vector<8x18xf32> to vector<8x16xf32>
    %294 = vector.extract_strided_slice %86 {offsets = [0, 4], sizes = [8, 1], strides = [1, 1]} : vector<8x9xf32> to vector<8x1xf32>
    %295 = vector.broadcast %294 : vector<8x1xf32> to vector<8x16xf32>
    %296 = arith.mulf %293, %295 : vector<8x16xf32>
    %297 = arith.addf %292, %296 : vector<8x16xf32>
    %298 = vector.extract_strided_slice %287 {offsets = [0, 2], sizes = [8, 16], strides = [1, 1]} : vector<8x18xf32> to vector<8x16xf32>
    %299 = vector.extract_strided_slice %86 {offsets = [0, 5], sizes = [8, 1], strides = [1, 1]} : vector<8x9xf32> to vector<8x1xf32>
    %300 = vector.broadcast %299 : vector<8x1xf32> to vector<8x16xf32>
    %301 = arith.mulf %298, %300 : vector<8x16xf32>
    %302 = arith.addf %297, %301 : vector<8x16xf32>
    %c0_100 = arith.constant 0 : index
    %c5_101 = arith.constant 5 : index
    %c0_102 = arith.constant 0 : index
    %303 = vector.load %arg9[%c0_100, %c5_101, %c0_102] : memref<8x18x18xf32, #tpu.memory_space<vmem>>, vector<8x1x18xf32>
    %304 = vector.shape_cast %303 : vector<8x1x18xf32> to vector<8x18xf32>
    %305 = vector.extract_strided_slice %304 {offsets = [0, 0], sizes = [8, 16], strides = [1, 1]} : vector<8x18xf32> to vector<8x16xf32>
    %306 = vector.extract_strided_slice %86 {offsets = [0, 6], sizes = [8, 1], strides = [1, 1]} : vector<8x9xf32> to vector<8x1xf32>
    %307 = vector.broadcast %306 : vector<8x1xf32> to vector<8x16xf32>
    %308 = arith.mulf %305, %307 : vector<8x16xf32>
    %309 = arith.addf %302, %308 : vector<8x16xf32>
    %310 = vector.extract_strided_slice %304 {offsets = [0, 1], sizes = [8, 16], strides = [1, 1]} : vector<8x18xf32> to vector<8x16xf32>
    %311 = vector.extract_strided_slice %86 {offsets = [0, 7], sizes = [8, 1], strides = [1, 1]} : vector<8x9xf32> to vector<8x1xf32>
    %312 = vector.broadcast %311 : vector<8x1xf32> to vector<8x16xf32>
    %313 = arith.mulf %310, %312 : vector<8x16xf32>
    %314 = arith.addf %309, %313 : vector<8x16xf32>
    %315 = vector.extract_strided_slice %304 {offsets = [0, 2], sizes = [8, 16], strides = [1, 1]} : vector<8x18xf32> to vector<8x16xf32>
    %316 = vector.extract_strided_slice %86 {offsets = [0, 8], sizes = [8, 1], strides = [1, 1]} : vector<8x9xf32> to vector<8x1xf32>
    %317 = vector.broadcast %316 : vector<8x1xf32> to vector<8x16xf32>
    %318 = arith.mulf %315, %317 : vector<8x16xf32>
    %319 = arith.addf %314, %318 : vector<8x16xf32>
    %320 = vector.broadcast %87 : vector<8x1xf32> to vector<8x16xf32>
    %321 = arith.addf %319, %320 : vector<8x16xf32>
    %cst_103 = arith.constant 0.000000e+00 : f32
    %cst_104 = arith.constant 6.000000e+00 : f32
    %322 = vector.broadcast %cst_103 : f32 to vector<8x16xf32>
    %323 = arith.maximumf %322, %321 : vector<8x16xf32>
    %324 = vector.broadcast %cst_104 : f32 to vector<8x16xf32>
    %325 = arith.minimumf %324, %323 : vector<8x16xf32>
    %cst_105 = arith.constant 1.71337485 : f32
    %326 = vector.broadcast %cst_105 : f32 to vector<8x16xf32>
    %327 = arith.mulf %325, %326 : vector<8x16xf32>
    %c0_106 = arith.constant 0 : index
    %c48 = arith.constant 48 : index
    %328 = vector.load %arg10[%c0_106, %c48] : memref<8x256xf32, #tpu.memory_space<vmem>>, vector<8x16xf32>
    tpu.vector_store %arg10[%c0_106, %c48], %327 {strides = array<i32>} : memref<8x256xf32, #tpu.memory_space<vmem>>, vector<8x16xf32>,
    %c0_107 = arith.constant 0 : index
    %c4_108 = arith.constant 4 : index
    %c0_109 = arith.constant 0 : index
    %329 = vector.load %arg9[%c0_107, %c4_108, %c0_109] : memref<8x18x18xf32, #tpu.memory_space<vmem>>, vector<8x1x18xf32>
    %330 = vector.shape_cast %329 : vector<8x1x18xf32> to vector<8x18xf32>
    %331 = vector.extract_strided_slice %330 {offsets = [0, 0], sizes = [8, 16], strides = [1, 1]} : vector<8x18xf32> to vector<8x16xf32>
    %332 = vector.extract_strided_slice %86 {offsets = [0, 0], sizes = [8, 1], strides = [1, 1]} : vector<8x9xf32> to vector<8x1xf32>
    %333 = vector.broadcast %332 : vector<8x1xf32> to vector<8x16xf32>
    %334 = arith.mulf %331, %333 : vector<8x16xf32>
    %335 = arith.addf %88, %334 : vector<8x16xf32>
    %336 = vector.extract_strided_slice %330 {offsets = [0, 1], sizes = [8, 16], strides = [1, 1]} : vector<8x18xf32> to vector<8x16xf32>
    %337 = vector.extract_strided_slice %86 {offsets = [0, 1], sizes = [8, 1], strides = [1, 1]} : vector<8x9xf32> to vector<8x1xf32>
    %338 = vector.broadcast %337 : vector<8x1xf32> to vector<8x16xf32>
    %339 = arith.mulf %336, %338 : vector<8x16xf32>
    %340 = arith.addf %335, %339 : vector<8x16xf32>
    %341 = vector.extract_strided_slice %330 {offsets = [0, 2], sizes = [8, 16], strides = [1, 1]} : vector<8x18xf32> to vector<8x16xf32>
    %342 = vector.extract_strided_slice %86 {offsets = [0, 2], sizes = [8, 1], strides = [1, 1]} : vector<8x9xf32> to vector<8x1xf32>
    %343 = vector.broadcast %342 : vector<8x1xf32> to vector<8x16xf32>
    %344 = arith.mulf %341, %343 : vector<8x16xf32>
    %345 = arith.addf %340, %344 : vector<8x16xf32>
    %c0_110 = arith.constant 0 : index
    %c5_111 = arith.constant 5 : index
    %c0_112 = arith.constant 0 : index
    %346 = vector.load %arg9[%c0_110, %c5_111, %c0_112] : memref<8x18x18xf32, #tpu.memory_space<vmem>>, vector<8x1x18xf32>
    %347 = vector.shape_cast %346 : vector<8x1x18xf32> to vector<8x18xf32>
    %348 = vector.extract_strided_slice %347 {offsets = [0, 0], sizes = [8, 16], strides = [1, 1]} : vector<8x18xf32> to vector<8x16xf32>
    %349 = vector.extract_strided_slice %86 {offsets = [0, 3], sizes = [8, 1], strides = [1, 1]} : vector<8x9xf32> to vector<8x1xf32>
    %350 = vector.broadcast %349 : vector<8x1xf32> to vector<8x16xf32>
    %351 = arith.mulf %348, %350 : vector<8x16xf32>
    %352 = arith.addf %345, %351 : vector<8x16xf32>
    %353 = vector.extract_strided_slice %347 {offsets = [0, 1], sizes = [8, 16], strides = [1, 1]} : vector<8x18xf32> to vector<8x16xf32>
    %354 = vector.extract_strided_slice %86 {offsets = [0, 4], sizes = [8, 1], strides = [1, 1]} : vector<8x9xf32> to vector<8x1xf32>
    %355 = vector.broadcast %354 : vector<8x1xf32> to vector<8x16xf32>
    %356 = arith.mulf %353, %355 : vector<8x16xf32>
    %357 = arith.addf %352, %356 : vector<8x16xf32>
    %358 = vector.extract_strided_slice %347 {offsets = [0, 2], sizes = [8, 16], strides = [1, 1]} : vector<8x18xf32> to vector<8x16xf32>
    %359 = vector.extract_strided_slice %86 {offsets = [0, 5], sizes = [8, 1], strides = [1, 1]} : vector<8x9xf32> to vector<8x1xf32>
    %360 = vector.broadcast %359 : vector<8x1xf32> to vector<8x16xf32>
    %361 = arith.mulf %358, %360 : vector<8x16xf32>
    %362 = arith.addf %357, %361 : vector<8x16xf32>
    %c0_113 = arith.constant 0 : index
    %c6_114 = arith.constant 6 : index
    %c0_115 = arith.constant 0 : index
    %363 = vector.load %arg9[%c0_113, %c6_114, %c0_115] : memref<8x18x18xf32, #tpu.memory_space<vmem>>, vector<8x1x18xf32>
    %364 = vector.shape_cast %363 : vector<8x1x18xf32> to vector<8x18xf32>
    %365 = vector.extract_strided_slice %364 {offsets = [0, 0], sizes = [8, 16], strides = [1, 1]} : vector<8x18xf32> to vector<8x16xf32>
    %366 = vector.extract_strided_slice %86 {offsets = [0, 6], sizes = [8, 1], strides = [1, 1]} : vector<8x9xf32> to vector<8x1xf32>
    %367 = vector.broadcast %366 : vector<8x1xf32> to vector<8x16xf32>
    %368 = arith.mulf %365, %367 : vector<8x16xf32>
    %369 = arith.addf %362, %368 : vector<8x16xf32>
    %370 = vector.extract_strided_slice %364 {offsets = [0, 1], sizes = [8, 16], strides = [1, 1]} : vector<8x18xf32> to vector<8x16xf32>
    %371 = vector.extract_strided_slice %86 {offsets = [0, 7], sizes = [8, 1], strides = [1, 1]} : vector<8x9xf32> to vector<8x1xf32>
    %372 = vector.broadcast %371 : vector<8x1xf32> to vector<8x16xf32>
    %373 = arith.mulf %370, %372 : vector<8x16xf32>
    %374 = arith.addf %369, %373 : vector<8x16xf32>
    %375 = vector.extract_strided_slice %364 {offsets = [0, 2], sizes = [8, 16], strides = [1, 1]} : vector<8x18xf32> to vector<8x16xf32>
    %376 = vector.extract_strided_slice %86 {offsets = [0, 8], sizes = [8, 1], strides = [1, 1]} : vector<8x9xf32> to vector<8x1xf32>
    %377 = vector.broadcast %376 : vector<8x1xf32> to vector<8x16xf32>
    %378 = arith.mulf %375, %377 : vector<8x16xf32>
    %379 = arith.addf %374, %378 : vector<8x16xf32>
    %380 = vector.broadcast %87 : vector<8x1xf32> to vector<8x16xf32>
    %381 = arith.addf %379, %380 : vector<8x16xf32>
    %cst_116 = arith.constant 0.000000e+00 : f32
    %cst_117 = arith.constant 6.000000e+00 : f32
    %382 = vector.broadcast %cst_116 : f32 to vector<8x16xf32>
    %383 = arith.maximumf %382, %381 : vector<8x16xf32>
    %384 = vector.broadcast %cst_117 : f32 to vector<8x16xf32>
    %385 = arith.minimumf %384, %383 : vector<8x16xf32>
    %cst_118 = arith.constant 1.71337485 : f32
    %386 = vector.broadcast %cst_118 : f32 to vector<8x16xf32>
    %387 = arith.mulf %385, %386 : vector<8x16xf32>
    %c0_119 = arith.constant 0 : index
    %c64 = arith.constant 64 : index
    %388 = vector.load %arg10[%c0_119, %c64] : memref<8x256xf32, #tpu.memory_space<vmem>>, vector<8x16xf32>
    tpu.vector_store %arg10[%c0_119, %c64], %387 {strides = array<i32>} : memref<8x256xf32, #tpu.memory_space<vmem>>, vector<8x16xf32>,
    %c0_120 = arith.constant 0 : index
    %c5_121 = arith.constant 5 : index
    %c0_122 = arith.constant 0 : index
    %389 = vector.load %arg9[%c0_120, %c5_121, %c0_122] : memref<8x18x18xf32, #tpu.memory_space<vmem>>, vector<8x1x18xf32>
    %390 = vector.shape_cast %389 : vector<8x1x18xf32> to vector<8x18xf32>
    %391 = vector.extract_strided_slice %390 {offsets = [0, 0], sizes = [8, 16], strides = [1, 1]} : vector<8x18xf32> to vector<8x16xf32>
    %392 = vector.extract_strided_slice %86 {offsets = [0, 0], sizes = [8, 1], strides = [1, 1]} : vector<8x9xf32> to vector<8x1xf32>
    %393 = vector.broadcast %392 : vector<8x1xf32> to vector<8x16xf32>
    %394 = arith.mulf %391, %393 : vector<8x16xf32>
    %395 = arith.addf %88, %394 : vector<8x16xf32>
    %396 = vector.extract_strided_slice %390 {offsets = [0, 1], sizes = [8, 16], strides = [1, 1]} : vector<8x18xf32> to vector<8x16xf32>
    %397 = vector.extract_strided_slice %86 {offsets = [0, 1], sizes = [8, 1], strides = [1, 1]} : vector<8x9xf32> to vector<8x1xf32>
    %398 = vector.broadcast %397 : vector<8x1xf32> to vector<8x16xf32>
    %399 = arith.mulf %396, %398 : vector<8x16xf32>
    %400 = arith.addf %395, %399 : vector<8x16xf32>
    %401 = vector.extract_strided_slice %390 {offsets = [0, 2], sizes = [8, 16], strides = [1, 1]} : vector<8x18xf32> to vector<8x16xf32>
    %402 = vector.extract_strided_slice %86 {offsets = [0, 2], sizes = [8, 1], strides = [1, 1]} : vector<8x9xf32> to vector<8x1xf32>
    %403 = vector.broadcast %402 : vector<8x1xf32> to vector<8x16xf32>
    %404 = arith.mulf %401, %403 : vector<8x16xf32>
    %405 = arith.addf %400, %404 : vector<8x16xf32>
    %c0_123 = arith.constant 0 : index
    %c6_124 = arith.constant 6 : index
    %c0_125 = arith.constant 0 : index
    %406 = vector.load %arg9[%c0_123, %c6_124, %c0_125] : memref<8x18x18xf32, #tpu.memory_space<vmem>>, vector<8x1x18xf32>
    %407 = vector.shape_cast %406 : vector<8x1x18xf32> to vector<8x18xf32>
    %408 = vector.extract_strided_slice %407 {offsets = [0, 0], sizes = [8, 16], strides = [1, 1]} : vector<8x18xf32> to vector<8x16xf32>
    %409 = vector.extract_strided_slice %86 {offsets = [0, 3], sizes = [8, 1], strides = [1, 1]} : vector<8x9xf32> to vector<8x1xf32>
    %410 = vector.broadcast %409 : vector<8x1xf32> to vector<8x16xf32>
    %411 = arith.mulf %408, %410 : vector<8x16xf32>
    %412 = arith.addf %405, %411 : vector<8x16xf32>
    %413 = vector.extract_strided_slice %407 {offsets = [0, 1], sizes = [8, 16], strides = [1, 1]} : vector<8x18xf32> to vector<8x16xf32>
    %414 = vector.extract_strided_slice %86 {offsets = [0, 4], sizes = [8, 1], strides = [1, 1]} : vector<8x9xf32> to vector<8x1xf32>
    %415 = vector.broadcast %414 : vector<8x1xf32> to vector<8x16xf32>
    %416 = arith.mulf %413, %415 : vector<8x16xf32>
    %417 = arith.addf %412, %416 : vector<8x16xf32>
    %418 = vector.extract_strided_slice %407 {offsets = [0, 2], sizes = [8, 16], strides = [1, 1]} : vector<8x18xf32> to vector<8x16xf32>
    %419 = vector.extract_strided_slice %86 {offsets = [0, 5], sizes = [8, 1], strides = [1, 1]} : vector<8x9xf32> to vector<8x1xf32>
    %420 = vector.broadcast %419 : vector<8x1xf32> to vector<8x16xf32>
    %421 = arith.mulf %418, %420 : vector<8x16xf32>
    %422 = arith.addf %417, %421 : vector<8x16xf32>
    %c0_126 = arith.constant 0 : index
    %c7_127 = arith.constant 7 : index
    %c0_128 = arith.constant 0 : index
    %423 = vector.load %arg9[%c0_126, %c7_127, %c0_128] : memref<8x18x18xf32, #tpu.memory_space<vmem>>, vector<8x1x18xf32>
    %424 = vector.shape_cast %423 : vector<8x1x18xf32> to vector<8x18xf32>
    %425 = vector.extract_strided_slice %424 {offsets = [0, 0], sizes = [8, 16], strides = [1, 1]} : vector<8x18xf32> to vector<8x16xf32>
    %426 = vector.extract_strided_slice %86 {offsets = [0, 6], sizes = [8, 1], strides = [1, 1]} : vector<8x9xf32> to vector<8x1xf32>
    %427 = vector.broadcast %426 : vector<8x1xf32> to vector<8x16xf32>
    %428 = arith.mulf %425, %427 : vector<8x16xf32>
    %429 = arith.addf %422, %428 : vector<8x16xf32>
    %430 = vector.extract_strided_slice %424 {offsets = [0, 1], sizes = [8, 16], strides = [1, 1]} : vector<8x18xf32> to vector<8x16xf32>
    %431 = vector.extract_strided_slice %86 {offsets = [0, 7], sizes = [8, 1], strides = [1, 1]} : vector<8x9xf32> to vector<8x1xf32>
    %432 = vector.broadcast %431 : vector<8x1xf32> to vector<8x16xf32>
    %433 = arith.mulf %430, %432 : vector<8x16xf32>
    %434 = arith.addf %429, %433 : vector<8x16xf32>
    %435 = vector.extract_strided_slice %424 {offsets = [0, 2], sizes = [8, 16], strides = [1, 1]} : vector<8x18xf32> to vector<8x16xf32>
    %436 = vector.extract_strided_slice %86 {offsets = [0, 8], sizes = [8, 1], strides = [1, 1]} : vector<8x9xf32> to vector<8x1xf32>
    %437 = vector.broadcast %436 : vector<8x1xf32> to vector<8x16xf32>
    %438 = arith.mulf %435, %437 : vector<8x16xf32>
    %439 = arith.addf %434, %438 : vector<8x16xf32>
    %440 = vector.broadcast %87 : vector<8x1xf32> to vector<8x16xf32>
    %441 = arith.addf %439, %440 : vector<8x16xf32>
    %cst_129 = arith.constant 0.000000e+00 : f32
    %cst_130 = arith.constant 6.000000e+00 : f32
    %442 = vector.broadcast %cst_129 : f32 to vector<8x16xf32>
    %443 = arith.maximumf %442, %441 : vector<8x16xf32>
    %444 = vector.broadcast %cst_130 : f32 to vector<8x16xf32>
    %445 = arith.minimumf %444, %443 : vector<8x16xf32>
    %cst_131 = arith.constant 1.71337485 : f32
    %446 = vector.broadcast %cst_131 : f32 to vector<8x16xf32>
    %447 = arith.mulf %445, %446 : vector<8x16xf32>
    %c0_132 = arith.constant 0 : index
    %c80 = arith.constant 80 : index
    %448 = vector.load %arg10[%c0_132, %c80] : memref<8x256xf32, #tpu.memory_space<vmem>>, vector<8x16xf32>
    tpu.vector_store %arg10[%c0_132, %c80], %447 {strides = array<i32>} : memref<8x256xf32, #tpu.memory_space<vmem>>, vector<8x16xf32>,
    %c0_133 = arith.constant 0 : index
    %c6_134 = arith.constant 6 : index
    %c0_135 = arith.constant 0 : index
    %449 = vector.load %arg9[%c0_133, %c6_134, %c0_135] : memref<8x18x18xf32, #tpu.memory_space<vmem>>, vector<8x1x18xf32>
    %450 = vector.shape_cast %449 : vector<8x1x18xf32> to vector<8x18xf32>
    %451 = vector.extract_strided_slice %450 {offsets = [0, 0], sizes = [8, 16], strides = [1, 1]} : vector<8x18xf32> to vector<8x16xf32>
    %452 = vector.extract_strided_slice %86 {offsets = [0, 0], sizes = [8, 1], strides = [1, 1]} : vector<8x9xf32> to vector<8x1xf32>
    %453 = vector.broadcast %452 : vector<8x1xf32> to vector<8x16xf32>
    %454 = arith.mulf %451, %453 : vector<8x16xf32>
    %455 = arith.addf %88, %454 : vector<8x16xf32>
    %456 = vector.extract_strided_slice %450 {offsets = [0, 1], sizes = [8, 16], strides = [1, 1]} : vector<8x18xf32> to vector<8x16xf32>
    %457 = vector.extract_strided_slice %86 {offsets = [0, 1], sizes = [8, 1], strides = [1, 1]} : vector<8x9xf32> to vector<8x1xf32>
    %458 = vector.broadcast %457 : vector<8x1xf32> to vector<8x16xf32>
    %459 = arith.mulf %456, %458 : vector<8x16xf32>
    %460 = arith.addf %455, %459 : vector<8x16xf32>
    %461 = vector.extract_strided_slice %450 {offsets = [0, 2], sizes = [8, 16], strides = [1, 1]} : vector<8x18xf32> to vector<8x16xf32>
    %462 = vector.extract_strided_slice %86 {offsets = [0, 2], sizes = [8, 1], strides = [1, 1]} : vector<8x9xf32> to vector<8x1xf32>
    %463 = vector.broadcast %462 : vector<8x1xf32> to vector<8x16xf32>
    %464 = arith.mulf %461, %463 : vector<8x16xf32>
    %465 = arith.addf %460, %464 : vector<8x16xf32>
    %c0_136 = arith.constant 0 : index
    %c7_137 = arith.constant 7 : index
    %c0_138 = arith.constant 0 : index
    %466 = vector.load %arg9[%c0_136, %c7_137, %c0_138] : memref<8x18x18xf32, #tpu.memory_space<vmem>>, vector<8x1x18xf32>
    %467 = vector.shape_cast %466 : vector<8x1x18xf32> to vector<8x18xf32>
    %468 = vector.extract_strided_slice %467 {offsets = [0, 0], sizes = [8, 16], strides = [1, 1]} : vector<8x18xf32> to vector<8x16xf32>
    %469 = vector.extract_strided_slice %86 {offsets = [0, 3], sizes = [8, 1], strides = [1, 1]} : vector<8x9xf32> to vector<8x1xf32>
    %470 = vector.broadcast %469 : vector<8x1xf32> to vector<8x16xf32>
    %471 = arith.mulf %468, %470 : vector<8x16xf32>
    %472 = arith.addf %465, %471 : vector<8x16xf32>
    %473 = vector.extract_strided_slice %467 {offsets = [0, 1], sizes = [8, 16], strides = [1, 1]} : vector<8x18xf32> to vector<8x16xf32>
    %474 = vector.extract_strided_slice %86 {offsets = [0, 4], sizes = [8, 1], strides = [1, 1]} : vector<8x9xf32> to vector<8x1xf32>
    %475 = vector.broadcast %474 : vector<8x1xf32> to vector<8x16xf32>
    %476 = arith.mulf %473, %475 : vector<8x16xf32>
    %477 = arith.addf %472, %476 : vector<8x16xf32>
    %478 = vector.extract_strided_slice %467 {offsets = [0, 2], sizes = [8, 16], strides = [1, 1]} : vector<8x18xf32> to vector<8x16xf32>
    %479 = vector.extract_strided_slice %86 {offsets = [0, 5], sizes = [8, 1], strides = [1, 1]} : vector<8x9xf32> to vector<8x1xf32>
    %480 = vector.broadcast %479 : vector<8x1xf32> to vector<8x16xf32>
    %481 = arith.mulf %478, %480 : vector<8x16xf32>
    %482 = arith.addf %477, %481 : vector<8x16xf32>
    %c0_139 = arith.constant 0 : index
    %c8_140 = arith.constant 8 : index
    %c0_141 = arith.constant 0 : index
    %483 = vector.load %arg9[%c0_139, %c8_140, %c0_141] : memref<8x18x18xf32, #tpu.memory_space<vmem>>, vector<8x1x18xf32>
    %484 = vector.shape_cast %483 : vector<8x1x18xf32> to vector<8x18xf32>
    %485 = vector.extract_strided_slice %484 {offsets = [0, 0], sizes = [8, 16], strides = [1, 1]} : vector<8x18xf32> to vector<8x16xf32>
    %486 = vector.extract_strided_slice %86 {offsets = [0, 6], sizes = [8, 1], strides = [1, 1]} : vector<8x9xf32> to vector<8x1xf32>
    %487 = vector.broadcast %486 : vector<8x1xf32> to vector<8x16xf32>
    %488 = arith.mulf %485, %487 : vector<8x16xf32>
    %489 = arith.addf %482, %488 : vector<8x16xf32>
    %490 = vector.extract_strided_slice %484 {offsets = [0, 1], sizes = [8, 16], strides = [1, 1]} : vector<8x18xf32> to vector<8x16xf32>
    %491 = vector.extract_strided_slice %86 {offsets = [0, 7], sizes = [8, 1], strides = [1, 1]} : vector<8x9xf32> to vector<8x1xf32>
    %492 = vector.broadcast %491 : vector<8x1xf32> to vector<8x16xf32>
    %493 = arith.mulf %490, %492 : vector<8x16xf32>
    %494 = arith.addf %489, %493 : vector<8x16xf32>
    %495 = vector.extract_strided_slice %484 {offsets = [0, 2], sizes = [8, 16], strides = [1, 1]} : vector<8x18xf32> to vector<8x16xf32>
    %496 = vector.extract_strided_slice %86 {offsets = [0, 8], sizes = [8, 1], strides = [1, 1]} : vector<8x9xf32> to vector<8x1xf32>
    %497 = vector.broadcast %496 : vector<8x1xf32> to vector<8x16xf32>
    %498 = arith.mulf %495, %497 : vector<8x16xf32>
    %499 = arith.addf %494, %498 : vector<8x16xf32>
    %500 = vector.broadcast %87 : vector<8x1xf32> to vector<8x16xf32>
    %501 = arith.addf %499, %500 : vector<8x16xf32>
    %cst_142 = arith.constant 0.000000e+00 : f32
    %cst_143 = arith.constant 6.000000e+00 : f32
    %502 = vector.broadcast %cst_142 : f32 to vector<8x16xf32>
    %503 = arith.maximumf %502, %501 : vector<8x16xf32>
    %504 = vector.broadcast %cst_143 : f32 to vector<8x16xf32>
    %505 = arith.minimumf %504, %503 : vector<8x16xf32>
    %cst_144 = arith.constant 1.71337485 : f32
    %506 = vector.broadcast %cst_144 : f32 to vector<8x16xf32>
    %507 = arith.mulf %505, %506 : vector<8x16xf32>
    %c0_145 = arith.constant 0 : index
    %c96 = arith.constant 96 : index
    %508 = vector.load %arg10[%c0_145, %c96] : memref<8x256xf32, #tpu.memory_space<vmem>>, vector<8x16xf32>
    tpu.vector_store %arg10[%c0_145, %c96], %507 {strides = array<i32>} : memref<8x256xf32, #tpu.memory_space<vmem>>, vector<8x16xf32>,
    %c0_146 = arith.constant 0 : index
    %c7_147 = arith.constant 7 : index
    %c0_148 = arith.constant 0 : index
    %509 = vector.load %arg9[%c0_146, %c7_147, %c0_148] : memref<8x18x18xf32, #tpu.memory_space<vmem>>, vector<8x1x18xf32>
    %510 = vector.shape_cast %509 : vector<8x1x18xf32> to vector<8x18xf32>
    %511 = vector.extract_strided_slice %510 {offsets = [0, 0], sizes = [8, 16], strides = [1, 1]} : vector<8x18xf32> to vector<8x16xf32>
    %512 = vector.extract_strided_slice %86 {offsets = [0, 0], sizes = [8, 1], strides = [1, 1]} : vector<8x9xf32> to vector<8x1xf32>
    %513 = vector.broadcast %512 : vector<8x1xf32> to vector<8x16xf32>
    %514 = arith.mulf %511, %513 : vector<8x16xf32>
    %515 = arith.addf %88, %514 : vector<8x16xf32>
    %516 = vector.extract_strided_slice %510 {offsets = [0, 1], sizes = [8, 16], strides = [1, 1]} : vector<8x18xf32> to vector<8x16xf32>
    %517 = vector.extract_strided_slice %86 {offsets = [0, 1], sizes = [8, 1], strides = [1, 1]} : vector<8x9xf32> to vector<8x1xf32>
    %518 = vector.broadcast %517 : vector<8x1xf32> to vector<8x16xf32>
    %519 = arith.mulf %516, %518 : vector<8x16xf32>
    %520 = arith.addf %515, %519 : vector<8x16xf32>
    %521 = vector.extract_strided_slice %510 {offsets = [0, 2], sizes = [8, 16], strides = [1, 1]} : vector<8x18xf32> to vector<8x16xf32>
    %522 = vector.extract_strided_slice %86 {offsets = [0, 2], sizes = [8, 1], strides = [1, 1]} : vector<8x9xf32> to vector<8x1xf32>
    %523 = vector.broadcast %522 : vector<8x1xf32> to vector<8x16xf32>
    %524 = arith.mulf %521, %523 : vector<8x16xf32>
    %525 = arith.addf %520, %524 : vector<8x16xf32>
    %c0_149 = arith.constant 0 : index
    %c8_150 = arith.constant 8 : index
    %c0_151 = arith.constant 0 : index
    %526 = vector.load %arg9[%c0_149, %c8_150, %c0_151] : memref<8x18x18xf32, #tpu.memory_space<vmem>>, vector<8x1x18xf32>
    %527 = vector.shape_cast %526 : vector<8x1x18xf32> to vector<8x18xf32>
    %528 = vector.extract_strided_slice %527 {offsets = [0, 0], sizes = [8, 16], strides = [1, 1]} : vector<8x18xf32> to vector<8x16xf32>
    %529 = vector.extract_strided_slice %86 {offsets = [0, 3], sizes = [8, 1], strides = [1, 1]} : vector<8x9xf32> to vector<8x1xf32>
    %530 = vector.broadcast %529 : vector<8x1xf32> to vector<8x16xf32>
    %531 = arith.mulf %528, %530 : vector<8x16xf32>
    %532 = arith.addf %525, %531 : vector<8x16xf32>
    %533 = vector.extract_strided_slice %527 {offsets = [0, 1], sizes = [8, 16], strides = [1, 1]} : vector<8x18xf32> to vector<8x16xf32>
    %534 = vector.extract_strided_slice %86 {offsets = [0, 4], sizes = [8, 1], strides = [1, 1]} : vector<8x9xf32> to vector<8x1xf32>
    %535 = vector.broadcast %534 : vector<8x1xf32> to vector<8x16xf32>
    %536 = arith.mulf %533, %535 : vector<8x16xf32>
    %537 = arith.addf %532, %536 : vector<8x16xf32>
    %538 = vector.extract_strided_slice %527 {offsets = [0, 2], sizes = [8, 16], strides = [1, 1]} : vector<8x18xf32> to vector<8x16xf32>
    %539 = vector.extract_strided_slice %86 {offsets = [0, 5], sizes = [8, 1], strides = [1, 1]} : vector<8x9xf32> to vector<8x1xf32>
    %540 = vector.broadcast %539 : vector<8x1xf32> to vector<8x16xf32>
    %541 = arith.mulf %538, %540 : vector<8x16xf32>
    %542 = arith.addf %537, %541 : vector<8x16xf32>
    %c0_152 = arith.constant 0 : index
    %c9_153 = arith.constant 9 : index
    %c0_154 = arith.constant 0 : index
    %543 = vector.load %arg9[%c0_152, %c9_153, %c0_154] : memref<8x18x18xf32, #tpu.memory_space<vmem>>, vector<8x1x18xf32>
    %544 = vector.shape_cast %543 : vector<8x1x18xf32> to vector<8x18xf32>
    %545 = vector.extract_strided_slice %544 {offsets = [0, 0], sizes = [8, 16], strides = [1, 1]} : vector<8x18xf32> to vector<8x16xf32>
    %546 = vector.extract_strided_slice %86 {offsets = [0, 6], sizes = [8, 1], strides = [1, 1]} : vector<8x9xf32> to vector<8x1xf32>
    %547 = vector.broadcast %546 : vector<8x1xf32> to vector<8x16xf32>
    %548 = arith.mulf %545, %547 : vector<8x16xf32>
    %549 = arith.addf %542, %548 : vector<8x16xf32>
    %550 = vector.extract_strided_slice %544 {offsets = [0, 1], sizes = [8, 16], strides = [1, 1]} : vector<8x18xf32> to vector<8x16xf32>
    %551 = vector.extract_strided_slice %86 {offsets = [0, 7], sizes = [8, 1], strides = [1, 1]} : vector<8x9xf32> to vector<8x1xf32>
    %552 = vector.broadcast %551 : vector<8x1xf32> to vector<8x16xf32>
    %553 = arith.mulf %550, %552 : vector<8x16xf32>
    %554 = arith.addf %549, %553 : vector<8x16xf32>
    %555 = vector.extract_strided_slice %544 {offsets = [0, 2], sizes = [8, 16], strides = [1, 1]} : vector<8x18xf32> to vector<8x16xf32>
    %556 = vector.extract_strided_slice %86 {offsets = [0, 8], sizes = [8, 1], strides = [1, 1]} : vector<8x9xf32> to vector<8x1xf32>
    %557 = vector.broadcast %556 : vector<8x1xf32> to vector<8x16xf32>
    %558 = arith.mulf %555, %557 : vector<8x16xf32>
    %559 = arith.addf %554, %558 : vector<8x16xf32>
    %560 = vector.broadcast %87 : vector<8x1xf32> to vector<8x16xf32>
    %561 = arith.addf %559, %560 : vector<8x16xf32>
    %cst_155 = arith.constant 0.000000e+00 : f32
    %cst_156 = arith.constant 6.000000e+00 : f32
    %562 = vector.broadcast %cst_155 : f32 to vector<8x16xf32>
    %563 = arith.maximumf %562, %561 : vector<8x16xf32>
    %564 = vector.broadcast %cst_156 : f32 to vector<8x16xf32>
    %565 = arith.minimumf %564, %563 : vector<8x16xf32>
    %cst_157 = arith.constant 1.71337485 : f32
    %566 = vector.broadcast %cst_157 : f32 to vector<8x16xf32>
    %567 = arith.mulf %565, %566 : vector<8x16xf32>
    %c0_158 = arith.constant 0 : index
    %c112 = arith.constant 112 : index
    %568 = vector.load %arg10[%c0_158, %c112] : memref<8x256xf32, #tpu.memory_space<vmem>>, vector<8x16xf32>
    tpu.vector_store %arg10[%c0_158, %c112], %567 {strides = array<i32>} : memref<8x256xf32, #tpu.memory_space<vmem>>, vector<8x16xf32>,
    %c0_159 = arith.constant 0 : index
    %c8_160 = arith.constant 8 : index
    %c0_161 = arith.constant 0 : index
    %569 = vector.load %arg9[%c0_159, %c8_160, %c0_161] : memref<8x18x18xf32, #tpu.memory_space<vmem>>, vector<8x1x18xf32>
    %570 = vector.shape_cast %569 : vector<8x1x18xf32> to vector<8x18xf32>
    %571 = vector.extract_strided_slice %570 {offsets = [0, 0], sizes = [8, 16], strides = [1, 1]} : vector<8x18xf32> to vector<8x16xf32>
    %572 = vector.extract_strided_slice %86 {offsets = [0, 0], sizes = [8, 1], strides = [1, 1]} : vector<8x9xf32> to vector<8x1xf32>
    %573 = vector.broadcast %572 : vector<8x1xf32> to vector<8x16xf32>
    %574 = arith.mulf %571, %573 : vector<8x16xf32>
    %575 = arith.addf %88, %574 : vector<8x16xf32>
    %576 = vector.extract_strided_slice %570 {offsets = [0, 1], sizes = [8, 16], strides = [1, 1]} : vector<8x18xf32> to vector<8x16xf32>
    %577 = vector.extract_strided_slice %86 {offsets = [0, 1], sizes = [8, 1], strides = [1, 1]} : vector<8x9xf32> to vector<8x1xf32>
    %578 = vector.broadcast %577 : vector<8x1xf32> to vector<8x16xf32>
    %579 = arith.mulf %576, %578 : vector<8x16xf32>
    %580 = arith.addf %575, %579 : vector<8x16xf32>
    %581 = vector.extract_strided_slice %570 {offsets = [0, 2], sizes = [8, 16], strides = [1, 1]} : vector<8x18xf32> to vector<8x16xf32>
    %582 = vector.extract_strided_slice %86 {offsets = [0, 2], sizes = [8, 1], strides = [1, 1]} : vector<8x9xf32> to vector<8x1xf32>
    %583 = vector.broadcast %582 : vector<8x1xf32> to vector<8x16xf32>
    %584 = arith.mulf %581, %583 : vector<8x16xf32>
    %585 = arith.addf %580, %584 : vector<8x16xf32>
    %c0_162 = arith.constant 0 : index
    %c9_163 = arith.constant 9 : index
    %c0_164 = arith.constant 0 : index
    %586 = vector.load %arg9[%c0_162, %c9_163, %c0_164] : memref<8x18x18xf32, #tpu.memory_space<vmem>>, vector<8x1x18xf32>
    %587 = vector.shape_cast %586 : vector<8x1x18xf32> to vector<8x18xf32>
    %588 = vector.extract_strided_slice %587 {offsets = [0, 0], sizes = [8, 16], strides = [1, 1]} : vector<8x18xf32> to vector<8x16xf32>
    %589 = vector.extract_strided_slice %86 {offsets = [0, 3], sizes = [8, 1], strides = [1, 1]} : vector<8x9xf32> to vector<8x1xf32>
    %590 = vector.broadcast %589 : vector<8x1xf32> to vector<8x16xf32>
    %591 = arith.mulf %588, %590 : vector<8x16xf32>
    %592 = arith.addf %585, %591 : vector<8x16xf32>
    %593 = vector.extract_strided_slice %587 {offsets = [0, 1], sizes = [8, 16], strides = [1, 1]} : vector<8x18xf32> to vector<8x16xf32>
    %594 = vector.extract_strided_slice %86 {offsets = [0, 4], sizes = [8, 1], strides = [1, 1]} : vector<8x9xf32> to vector<8x1xf32>
    %595 = vector.broadcast %594 : vector<8x1xf32> to vector<8x16xf32>
    %596 = arith.mulf %593, %595 : vector<8x16xf32>
    %597 = arith.addf %592, %596 : vector<8x16xf32>
    %598 = vector.extract_strided_slice %587 {offsets = [0, 2], sizes = [8, 16], strides = [1, 1]} : vector<8x18xf32> to vector<8x16xf32>
    %599 = vector.extract_strided_slice %86 {offsets = [0, 5], sizes = [8, 1], strides = [1, 1]} : vector<8x9xf32> to vector<8x1xf32>
    %600 = vector.broadcast %599 : vector<8x1xf32> to vector<8x16xf32>
    %601 = arith.mulf %598, %600 : vector<8x16xf32>
    %602 = arith.addf %597, %601 : vector<8x16xf32>
    %c0_165 = arith.constant 0 : index
    %c10_166 = arith.constant 10 : index
    %c0_167 = arith.constant 0 : index
    %603 = vector.load %arg9[%c0_165, %c10_166, %c0_167] : memref<8x18x18xf32, #tpu.memory_space<vmem>>, vector<8x1x18xf32>
    %604 = vector.shape_cast %603 : vector<8x1x18xf32> to vector<8x18xf32>
    %605 = vector.extract_strided_slice %604 {offsets = [0, 0], sizes = [8, 16], strides = [1, 1]} : vector<8x18xf32> to vector<8x16xf32>
    %606 = vector.extract_strided_slice %86 {offsets = [0, 6], sizes = [8, 1], strides = [1, 1]} : vector<8x9xf32> to vector<8x1xf32>
    %607 = vector.broadcast %606 : vector<8x1xf32> to vector<8x16xf32>
    %608 = arith.mulf %605, %607 : vector<8x16xf32>
    %609 = arith.addf %602, %608 : vector<8x16xf32>
    %610 = vector.extract_strided_slice %604 {offsets = [0, 1], sizes = [8, 16], strides = [1, 1]} : vector<8x18xf32> to vector<8x16xf32>
    %611 = vector.extract_strided_slice %86 {offsets = [0, 7], sizes = [8, 1], strides = [1, 1]} : vector<8x9xf32> to vector<8x1xf32>
    %612 = vector.broadcast %611 : vector<8x1xf32> to vector<8x16xf32>
    %613 = arith.mulf %610, %612 : vector<8x16xf32>
    %614 = arith.addf %609, %613 : vector<8x16xf32>
    %615 = vector.extract_strided_slice %604 {offsets = [0, 2], sizes = [8, 16], strides = [1, 1]} : vector<8x18xf32> to vector<8x16xf32>
    %616 = vector.extract_strided_slice %86 {offsets = [0, 8], sizes = [8, 1], strides = [1, 1]} : vector<8x9xf32> to vector<8x1xf32>
    %617 = vector.broadcast %616 : vector<8x1xf32> to vector<8x16xf32>
    %618 = arith.mulf %615, %617 : vector<8x16xf32>
    %619 = arith.addf %614, %618 : vector<8x16xf32>
    %620 = vector.broadcast %87 : vector<8x1xf32> to vector<8x16xf32>
    %621 = arith.addf %619, %620 : vector<8x16xf32>
    %cst_168 = arith.constant 0.000000e+00 : f32
    %cst_169 = arith.constant 6.000000e+00 : f32
    %622 = vector.broadcast %cst_168 : f32 to vector<8x16xf32>
    %623 = arith.maximumf %622, %621 : vector<8x16xf32>
    %624 = vector.broadcast %cst_169 : f32 to vector<8x16xf32>
    %625 = arith.minimumf %624, %623 : vector<8x16xf32>
    %cst_170 = arith.constant 1.71337485 : f32
    %626 = vector.broadcast %cst_170 : f32 to vector<8x16xf32>
    %627 = arith.mulf %625, %626 : vector<8x16xf32>
    %c0_171 = arith.constant 0 : index
    %c128 = arith.constant 128 : index
    %628 = vector.load %arg10[%c0_171, %c128] : memref<8x256xf32, #tpu.memory_space<vmem>>, vector<8x16xf32>
    tpu.vector_store %arg10[%c0_171, %c128], %627 {strides = array<i32>} : memref<8x256xf32, #tpu.memory_space<vmem>>, vector<8x16xf32>,
    %c0_172 = arith.constant 0 : index
    %c9_173 = arith.constant 9 : index
    %c0_174 = arith.constant 0 : index
    %629 = vector.load %arg9[%c0_172, %c9_173, %c0_174] : memref<8x18x18xf32, #tpu.memory_space<vmem>>, vector<8x1x18xf32>
    %630 = vector.shape_cast %629 : vector<8x1x18xf32> to vector<8x18xf32>
    %631 = vector.extract_strided_slice %630 {offsets = [0, 0], sizes = [8, 16], strides = [1, 1]} : vector<8x18xf32> to vector<8x16xf32>
    %632 = vector.extract_strided_slice %86 {offsets = [0, 0], sizes = [8, 1], strides = [1, 1]} : vector<8x9xf32> to vector<8x1xf32>
    %633 = vector.broadcast %632 : vector<8x1xf32> to vector<8x16xf32>
    %634 = arith.mulf %631, %633 : vector<8x16xf32>
    %635 = arith.addf %88, %634 : vector<8x16xf32>
    %636 = vector.extract_strided_slice %630 {offsets = [0, 1], sizes = [8, 16], strides = [1, 1]} : vector<8x18xf32> to vector<8x16xf32>
    %637 = vector.extract_strided_slice %86 {offsets = [0, 1], sizes = [8, 1], strides = [1, 1]} : vector<8x9xf32> to vector<8x1xf32>
    %638 = vector.broadcast %637 : vector<8x1xf32> to vector<8x16xf32>
    %639 = arith.mulf %636, %638 : vector<8x16xf32>
    %640 = arith.addf %635, %639 : vector<8x16xf32>
    %641 = vector.extract_strided_slice %630 {offsets = [0, 2], sizes = [8, 16], strides = [1, 1]} : vector<8x18xf32> to vector<8x16xf32>
    %642 = vector.extract_strided_slice %86 {offsets = [0, 2], sizes = [8, 1], strides = [1, 1]} : vector<8x9xf32> to vector<8x1xf32>
    %643 = vector.broadcast %642 : vector<8x1xf32> to vector<8x16xf32>
    %644 = arith.mulf %641, %643 : vector<8x16xf32>
    %645 = arith.addf %640, %644 : vector<8x16xf32>
    %c0_175 = arith.constant 0 : index
    %c10_176 = arith.constant 10 : index
    %c0_177 = arith.constant 0 : index
    %646 = vector.load %arg9[%c0_175, %c10_176, %c0_177] : memref<8x18x18xf32, #tpu.memory_space<vmem>>, vector<8x1x18xf32>
    %647 = vector.shape_cast %646 : vector<8x1x18xf32> to vector<8x18xf32>
    %648 = vector.extract_strided_slice %647 {offsets = [0, 0], sizes = [8, 16], strides = [1, 1]} : vector<8x18xf32> to vector<8x16xf32>
    %649 = vector.extract_strided_slice %86 {offsets = [0, 3], sizes = [8, 1], strides = [1, 1]} : vector<8x9xf32> to vector<8x1xf32>
    %650 = vector.broadcast %649 : vector<8x1xf32> to vector<8x16xf32>
    %651 = arith.mulf %648, %650 : vector<8x16xf32>
    %652 = arith.addf %645, %651 : vector<8x16xf32>
    %653 = vector.extract_strided_slice %647 {offsets = [0, 1], sizes = [8, 16], strides = [1, 1]} : vector<8x18xf32> to vector<8x16xf32>
    %654 = vector.extract_strided_slice %86 {offsets = [0, 4], sizes = [8, 1], strides = [1, 1]} : vector<8x9xf32> to vector<8x1xf32>
    %655 = vector.broadcast %654 : vector<8x1xf32> to vector<8x16xf32>
    %656 = arith.mulf %653, %655 : vector<8x16xf32>
    %657 = arith.addf %652, %656 : vector<8x16xf32>
    %658 = vector.extract_strided_slice %647 {offsets = [0, 2], sizes = [8, 16], strides = [1, 1]} : vector<8x18xf32> to vector<8x16xf32>
    %659 = vector.extract_strided_slice %86 {offsets = [0, 5], sizes = [8, 1], strides = [1, 1]} : vector<8x9xf32> to vector<8x1xf32>
    %660 = vector.broadcast %659 : vector<8x1xf32> to vector<8x16xf32>
    %661 = arith.mulf %658, %660 : vector<8x16xf32>
    %662 = arith.addf %657, %661 : vector<8x16xf32>
    %c0_178 = arith.constant 0 : index
    %c11_179 = arith.constant 11 : index
    %c0_180 = arith.constant 0 : index
    %663 = vector.load %arg9[%c0_178, %c11_179, %c0_180] : memref<8x18x18xf32, #tpu.memory_space<vmem>>, vector<8x1x18xf32>
    %664 = vector.shape_cast %663 : vector<8x1x18xf32> to vector<8x18xf32>
    %665 = vector.extract_strided_slice %664 {offsets = [0, 0], sizes = [8, 16], strides = [1, 1]} : vector<8x18xf32> to vector<8x16xf32>
    %666 = vector.extract_strided_slice %86 {offsets = [0, 6], sizes = [8, 1], strides = [1, 1]} : vector<8x9xf32> to vector<8x1xf32>
    %667 = vector.broadcast %666 : vector<8x1xf32> to vector<8x16xf32>
    %668 = arith.mulf %665, %667 : vector<8x16xf32>
    %669 = arith.addf %662, %668 : vector<8x16xf32>
    %670 = vector.extract_strided_slice %664 {offsets = [0, 1], sizes = [8, 16], strides = [1, 1]} : vector<8x18xf32> to vector<8x16xf32>
    %671 = vector.extract_strided_slice %86 {offsets = [0, 7], sizes = [8, 1], strides = [1, 1]} : vector<8x9xf32> to vector<8x1xf32>
    %672 = vector.broadcast %671 : vector<8x1xf32> to vector<8x16xf32>
    %673 = arith.mulf %670, %672 : vector<8x16xf32>
    %674 = arith.addf %669, %673 : vector<8x16xf32>
    %675 = vector.extract_strided_slice %664 {offsets = [0, 2], sizes = [8, 16], strides = [1, 1]} : vector<8x18xf32> to vector<8x16xf32>
    %676 = vector.extract_strided_slice %86 {offsets = [0, 8], sizes = [8, 1], strides = [1, 1]} : vector<8x9xf32> to vector<8x1xf32>
    %677 = vector.broadcast %676 : vector<8x1xf32> to vector<8x16xf32>
    %678 = arith.mulf %675, %677 : vector<8x16xf32>
    %679 = arith.addf %674, %678 : vector<8x16xf32>
    %680 = vector.broadcast %87 : vector<8x1xf32> to vector<8x16xf32>
    %681 = arith.addf %679, %680 : vector<8x16xf32>
    %cst_181 = arith.constant 0.000000e+00 : f32
    %cst_182 = arith.constant 6.000000e+00 : f32
    %682 = vector.broadcast %cst_181 : f32 to vector<8x16xf32>
    %683 = arith.maximumf %682, %681 : vector<8x16xf32>
    %684 = vector.broadcast %cst_182 : f32 to vector<8x16xf32>
    %685 = arith.minimumf %684, %683 : vector<8x16xf32>
    %cst_183 = arith.constant 1.71337485 : f32
    %686 = vector.broadcast %cst_183 : f32 to vector<8x16xf32>
    %687 = arith.mulf %685, %686 : vector<8x16xf32>
    %c0_184 = arith.constant 0 : index
    %c144 = arith.constant 144 : index
    %688 = vector.load %arg10[%c0_184, %c144] : memref<8x256xf32, #tpu.memory_space<vmem>>, vector<8x16xf32>
    tpu.vector_store %arg10[%c0_184, %c144], %687 {strides = array<i32>} : memref<8x256xf32, #tpu.memory_space<vmem>>, vector<8x16xf32>,
    %c0_185 = arith.constant 0 : index
    %c10_186 = arith.constant 10 : index
    %c0_187 = arith.constant 0 : index
    %689 = vector.load %arg9[%c0_185, %c10_186, %c0_187] : memref<8x18x18xf32, #tpu.memory_space<vmem>>, vector<8x1x18xf32>
    %690 = vector.shape_cast %689 : vector<8x1x18xf32> to vector<8x18xf32>
    %691 = vector.extract_strided_slice %690 {offsets = [0, 0], sizes = [8, 16], strides = [1, 1]} : vector<8x18xf32> to vector<8x16xf32>
    %692 = vector.extract_strided_slice %86 {offsets = [0, 0], sizes = [8, 1], strides = [1, 1]} : vector<8x9xf32> to vector<8x1xf32>
    %693 = vector.broadcast %692 : vector<8x1xf32> to vector<8x16xf32>
    %694 = arith.mulf %691, %693 : vector<8x16xf32>
    %695 = arith.addf %88, %694 : vector<8x16xf32>
    %696 = vector.extract_strided_slice %690 {offsets = [0, 1], sizes = [8, 16], strides = [1, 1]} : vector<8x18xf32> to vector<8x16xf32>
    %697 = vector.extract_strided_slice %86 {offsets = [0, 1], sizes = [8, 1], strides = [1, 1]} : vector<8x9xf32> to vector<8x1xf32>
    %698 = vector.broadcast %697 : vector<8x1xf32> to vector<8x16xf32>
    %699 = arith.mulf %696, %698 : vector<8x16xf32>
    %700 = arith.addf %695, %699 : vector<8x16xf32>
    %701 = vector.extract_strided_slice %690 {offsets = [0, 2], sizes = [8, 16], strides = [1, 1]} : vector<8x18xf32> to vector<8x16xf32>
    %702 = vector.extract_strided_slice %86 {offsets = [0, 2], sizes = [8, 1], strides = [1, 1]} : vector<8x9xf32> to vector<8x1xf32>
    %703 = vector.broadcast %702 : vector<8x1xf32> to vector<8x16xf32>
    %704 = arith.mulf %701, %703 : vector<8x16xf32>
    %705 = arith.addf %700, %704 : vector<8x16xf32>
    %c0_188 = arith.constant 0 : index
    %c11_189 = arith.constant 11 : index
    %c0_190 = arith.constant 0 : index
    %706 = vector.load %arg9[%c0_188, %c11_189, %c0_190] : memref<8x18x18xf32, #tpu.memory_space<vmem>>, vector<8x1x18xf32>
    %707 = vector.shape_cast %706 : vector<8x1x18xf32> to vector<8x18xf32>
    %708 = vector.extract_strided_slice %707 {offsets = [0, 0], sizes = [8, 16], strides = [1, 1]} : vector<8x18xf32> to vector<8x16xf32>
    %709 = vector.extract_strided_slice %86 {offsets = [0, 3], sizes = [8, 1], strides = [1, 1]} : vector<8x9xf32> to vector<8x1xf32>
    %710 = vector.broadcast %709 : vector<8x1xf32> to vector<8x16xf32>
    %711 = arith.mulf %708, %710 : vector<8x16xf32>
    %712 = arith.addf %705, %711 : vector<8x16xf32>
    %713 = vector.extract_strided_slice %707 {offsets = [0, 1], sizes = [8, 16], strides = [1, 1]} : vector<8x18xf32> to vector<8x16xf32>
    %714 = vector.extract_strided_slice %86 {offsets = [0, 4], sizes = [8, 1], strides = [1, 1]} : vector<8x9xf32> to vector<8x1xf32>
    %715 = vector.broadcast %714 : vector<8x1xf32> to vector<8x16xf32>
    %716 = arith.mulf %713, %715 : vector<8x16xf32>
    %717 = arith.addf %712, %716 : vector<8x16xf32>
    %718 = vector.extract_strided_slice %707 {offsets = [0, 2], sizes = [8, 16], strides = [1, 1]} : vector<8x18xf32> to vector<8x16xf32>
    %719 = vector.extract_strided_slice %86 {offsets = [0, 5], sizes = [8, 1], strides = [1, 1]} : vector<8x9xf32> to vector<8x1xf32>
    %720 = vector.broadcast %719 : vector<8x1xf32> to vector<8x16xf32>
    %721 = arith.mulf %718, %720 : vector<8x16xf32>
    %722 = arith.addf %717, %721 : vector<8x16xf32>
    %c0_191 = arith.constant 0 : index
    %c12_192 = arith.constant 12 : index
    %c0_193 = arith.constant 0 : index
    %723 = vector.load %arg9[%c0_191, %c12_192, %c0_193] : memref<8x18x18xf32, #tpu.memory_space<vmem>>, vector<8x1x18xf32>
    %724 = vector.shape_cast %723 : vector<8x1x18xf32> to vector<8x18xf32>
    %725 = vector.extract_strided_slice %724 {offsets = [0, 0], sizes = [8, 16], strides = [1, 1]} : vector<8x18xf32> to vector<8x16xf32>
    %726 = vector.extract_strided_slice %86 {offsets = [0, 6], sizes = [8, 1], strides = [1, 1]} : vector<8x9xf32> to vector<8x1xf32>
    %727 = vector.broadcast %726 : vector<8x1xf32> to vector<8x16xf32>
    %728 = arith.mulf %725, %727 : vector<8x16xf32>
    %729 = arith.addf %722, %728 : vector<8x16xf32>
    %730 = vector.extract_strided_slice %724 {offsets = [0, 1], sizes = [8, 16], strides = [1, 1]} : vector<8x18xf32> to vector<8x16xf32>
    %731 = vector.extract_strided_slice %86 {offsets = [0, 7], sizes = [8, 1], strides = [1, 1]} : vector<8x9xf32> to vector<8x1xf32>
    %732 = vector.broadcast %731 : vector<8x1xf32> to vector<8x16xf32>
    %733 = arith.mulf %730, %732 : vector<8x16xf32>
    %734 = arith.addf %729, %733 : vector<8x16xf32>
    %735 = vector.extract_strided_slice %724 {offsets = [0, 2], sizes = [8, 16], strides = [1, 1]} : vector<8x18xf32> to vector<8x16xf32>
    %736 = vector.extract_strided_slice %86 {offsets = [0, 8], sizes = [8, 1], strides = [1, 1]} : vector<8x9xf32> to vector<8x1xf32>
    %737 = vector.broadcast %736 : vector<8x1xf32> to vector<8x16xf32>
    %738 = arith.mulf %735, %737 : vector<8x16xf32>
    %739 = arith.addf %734, %738 : vector<8x16xf32>
    %740 = vector.broadcast %87 : vector<8x1xf32> to vector<8x16xf32>
    %741 = arith.addf %739, %740 : vector<8x16xf32>
    %cst_194 = arith.constant 0.000000e+00 : f32
    %cst_195 = arith.constant 6.000000e+00 : f32
    %742 = vector.broadcast %cst_194 : f32 to vector<8x16xf32>
    %743 = arith.maximumf %742, %741 : vector<8x16xf32>
    %744 = vector.broadcast %cst_195 : f32 to vector<8x16xf32>
    %745 = arith.minimumf %744, %743 : vector<8x16xf32>
    %cst_196 = arith.constant 1.71337485 : f32
    %746 = vector.broadcast %cst_196 : f32 to vector<8x16xf32>
    %747 = arith.mulf %745, %746 : vector<8x16xf32>
    %c0_197 = arith.constant 0 : index
    %c160 = arith.constant 160 : index
    %748 = vector.load %arg10[%c0_197, %c160] : memref<8x256xf32, #tpu.memory_space<vmem>>, vector<8x16xf32>
    tpu.vector_store %arg10[%c0_197, %c160], %747 {strides = array<i32>} : memref<8x256xf32, #tpu.memory_space<vmem>>, vector<8x16xf32>,
    %c0_198 = arith.constant 0 : index
    %c11_199 = arith.constant 11 : index
    %c0_200 = arith.constant 0 : index
    %749 = vector.load %arg9[%c0_198, %c11_199, %c0_200] : memref<8x18x18xf32, #tpu.memory_space<vmem>>, vector<8x1x18xf32>
    %750 = vector.shape_cast %749 : vector<8x1x18xf32> to vector<8x18xf32>
    %751 = vector.extract_strided_slice %750 {offsets = [0, 0], sizes = [8, 16], strides = [1, 1]} : vector<8x18xf32> to vector<8x16xf32>
    %752 = vector.extract_strided_slice %86 {offsets = [0, 0], sizes = [8, 1], strides = [1, 1]} : vector<8x9xf32> to vector<8x1xf32>
    %753 = vector.broadcast %752 : vector<8x1xf32> to vector<8x16xf32>
    %754 = arith.mulf %751, %753 : vector<8x16xf32>
    %755 = arith.addf %88, %754 : vector<8x16xf32>
    %756 = vector.extract_strided_slice %750 {offsets = [0, 1], sizes = [8, 16], strides = [1, 1]} : vector<8x18xf32> to vector<8x16xf32>
    %757 = vector.extract_strided_slice %86 {offsets = [0, 1], sizes = [8, 1], strides = [1, 1]} : vector<8x9xf32> to vector<8x1xf32>
    %758 = vector.broadcast %757 : vector<8x1xf32> to vector<8x16xf32>
    %759 = arith.mulf %756, %758 : vector<8x16xf32>
    %760 = arith.addf %755, %759 : vector<8x16xf32>
    %761 = vector.extract_strided_slice %750 {offsets = [0, 2], sizes = [8, 16], strides = [1, 1]} : vector<8x18xf32> to vector<8x16xf32>
    %762 = vector.extract_strided_slice %86 {offsets = [0, 2], sizes = [8, 1], strides = [1, 1]} : vector<8x9xf32> to vector<8x1xf32>
    %763 = vector.broadcast %762 : vector<8x1xf32> to vector<8x16xf32>
    %764 = arith.mulf %761, %763 : vector<8x16xf32>
    %765 = arith.addf %760, %764 : vector<8x16xf32>
    %c0_201 = arith.constant 0 : index
    %c12_202 = arith.constant 12 : index
    %c0_203 = arith.constant 0 : index
    %766 = vector.load %arg9[%c0_201, %c12_202, %c0_203] : memref<8x18x18xf32, #tpu.memory_space<vmem>>, vector<8x1x18xf32>
    %767 = vector.shape_cast %766 : vector<8x1x18xf32> to vector<8x18xf32>
    %768 = vector.extract_strided_slice %767 {offsets = [0, 0], sizes = [8, 16], strides = [1, 1]} : vector<8x18xf32> to vector<8x16xf32>
    %769 = vector.extract_strided_slice %86 {offsets = [0, 3], sizes = [8, 1], strides = [1, 1]} : vector<8x9xf32> to vector<8x1xf32>
    %770 = vector.broadcast %769 : vector<8x1xf32> to vector<8x16xf32>
    %771 = arith.mulf %768, %770 : vector<8x16xf32>
    %772 = arith.addf %765, %771 : vector<8x16xf32>
    %773 = vector.extract_strided_slice %767 {offsets = [0, 1], sizes = [8, 16], strides = [1, 1]} : vector<8x18xf32> to vector<8x16xf32>
    %774 = vector.extract_strided_slice %86 {offsets = [0, 4], sizes = [8, 1], strides = [1, 1]} : vector<8x9xf32> to vector<8x1xf32>
    %775 = vector.broadcast %774 : vector<8x1xf32> to vector<8x16xf32>
    %776 = arith.mulf %773, %775 : vector<8x16xf32>
    %777 = arith.addf %772, %776 : vector<8x16xf32>
    %778 = vector.extract_strided_slice %767 {offsets = [0, 2], sizes = [8, 16], strides = [1, 1]} : vector<8x18xf32> to vector<8x16xf32>
    %779 = vector.extract_strided_slice %86 {offsets = [0, 5], sizes = [8, 1], strides = [1, 1]} : vector<8x9xf32> to vector<8x1xf32>
    %780 = vector.broadcast %779 : vector<8x1xf32> to vector<8x16xf32>
    %781 = arith.mulf %778, %780 : vector<8x16xf32>
    %782 = arith.addf %777, %781 : vector<8x16xf32>
    %c0_204 = arith.constant 0 : index
    %c13_205 = arith.constant 13 : index
    %c0_206 = arith.constant 0 : index
    %783 = vector.load %arg9[%c0_204, %c13_205, %c0_206] : memref<8x18x18xf32, #tpu.memory_space<vmem>>, vector<8x1x18xf32>
    %784 = vector.shape_cast %783 : vector<8x1x18xf32> to vector<8x18xf32>
    %785 = vector.extract_strided_slice %784 {offsets = [0, 0], sizes = [8, 16], strides = [1, 1]} : vector<8x18xf32> to vector<8x16xf32>
    %786 = vector.extract_strided_slice %86 {offsets = [0, 6], sizes = [8, 1], strides = [1, 1]} : vector<8x9xf32> to vector<8x1xf32>
    %787 = vector.broadcast %786 : vector<8x1xf32> to vector<8x16xf32>
    %788 = arith.mulf %785, %787 : vector<8x16xf32>
    %789 = arith.addf %782, %788 : vector<8x16xf32>
    %790 = vector.extract_strided_slice %784 {offsets = [0, 1], sizes = [8, 16], strides = [1, 1]} : vector<8x18xf32> to vector<8x16xf32>
    %791 = vector.extract_strided_slice %86 {offsets = [0, 7], sizes = [8, 1], strides = [1, 1]} : vector<8x9xf32> to vector<8x1xf32>
    %792 = vector.broadcast %791 : vector<8x1xf32> to vector<8x16xf32>
    %793 = arith.mulf %790, %792 : vector<8x16xf32>
    %794 = arith.addf %789, %793 : vector<8x16xf32>
    %795 = vector.extract_strided_slice %784 {offsets = [0, 2], sizes = [8, 16], strides = [1, 1]} : vector<8x18xf32> to vector<8x16xf32>
    %796 = vector.extract_strided_slice %86 {offsets = [0, 8], sizes = [8, 1], strides = [1, 1]} : vector<8x9xf32> to vector<8x1xf32>
    %797 = vector.broadcast %796 : vector<8x1xf32> to vector<8x16xf32>
    %798 = arith.mulf %795, %797 : vector<8x16xf32>
    %799 = arith.addf %794, %798 : vector<8x16xf32>
    %800 = vector.broadcast %87 : vector<8x1xf32> to vector<8x16xf32>
    %801 = arith.addf %799, %800 : vector<8x16xf32>
    %cst_207 = arith.constant 0.000000e+00 : f32
    %cst_208 = arith.constant 6.000000e+00 : f32
    %802 = vector.broadcast %cst_207 : f32 to vector<8x16xf32>
    %803 = arith.maximumf %802, %801 : vector<8x16xf32>
    %804 = vector.broadcast %cst_208 : f32 to vector<8x16xf32>
    %805 = arith.minimumf %804, %803 : vector<8x16xf32>
    %cst_209 = arith.constant 1.71337485 : f32
    %806 = vector.broadcast %cst_209 : f32 to vector<8x16xf32>
    %807 = arith.mulf %805, %806 : vector<8x16xf32>
    %c0_210 = arith.constant 0 : index
    %c176 = arith.constant 176 : index
    %808 = vector.load %arg10[%c0_210, %c176] : memref<8x256xf32, #tpu.memory_space<vmem>>, vector<8x16xf32>
    tpu.vector_store %arg10[%c0_210, %c176], %807 {strides = array<i32>} : memref<8x256xf32, #tpu.memory_space<vmem>>, vector<8x16xf32>,
    %c0_211 = arith.constant 0 : index
    %c12_212 = arith.constant 12 : index
    %c0_213 = arith.constant 0 : index
    %809 = vector.load %arg9[%c0_211, %c12_212, %c0_213] : memref<8x18x18xf32, #tpu.memory_space<vmem>>, vector<8x1x18xf32>
    %810 = vector.shape_cast %809 : vector<8x1x18xf32> to vector<8x18xf32>
    %811 = vector.extract_strided_slice %810 {offsets = [0, 0], sizes = [8, 16], strides = [1, 1]} : vector<8x18xf32> to vector<8x16xf32>
    %812 = vector.extract_strided_slice %86 {offsets = [0, 0], sizes = [8, 1], strides = [1, 1]} : vector<8x9xf32> to vector<8x1xf32>
    %813 = vector.broadcast %812 : vector<8x1xf32> to vector<8x16xf32>
    %814 = arith.mulf %811, %813 : vector<8x16xf32>
    %815 = arith.addf %88, %814 : vector<8x16xf32>
    %816 = vector.extract_strided_slice %810 {offsets = [0, 1], sizes = [8, 16], strides = [1, 1]} : vector<8x18xf32> to vector<8x16xf32>
    %817 = vector.extract_strided_slice %86 {offsets = [0, 1], sizes = [8, 1], strides = [1, 1]} : vector<8x9xf32> to vector<8x1xf32>
    %818 = vector.broadcast %817 : vector<8x1xf32> to vector<8x16xf32>
    %819 = arith.mulf %816, %818 : vector<8x16xf32>
    %820 = arith.addf %815, %819 : vector<8x16xf32>
    %821 = vector.extract_strided_slice %810 {offsets = [0, 2], sizes = [8, 16], strides = [1, 1]} : vector<8x18xf32> to vector<8x16xf32>
    %822 = vector.extract_strided_slice %86 {offsets = [0, 2], sizes = [8, 1], strides = [1, 1]} : vector<8x9xf32> to vector<8x1xf32>
    %823 = vector.broadcast %822 : vector<8x1xf32> to vector<8x16xf32>
    %824 = arith.mulf %821, %823 : vector<8x16xf32>
    %825 = arith.addf %820, %824 : vector<8x16xf32>
    %c0_214 = arith.constant 0 : index
    %c13_215 = arith.constant 13 : index
    %c0_216 = arith.constant 0 : index
    %826 = vector.load %arg9[%c0_214, %c13_215, %c0_216] : memref<8x18x18xf32, #tpu.memory_space<vmem>>, vector<8x1x18xf32>
    %827 = vector.shape_cast %826 : vector<8x1x18xf32> to vector<8x18xf32>
    %828 = vector.extract_strided_slice %827 {offsets = [0, 0], sizes = [8, 16], strides = [1, 1]} : vector<8x18xf32> to vector<8x16xf32>
    %829 = vector.extract_strided_slice %86 {offsets = [0, 3], sizes = [8, 1], strides = [1, 1]} : vector<8x9xf32> to vector<8x1xf32>
    %830 = vector.broadcast %829 : vector<8x1xf32> to vector<8x16xf32>
    %831 = arith.mulf %828, %830 : vector<8x16xf32>
    %832 = arith.addf %825, %831 : vector<8x16xf32>
    %833 = vector.extract_strided_slice %827 {offsets = [0, 1], sizes = [8, 16], strides = [1, 1]} : vector<8x18xf32> to vector<8x16xf32>
    %834 = vector.extract_strided_slice %86 {offsets = [0, 4], sizes = [8, 1], strides = [1, 1]} : vector<8x9xf32> to vector<8x1xf32>
    %835 = vector.broadcast %834 : vector<8x1xf32> to vector<8x16xf32>
    %836 = arith.mulf %833, %835 : vector<8x16xf32>
    %837 = arith.addf %832, %836 : vector<8x16xf32>
    %838 = vector.extract_strided_slice %827 {offsets = [0, 2], sizes = [8, 16], strides = [1, 1]} : vector<8x18xf32> to vector<8x16xf32>
    %839 = vector.extract_strided_slice %86 {offsets = [0, 5], sizes = [8, 1], strides = [1, 1]} : vector<8x9xf32> to vector<8x1xf32>
    %840 = vector.broadcast %839 : vector<8x1xf32> to vector<8x16xf32>
    %841 = arith.mulf %838, %840 : vector<8x16xf32>
    %842 = arith.addf %837, %841 : vector<8x16xf32>
    %c0_217 = arith.constant 0 : index
    %c14_218 = arith.constant 14 : index
    %c0_219 = arith.constant 0 : index
    %843 = vector.load %arg9[%c0_217, %c14_218, %c0_219] : memref<8x18x18xf32, #tpu.memory_space<vmem>>, vector<8x1x18xf32>
    %844 = vector.shape_cast %843 : vector<8x1x18xf32> to vector<8x18xf32>
    %845 = vector.extract_strided_slice %844 {offsets = [0, 0], sizes = [8, 16], strides = [1, 1]} : vector<8x18xf32> to vector<8x16xf32>
    %846 = vector.extract_strided_slice %86 {offsets = [0, 6], sizes = [8, 1], strides = [1, 1]} : vector<8x9xf32> to vector<8x1xf32>
    %847 = vector.broadcast %846 : vector<8x1xf32> to vector<8x16xf32>
    %848 = arith.mulf %845, %847 : vector<8x16xf32>
    %849 = arith.addf %842, %848 : vector<8x16xf32>
    %850 = vector.extract_strided_slice %844 {offsets = [0, 1], sizes = [8, 16], strides = [1, 1]} : vector<8x18xf32> to vector<8x16xf32>
    %851 = vector.extract_strided_slice %86 {offsets = [0, 7], sizes = [8, 1], strides = [1, 1]} : vector<8x9xf32> to vector<8x1xf32>
    %852 = vector.broadcast %851 : vector<8x1xf32> to vector<8x16xf32>
    %853 = arith.mulf %850, %852 : vector<8x16xf32>
    %854 = arith.addf %849, %853 : vector<8x16xf32>
    %855 = vector.extract_strided_slice %844 {offsets = [0, 2], sizes = [8, 16], strides = [1, 1]} : vector<8x18xf32> to vector<8x16xf32>
    %856 = vector.extract_strided_slice %86 {offsets = [0, 8], sizes = [8, 1], strides = [1, 1]} : vector<8x9xf32> to vector<8x1xf32>
    %857 = vector.broadcast %856 : vector<8x1xf32> to vector<8x16xf32>
    %858 = arith.mulf %855, %857 : vector<8x16xf32>
    %859 = arith.addf %854, %858 : vector<8x16xf32>
    %860 = vector.broadcast %87 : vector<8x1xf32> to vector<8x16xf32>
    %861 = arith.addf %859, %860 : vector<8x16xf32>
    %cst_220 = arith.constant 0.000000e+00 : f32
    %cst_221 = arith.constant 6.000000e+00 : f32
    %862 = vector.broadcast %cst_220 : f32 to vector<8x16xf32>
    %863 = arith.maximumf %862, %861 : vector<8x16xf32>
    %864 = vector.broadcast %cst_221 : f32 to vector<8x16xf32>
    %865 = arith.minimumf %864, %863 : vector<8x16xf32>
    %cst_222 = arith.constant 1.71337485 : f32
    %866 = vector.broadcast %cst_222 : f32 to vector<8x16xf32>
    %867 = arith.mulf %865, %866 : vector<8x16xf32>
    %c0_223 = arith.constant 0 : index
    %c192 = arith.constant 192 : index
    %868 = vector.load %arg10[%c0_223, %c192] : memref<8x256xf32, #tpu.memory_space<vmem>>, vector<8x16xf32>
    tpu.vector_store %arg10[%c0_223, %c192], %867 {strides = array<i32>} : memref<8x256xf32, #tpu.memory_space<vmem>>, vector<8x16xf32>,
    %c0_224 = arith.constant 0 : index
    %c13_225 = arith.constant 13 : index
    %c0_226 = arith.constant 0 : index
    %869 = vector.load %arg9[%c0_224, %c13_225, %c0_226] : memref<8x18x18xf32, #tpu.memory_space<vmem>>, vector<8x1x18xf32>
    %870 = vector.shape_cast %869 : vector<8x1x18xf32> to vector<8x18xf32>
    %871 = vector.extract_strided_slice %870 {offsets = [0, 0], sizes = [8, 16], strides = [1, 1]} : vector<8x18xf32> to vector<8x16xf32>
    %872 = vector.extract_strided_slice %86 {offsets = [0, 0], sizes = [8, 1], strides = [1, 1]} : vector<8x9xf32> to vector<8x1xf32>
    %873 = vector.broadcast %872 : vector<8x1xf32> to vector<8x16xf32>
    %874 = arith.mulf %871, %873 : vector<8x16xf32>
    %875 = arith.addf %88, %874 : vector<8x16xf32>
    %876 = vector.extract_strided_slice %870 {offsets = [0, 1], sizes = [8, 16], strides = [1, 1]} : vector<8x18xf32> to vector<8x16xf32>
    %877 = vector.extract_strided_slice %86 {offsets = [0, 1], sizes = [8, 1], strides = [1, 1]} : vector<8x9xf32> to vector<8x1xf32>
    %878 = vector.broadcast %877 : vector<8x1xf32> to vector<8x16xf32>
    %879 = arith.mulf %876, %878 : vector<8x16xf32>
    %880 = arith.addf %875, %879 : vector<8x16xf32>
    %881 = vector.extract_strided_slice %870 {offsets = [0, 2], sizes = [8, 16], strides = [1, 1]} : vector<8x18xf32> to vector<8x16xf32>
    %882 = vector.extract_strided_slice %86 {offsets = [0, 2], sizes = [8, 1], strides = [1, 1]} : vector<8x9xf32> to vector<8x1xf32>
    %883 = vector.broadcast %882 : vector<8x1xf32> to vector<8x16xf32>
    %884 = arith.mulf %881, %883 : vector<8x16xf32>
    %885 = arith.addf %880, %884 : vector<8x16xf32>
    %c0_227 = arith.constant 0 : index
    %c14_228 = arith.constant 14 : index
    %c0_229 = arith.constant 0 : index
    %886 = vector.load %arg9[%c0_227, %c14_228, %c0_229] : memref<8x18x18xf32, #tpu.memory_space<vmem>>, vector<8x1x18xf32>
    %887 = vector.shape_cast %886 : vector<8x1x18xf32> to vector<8x18xf32>
    %888 = vector.extract_strided_slice %887 {offsets = [0, 0], sizes = [8, 16], strides = [1, 1]} : vector<8x18xf32> to vector<8x16xf32>
    %889 = vector.extract_strided_slice %86 {offsets = [0, 3], sizes = [8, 1], strides = [1, 1]} : vector<8x9xf32> to vector<8x1xf32>
    %890 = vector.broadcast %889 : vector<8x1xf32> to vector<8x16xf32>
    %891 = arith.mulf %888, %890 : vector<8x16xf32>
    %892 = arith.addf %885, %891 : vector<8x16xf32>
    %893 = vector.extract_strided_slice %887 {offsets = [0, 1], sizes = [8, 16], strides = [1, 1]} : vector<8x18xf32> to vector<8x16xf32>
    %894 = vector.extract_strided_slice %86 {offsets = [0, 4], sizes = [8, 1], strides = [1, 1]} : vector<8x9xf32> to vector<8x1xf32>
    %895 = vector.broadcast %894 : vector<8x1xf32> to vector<8x16xf32>
    %896 = arith.mulf %893, %895 : vector<8x16xf32>
    %897 = arith.addf %892, %896 : vector<8x16xf32>
    %898 = vector.extract_strided_slice %887 {offsets = [0, 2], sizes = [8, 16], strides = [1, 1]} : vector<8x18xf32> to vector<8x16xf32>
    %899 = vector.extract_strided_slice %86 {offsets = [0, 5], sizes = [8, 1], strides = [1, 1]} : vector<8x9xf32> to vector<8x1xf32>
    %900 = vector.broadcast %899 : vector<8x1xf32> to vector<8x16xf32>
    %901 = arith.mulf %898, %900 : vector<8x16xf32>
    %902 = arith.addf %897, %901 : vector<8x16xf32>
    %c0_230 = arith.constant 0 : index
    %c15_231 = arith.constant 15 : index
    %c0_232 = arith.constant 0 : index
    %903 = vector.load %arg9[%c0_230, %c15_231, %c0_232] : memref<8x18x18xf32, #tpu.memory_space<vmem>>, vector<8x1x18xf32>
    %904 = vector.shape_cast %903 : vector<8x1x18xf32> to vector<8x18xf32>
    %905 = vector.extract_strided_slice %904 {offsets = [0, 0], sizes = [8, 16], strides = [1, 1]} : vector<8x18xf32> to vector<8x16xf32>
    %906 = vector.extract_strided_slice %86 {offsets = [0, 6], sizes = [8, 1], strides = [1, 1]} : vector<8x9xf32> to vector<8x1xf32>
    %907 = vector.broadcast %906 : vector<8x1xf32> to vector<8x16xf32>
    %908 = arith.mulf %905, %907 : vector<8x16xf32>
    %909 = arith.addf %902, %908 : vector<8x16xf32>
    %910 = vector.extract_strided_slice %904 {offsets = [0, 1], sizes = [8, 16], strides = [1, 1]} : vector<8x18xf32> to vector<8x16xf32>
    %911 = vector.extract_strided_slice %86 {offsets = [0, 7], sizes = [8, 1], strides = [1, 1]} : vector<8x9xf32> to vector<8x1xf32>
    %912 = vector.broadcast %911 : vector<8x1xf32> to vector<8x16xf32>
    %913 = arith.mulf %910, %912 : vector<8x16xf32>
    %914 = arith.addf %909, %913 : vector<8x16xf32>
    %915 = vector.extract_strided_slice %904 {offsets = [0, 2], sizes = [8, 16], strides = [1, 1]} : vector<8x18xf32> to vector<8x16xf32>
    %916 = vector.extract_strided_slice %86 {offsets = [0, 8], sizes = [8, 1], strides = [1, 1]} : vector<8x9xf32> to vector<8x1xf32>
    %917 = vector.broadcast %916 : vector<8x1xf32> to vector<8x16xf32>
    %918 = arith.mulf %915, %917 : vector<8x16xf32>
    %919 = arith.addf %914, %918 : vector<8x16xf32>
    %920 = vector.broadcast %87 : vector<8x1xf32> to vector<8x16xf32>
    %921 = arith.addf %919, %920 : vector<8x16xf32>
    %cst_233 = arith.constant 0.000000e+00 : f32
    %cst_234 = arith.constant 6.000000e+00 : f32
    %922 = vector.broadcast %cst_233 : f32 to vector<8x16xf32>
    %923 = arith.maximumf %922, %921 : vector<8x16xf32>
    %924 = vector.broadcast %cst_234 : f32 to vector<8x16xf32>
    %925 = arith.minimumf %924, %923 : vector<8x16xf32>
    %cst_235 = arith.constant 1.71337485 : f32
    %926 = vector.broadcast %cst_235 : f32 to vector<8x16xf32>
    %927 = arith.mulf %925, %926 : vector<8x16xf32>
    %c0_236 = arith.constant 0 : index
    %c208 = arith.constant 208 : index
    %928 = vector.load %arg10[%c0_236, %c208] : memref<8x256xf32, #tpu.memory_space<vmem>>, vector<8x16xf32>
    tpu.vector_store %arg10[%c0_236, %c208], %927 {strides = array<i32>} : memref<8x256xf32, #tpu.memory_space<vmem>>, vector<8x16xf32>,
    %c0_237 = arith.constant 0 : index
    %c14_238 = arith.constant 14 : index
    %c0_239 = arith.constant 0 : index
    %929 = vector.load %arg9[%c0_237, %c14_238, %c0_239] : memref<8x18x18xf32, #tpu.memory_space<vmem>>, vector<8x1x18xf32>
    %930 = vector.shape_cast %929 : vector<8x1x18xf32> to vector<8x18xf32>
    %931 = vector.extract_strided_slice %930 {offsets = [0, 0], sizes = [8, 16], strides = [1, 1]} : vector<8x18xf32> to vector<8x16xf32>
    %932 = vector.extract_strided_slice %86 {offsets = [0, 0], sizes = [8, 1], strides = [1, 1]} : vector<8x9xf32> to vector<8x1xf32>
    %933 = vector.broadcast %932 : vector<8x1xf32> to vector<8x16xf32>
    %934 = arith.mulf %931, %933 : vector<8x16xf32>
    %935 = arith.addf %88, %934 : vector<8x16xf32>
    %936 = vector.extract_strided_slice %930 {offsets = [0, 1], sizes = [8, 16], strides = [1, 1]} : vector<8x18xf32> to vector<8x16xf32>
    %937 = vector.extract_strided_slice %86 {offsets = [0, 1], sizes = [8, 1], strides = [1, 1]} : vector<8x9xf32> to vector<8x1xf32>
    %938 = vector.broadcast %937 : vector<8x1xf32> to vector<8x16xf32>
    %939 = arith.mulf %936, %938 : vector<8x16xf32>
    %940 = arith.addf %935, %939 : vector<8x16xf32>
    %941 = vector.extract_strided_slice %930 {offsets = [0, 2], sizes = [8, 16], strides = [1, 1]} : vector<8x18xf32> to vector<8x16xf32>
    %942 = vector.extract_strided_slice %86 {offsets = [0, 2], sizes = [8, 1], strides = [1, 1]} : vector<8x9xf32> to vector<8x1xf32>
    %943 = vector.broadcast %942 : vector<8x1xf32> to vector<8x16xf32>
    %944 = arith.mulf %941, %943 : vector<8x16xf32>
    %945 = arith.addf %940, %944 : vector<8x16xf32>
    %c0_240 = arith.constant 0 : index
    %c15_241 = arith.constant 15 : index
    %c0_242 = arith.constant 0 : index
    %946 = vector.load %arg9[%c0_240, %c15_241, %c0_242] : memref<8x18x18xf32, #tpu.memory_space<vmem>>, vector<8x1x18xf32>
    %947 = vector.shape_cast %946 : vector<8x1x18xf32> to vector<8x18xf32>
    %948 = vector.extract_strided_slice %947 {offsets = [0, 0], sizes = [8, 16], strides = [1, 1]} : vector<8x18xf32> to vector<8x16xf32>
    %949 = vector.extract_strided_slice %86 {offsets = [0, 3], sizes = [8, 1], strides = [1, 1]} : vector<8x9xf32> to vector<8x1xf32>
    %950 = vector.broadcast %949 : vector<8x1xf32> to vector<8x16xf32>
    %951 = arith.mulf %948, %950 : vector<8x16xf32>
    %952 = arith.addf %945, %951 : vector<8x16xf32>
    %953 = vector.extract_strided_slice %947 {offsets = [0, 1], sizes = [8, 16], strides = [1, 1]} : vector<8x18xf32> to vector<8x16xf32>
    %954 = vector.extract_strided_slice %86 {offsets = [0, 4], sizes = [8, 1], strides = [1, 1]} : vector<8x9xf32> to vector<8x1xf32>
    %955 = vector.broadcast %954 : vector<8x1xf32> to vector<8x16xf32>
    %956 = arith.mulf %953, %955 : vector<8x16xf32>
    %957 = arith.addf %952, %956 : vector<8x16xf32>
    %958 = vector.extract_strided_slice %947 {offsets = [0, 2], sizes = [8, 16], strides = [1, 1]} : vector<8x18xf32> to vector<8x16xf32>
    %959 = vector.extract_strided_slice %86 {offsets = [0, 5], sizes = [8, 1], strides = [1, 1]} : vector<8x9xf32> to vector<8x1xf32>
    %960 = vector.broadcast %959 : vector<8x1xf32> to vector<8x16xf32>
    %961 = arith.mulf %958, %960 : vector<8x16xf32>
    %962 = arith.addf %957, %961 : vector<8x16xf32>
    %c0_243 = arith.constant 0 : index
    %c16_244 = arith.constant 16 : index
    %c0_245 = arith.constant 0 : index
    %963 = vector.load %arg9[%c0_243, %c16_244, %c0_245] : memref<8x18x18xf32, #tpu.memory_space<vmem>>, vector<8x1x18xf32>
    %964 = vector.shape_cast %963 : vector<8x1x18xf32> to vector<8x18xf32>
    %965 = vector.extract_strided_slice %964 {offsets = [0, 0], sizes = [8, 16], strides = [1, 1]} : vector<8x18xf32> to vector<8x16xf32>
    %966 = vector.extract_strided_slice %86 {offsets = [0, 6], sizes = [8, 1], strides = [1, 1]} : vector<8x9xf32> to vector<8x1xf32>
    %967 = vector.broadcast %966 : vector<8x1xf32> to vector<8x16xf32>
    %968 = arith.mulf %965, %967 : vector<8x16xf32>
    %969 = arith.addf %962, %968 : vector<8x16xf32>
    %970 = vector.extract_strided_slice %964 {offsets = [0, 1], sizes = [8, 16], strides = [1, 1]} : vector<8x18xf32> to vector<8x16xf32>
    %971 = vector.extract_strided_slice %86 {offsets = [0, 7], sizes = [8, 1], strides = [1, 1]} : vector<8x9xf32> to vector<8x1xf32>
    %972 = vector.broadcast %971 : vector<8x1xf32> to vector<8x16xf32>
    %973 = arith.mulf %970, %972 : vector<8x16xf32>
    %974 = arith.addf %969, %973 : vector<8x16xf32>
    %975 = vector.extract_strided_slice %964 {offsets = [0, 2], sizes = [8, 16], strides = [1, 1]} : vector<8x18xf32> to vector<8x16xf32>
    %976 = vector.extract_strided_slice %86 {offsets = [0, 8], sizes = [8, 1], strides = [1, 1]} : vector<8x9xf32> to vector<8x1xf32>
    %977 = vector.broadcast %976 : vector<8x1xf32> to vector<8x16xf32>
    %978 = arith.mulf %975, %977 : vector<8x16xf32>
    %979 = arith.addf %974, %978 : vector<8x16xf32>
    %980 = vector.broadcast %87 : vector<8x1xf32> to vector<8x16xf32>
    %981 = arith.addf %979, %980 : vector<8x16xf32>
    %cst_246 = arith.constant 0.000000e+00 : f32
    %cst_247 = arith.constant 6.000000e+00 : f32
    %982 = vector.broadcast %cst_246 : f32 to vector<8x16xf32>
    %983 = arith.maximumf %982, %981 : vector<8x16xf32>
    %984 = vector.broadcast %cst_247 : f32 to vector<8x16xf32>
    %985 = arith.minimumf %984, %983 : vector<8x16xf32>
    %cst_248 = arith.constant 1.71337485 : f32
    %986 = vector.broadcast %cst_248 : f32 to vector<8x16xf32>
    %987 = arith.mulf %985, %986 : vector<8x16xf32>
    %c0_249 = arith.constant 0 : index
    %c224 = arith.constant 224 : index
    %988 = vector.load %arg10[%c0_249, %c224] : memref<8x256xf32, #tpu.memory_space<vmem>>, vector<8x16xf32>
    tpu.vector_store %arg10[%c0_249, %c224], %987 {strides = array<i32>} : memref<8x256xf32, #tpu.memory_space<vmem>>, vector<8x16xf32>,
    %c0_250 = arith.constant 0 : index
    %c15_251 = arith.constant 15 : index
    %c0_252 = arith.constant 0 : index
    %989 = vector.load %arg9[%c0_250, %c15_251, %c0_252] : memref<8x18x18xf32, #tpu.memory_space<vmem>>, vector<8x1x18xf32>
    %990 = vector.shape_cast %989 : vector<8x1x18xf32> to vector<8x18xf32>
    %991 = vector.extract_strided_slice %990 {offsets = [0, 0], sizes = [8, 16], strides = [1, 1]} : vector<8x18xf32> to vector<8x16xf32>
    %992 = vector.extract_strided_slice %86 {offsets = [0, 0], sizes = [8, 1], strides = [1, 1]} : vector<8x9xf32> to vector<8x1xf32>
    %993 = vector.broadcast %992 : vector<8x1xf32> to vector<8x16xf32>
    %994 = arith.mulf %991, %993 : vector<8x16xf32>
    %995 = arith.addf %88, %994 : vector<8x16xf32>
    %996 = vector.extract_strided_slice %990 {offsets = [0, 1], sizes = [8, 16], strides = [1, 1]} : vector<8x18xf32> to vector<8x16xf32>
    %997 = vector.extract_strided_slice %86 {offsets = [0, 1], sizes = [8, 1], strides = [1, 1]} : vector<8x9xf32> to vector<8x1xf32>
    %998 = vector.broadcast %997 : vector<8x1xf32> to vector<8x16xf32>
    %999 = arith.mulf %996, %998 : vector<8x16xf32>
    %1000 = arith.addf %995, %999 : vector<8x16xf32>
    %1001 = vector.extract_strided_slice %990 {offsets = [0, 2], sizes = [8, 16], strides = [1, 1]} : vector<8x18xf32> to vector<8x16xf32>
    %1002 = vector.extract_strided_slice %86 {offsets = [0, 2], sizes = [8, 1], strides = [1, 1]} : vector<8x9xf32> to vector<8x1xf32>
    %1003 = vector.broadcast %1002 : vector<8x1xf32> to vector<8x16xf32>
    %1004 = arith.mulf %1001, %1003 : vector<8x16xf32>
    %1005 = arith.addf %1000, %1004 : vector<8x16xf32>
    %c0_253 = arith.constant 0 : index
    %c16_254 = arith.constant 16 : index
    %c0_255 = arith.constant 0 : index
    %1006 = vector.load %arg9[%c0_253, %c16_254, %c0_255] : memref<8x18x18xf32, #tpu.memory_space<vmem>>, vector<8x1x18xf32>
    %1007 = vector.shape_cast %1006 : vector<8x1x18xf32> to vector<8x18xf32>
    %1008 = vector.extract_strided_slice %1007 {offsets = [0, 0], sizes = [8, 16], strides = [1, 1]} : vector<8x18xf32> to vector<8x16xf32>
    %1009 = vector.extract_strided_slice %86 {offsets = [0, 3], sizes = [8, 1], strides = [1, 1]} : vector<8x9xf32> to vector<8x1xf32>
    %1010 = vector.broadcast %1009 : vector<8x1xf32> to vector<8x16xf32>
    %1011 = arith.mulf %1008, %1010 : vector<8x16xf32>
    %1012 = arith.addf %1005, %1011 : vector<8x16xf32>
    %1013 = vector.extract_strided_slice %1007 {offsets = [0, 1], sizes = [8, 16], strides = [1, 1]} : vector<8x18xf32> to vector<8x16xf32>
    %1014 = vector.extract_strided_slice %86 {offsets = [0, 4], sizes = [8, 1], strides = [1, 1]} : vector<8x9xf32> to vector<8x1xf32>
    %1015 = vector.broadcast %1014 : vector<8x1xf32> to vector<8x16xf32>
    %1016 = arith.mulf %1013, %1015 : vector<8x16xf32>
    %1017 = arith.addf %1012, %1016 : vector<8x16xf32>
    %1018 = vector.extract_strided_slice %1007 {offsets = [0, 2], sizes = [8, 16], strides = [1, 1]} : vector<8x18xf32> to vector<8x16xf32>
    %1019 = vector.extract_strided_slice %86 {offsets = [0, 5], sizes = [8, 1], strides = [1, 1]} : vector<8x9xf32> to vector<8x1xf32>
    %1020 = vector.broadcast %1019 : vector<8x1xf32> to vector<8x16xf32>
    %1021 = arith.mulf %1018, %1020 : vector<8x16xf32>
    %1022 = arith.addf %1017, %1021 : vector<8x16xf32>
    %c0_256 = arith.constant 0 : index
    %c17 = arith.constant 17 : index
    %c0_257 = arith.constant 0 : index
    %1023 = vector.load %arg9[%c0_256, %c17, %c0_257] : memref<8x18x18xf32, #tpu.memory_space<vmem>>, vector<8x1x18xf32>
    %1024 = vector.shape_cast %1023 : vector<8x1x18xf32> to vector<8x18xf32>
    %1025 = vector.extract_strided_slice %1024 {offsets = [0, 0], sizes = [8, 16], strides = [1, 1]} : vector<8x18xf32> to vector<8x16xf32>
    %1026 = vector.extract_strided_slice %86 {offsets = [0, 6], sizes = [8, 1], strides = [1, 1]} : vector<8x9xf32> to vector<8x1xf32>
    %1027 = vector.broadcast %1026 : vector<8x1xf32> to vector<8x16xf32>
    %1028 = arith.mulf %1025, %1027 : vector<8x16xf32>
    %1029 = arith.addf %1022, %1028 : vector<8x16xf32>
    %1030 = vector.extract_strided_slice %1024 {offsets = [0, 1], sizes = [8, 16], strides = [1, 1]} : vector<8x18xf32> to vector<8x16xf32>
    %1031 = vector.extract_strided_slice %86 {offsets = [0, 7], sizes = [8, 1], strides = [1, 1]} : vector<8x9xf32> to vector<8x1xf32>
    %1032 = vector.broadcast %1031 : vector<8x1xf32> to vector<8x16xf32>
    %1033 = arith.mulf %1030, %1032 : vector<8x16xf32>
    %1034 = arith.addf %1029, %1033 : vector<8x16xf32>
    %1035 = vector.extract_strided_slice %1024 {offsets = [0, 2], sizes = [8, 16], strides = [1, 1]} : vector<8x18xf32> to vector<8x16xf32>
    %1036 = vector.extract_strided_slice %86 {offsets = [0, 8], sizes = [8, 1], strides = [1, 1]} : vector<8x9xf32> to vector<8x1xf32>
    %1037 = vector.broadcast %1036 : vector<8x1xf32> to vector<8x16xf32>
    %1038 = arith.mulf %1035, %1037 : vector<8x16xf32>
    %1039 = arith.addf %1034, %1038 : vector<8x16xf32>
    %1040 = vector.broadcast %87 : vector<8x1xf32> to vector<8x16xf32>
    %1041 = arith.addf %1039, %1040 : vector<8x16xf32>
    %cst_258 = arith.constant 0.000000e+00 : f32
    %cst_259 = arith.constant 6.000000e+00 : f32
    %1042 = vector.broadcast %cst_258 : f32 to vector<8x16xf32>
    %1043 = arith.maximumf %1042, %1041 : vector<8x16xf32>
    %1044 = vector.broadcast %cst_259 : f32 to vector<8x16xf32>
    %1045 = arith.minimumf %1044, %1043 : vector<8x16xf32>
    %cst_260 = arith.constant 1.71337485 : f32
    %1046 = vector.broadcast %cst_260 : f32 to vector<8x16xf32>
    %1047 = arith.mulf %1045, %1046 : vector<8x16xf32>
    %c0_261 = arith.constant 0 : index
    %c240 = arith.constant 240 : index
    %1048 = vector.load %arg10[%c0_261, %c240] : memref<8x256xf32, #tpu.memory_space<vmem>>, vector<8x16xf32>
    tpu.vector_store %arg10[%c0_261, %c240], %1047 {strides = array<i32>} : memref<8x256xf32, #tpu.memory_space<vmem>>, vector<8x16xf32>,
    %c0_262 = arith.constant 0 : index
    %c0_263 = arith.constant 0 : index
    %1049 = vector.load %arg6[%c0_262, %c0_263] : memref<4x8xbf16, #tpu.memory_space<vmem>>, vector<4x8xbf16>
    %c0_264 = arith.constant 0 : index
    %c0_265 = arith.constant 0 : index
    %1050 = vector.load %arg10[%c0_264, %c0_265] : memref<8x256xf32, #tpu.memory_space<vmem>>, vector<8x256xf32>
    %1051 = arith.truncf %1050 : vector<8x256xf32> to vector<8x256xbf16>
    %cst_266 = arith.constant dense<0.000000e+00> : vector<4x256xf32>
    %1052 = tpu.matmul %1049, %1051, %cst_266 {dimension_numbers = #tpu.dot_dimension_numbers<[1], [0], [0], [1], [0, 0, 1, 1], [], []>} : vector<4x8xbf16>, vector<8x256xbf16>, vector<4x256xf32> -> vector<4x256xf32>
    %c0_267 = arith.constant 0 : index
    %c0_268 = arith.constant 0 : index
    %1053 = vector.load %arg7[%c0_267, %c0_268] : memref<4x1xf32, #tpu.memory_space<vmem>>, vector<4x1xf32>
    %1054 = vector.broadcast %1053 : vector<4x1xf32> to vector<4x256xf32>
    %1055 = arith.addf %1052, %1054 : vector<4x256xf32>
    %cst_269 = arith.constant 2.000000e-01 : f32
    %1056 = vector.broadcast %cst_269 : f32 to vector<4x256xf32>
    %1057 = arith.mulf %1055, %1056 : vector<4x256xf32>
    %1058 = arith.addf %1057, %7 : vector<4x256xf32>
    %c0_270 = arith.constant 0 : index
    %c0_271 = arith.constant 0 : index
    %c0_272 = arith.constant 0 : index
    %1059 = vector.load %arg8[%c0_270, %c0_271, %c0_272] : memref<1x4x256xf32, #tpu.memory_space<vmem>>, vector<1x4x256xf32>
    %1060 = vector.shape_cast %1059 : vector<1x4x256xf32> to vector<4x256xf32>
    %1061 = vector.shape_cast %1058 : vector<4x256xf32> to vector<1x4x256xf32>
    tpu.vector_store %arg8[%c0_270, %c0_271, %c0_272], %1061 {strides = array<i32>} : memref<1x4x256xf32, #tpu.memory_space<vmem>>, vector<1x4x256xf32>,
    return
  }
  func.func @transform_0(%arg0: i32) -> (i32, i32, i32) {
    %c0_i32 = arith.constant 0 : i32
    %c0_i32_0 = arith.constant 0 : i32
    %c0_i32_1 = arith.constant 0 : i32
    return %arg0, %c0_i32, %c0_i32_0 : i32, i32, i32
  }
  func.func @transform_1(%arg0: i32) -> (i32, i32) {
    %c0_i32 = arith.constant 0 : i32
    %c0_i32_0 = arith.constant 0 : i32
    %c0_i32_1 = arith.constant 0 : i32
    return %c0_i32, %c0_i32_0 : i32, i32
  }
  func.func @transform_2(%arg0: i32) -> (i32, i32) {
    %c0_i32 = arith.constant 0 : i32
    %c0_i32_0 = arith.constant 0 : i32
    %c0_i32_1 = arith.constant 0 : i32
    return %c0_i32, %c0_i32_0 : i32, i32
  }
  func.func @transform_3(%arg0: i32) -> (i32, i32) {
    %c0_i32 = arith.constant 0 : i32
    %c0_i32_0 = arith.constant 0 : i32
    %c0_i32_1 = arith.constant 0 : i32
    return %c0_i32, %c0_i32_0 : i32, i32
  }
  func.func @transform_4(%arg0: i32) -> (i32, i32) {
    %c0_i32 = arith.constant 0 : i32
    %c0_i32_0 = arith.constant 0 : i32
    %c0_i32_1 = arith.constant 0 : i32
    return %c0_i32, %c0_i32_0 : i32, i32
  }
  func.func @transform_5(%arg0: i32) -> (i32, i32) {
    %c0_i32 = arith.constant 0 : i32
    %c0_i32_0 = arith.constant 0 : i32
    %c0_i32_1 = arith.constant 0 : i32
    return %c0_i32, %c0_i32_0 : i32, i32
  }
  func.func @transform_6(%arg0: i32) -> (i32, i32) {
    %c0_i32 = arith.constant 0 : i32
    %c0_i32_0 = arith.constant 0 : i32
    %c0_i32_1 = arith.constant 0 : i32
    return %c0_i32, %c0_i32_0 : i32, i32
  }
  func.func @transform_7(%arg0: i32) -> (i32, i32, i32) {
    %c0_i32 = arith.constant 0 : i32
    %c0_i32_0 = arith.constant 0 : i32
    %c0_i32_1 = arith.constant 0 : i32
    return %arg0, %c0_i32, %c0_i32_0 : i32, i32, i32
  }
}

</mosaic_0001>

<llo_original>
// kernel: tpu_custom_call.1
$region0: #{tpu_custom_call.1}
  #allocation0 [shape = 'u32[]', space=smem, size = 0x4, offset = 0x4, fixed_abs, tag = 'smem constant byte address 0x4 - core index']
  #allocation1 [shape = 'u32[72,128]{1,0:T(1,128)}', space=vmem, size = 0x9000, scoped, tag = 'internal scratch']
  #allocation2 [shape = 'f32[8,18,18]{2,1,0:T(8,128)}', space=vmem, size = 0x18000, scoped, tag = 'scratch operand']
  #allocation3 [shape = 'f32[8,256]{1,0:T(8,128)}', space=vmem, size = 0x2000, scoped, tag = 'scratch operand']
  %s0 = inlined_call_operand.vmem [shape: f32[2,4,256], index: 0, kind: input, shape index: {}]
  %s1 = inlined_call_operand.vmem [shape: bf16[8,4], index: 1, kind: input, shape index: {}]
  %s2 = inlined_call_operand.vmem [shape: f32[8,1], index: 2, kind: input, shape index: {}]
  %s3 = inlined_call_operand.vmem [shape: f32[8,9], index: 3, kind: input, shape index: {}]
  %s4 = inlined_call_operand.vmem [shape: f32[8,1], index: 4, kind: input, shape index: {}]
  %s5 = inlined_call_operand.vmem [shape: bf16[4,8], index: 5, kind: input, shape index: {}]
  %s6 = inlined_call_operand.vmem [shape: f32[4,1], index: 6, kind: input, shape index: {}]
  %s7 = inlined_call_operand.hbm [shape: f32[2,4,256], index: 7, kind: output, shape index: {}]
  %s8 = sld [smem:[#allocation0]]
  $region61: #{tpu_custom_call.1} parent=0
    _
  %s10 = ssub.s32 1, %s8
  %s11 = scalar_select 0, %s10, %s8
  $region1: #{tpu_custom_call.1} parent=0
    #allocation4 [shape = 'u8[8192]{0}', space=vmem, size = 0x2000, scoped, tag = 'output window, operand 0']
    #allocation5 [shape = 's32[2]{0}', space=sflag, size = 0x8, scoped, tag = 'scoped memory for tpu_custom_call.1']
    %12 = vsyncpa [#allocation5], 0
    %s13 = scalar_lea.sflag [#allocation5], 1
    %14 = vsyncpa %s13, 0
    loop: start=0, step=1, limit=4
    $region2: #{tpu_custom_call.1} parent=1 // loop_pre_header
      _
    $region3: #{tpu_custom_call.1} parent=1 // loop_header
      %s16 = sphi 0, %s20
      %p17 = scmp.ge.s32.totalorder %s16, 4
      %s26 = sphi 0, %s28
      %s29 = sphi 0, %s26
      %s30 = sphi 0, %s29
      %s46 = sphi 0, %s30
      %s50 = sphi 0, %s50
      %s52 = sphi 0, %s50
      %s53 = sphi 0, %s52
      %s67 = sphi 0, %s53
      %s71 = sphi 0, %s71
      %s73 = sphi 0, %s71
      %s74 = sphi 0, %s73
      %s88 = sphi 0, %s74
      %s92 = sphi 0, %s92
      %s94 = sphi 0, %s92
      %s95 = sphi 0, %s94
      %s109 = sphi 0, %s95
      %s113 = sphi 0, %s113
      %s115 = sphi 0, %s113
      %s116 = sphi 0, %s115
      %s130 = sphi 0, %s116
      %s134 = sphi 0, %s134
      %s136 = sphi 0, %s134
      %s137 = sphi 0, %s136
      %s151 = sphi 0, %s137
      %s155 = sphi 0, %s155
      %s157 = sphi 0, %s155
      %s158 = sphi 0, %s157
      %s172 = sphi 0, %s158
      %s178 = sphi 0, %s180
      %s181 = sphi 0, %s178
      %s182 = sphi 0, %s181
      %s198 = sphi 0, %s182
    $region4: #{tpu_custom_call.1} parent=1 // loop_header_branch
      %19 = sbr.rel (%p17) target = $region8
    $region5: #{tpu_custom_call.1} parent=1 // loop_body
      %s21 = ssub.s32 %s16, 1
      %s22 = ssub.s32 %s16, 2
      %s23 = sadd.s32 %s16, 1
      %s24 = ssub.s32 %s16, %s23
      %p25 = scmp.eq.s32.totalorder %s24, 0
      %s27 = sadd.s32 %s26, 1
      %s28 = scalar_select %p25, %s26, %s27
      %p31 = pneg %p25
      %p32 = scmp.eq.s32.totalorder %s16, 1
      %p33 = por %p31, %p32
      %p34 = scmp.ne.s32.totalorder %s26, %s29
      %p35 = scmp.eq.s32.totalorder %s16, 0
      %p36 = por %p34, %p35
      %p37 = scmp.ne.s32.totalorder %s26, %s29
      %p38 = scmp.eq.s32.totalorder %s21, 1
      %p39 = por %p37, %p38
      %p40 = scmp.ne.s32.totalorder %s29, %s30
      %p41 = scmp.eq.s32.totalorder %s21, 0
      %p42 = por %p40, %p41
      %p43 = scmp.ne.s32.totalorder %s29, %s30
      %p44 = scmp.eq.s32.totalorder %s22, 1
      %p45 = por %p43, %p44
      %p47 = scmp.ne.s32.totalorder %s30, %s46
      %p48 = scmp.eq.s32.totalorder %s22, 0
      %p49 = por %p47, %p48
      %s51 = sadd.s32 %s50, 1
      %p54 = scmp.eq.s32.totalorder %s16, 1
      %p55 = scmp.ne.s32.totalorder %s50, %s52
      %p56 = scmp.eq.s32.totalorder %s16, 0
      %p57 = por %p55, %p56
      %p58 = scmp.ne.s32.totalorder %s50, %s52
      %p59 = scmp.eq.s32.totalorder %s21, 1
      %p60 = por %p58, %p59
      %p61 = scmp.ne.s32.totalorder %s52, %s53
      %p62 = scmp.eq.s32.totalorder %s21, 0
      %p63 = por %p61, %p62
      %p64 = scmp.ne.s32.totalorder %s52, %s53
      %p65 = scmp.eq.s32.totalorder %s22, 1
      %p66 = por %p64, %p65
      %p68 = scmp.ne.s32.totalorder %s53, %s67
      %p69 = scmp.eq.s32.totalorder %s22, 0
      %p70 = por %p68, %p69
      %s72 = sadd.s32 %s71, 1
      %p75 = scmp.eq.s32.totalorder %s16, 1
      %p76 = scmp.ne.s32.totalorder %s71, %s73
      %p77 = scmp.eq.s32.totalorder %s16, 0
      %p78 = por %p76, %p77
      %p79 = scmp.ne.s32.totalorder %s71, %s73
      %p80 = scmp.eq.s32.totalorder %s21, 1
      %p81 = por %p79, %p80
      %p82 = scmp.ne.s32.totalorder %s73, %s74
      %p83 = scmp.eq.s32.totalorder %s21, 0
      %p84 = por %p82, %p83
      %p85 = scmp.ne.s32.totalorder %s73, %s74
      %p86 = scmp.eq.s32.totalorder %s22, 1
      %p87 = por %p85, %p86
      %p89 = scmp.ne.s32.totalorder %s74, %s88
      %p90 = scmp.eq.s32.totalorder %s22, 0
      %p91 = por %p89, %p90
      %s93 = sadd.s32 %s92, 1
      %p96 = scmp.eq.s32.totalorder %s16, 1
      %p97 = scmp.ne.s32.totalorder %s92, %s94
      %p98 = scmp.eq.s32.totalorder %s16, 0
      %p99 = por %p97, %p98
      %p100 = scmp.ne.s32.totalorder %s92, %s94
      %p101 = scmp.eq.s32.totalorder %s21, 1
      %p102 = por %p100, %p101
      %p103 = scmp.ne.s32.totalorder %s94, %s95
      %p104 = scmp.eq.s32.totalorder %s21, 0
      %p105 = por %p103, %p104
      %p106 = scmp.ne.s32.totalorder %s94, %s95
      %p107 = scmp.eq.s32.totalorder %s22, 1
      %p108 = por %p106, %p107
      %p110 = scmp.ne.s32.totalorder %s95, %s109
      %p111 = scmp.eq.s32.totalorder %s22, 0
      %p112 = por %p110, %p111
      %s114 = sadd.s32 %s113, 1
      %p117 = scmp.eq.s32.totalorder %s16, 1
      %p118 = scmp.ne.s32.totalorder %s113, %s115
      %p119 = scmp.eq.s32.totalorder %s16, 0
      %p120 = por %p118, %p119
      %p121 = scmp.ne.s32.totalorder %s113, %s115
      %p122 = scmp.eq.s32.totalorder %s21, 1
      %p123 = por %p121, %p122
      %p124 = scmp.ne.s32.totalorder %s115, %s116
      %p125 = scmp.eq.s32.totalorder %s21, 0
      %p126 = por %p124, %p125
      %p127 = scmp.ne.s32.totalorder %s115, %s116
      %p128 = scmp.eq.s32.totalorder %s22, 1
      %p129 = por %p127, %p128
      %p131 = scmp.ne.s32.totalorder %s116, %s130
      %p132 = scmp.eq.s32.totalorder %s22, 0
      %p133 = por %p131, %p132
      %s135 = sadd.s32 %s134, 1
      %p138 = scmp.eq.s32.totalorder %s16, 1
      %p139 = scmp.ne.s32.totalorder %s134, %s136
      %p140 = scmp.eq.s32.totalorder %s16, 0
      %p141 = por %p139, %p140
      %p142 = scmp.ne.s32.totalorder %s134, %s136
      %p143 = scmp.eq.s32.totalorder %s21, 1
      %p144 = por %p142, %p143
      %p145 = scmp.ne.s32.totalorder %s136, %s137
      %p146 = scmp.eq.s32.totalorder %s21, 0
      %p147 = por %p145, %p146
      %p148 = scmp.ne.s32.totalorder %s136, %s137
      %p149 = scmp.eq.s32.totalorder %s22, 1
      %p150 = por %p148, %p149
      %p152 = scmp.ne.s32.totalorder %s137, %s151
      %p153 = scmp.eq.s32.totalorder %s22, 0
      %p154 = por %p152, %p153
      %s156 = sadd.s32 %s155, 1
      %p159 = scmp.eq.s32.totalorder %s16, 1
      %p160 = scmp.ne.s32.totalorder %s155, %s157
      %p161 = scmp.eq.s32.totalorder %s16, 0
      %p162 = por %p160, %p161
      %p163 = scmp.ne.s32.totalorder %s155, %s157
      %p164 = scmp.eq.s32.totalorder %s21, 1
      %p165 = por %p163, %p164
      %p166 = scmp.ne.s32.totalorder %s157, %s158
      %p167 = scmp.eq.s32.totalorder %s21, 0
      %p168 = por %p166, %p167
      %p169 = scmp.ne.s32.totalorder %s157, %s158
      %p170 = scmp.eq.s32.totalorder %s22, 1
      %p171 = por %p169, %p170
      %p173 = scmp.ne.s32.totalorder %s158, %s172
      %p174 = scmp.eq.s32.totalorder %s22, 0
      %p175 = por %p173, %p174
      %s176 = ssub.s32 %s16, %s23
      %p177 = scmp.eq.s32.totalorder %s176, 0
      %s179 = sadd.s32 %s178, 1
      %s180 = scalar_select %p177, %s178, %s179
      %p183 = pneg %p177
      %p184 = scmp.eq.s32.totalorder %s16, 1
      %p185 = por %p183, %p184
      %p186 = scmp.ne.s32.totalorder %s178, %s181
      %p187 = scmp.eq.s32.totalorder %s16, 0
      %p188 = por %p186, %p187
      %p189 = scmp.ne.s32.totalorder %s178, %s181
      %p190 = scmp.eq.s32.totalorder %s21, 1
      %p191 = por %p189, %p190
      %p192 = scmp.ne.s32.totalorder %s181, %s182
      %p193 = scmp.eq.s32.totalorder %s21, 0
      %p194 = por %p192, %p193
      %p195 = scmp.ne.s32.totalorder %s181, %s182
      %p196 = scmp.eq.s32.totalorder %s22, 1
      %p197 = por %p195, %p196
      %p199 = scmp.ne.s32.totalorder %s182, %s198
      %p200 = scmp.eq.s32.totalorder %s22, 0
      %p201 = por %p199, %p200
      %p202 = scmp.le.s32.totalorder 1, %s16
      %p203 = scmp.lt.s32.totalorder %s16, 3
      %p204 = pnand %p202, %p203
      %p205 = pneg %p204
      // Predicated region
      $region9: #{tpu_custom_call.1} parent=5 // pred_check
        _
      $region10: #{tpu_custom_call.1} parent=5 // pred_check_branch
        %207 = sbr.rel (%p204) target = $region12
      $region11: #{tpu_custom_call.1} parent=5 // pred_region
        %s208 = ssub.s32 %s16, 1
        // Predicated region
        $region13: #{tpu_custom_call.1} parent=11 // pred_check
          %p209 = pneg %p63
        $region14: #{tpu_custom_call.1} parent=11 // pred_check_branch
          %211 = sbr.rel (%p209) target = $region16
        $region15: #{tpu_custom_call.1} parent=11 // pred_region
          _
        $region16: #{tpu_custom_call.1} parent=11 // pred_fallthru
          _
        // Predicated region
        $region17: #{tpu_custom_call.1} parent=11 // pred_check
          %p212 = pneg %p84
        $region18: #{tpu_custom_call.1} parent=11 // pred_check_branch
          %214 = sbr.rel (%p212) target = $region20
        $region19: #{tpu_custom_call.1} parent=11 // pred_region
          _
        $region20: #{tpu_custom_call.1} parent=11 // pred_fallthru
          _
        // Predicated region
        $region21: #{tpu_custom_call.1} parent=11 // pred_check
          %p215 = pneg %p105
        $region22: #{tpu_custom_call.1} parent=11 // pred_check_branch
          %217 = sbr.rel (%p215) target = $region24
        $region23: #{tpu_custom_call.1} parent=11 // pred_region
          _
        $region24: #{tpu_custom_call.1} parent=11 // pred_fallthru
          _
        // Predicated region
        $region25: #{tpu_custom_call.1} parent=11 // pred_check
          %p218 = pneg %p126
        $region26: #{tpu_custom_call.1} parent=11 // pred_check_branch
          %220 = sbr.rel (%p218) target = $region28
        $region27: #{tpu_custom_call.1} parent=11 // pred_region
          _
        $region28: #{tpu_custom_call.1} parent=11 // pred_fallthru
          _
        // Predicated region
        $region29: #{tpu_custom_call.1} parent=11 // pred_check
          %p221 = pneg %p147
        $region30: #{tpu_custom_call.1} parent=11 // pred_check_branch
          %223 = sbr.rel (%p221) target = $region32
        $region31: #{tpu_custom_call.1} parent=11 // pred_region
          _
        $region32: #{tpu_custom_call.1} parent=11 // pred_fallthru
          _
        // Predicated region
        $region33: #{tpu_custom_call.1} parent=11 // pred_check
          %p224 = pneg %p168
        $region34: #{tpu_custom_call.1} parent=11 // pred_check_branch
          %226 = sbr.rel (%p224) target = $region36
        $region35: #{tpu_custom_call.1} parent=11 // pred_region
          _
        $region36: #{tpu_custom_call.1} parent=11 // pred_fallthru
          _
      $region12: #{tpu_custom_call.1} parent=5 // pred_fallthru
        _
      %p227 = scmp.lt.s32.totalorder %s16, 2
      // Predicated region
      $region37: #{tpu_custom_call.1} parent=5 // pred_check
        %p228 = pneg %p227
      $region38: #{tpu_custom_call.1} parent=5 // pred_check_branch
        %230 = sbr.rel (%p228) target = $region40
      $region39: #{tpu_custom_call.1} parent=5 // pred_region
        // Predicated region
        $region41: #{tpu_custom_call.1} parent=39 // pred_check
          %p231 = pneg %p36
        $region42: #{tpu_custom_call.1} parent=39 // pred_check_branch
          %233 = sbr.rel (%p231) target = $region44
        $region43: #{tpu_custom_call.1} parent=39 // pred_region
          %p234 = scmp.lt.s32.totalorder %s16, 1
          %s235 = scalar_select %p234, %s16, 1
          %s236 = smul.addr %s235, 2
          %s237 = smul.addr %s236, 4
          %s238 = scalar_lea.vmem %s0, %s237
        $region44: #{tpu_custom_call.1} parent=39 // pred_fallthru
          _
      $region40: #{tpu_custom_call.1} parent=5 // pred_fallthru
        _
      %p239 = scmp.le.s32.totalorder 1, %s16
      %p240 = scmp.lt.s32.totalorder %s16, 3
      %p241 = pnand %p239, %p240
      %p242 = pneg %p241
      // Predicated region
      $region45: #{tpu_custom_call.1} parent=5 // pred_check
        _
      $region46: #{tpu_custom_call.1} parent=5 // pred_check_branch
        %244 = sbr.rel (%p241) target = $region48
      $region47: #{tpu_custom_call.1} parent=5 // pred_region
        %s245 = ssub.s32 %s16, 1
        %p246 = scmp.lt.s32.totalorder %s21, 1
        %s247 = scalar_select %p246, %s21, 1
        %s248 = smul.addr %s247, 2
        %s249 = smul.addr %s248, 4
        %s250 = scalar_lea.vmem %s0, %s249
        %p251 = pneg %p42
        %p252 = pneg %p39
        %p253 = pneg %p63
        %p254 = pneg %p60
        %p255 = pneg %p84
        %p256 = pneg %p81
        %p257 = pneg %p105
        %p258 = pneg %p102
        %p259 = pneg %p126
        %p260 = pneg %p123
        %p261 = pneg %p147
        %p262 = pneg %p144
        %p263 = pneg %p168
        %p264 = pneg %p165
        %p265 = pneg %p194
        %p266 = pneg %p191
        %s267 = sand.u32 %s181, 1
        %s268 = scalar_lea.sflag [#allocation5], %s267
        %s269 = sand.u32 %s181, 1
        %s270 = smul.addr %s269, 8
        %s271 = scalar_lea.vmem [#allocation4], %s270
        %p272 = scmp.lt.s32.totalorder %s21, 1
        %s273 = scalar_select %p272, %s21, 1
        %s274 = smul.addr %s273, 2
        %s275 = smul.addr %s274, 4
        %s276 = scalar_lea.vmem %s0, %s275
        %v278 = vld [vmem:[%s276] sm:$0xff]
        %v279 = vmax.f32 %v278, 0.0
        %v280 = vmin.f32 %v279, 6.0
        %v281 = vmul.f32 %v280, 1.7133749
        %v282 = vld [vmem:[%s1] sm:$0xf]
        %284 = vst [vmem:[#allocation1] ss:$2 sm:$0xff] %v281
        %v285 = vld.sshfl [vmem:[#allocation1] sm:$0xff pattern:$0x75316420]
        %v286 = vld.sshfl [vmem:[#allocation1 + $0x8] sm:$0xff pattern:$0x75316420]
        %v289 = vpack.c.bf16 %v285, %v285
        %v290 = vpack.c.bf16 %v286, %v286
        %v291 = vld [vmem:[%s2] sm:$0xff]
        %293 = vset.pattern.permute.xlu0 0
        %294 = vperm.xlu0 %293, %v291
        %v295 = vpop.permute.xlu0 %294
        %vm297 = vcmask 31744
        %v299 = vsel %vm297, %v282, 0
        %vm301 = vcmask 1041408
        %v303 = vsel %vm301, %v289, 0
        %v306 = vsel %vm301, %v290, 0
        %308 = vmatpush.bf16.msra.mxu0 0
        %309 = vmatpush.bf16.msra.mxu0 0
        %310 = vmatpush.bf16.msra.mxu0 0
        %311 = vmatpush.bf16.msra.mxu0 0
        %312 = vmatpush.bf16.msra.mxu0 0
        %313 = vmatpush.bf16.msra.mxu0 0
        %314 = vmatpush.bf16.msra.mxu0 0
        %315 = vmatpush.bf16.msra.mxu0 %v303
        %316 = vmatmul.bf16.gmra.mxu0 %v299
        %v317 = vpop.f32.mrf.mxu0
        %v318 = vadd.f32 %v295, %v317
        %v319 = vpop.f32.mrf.mxu0
        %320 = vdwg.mxu0
        %321 = vmatpush.bf16.msra.mxu0 0
        %322 = vmatpush.bf16.msra.mxu0 0
        %323 = vmatpush.bf16.msra.mxu0 0
        %324 = vmatpush.bf16.msra.mxu0 0
        %325 = vmatpush.bf16.msra.mxu0 0
        %326 = vmatpush.bf16.msra.mxu0 0
        %327 = vmatpush.bf16.msra.mxu0 0
        %328 = vmatpush.bf16.msra.mxu0 %v306
        %329 = vmatmul.bf16.gmra.mxu0 %v299
        %v330 = vpop.f32.mrf.mxu0
        %v331 = vadd.f32 %v295, %v330
        %v332 = vpop.f32.mrf.mxu0
        %333 = vdwg.mxu0
        %v334 = vmax.f32 %v318, 0.0
        %v335 = vmax.f32 %v331, 0.0
        %v336 = vmin.f32 %v334, 6.0
        %v337 = vmin.f32 %v335, 6.0
        %v338 = vmul.f32 %v336, 1.7133749
        %v339 = vmul.f32 %v337, 1.7133749
        %vm340 = vcmask 146432
        %341 = vst.msk [vmem:[#allocation2] sm:$0xff] %vm340, 0.0
        %342 = vst.msk [vmem:[#allocation2 + $0x8] sm:$0xff] %vm340, 0.0
        %vm343 = vcmask 140288
        %344 = vst.msk [vmem:[#allocation2 + $0x10] sm:$0x3] %vm343, 0.0
        %345 = vst.msk [vmem:[#allocation2 + $0x18] sm:$0xff] %vm340, 0.0
        %346 = vst.msk [vmem:[#allocation2 + $0x20] sm:$0xff] %vm340, 0.0
        %347 = vst.msk [vmem:[#allocation2 + $0x28] sm:$0x3] %vm343, 0.0
        %348 = vst.msk [vmem:[#allocation2 + $0x30] sm:$0xff] %vm340, 0.0
        %349 = vst.msk [vmem:[#allocation2 + $0x38] sm:$0xff] %vm340, 0.0
        %350 = vst.msk [vmem:[#allocation2 + $0x40] sm:$0x3] %vm343, 0.0
        %351 = vst.msk [vmem:[#allocation2 + $0x48] sm:$0xff] %vm340, 0.0
        %352 = vst.msk [vmem:[#allocation2 + $0x50] sm:$0xff] %vm340, 0.0
        %353 = vst.msk [vmem:[#allocation2 + $0x58] sm:$0x3] %vm343, 0.0
        %354 = vst.msk [vmem:[#allocation2 + $0x60] sm:$0xff] %vm340, 0.0
        %355 = vst.msk [vmem:[#allocation2 + $0x68] sm:$0xff] %vm340, 0.0
        %356 = vst.msk [vmem:[#allocation2 + $0x70] sm:$0x3] %vm343, 0.0
        %357 = vst.msk [vmem:[#allocation2 + $0x78] sm:$0xff] %vm340, 0.0
        %358 = vst.msk [vmem:[#allocation2 + $0x80] sm:$0xff] %vm340, 0.0
        %359 = vst.msk [vmem:[#allocation2 + $0x88] sm:$0x3] %vm343, 0.0
        %360 = vst.msk [vmem:[#allocation2 + $0x90] sm:$0xff] %vm340, 0.0
        %361 = vst.msk [vmem:[#allocation2 + $0x98] sm:$0xff] %vm340, 0.0
        %362 = vst.msk [vmem:[#allocation2 + $0xa0] sm:$0x3] %vm343, 0.0
        %363 = vst.msk [vmem:[#allocation2 + $0xa8] sm:$0xff] %vm340, 0.0
        %364 = vst.msk [vmem:[#allocation2 + $0xb0] sm:$0xff] %vm340, 0.0
        %365 = vst.msk [vmem:[#allocation2 + $0xb8] sm:$0x3] %vm343, 0.0
        %v367 = vrot.slane %v338, 1
        %v368 = vrot.slane %v338, 2
        %v369 = vrot.slane %v338, 3
        %v370 = vrot.slane %v338, 4
        %v371 = vrot.slane %v338, 5
        %v372 = vrot.slane %v338, 6
        %v373 = vrot.slane %v338, 7
        %v374 = vperm.slane %v338, 0
        %v375 = vperm.slane %v367, 0
        %v376 = vperm.slane %v368, 0
        %v377 = vperm.slane %v369, 0
        %v378 = vperm.slane %v370, 0
        %v379 = vperm.slane %v371, 0
        %v380 = vperm.slane %v372, 0
        %v381 = vperm.slane %v373, 0
        %382 = vrot.lane.b32.xlu0 %v374, 1
        %v383 = vpop.permute.xlu0 %382
        %384 = vrot.lane.b32.xlu0 %v375, 1
        %v385 = vpop.permute.xlu0 %384
        %386 = vrot.lane.b32.xlu0 %v376, 1
        %v387 = vpop.permute.xlu0 %386
        %388 = vrot.lane.b32.xlu0 %v377, 1
        %v389 = vpop.permute.xlu0 %388
        %390 = vrot.lane.b32.xlu0 %v378, 1
        %v391 = vpop.permute.xlu0 %390
        %392 = vrot.lane.b32.xlu0 %v379, 1
        %v393 = vpop.permute.xlu0 %392
        %394 = vrot.lane.b32.xlu0 %v380, 1
        %v395 = vpop.permute.xlu0 %394
        %396 = vrot.lane.b32.xlu0 %v381, 1
        %v397 = vpop.permute.xlu0 %396
        %vm406 = vcmask 131080
        %407 = vst.msk [vmem:[#allocation2 + $0x1] sm:$0x1] %vm406, %v383
        %408 = vst.msk [vmem:[#allocation2 + $0x19] sm:$0x1] %vm406, %v385
        %409 = vst.msk [vmem:[#allocation2 + $0x31] sm:$0x1] %vm406, %v387
        %410 = vst.msk [vmem:[#allocation2 + $0x49] sm:$0x1] %vm406, %v389
        %411 = vst.msk [vmem:[#allocation2 + $0x61] sm:$0x1] %vm406, %v391
        %412 = vst.msk [vmem:[#allocation2 + $0x79] sm:$0x1] %vm406, %v393
        %413 = vst.msk [vmem:[#allocation2 + $0x91] sm:$0x1] %vm406, %v395
        %414 = vst.msk [vmem:[#allocation2 + $0xa9] sm:$0x1] %vm406, %v397
        %415 = vrot.lane.b32.xlu0 %v374, 113
        %v416 = vpop.permute.xlu0 %415
        %417 = vrot.lane.b32.xlu0 %v375, 113
        %v418 = vpop.permute.xlu0 %417
        %419 = vrot.lane.b32.xlu0 %v376, 113
        %v420 = vpop.permute.xlu0 %419
        %421 = vrot.lane.b32.xlu0 %v377, 113
        %v422 = vpop.permute.xlu0 %421
        %423 = vrot.lane.b32.xlu0 %v378, 113
        %v424 = vpop.permute.xlu0 %423
        %425 = vrot.lane.b32.xlu0 %v379, 113
        %v426 = vpop.permute.xlu0 %425
        %427 = vrot.lane.b32.xlu0 %v380, 113
        %v428 = vpop.permute.xlu0 %427
        %429 = vrot.lane.b32.xlu0 %v381, 113
        %v430 = vpop.permute.xlu0 %429
        %439 = vst.msk [vmem:[#allocation2 + $0x2] sm:$0x1] %vm406, %v416
        %440 = vst.msk [vmem:[#allocation2 + $0x1a] sm:$0x1] %vm406, %v418
        %441 = vst.msk [vmem:[#allocation2 + $0x32] sm:$0x1] %vm406, %v420
        %442 = vst.msk [vmem:[#allocation2 + $0x4a] sm:$0x1] %vm406, %v422
        %443 = vst.msk [vmem:[#allocation2 + $0x62] sm:$0x1] %vm406, %v424
        %444 = vst.msk [vmem:[#allocation2 + $0x7a] sm:$0x1] %vm406, %v426
        %445 = vst.msk [vmem:[#allocation2 + $0x92] sm:$0x1] %vm406, %v428
        %446 = vst.msk [vmem:[#allocation2 + $0xaa] sm:$0x1] %vm406, %v430
        %447 = vrot.lane.b32.xlu0 %v374, 97
        %v448 = vpop.permute.xlu0 %447
        %449 = vrot.lane.b32.xlu0 %v375, 97
        %v450 = vpop.permute.xlu0 %449
        %451 = vrot.lane.b32.xlu0 %v376, 97
        %v452 = vpop.permute.xlu0 %451
        %453 = vrot.lane.b32.xlu0 %v377, 97
        %v454 = vpop.permute.xlu0 %453
        %455 = vrot.lane.b32.xlu0 %v378, 97
        %v456 = vpop.permute.xlu0 %455
        %457 = vrot.lane.b32.xlu0 %v379, 97
        %v458 = vpop.permute.xlu0 %457
        %459 = vrot.lane.b32.xlu0 %v380, 97
        %v460 = vpop.permute.xlu0 %459
        %461 = vrot.lane.b32.xlu0 %v381, 97
        %v462 = vpop.permute.xlu0 %461
        %471 = vst.msk [vmem:[#allocation2 + $0x3] sm:$0x1] %vm406, %v448
        %472 = vst.msk [vmem:[#allocation2 + $0x1b] sm:$0x1] %vm406, %v450
        %473 = vst.msk [vmem:[#allocation2 + $0x33] sm:$0x1] %vm406, %v452
        %474 = vst.msk [vmem:[#allocation2 + $0x4b] sm:$0x1] %vm406, %v454
        %475 = vst.msk [vmem:[#allocation2 + $0x63] sm:$0x1] %vm406, %v456
        %476 = vst.msk [vmem:[#allocation2 + $0x7b] sm:$0x1] %vm406, %v458
        %477 = vst.msk [vmem:[#allocation2 + $0x93] sm:$0x1] %vm406, %v460
        %478 = vst.msk [vmem:[#allocation2 + $0xab] sm:$0x1] %vm406, %v462
        %479 = vrot.lane.b32.xlu0 %v374, 81
        %v480 = vpop.permute.xlu0 %479
        %481 = vrot.lane.b32.xlu0 %v375, 81
        %v482 = vpop.permute.xlu0 %481
        %483 = vrot.lane.b32.xlu0 %v376, 81
        %v484 = vpop.permute.xlu0 %483
        %485 = vrot.lane.b32.xlu0 %v377, 81
        %v486 = vpop.permute.xlu0 %485
        %487 = vrot.lane.b32.xlu0 %v378, 81
        %v488 = vpop.permute.xlu0 %487
        %489 = vrot.lane.b32.xlu0 %v379, 81
        %v490 = vpop.permute.xlu0 %489
        %491 = vrot.lane.b32.xlu0 %v380, 81
        %v492 = vpop.permute.xlu0 %491
        %493 = vrot.lane.b32.xlu0 %v381, 81
        %v494 = vpop.permute.xlu0 %493
        %503 = vst.msk [vmem:[#allocation2 + $0x4] sm:$0x1] %vm406, %v480
        %504 = vst.msk [vmem:[#allocation2 + $0x1c] sm:$0x1] %vm406, %v482
        %505 = vst.msk [vmem:[#allocation2 + $0x34] sm:$0x1] %vm406, %v484
        %506 = vst.msk [vmem:[#allocation2 + $0x4c] sm:$0x1] %vm406, %v486
        %507 = vst.msk [vmem:[#allocation2 + $0x64] sm:$0x1] %vm406, %v488
        %508 = vst.msk [vmem:[#allocation2 + $0x7c] sm:$0x1] %vm406, %v490
        %509 = vst.msk [vmem:[#allocation2 + $0x94] sm:$0x1] %vm406, %v492
        %510 = vst.msk [vmem:[#allocation2 + $0xac] sm:$0x1] %vm406, %v494
        %511 = vrot.lane.b32.xlu0 %v374, 65
        %v512 = vpop.permute.xlu0 %511
        %513 = vrot.lane.b32.xlu0 %v375, 65
        %v514 = vpop.permute.xlu0 %513
        %515 = vrot.lane.b32.xlu0 %v376, 65
        %v516 = vpop.permute.xlu0 %515
        %517 = vrot.lane.b32.xlu0 %v377, 65
        %v518 = vpop.permute.xlu0 %517
        %519 = vrot.lane.b32.xlu0 %v378, 65
        %v520 = vpop.permute.xlu0 %519
        %521 = vrot.lane.b32.xlu0 %v379, 65
        %v522 = vpop.permute.xlu0 %521
        %523 = vrot.lane.b32.xlu0 %v380, 65
        %v524 = vpop.permute.xlu0 %523
        %525 = vrot.lane.b32.xlu0 %v381, 65
        %v526 = vpop.permute.xlu0 %525
        %535 = vst.msk [vmem:[#allocation2 + $0x5] sm:$0x1] %vm406, %v512
        %536 = vst.msk [vmem:[#allocation2 + $0x1d] sm:$0x1] %vm406, %v514
        %537 = vst.msk [vmem:[#allocation2 + $0x35] sm:$0x1] %vm406, %v516
        %538 = vst.msk [vmem:[#allocation2 + $0x4d] sm:$0x1] %vm406, %v518
        %539 = vst.msk [vmem:[#allocation2 + $0x65] sm:$0x1] %vm406, %v520
        %540 = vst.msk [vmem:[#allocation2 + $0x7d] sm:$0x1] %vm406, %v522
        %541 = vst.msk [vmem:[#allocation2 + $0x95] sm:$0x1] %vm406, %v524
        %542 = vst.msk [vmem:[#allocation2 + $0xad] sm:$0x1] %vm406, %v526
        %543 = vrot.lane.b32.xlu0 %v374, 49
        %v544 = vpop.permute.xlu0 %543
        %545 = vrot.lane.b32.xlu0 %v375, 49
        %v546 = vpop.permute.xlu0 %545
        %547 = vrot.lane.b32.xlu0 %v376, 49
        %v548 = vpop.permute.xlu0 %547
        %549 = vrot.lane.b32.xlu0 %v377, 49
        %v550 = vpop.permute.xlu0 %549
        %551 = vrot.lane.b32.xlu0 %v378, 49
        %v552 = vpop.permute.xlu0 %551
        %553 = vrot.lane.b32.xlu0 %v379, 49
        %v554 = vpop.permute.xlu0 %553
        %555 = vrot.lane.b32.xlu0 %v380, 49
        %v556 = vpop.permute.xlu0 %555
        %557 = vrot.lane.b32.xlu0 %v381, 49
        %v558 = vpop.permute.xlu0 %557
        %567 = vst.msk [vmem:[#allocation2 + $0x6] sm:$0x1] %vm406, %v544
        %568 = vst.msk [vmem:[#allocation2 + $0x1e] sm:$0x1] %vm406, %v546
        %569 = vst.msk [vmem:[#allocation2 + $0x36] sm:$0x1] %vm406, %v548
        %570 = vst.msk [vmem:[#allocation2 + $0x4e] sm:$0x1] %vm406, %v550
        %571 = vst.msk [vmem:[#allocation2 + $0x66] sm:$0x1] %vm406, %v552
        %572 = vst.msk [vmem:[#allocation2 + $0x7e] sm:$0x1] %vm406, %v554
        %573 = vst.msk [vmem:[#allocation2 + $0x96] sm:$0x1] %vm406, %v556
        %574 = vst.msk [vmem:[#allocation2 + $0xae] sm:$0x1] %vm406, %v558
        %575 = vrot.lane.b32.xlu0 %v374, 33
        %v576 = vpop.permute.xlu0 %575
        %577 = vrot.lane.b32.xlu0 %v375, 33
        %v578 = vpop.permute.xlu0 %577
        %579 = vrot.lane.b32.xlu0 %v376, 33
        %v580 = vpop.permute.xlu0 %579
        %581 = vrot.lane.b32.xlu0 %v377, 33
        %v582 = vpop.permute.xlu0 %581
        %583 = vrot.lane.b32.xlu0 %v378, 33
        %v584 = vpop.permute.xlu0 %583
        %585 = vrot.lane.b32.xlu0 %v379, 33
        %v586 = vpop.permute.xlu0 %585
        %587 = vrot.lane.b32.xlu0 %v380, 33
        %v588 = vpop.permute.xlu0 %587
        %589 = vrot.lane.b32.xlu0 %v381, 33
        %v590 = vpop.permute.xlu0 %589
        %599 = vst.msk [vmem:[#allocation2 + $0x7] sm:$0x1] %vm406, %v576
        %600 = vst.msk [vmem:[#allocation2 + $0x1f] sm:$0x1] %vm406, %v578
        %601 = vst.msk [vmem:[#allocation2 + $0x37] sm:$0x1] %vm406, %v580
        %602 = vst.msk [vmem:[#allocation2 + $0x4f] sm:$0x1] %vm406, %v582
        %603 = vst.msk [vmem:[#allocation2 + $0x67] sm:$0x1] %vm406, %v584
        %604 = vst.msk [vmem:[#allocation2 + $0x7f] sm:$0x1] %vm406, %v586
        %605 = vst.msk [vmem:[#allocation2 + $0x97] sm:$0x1] %vm406, %v588
        %606 = vst.msk [vmem:[#allocation2 + $0xaf] sm:$0x1] %vm406, %v590
        %607 = vrot.lane.b32.xlu0 %v374, 17
        %v608 = vpop.permute.xlu0 %607
        %609 = vrot.lane.b32.xlu0 %v375, 17
        %v610 = vpop.permute.xlu0 %609
        %611 = vrot.lane.b32.xlu0 %v376, 17
        %v612 = vpop.permute.xlu0 %611
        %613 = vrot.lane.b32.xlu0 %v377, 17
        %v614 = vpop.permute.xlu0 %613
        %615 = vrot.lane.b32.xlu0 %v378, 17
        %v616 = vpop.permute.xlu0 %615
        %617 = vrot.lane.b32.xlu0 %v379, 17
        %v618 = vpop.permute.xlu0 %617
        %619 = vrot.lane.b32.xlu0 %v380, 17
        %v620 = vpop.permute.xlu0 %619
        %621 = vrot.lane.b32.xlu0 %v381, 17
        %v622 = vpop.permute.xlu0 %621
        %631 = vst.msk [vmem:[#allocation2 + $0x8] sm:$0x1] %vm406, %v608
        %632 = vst.msk [vmem:[#allocation2 + $0x20] sm:$0x1] %vm406, %v610
        %633 = vst.msk [vmem:[#allocation2 + $0x38] sm:$0x1] %vm406, %v612
        %634 = vst.msk [vmem:[#allocation2 + $0x50] sm:$0x1] %vm406, %v614
        %635 = vst.msk [vmem:[#allocation2 + $0x68] sm:$0x1] %vm406, %v616
        %636 = vst.msk [vmem:[#allocation2 + $0x80] sm:$0x1] %vm406, %v618
        %637 = vst.msk [vmem:[#allocation2 + $0x98] sm:$0x1] %vm406, %v620
        %638 = vst.msk [vmem:[#allocation2 + $0xb0] sm:$0x1] %vm406, %v622
        %v640 = vrot.slane %v339, 1
        %v641 = vrot.slane %v339, 2
        %v642 = vrot.slane %v339, 3
        %v643 = vrot.slane %v339, 4
        %v644 = vrot.slane %v339, 5
        %v645 = vrot.slane %v339, 6
        %v646 = vrot.slane %v339, 7
        %v647 = vperm.slane %v339, 0
        %v648 = vperm.slane %v640, 0
        %v649 = vperm.slane %v641, 0
        %v650 = vperm.slane %v642, 0
        %v651 = vperm.slane %v643, 0
        %v652 = vperm.slane %v644, 0
        %v653 = vperm.slane %v645, 0
        %v654 = vperm.slane %v646, 0
        %655 = vrot.lane.b32.xlu0 %v647, 1
        %v656 = vpop.permute.xlu0 %655
        %657 = vrot.lane.b32.xlu0 %v648, 1
        %v658 = vpop.permute.xlu0 %657
        %659 = vrot.lane.b32.xlu0 %v649, 1
        %v660 = vpop.permute.xlu0 %659
        %661 = vrot.lane.b32.xlu0 %v650, 1
        %v662 = vpop.permute.xlu0 %661
        %663 = vrot.lane.b32.xlu0 %v651, 1
        %v664 = vpop.permute.xlu0 %663
        %665 = vrot.lane.b32.xlu0 %v652, 1
        %v666 = vpop.permute.xlu0 %665
        %667 = vrot.lane.b32.xlu0 %v653, 1
        %v668 = vpop.permute.xlu0 %667
        %669 = vrot.lane.b32.xlu0 %v654, 1
        %v670 = vpop.permute.xlu0 %669
        %679 = vst.msk [vmem:[#allocation2 + $0x9] sm:$0x1] %vm406, %v656
        %680 = vst.msk [vmem:[#allocation2 + $0x21] sm:$0x1] %vm406, %v658
        %681 = vst.msk [vmem:[#allocation2 + $0x39] sm:$0x1] %vm406, %v660
        %682 = vst.msk [vmem:[#allocation2 + $0x51] sm:$0x1] %vm406, %v662
        %683 = vst.msk [vmem:[#allocation2 + $0x69] sm:$0x1] %vm406, %v664
        %684 = vst.msk [vmem:[#allocation2 + $0x81] sm:$0x1] %vm406, %v666
        %685 = vst.msk [vmem:[#allocation2 + $0x99] sm:$0x1] %vm406, %v668
        %686 = vst.msk [vmem:[#allocation2 + $0xb1] sm:$0x1] %vm406, %v670
        %687 = vrot.lane.b32.xlu0 %v647, 113
        %v688 = vpop.permute.xlu0 %687
        %689 = vrot.lane.b32.xlu0 %v648, 113
        %v690 = vpop.permute.xlu0 %689
        %691 = vrot.lane.b32.xlu0 %v649, 113
        %v692 = vpop.permute.xlu0 %691
        %693 = vrot.lane.b32.xlu0 %v650, 113
        %v694 = vpop.permute.xlu0 %693
        %695 = vrot.lane.b32.xlu0 %v651, 113
        %v696 = vpop.permute.xlu0 %695
        %697 = vrot.lane.b32.xlu0 %v652, 113
        %v698 = vpop.permute.xlu0 %697
        %699 = vrot.lane.b32.xlu0 %v653, 113
        %v700 = vpop.permute.xlu0 %699
        %701 = vrot.lane.b32.xlu0 %v654, 113
        %v702 = vpop.permute.xlu0 %701
        %711 = vst.msk [vmem:[#allocation2 + $0xa] sm:$0x1] %vm406, %v688
        %712 = vst.msk [vmem:[#allocation2 + $0x22] sm:$0x1] %vm406, %v690
        %713 = vst.msk [vmem:[#allocation2 + $0x3a] sm:$0x1] %vm406, %v692
        %714 = vst.msk [vmem:[#allocation2 + $0x52] sm:$0x1] %vm406, %v694
        %715 = vst.msk [vmem:[#allocation2 + $0x6a] sm:$0x1] %vm406, %v696
        %716 = vst.msk [vmem:[#allocation2 + $0x82] sm:$0x1] %vm406, %v698
        %717 = vst.msk [vmem:[#allocation2 + $0x9a] sm:$0x1] %vm406, %v700
        %718 = vst.msk [vmem:[#allocation2 + $0xb2] sm:$0x1] %vm406, %v702
        %719 = vrot.lane.b32.xlu0 %v647, 97
        %v720 = vpop.permute.xlu0 %719
        %721 = vrot.lane.b32.xlu0 %v648, 97
        %v722 = vpop.permute.xlu0 %721
        %723 = vrot.lane.b32.xlu0 %v649, 97
        %v724 = vpop.permute.xlu0 %723
        %725 = vrot.lane.b32.xlu0 %v650, 97
        %v726 = vpop.permute.xlu0 %725
        %727 = vrot.lane.b32.xlu0 %v651, 97
        %v728 = vpop.permute.xlu0 %727
        %729 = vrot.lane.b32.xlu0 %v652, 97
        %v730 = vpop.permute.xlu0 %729
        %731 = vrot.lane.b32.xlu0 %v653, 97
        %v732 = vpop.permute.xlu0 %731
        %733 = vrot.lane.b32.xlu0 %v654, 97
        %v734 = vpop.permute.xlu0 %733
        %743 = vst.msk [vmem:[#allocation2 + $0xb] sm:$0x1] %vm406, %v720
        %744 = vst.msk [vmem:[#allocation2 + $0x23] sm:$0x1] %vm406, %v722
        %745 = vst.msk [vmem:[#allocation2 + $0x3b] sm:$0x1] %vm406, %v724
        %746 = vst.msk [vmem:[#allocation2 + $0x53] sm:$0x1] %vm406, %v726
        %747 = vst.msk [vmem:[#allocation2 + $0x6b] sm:$0x1] %vm406, %v728
        %748 = vst.msk [vmem:[#allocation2 + $0x83] sm:$0x1] %vm406, %v730
        %749 = vst.msk [vmem:[#allocation2 + $0x9b] sm:$0x1] %vm406, %v732
        %750 = vst.msk [vmem:[#allocation2 + $0xb3] sm:$0x1] %vm406, %v734
        %751 = vrot.lane.b32.xlu0 %v647, 81
        %v752 = vpop.permute.xlu0 %751
        %753 = vrot.lane.b32.xlu0 %v648, 81
        %v754 = vpop.permute.xlu0 %753
        %755 = vrot.lane.b32.xlu0 %v649, 81
        %v756 = vpop.permute.xlu0 %755
        %757 = vrot.lane.b32.xlu0 %v650, 81
        %v758 = vpop.permute.xlu0 %757
        %759 = vrot.lane.b32.xlu0 %v651, 81
        %v760 = vpop.permute.xlu0 %759
        %761 = vrot.lane.b32.xlu0 %v652, 81
        %v762 = vpop.permute.xlu0 %761
        %763 = vrot.lane.b32.xlu0 %v653, 81
        %v764 = vpop.permute.xlu0 %763
        %765 = vrot.lane.b32.xlu0 %v654, 81
        %v766 = vpop.permute.xlu0 %765
        %775 = vst.msk [vmem:[#allocation2 + $0xc] sm:$0x1] %vm406, %v752
        %776 = vst.msk [vmem:[#allocation2 + $0x24] sm:$0x1] %vm406, %v754
        %777 = vst.msk [vmem:[#allocation2 + $0x3c] sm:$0x1] %vm406, %v756
        %778 = vst.msk [vmem:[#allocation2 + $0x54] sm:$0x1] %vm406, %v758
        %779 = vst.msk [vmem:[#allocation2 + $0x6c] sm:$0x1] %vm406, %v760
        %780 = vst.msk [vmem:[#allocation2 + $0x84] sm:$0x1] %vm406, %v762
        %781 = vst.msk [vmem:[#allocation2 + $0x9c] sm:$0x1] %vm406, %v764
        %782 = vst.msk [vmem:[#allocation2 + $0xb4] sm:$0x1] %vm406, %v766
        %783 = vrot.lane.b32.xlu0 %v647, 65
        %v784 = vpop.permute.xlu0 %783
        %785 = vrot.lane.b32.xlu0 %v648, 65
        %v786 = vpop.permute.xlu0 %785
        %787 = vrot.lane.b32.xlu0 %v649, 65
        %v788 = vpop.permute.xlu0 %787
        %789 = vrot.lane.b32.xlu0 %v650, 65
        %v790 = vpop.permute.xlu0 %789
        %791 = vrot.lane.b32.xlu0 %v651, 65
        %v792 = vpop.permute.xlu0 %791
        %793 = vrot.lane.b32.xlu0 %v652, 65
        %v794 = vpop.permute.xlu0 %793
        %795 = vrot.lane.b32.xlu0 %v653, 65
        %v796 = vpop.permute.xlu0 %795
        %797 = vrot.lane.b32.xlu0 %v654, 65
        %v798 = vpop.permute.xlu0 %797
        %807 = vst.msk [vmem:[#allocation2 + $0xd] sm:$0x1] %vm406, %v784
        %808 = vst.msk [vmem:[#allocation2 + $0x25] sm:$0x1] %vm406, %v786
        %809 = vst.msk [vmem:[#allocation2 + $0x3d] sm:$0x1] %vm406, %v788
        %810 = vst.msk [vmem:[#allocation2 + $0x55] sm:$0x1] %vm406, %v790
        %811 = vst.msk [vmem:[#allocation2 + $0x6d] sm:$0x1] %vm406, %v792
        %812 = vst.msk [vmem:[#allocation2 + $0x85] sm:$0x1] %vm406, %v794
        %813 = vst.msk [vmem:[#allocation2 + $0x9d] sm:$0x1] %vm406, %v796
        %814 = vst.msk [vmem:[#allocation2 + $0xb5] sm:$0x1] %vm406, %v798
        %815 = vrot.lane.b32.xlu0 %v647, 49
        %v816 = vpop.permute.xlu0 %815
        %817 = vrot.lane.b32.xlu0 %v648, 49
        %v818 = vpop.permute.xlu0 %817
        %819 = vrot.lane.b32.xlu0 %v649, 49
        %v820 = vpop.permute.xlu0 %819
        %821 = vrot.lane.b32.xlu0 %v650, 49
        %v822 = vpop.permute.xlu0 %821
        %823 = vrot.lane.b32.xlu0 %v651, 49
        %v824 = vpop.permute.xlu0 %823
        %825 = vrot.lane.b32.xlu0 %v652, 49
        %v826 = vpop.permute.xlu0 %825
        %827 = vrot.lane.b32.xlu0 %v653, 49
        %v828 = vpop.permute.xlu0 %827
        %829 = vrot.lane.b32.xlu0 %v654, 49
        %v830 = vpop.permute.xlu0 %829
        %839 = vst.msk [vmem:[#allocation2 + $0xe] sm:$0x1] %vm406, %v816
        %840 = vst.msk [vmem:[#allocation2 + $0x26] sm:$0x1] %vm406, %v818
        %841 = vst.msk [vmem:[#allocation2 + $0x3e] sm:$0x1] %vm406, %v820
        %842 = vst.msk [vmem:[#allocation2 + $0x56] sm:$0x1] %vm406, %v822
        %843 = vst.msk [vmem:[#allocation2 + $0x6e] sm:$0x1] %vm406, %v824
        %844 = vst.msk [vmem:[#allocation2 + $0x86] sm:$0x1] %vm406, %v826
        %845 = vst.msk [vmem:[#allocation2 + $0x9e] sm:$0x1] %vm406, %v828
        %846 = vst.msk [vmem:[#allocation2 + $0xb6] sm:$0x1] %vm406, %v830
        %847 = vrot.lane.b32.xlu0 %v647, 33
        %v848 = vpop.permute.xlu0 %847
        %849 = vrot.lane.b32.xlu0 %v648, 33
        %v850 = vpop.permute.xlu0 %849
        %851 = vrot.lane.b32.xlu0 %v649, 33
        %v852 = vpop.permute.xlu0 %851
        %853 = vrot.lane.b32.xlu0 %v650, 33
        %v854 = vpop.permute.xlu0 %853
        %855 = vrot.lane.b32.xlu0 %v651, 33
        %v856 = vpop.permute.xlu0 %855
        %857 = vrot.lane.b32.xlu0 %v652, 33
        %v858 = vpop.permute.xlu0 %857
        %859 = vrot.lane.b32.xlu0 %v653, 33
        %v860 = vpop.permute.xlu0 %859
        %861 = vrot.lane.b32.xlu0 %v654, 33
        %v862 = vpop.permute.xlu0 %861
        %871 = vst.msk [vmem:[#allocation2 + $0xf] sm:$0x1] %vm406, %v848
        %872 = vst.msk [vmem:[#allocation2 + $0x27] sm:$0x1] %vm406, %v850
        %873 = vst.msk [vmem:[#allocation2 + $0x3f] sm:$0x1] %vm406, %v852
        %874 = vst.msk [vmem:[#allocation2 + $0x57] sm:$0x1] %vm406, %v854
        %875 = vst.msk [vmem:[#allocation2 + $0x6f] sm:$0x1] %vm406, %v856
        %876 = vst.msk [vmem:[#allocation2 + $0x87] sm:$0x1] %vm406, %v858
        %877 = vst.msk [vmem:[#allocation2 + $0x9f] sm:$0x1] %vm406, %v860
        %878 = vst.msk [vmem:[#allocation2 + $0xb7] sm:$0x1] %vm406, %v862
        %879 = vrot.lane.b32.xlu0 %v647, 17
        %v880 = vpop.permute.xlu0 %879
        %881 = vrot.lane.b32.xlu0 %v648, 17
        %v882 = vpop.permute.xlu0 %881
        %883 = vrot.lane.b32.xlu0 %v649, 17
        %v884 = vpop.permute.xlu0 %883
        %885 = vrot.lane.b32.xlu0 %v650, 17
        %v886 = vpop.permute.xlu0 %885
        %887 = vrot.lane.b32.xlu0 %v651, 17
        %v888 = vpop.permute.xlu0 %887
        %889 = vrot.lane.b32.xlu0 %v652, 17
        %v890 = vpop.permute.xlu0 %889
        %891 = vrot.lane.b32.xlu0 %v653, 17
        %v892 = vpop.permute.xlu0 %891
        %893 = vrot.lane.b32.xlu0 %v654, 17
        %v894 = vpop.permute.xlu0 %893
        %903 = vst.msk [vmem:[#allocation2 + $0x10] sm:$0x1] %vm406, %v880
        %904 = vst.msk [vmem:[#allocation2 + $0x28] sm:$0x1] %vm406, %v882
        %905 = vst.msk [vmem:[#allocation2 + $0x40] sm:$0x1] %vm406, %v884
        %906 = vst.msk [vmem:[#allocation2 + $0x58] sm:$0x1] %vm406, %v886
        %907 = vst.msk [vmem:[#allocation2 + $0x70] sm:$0x1] %vm406, %v888
        %908 = vst.msk [vmem:[#allocation2 + $0x88] sm:$0x1] %vm406, %v890
        %909 = vst.msk [vmem:[#allocation2 + $0xa0] sm:$0x1] %vm406, %v892
        %910 = vst.msk [vmem:[#allocation2 + $0xb8] sm:$0x1] %vm406, %v894
        %v911 = vld [vmem:[%s3] sm:$0xff]
        %v912 = vld [vmem:[%s4] sm:$0xff]
        %v913 = vld [vmem:[#allocation2] sm:$0x1]
        %v914 = vld [vmem:[#allocation2 + $0x18] sm:$0x1]
        %v915 = vld [vmem:[#allocation2 + $0x30] sm:$0x1]
        %v916 = vld [vmem:[#allocation2 + $0x48] sm:$0x1]
        %v917 = vld [vmem:[#allocation2 + $0x60] sm:$0x1]
        %v918 = vld [vmem:[#allocation2 + $0x78] sm:$0x1]
        %v919 = vld [vmem:[#allocation2 + $0x90] sm:$0x1]
        %v920 = vld [vmem:[#allocation2 + $0xa8] sm:$0x1]
        %922 = vset.pattern.permute.xlu0 0
        %923 = vperm.xlu0 %922, %v911
        %v924 = vpop.permute.xlu0 %923
        %v925 = vrot.slane %v924, 1
        %v926 = vrot.slane %v924, 2
        %v927 = vrot.slane %v924, 3
        %v928 = vrot.slane %v924, 4
        %v929 = vrot.slane %v924, 5
        %v930 = vrot.slane %v924, 6
        %v931 = vrot.slane %v924, 7
        %v940 = vmul.f32 %v913, %v924
        %v941 = vmul.f32 %v914, %v925
        %v942 = vmul.f32 %v915, %v926
        %v943 = vmul.f32 %v916, %v927
        %v944 = vmul.f32 %v917, %v928
        %v945 = vmul.f32 %v918, %v929
        %v946 = vmul.f32 %v919, %v930
        %v947 = vmul.f32 %v920, %v931
        %v948 = vadd.f32 %v940, 0.0
        %v949 = vadd.f32 %v941, 0.0
        %v950 = vadd.f32 %v942, 0.0
        %v951 = vadd.f32 %v943, 0.0
        %v952 = vadd.f32 %v944, 0.0
        %v953 = vadd.f32 %v945, 0.0
        %v954 = vadd.f32 %v946, 0.0
        %v955 = vadd.f32 %v947, 0.0
        %956 = vset.pattern.permute.xlu0 1
        %957 = vperm.xlu0 %956, %v911
        %v958 = vpop.permute.xlu0 %957
        %v959 = vrot.slane %v958, 1
        %v960 = vrot.slane %v958, 2
        %v961 = vrot.slane %v958, 3
        %v962 = vrot.slane %v958, 4
        %v963 = vrot.slane %v958, 5
        %v964 = vrot.slane %v958, 6
        %v965 = vrot.slane %v958, 7
        %v974 = vmul.f32 %v913, %v958
        %v975 = vmul.f32 %v914, %v959
        %v976 = vmul.f32 %v915, %v960
        %v977 = vmul.f32 %v916, %v961
        %v978 = vmul.f32 %v917, %v962
        %v979 = vmul.f32 %v918, %v963
        %v980 = vmul.f32 %v919, %v964
        %v981 = vmul.f32 %v920, %v965
        %990 = vrot.lane.b32.xlu0 %v974, 127
        %v991 = vpop.permute.xlu0 %990
        %992 = vrot.lane.b32.xlu0 %v975, 127
        %v993 = vpop.permute.xlu0 %992
        %994 = vrot.lane.b32.xlu0 %v976, 127
        %v995 = vpop.permute.xlu0 %994
        %996 = vrot.lane.b32.xlu0 %v977, 127
        %v997 = vpop.permute.xlu0 %996
        %998 = vrot.lane.b32.xlu0 %v978, 127
        %v999 = vpop.permute.xlu0 %998
        %1000 = vrot.lane.b32.xlu0 %v979, 127
        %v1001 = vpop.permute.xlu0 %1000
        %1002 = vrot.lane.b32.xlu0 %v980, 127
        %v1003 = vpop.permute.xlu0 %1002
        %1004 = vrot.lane.b32.xlu0 %v981, 127
        %v1005 = vpop.permute.xlu0 %1004
        %v1014 = vadd.f32 %v948, %v991
        %v1015 = vadd.f32 %v949, %v993
        %v1016 = vadd.f32 %v950, %v995
        %v1017 = vadd.f32 %v951, %v997
        %v1018 = vadd.f32 %v952, %v999
        %v1019 = vadd.f32 %v953, %v1001
        %v1020 = vadd.f32 %v954, %v1003
        %v1021 = vadd.f32 %v955, %v1005
        %1022 = vset.pattern.permute.xlu0 2
        %1023 = vperm.xlu0 %1022, %v911
        %v1024 = vpop.permute.xlu0 %1023
        %v1025 = vrot.slane %v1024, 1
        %v1026 = vrot.slane %v1024, 2
        %v1027 = vrot.slane %v1024, 3
        %v1028 = vrot.slane %v1024, 4
        %v1029 = vrot.slane %v1024, 5
        %v1030 = vrot.slane %v1024, 6
        %v1031 = vrot.slane %v1024, 7
        %v1040 = vmul.f32 %v913, %v1024
        %v1041 = vmul.f32 %v914, %v1025
        %v1042 = vmul.f32 %v915, %v1026
        %v1043 = vmul.f32 %v916, %v1027
        %v1044 = vmul.f32 %v917, %v1028
        %v1045 = vmul.f32 %v918, %v1029
        %v1046 = vmul.f32 %v919, %v1030
        %v1047 = vmul.f32 %v920, %v1031
        %1056 = vrot.lane.b32.xlu0 %v1040, 126
        %v1057 = vpop.permute.xlu0 %1056
        %1058 = vrot.lane.b32.xlu0 %v1041, 126
        %v1059 = vpop.permute.xlu0 %1058
        %1060 = vrot.lane.b32.xlu0 %v1042, 126
        %v1061 = vpop.permute.xlu0 %1060
        %1062 = vrot.lane.b32.xlu0 %v1043, 126
        %v1063 = vpop.permute.xlu0 %1062
        %1064 = vrot.lane.b32.xlu0 %v1044, 126
        %v1065 = vpop.permute.xlu0 %1064
        %1066 = vrot.lane.b32.xlu0 %v1045, 126
        %v1067 = vpop.permute.xlu0 %1066
        %1068 = vrot.lane.b32.xlu0 %v1046, 126
        %v1069 = vpop.permute.xlu0 %1068
        %1070 = vrot.lane.b32.xlu0 %v1047, 126
        %v1071 = vpop.permute.xlu0 %1070
        %v1080 = vadd.f32 %v1014, %v1057
        %v1081 = vadd.f32 %v1015, %v1059
        %v1082 = vadd.f32 %v1016, %v1061
        %v1083 = vadd.f32 %v1017, %v1063
        %v1084 = vadd.f32 %v1018, %v1065
        %v1085 = vadd.f32 %v1019, %v1067
        %v1086 = vadd.f32 %v1020, %v1069
        %v1087 = vadd.f32 %v1021, %v1071
        %v1088 = vld [vmem:[#allocation2 + $0x1] sm:$0x1]
        %v1089 = vld [vmem:[#allocation2 + $0x19] sm:$0x1]
        %v1090 = vld [vmem:[#allocation2 + $0x31] sm:$0x1]
        %v1091 = vld [vmem:[#allocation2 + $0x49] sm:$0x1]
        %v1092 = vld [vmem:[#allocation2 + $0x61] sm:$0x1]
        %v1093 = vld [vmem:[#allocation2 + $0x79] sm:$0x1]
        %v1094 = vld [vmem:[#allocation2 + $0x91] sm:$0x1]
        %v1095 = vld [vmem:[#allocation2 + $0xa9] sm:$0x1]
        %1096 = vset.pattern.permute.xlu0 3
        %1097 = vperm.xlu0 %1096, %v911
        %v1098 = vpop.permute.xlu0 %1097
        %v1099 = vrot.slane %v1098, 1
        %v1100 = vrot.slane %v1098, 2
        %v1101 = vrot.slane %v1098, 3
        %v1102 = vrot.slane %v1098, 4
        %v1103 = vrot.slane %v1098, 5
        %v1104 = vrot.slane %v1098, 6
        %v1105 = vrot.slane %v1098, 7
        %v1114 = vmul.f32 %v1088, %v1098
        %v1115 = vmul.f32 %v1089, %v1099
        %v1116 = vmul.f32 %v1090, %v1100
        %v1117 = vmul.f32 %v1091, %v1101
        %v1118 = vmul.f32 %v1092, %v1102
        %v1119 = vmul.f32 %v1093, %v1103
        %v1120 = vmul.f32 %v1094, %v1104
        %v1121 = vmul.f32 %v1095, %v1105
        %v1122 = vadd.f32 %v1080, %v1114
        %v1123 = vadd.f32 %v1081, %v1115
        %v1124 = vadd.f32 %v1082, %v1116
        %v1125 = vadd.f32 %v1083, %v1117
        %v1126 = vadd.f32 %v1084, %v1118
        %v1127 = vadd.f32 %v1085, %v1119
        %v1128 = vadd.f32 %v1086, %v1120
        %v1129 = vadd.f32 %v1087, %v1121
        %1130 = vset.pattern.permute.xlu0 4
        %1131 = vperm.xlu0 %1130, %v911
        %v1132 = vpop.permute.xlu0 %1131
        %v1133 = vrot.slane %v1132, 1
        %v1134 = vrot.slane %v1132, 2
        %v1135 = vrot.slane %v1132, 3
        %v1136 = vrot.slane %v1132, 4
        %v1137 = vrot.slane %v1132, 5
        %v1138 = vrot.slane %v1132, 6
        %v1139 = vrot.slane %v1132, 7
        %v1148 = vmul.f32 %v1088, %v1132
        %v1149 = vmul.f32 %v1089, %v1133
        %v1150 = vmul.f32 %v1090, %v1134
        %v1151 = vmul.f32 %v1091, %v1135
        %v1152 = vmul.f32 %v1092, %v1136
        %v1153 = vmul.f32 %v1093, %v1137
        %v1154 = vmul.f32 %v1094, %v1138
        %v1155 = vmul.f32 %v1095, %v1139
        %1164 = vrot.lane.b32.xlu0 %v1148, 127
        %v1165 = vpop.permute.xlu0 %1164
        %1166 = vrot.lane.b32.xlu0 %v1149, 127
        %v1167 = vpop.permute.xlu0 %1166
        %1168 = vrot.lane.b32.xlu0 %v1150, 127
        %v1169 = vpop.permute.xlu0 %1168
        %1170 = vrot.lane.b32.xlu0 %v1151, 127
        %v1171 = vpop.permute.xlu0 %1170
        %1172 = vrot.lane.b32.xlu0 %v1152, 127
        %v1173 = vpop.permute.xlu0 %1172
        %1174 = vrot.lane.b32.xlu0 %v1153, 127
        %v1175 = vpop.permute.xlu0 %1174
        %1176 = vrot.lane.b32.xlu0 %v1154, 127
        %v1177 = vpop.permute.xlu0 %1176
        %1178 = vrot.lane.b32.xlu0 %v1155, 127
        %v1179 = vpop.permute.xlu0 %1178
        %v1188 = vadd.f32 %v1122, %v1165
        %v1189 = vadd.f32 %v1123, %v1167
        %v1190 = vadd.f32 %v1124, %v1169
        %v1191 = vadd.f32 %v1125, %v1171
        %v1192 = vadd.f32 %v1126, %v1173
        %v1193 = vadd.f32 %v1127, %v1175
        %v1194 = vadd.f32 %v1128, %v1177
        %v1195 = vadd.f32 %v1129, %v1179
        %1196 = vset.pattern.permute.xlu0 5
        %1197 = vperm.xlu0 %1196, %v911
        %v1198 = vpop.permute.xlu0 %1197
        %v1199 = vrot.slane %v1198, 1
        %v1200 = vrot.slane %v1198, 2
        %v1201 = vrot.slane %v1198, 3
        %v1202 = vrot.slane %v1198, 4
        %v1203 = vrot.slane %v1198, 5
        %v1204 = vrot.slane %v1198, 6
        %v1205 = vrot.slane %v1198, 7
        %v1214 = vmul.f32 %v1088, %v1198
        %v1215 = vmul.f32 %v1089, %v1199
        %v1216 = vmul.f32 %v1090, %v1200
        %v1217 = vmul.f32 %v1091, %v1201
        %v1218 = vmul.f32 %v1092, %v1202
        %v1219 = vmul.f32 %v1093, %v1203
        %v1220 = vmul.f32 %v1094, %v1204
        %v1221 = vmul.f32 %v1095, %v1205
        %1230 = vrot.lane.b32.xlu0 %v1214, 126
        %v1231 = vpop.permute.xlu0 %1230
        %1232 = vrot.lane.b32.xlu0 %v1215, 126
        %v1233 = vpop.permute.xlu0 %1232
        %1234 = vrot.lane.b32.xlu0 %v1216, 126
        %v1235 = vpop.permute.xlu0 %1234
        %1236 = vrot.lane.b32.xlu0 %v1217, 126
        %v1237 = vpop.permute.xlu0 %1236
        %1238 = vrot.lane.b32.xlu0 %v1218, 126
        %v1239 = vpop.permute.xlu0 %1238
        %1240 = vrot.lane.b32.xlu0 %v1219, 126
        %v1241 = vpop.permute.xlu0 %1240
        %1242 = vrot.lane.b32.xlu0 %v1220, 126
        %v1243 = vpop.permute.xlu0 %1242
        %1244 = vrot.lane.b32.xlu0 %v1221, 126
        %v1245 = vpop.permute.xlu0 %1244
        %v1254 = vadd.f32 %v1188, %v1231
        %v1255 = vadd.f32 %v1189, %v1233
        %v1256 = vadd.f32 %v1190, %v1235
        %v1257 = vadd.f32 %v1191, %v1237
        %v1258 = vadd.f32 %v1192, %v1239
        %v1259 = vadd.f32 %v1193, %v1241
        %v1260 = vadd.f32 %v1194, %v1243
        %v1261 = vadd.f32 %v1195, %v1245
        %v1262 = vld [vmem:[#allocation2 + $0x2] sm:$0x1]
        %v1263 = vld [vmem:[#allocation2 + $0x1a] sm:$0x1]
        %v1264 = vld [vmem:[#allocation2 + $0x32] sm:$0x1]
        %v1265 = vld [vmem:[#allocation2 + $0x4a] sm:$0x1]
        %v1266 = vld [vmem:[#allocation2 + $0x62] sm:$0x1]
        %v1267 = vld [vmem:[#allocation2 + $0x7a] sm:$0x1]
        %v1268 = vld [vmem:[#allocation2 + $0x92] sm:$0x1]
        %v1269 = vld [vmem:[#allocation2 + $0xaa] sm:$0x1]
        %1270 = vset.pattern.permute.xlu0 6
        %1271 = vperm.xlu0 %1270, %v911
        %v1272 = vpop.permute.xlu0 %1271
        %v1273 = vrot.slane %v1272, 1
        %v1274 = vrot.slane %v1272, 2
        %v1275 = vrot.slane %v1272, 3
        %v1276 = vrot.slane %v1272, 4
        %v1277 = vrot.slane %v1272, 5
        %v1278 = vrot.slane %v1272, 6
        %v1279 = vrot.slane %v1272, 7
        %v1288 = vmul.f32 %v1262, %v1272
        %v1289 = vmul.f32 %v1263, %v1273
        %v1290 = vmul.f32 %v1264, %v1274
        %v1291 = vmul.f32 %v1265, %v1275
        %v1292 = vmul.f32 %v1266, %v1276
        %v1293 = vmul.f32 %v1267, %v1277
        %v1294 = vmul.f32 %v1268, %v1278
        %v1295 = vmul.f32 %v1269, %v1279
        %v1296 = vadd.f32 %v1254, %v1288
        %v1297 = vadd.f32 %v1255, %v1289
        %v1298 = vadd.f32 %v1256, %v1290
        %v1299 = vadd.f32 %v1257, %v1291
        %v1300 = vadd.f32 %v1258, %v1292
        %v1301 = vadd.f32 %v1259, %v1293
        %v1302 = vadd.f32 %v1260, %v1294
        %v1303 = vadd.f32 %v1261, %v1295
        %1304 = vset.pattern.permute.xlu0 7
        %1305 = vperm.xlu0 %1304, %v911
        %v1306 = vpop.permute.xlu0 %1305
        %v1307 = vrot.slane %v1306, 1
        %v1308 = vrot.slane %v1306, 2
        %v1309 = vrot.slane %v1306, 3
        %v1310 = vrot.slane %v1306, 4
        %v1311 = vrot.slane %v1306, 5
        %v1312 = vrot.slane %v1306, 6
        %v1313 = vrot.slane %v1306, 7
        %v1322 = vmul.f32 %v1262, %v1306
        %v1323 = vmul.f32 %v1263, %v1307
        %v1324 = vmul.f32 %v1264, %v1308
        %v1325 = vmul.f32 %v1265, %v1309
        %v1326 = vmul.f32 %v1266, %v1310
        %v1327 = vmul.f32 %v1267, %v1311
        %v1328 = vmul.f32 %v1268, %v1312
        %v1329 = vmul.f32 %v1269, %v1313
        %1338 = vrot.lane.b32.xlu0 %v1322, 127
        %v1339 = vpop.permute.xlu0 %1338
        %1340 = vrot.lane.b32.xlu0 %v1323, 127
        %v1341 = vpop.permute.xlu0 %1340
        %1342 = vrot.lane.b32.xlu0 %v1324, 127
        %v1343 = vpop.permute.xlu0 %1342
        %1344 = vrot.lane.b32.xlu0 %v1325, 127
        %v1345 = vpop.permute.xlu0 %1344
        %1346 = vrot.lane.b32.xlu0 %v1326, 127
        %v1347 = vpop.permute.xlu0 %1346
        %1348 = vrot.lane.b32.xlu0 %v1327, 127
        %v1349 = vpop.permute.xlu0 %1348
        %1350 = vrot.lane.b32.xlu0 %v1328, 127
        %v1351 = vpop.permute.xlu0 %1350
        %1352 = vrot.lane.b32.xlu0 %v1329, 127
        %v1353 = vpop.permute.xlu0 %1352
        %v1362 = vadd.f32 %v1296, %v1339
        %v1363 = vadd.f32 %v1297, %v1341
        %v1364 = vadd.f32 %v1298, %v1343
        %v1365 = vadd.f32 %v1299, %v1345
        %v1366 = vadd.f32 %v1300, %v1347
        %v1367 = vadd.f32 %v1301, %v1349
        %v1368 = vadd.f32 %v1302, %v1351
        %v1369 = vadd.f32 %v1303, %v1353
        %1370 = vset.pattern.permute.xlu0 8
        %1371 = vperm.xlu0 %1370, %v911
        %v1372 = vpop.permute.xlu0 %1371
        %v1373 = vrot.slane %v1372, 1
        %v1374 = vrot.slane %v1372, 2
        %v1375 = vrot.slane %v1372, 3
        %v1376 = vrot.slane %v1372, 4
        %v1377 = vrot.slane %v1372, 5
        %v1378 = vrot.slane %v1372, 6
        %v1379 = vrot.slane %v1372, 7
        %v1388 = vmul.f32 %v1262, %v1372
        %v1389 = vmul.f32 %v1263, %v1373
        %v1390 = vmul.f32 %v1264, %v1374
        %v1391 = vmul.f32 %v1265, %v1375
        %v1392 = vmul.f32 %v1266, %v1376
        %v1393 = vmul.f32 %v1267, %v1377
        %v1394 = vmul.f32 %v1268, %v1378
        %v1395 = vmul.f32 %v1269, %v1379
        %1404 = vrot.lane.b32.xlu0 %v1388, 126
        %v1405 = vpop.permute.xlu0 %1404
        %1406 = vrot.lane.b32.xlu0 %v1389, 126
        %v1407 = vpop.permute.xlu0 %1406
        %1408 = vrot.lane.b32.xlu0 %v1390, 126
        %v1409 = vpop.permute.xlu0 %1408
        %1410 = vrot.lane.b32.xlu0 %v1391, 126
        %v1411 = vpop.permute.xlu0 %1410
        %1412 = vrot.lane.b32.xlu0 %v1392, 126
        %v1413 = vpop.permute.xlu0 %1412
        %1414 = vrot.lane.b32.xlu0 %v1393, 126
        %v1415 = vpop.permute.xlu0 %1414
        %1416 = vrot.lane.b32.xlu0 %v1394, 126
        %v1417 = vpop.permute.xlu0 %1416
        %1418 = vrot.lane.b32.xlu0 %v1395, 126
        %v1419 = vpop.permute.xlu0 %1418
        %v1428 = vadd.f32 %v1362, %v1405
        %v1429 = vadd.f32 %v1363, %v1407
        %v1430 = vadd.f32 %v1364, %v1409
        %v1431 = vadd.f32 %v1365, %v1411
        %v1432 = vadd.f32 %v1366, %v1413
        %v1433 = vadd.f32 %v1367, %v1415
        %v1434 = vadd.f32 %v1368, %v1417
        %v1435 = vadd.f32 %v1369, %v1419
        %1437 = vset.pattern.permute.xlu0 0
        %1438 = vperm.xlu0 %1437, %v912
        %v1439 = vpop.permute.xlu0 %1438
        %v1440 = vrot.slane %v1439, 1
        %v1441 = vrot.slane %v1439, 2
        %v1442 = vrot.slane %v1439, 3
        %v1443 = vrot.slane %v1439, 4
        %v1444 = vrot.slane %v1439, 5
        %v1445 = vrot.slane %v1439, 6
        %v1446 = vrot.slane %v1439, 7
        %v1455 = vadd.f32 %v1428, %v1439
        %v1456 = vadd.f32 %v1429, %v1440
        %v1457 = vadd.f32 %v1430, %v1441
        %v1458 = vadd.f32 %v1431, %v1442
        %v1459 = vadd.f32 %v1432, %v1443
        %v1460 = vadd.f32 %v1433, %v1444
        %v1461 = vadd.f32 %v1434, %v1445
        %v1462 = vadd.f32 %v1435, %v1446
        %v1463 = vmax.f32 %v1455, 0.0
        %v1464 = vmax.f32 %v1456, 0.0
        %v1465 = vmax.f32 %v1457, 0.0
        %v1466 = vmax.f32 %v1458, 0.0
        %v1467 = vmax.f32 %v1459, 0.0
        %v1468 = vmax.f32 %v1460, 0.0
        %v1469 = vmax.f32 %v1461, 0.0
        %v1470 = vmax.f32 %v1462, 0.0
        %v1471 = vmin.f32 %v1463, 6.0
        %v1472 = vmin.f32 %v1464, 6.0
        %v1473 = vmin.f32 %v1465, 6.0
        %v1474 = vmin.f32 %v1466, 6.0
        %v1475 = vmin.f32 %v1467, 6.0
        %v1476 = vmin.f32 %v1468, 6.0
        %v1477 = vmin.f32 %v1469, 6.0
        %v1478 = vmin.f32 %v1470, 6.0
        %v1479 = vmul.f32 %v1471, 1.7133749
        %v1480 = vmul.f32 %v1472, 1.7133749
        %v1481 = vmul.f32 %v1473, 1.7133749
        %v1482 = vmul.f32 %v1474, 1.7133749
        %v1483 = vmul.f32 %v1475, 1.7133749
        %v1484 = vmul.f32 %v1476, 1.7133749
        %v1485 = vmul.f32 %v1477, 1.7133749
        %v1486 = vmul.f32 %v1478, 1.7133749
        %v1495 = vrot.slane %v1480, 7
        %vm1496 = vcmask 1041409
        %v1497 = vsel %vm1496, %v1495, %v1479
        %v1498 = vrot.slane %v1481, 6
        %vm1499 = vcmask 1042434
        %v1500 = vsel %vm1499, %v1498, %v1497
        %v1501 = vrot.slane %v1482, 5
        %vm1502 = vcmask 1043459
        %v1503 = vsel %vm1502, %v1501, %v1500
        %v1504 = vrot.slane %v1483, 4
        %vm1505 = vcmask 1044484
        %v1506 = vsel %vm1505, %v1504, %v1503
        %v1507 = vrot.slane %v1484, 3
        %vm1508 = vcmask 1045509
        %v1509 = vsel %vm1508, %v1507, %v1506
        %v1510 = vrot.slane %v1485, 2
        %vm1511 = vcmask 1046534
        %v1512 = vsel %vm1511, %v1510, %v1509
        %v1513 = vrot.slane %v1486, 1
        %vm1514 = vcmask 1047559
        %v1515 = vsel %vm1514, %v1513, %v1512
        %vm1517 = vcmask 130048
        %1518 = vst.msk [vmem:[#allocation3] sm:$0xff] %vm1517, %v1515
        %v1519 = vld [vmem:[#allocation2 + $0x1] sm:$0x1]
        %v1520 = vld [vmem:[#allocation2 + $0x19] sm:$0x1]
        %v1521 = vld [vmem:[#allocation2 + $0x31] sm:$0x1]
        %v1522 = vld [vmem:[#allocation2 + $0x49] sm:$0x1]
        %v1523 = vld [vmem:[#allocation2 + $0x61] sm:$0x1]
        %v1524 = vld [vmem:[#allocation2 + $0x79] sm:$0x1]
        %v1525 = vld [vmem:[#allocation2 + $0x91] sm:$0x1]
        %v1526 = vld [vmem:[#allocation2 + $0xa9] sm:$0x1]
        %v1527 = vmul.f32 %v1519, %v924
        %v1528 = vmul.f32 %v1520, %v925
        %v1529 = vmul.f32 %v1521, %v926
        %v1530 = vmul.f32 %v1522, %v927
        %v1531 = vmul.f32 %v1523, %v928
        %v1532 = vmul.f32 %v1524, %v929
        %v1533 = vmul.f32 %v1525, %v930
        %v1534 = vmul.f32 %v1526, %v931
        %v1535 = vadd.f32 %v1527, 0.0
        %v1536 = vadd.f32 %v1528, 0.0
        %v1537 = vadd.f32 %v1529, 0.0
        %v1538 = vadd.f32 %v1530, 0.0
        %v1539 = vadd.f32 %v1531, 0.0
        %v1540 = vadd.f32 %v1532, 0.0
        %v1541 = vadd.f32 %v1533, 0.0
        %v1542 = vadd.f32 %v1534, 0.0
        %v1543 = vmul.f32 %v1519, %v958
        %v1544 = vmul.f32 %v1520, %v959
        %v1545 = vmul.f32 %v1521, %v960
        %v1546 = vmul.f32 %v1522, %v961
        %v1547 = vmul.f32 %v1523, %v962
        %v1548 = vmul.f32 %v1524, %v963
        %v1549 = vmul.f32 %v1525, %v964
        %v1550 = vmul.f32 %v1526, %v965
        %1559 = vrot.lane.b32.xlu0 %v1543, 127
        %v1560 = vpop.permute.xlu0 %1559
        %1561 = vrot.lane.b32.xlu0 %v1544, 127
        %v1562 = vpop.permute.xlu0 %1561
        %1563 = vrot.lane.b32.xlu0 %v1545, 127
        %v1564 = vpop.permute.xlu0 %1563
        %1565 = vrot.lane.b32.xlu0 %v1546, 127
        %v1566 = vpop.permute.xlu0 %1565
        %1567 = vrot.lane.b32.xlu0 %v1547, 127
        %v1568 = vpop.permute.xlu0 %1567
        %1569 = vrot.lane.b32.xlu0 %v1548, 127
        %v1570 = vpop.permute.xlu0 %1569
        %1571 = vrot.lane.b32.xlu0 %v1549, 127
        %v1572 = vpop.permute.xlu0 %1571
        %1573 = vrot.lane.b32.xlu0 %v1550, 127
        %v1574 = vpop.permute.xlu0 %1573
        %v1583 = vadd.f32 %v1535, %v1560
        %v1584 = vadd.f32 %v1536, %v1562
        %v1585 = vadd.f32 %v1537, %v1564
        %v1586 = vadd.f32 %v1538, %v1566
        %v1587 = vadd.f32 %v1539, %v1568
        %v1588 = vadd.f32 %v1540, %v1570
        %v1589 = vadd.f32 %v1541, %v1572
        %v1590 = vadd.f32 %v1542, %v1574
        %v1591 = vmul.f32 %v1519, %v1024
        %v1592 = vmul.f32 %v1520, %v1025
        %v1593 = vmul.f32 %v1521, %v1026
        %v1594 = vmul.f32 %v1522, %v1027
        %v1595 = vmul.f32 %v1523, %v1028
        %v1596 = vmul.f32 %v1524, %v1029
        %v1597 = vmul.f32 %v1525, %v1030
        %v1598 = vmul.f32 %v1526, %v1031
        %1607 = vrot.lane.b32.xlu0 %v1591, 126
        %v1608 = vpop.permute.xlu0 %1607
        %1609 = vrot.lane.b32.xlu0 %v1592, 126
        %v1610 = vpop.permute.xlu0 %1609
        %1611 = vrot.lane.b32.xlu0 %v1593, 126
        %v1612 = vpop.permute.xlu0 %1611
        %1613 = vrot.lane.b32.xlu0 %v1594, 126
        %v1614 = vpop.permute.xlu0 %1613
        %1615 = vrot.lane.b32.xlu0 %v1595, 126
        %v1616 = vpop.permute.xlu0 %1615
        %1617 = vrot.lane.b32.xlu0 %v1596, 126
        %v1618 = vpop.permute.xlu0 %1617
        %1619 = vrot.lane.b32.xlu0 %v1597, 126
        %v1620 = vpop.permute.xlu0 %1619
        %1621 = vrot.lane.b32.xlu0 %v1598, 126
        %v1622 = vpop.permute.xlu0 %1621
        %v1631 = vadd.f32 %v1583, %v1608
        %v1632 = vadd.f32 %v1584, %v1610
        %v1633 = vadd.f32 %v1585, %v1612
        %v1634 = vadd.f32 %v1586, %v1614
        %v1635 = vadd.f32 %v1587, %v1616
        %v1636 = vadd.f32 %v1588, %v1618
        %v1637 = vadd.f32 %v1589, %v1620
        %v1638 = vadd.f32 %v1590, %v1622
        %v1639 = vld [vmem:[#allocation2 + $0x2] sm:$0x1]
        %v1640 = vld [vmem:[#allocation2 + $0x1a] sm:$0x1]
        %v1641 = vld [vmem:[#allocation2 + $0x32] sm:$0x1]
        %v1642 = vld [vmem:[#allocation2 + $0x4a] sm:$0x1]
        %v1643 = vld [vmem:[#allocation2 + $0x62] sm:$0x1]
        %v1644 = vld [vmem:[#allocation2 + $0x7a] sm:$0x1]
        %v1645 = vld [vmem:[#allocation2 + $0x92] sm:$0x1]
        %v1646 = vld [vmem:[#allocation2 + $0xaa] sm:$0x1]
        %v1647 = vmul.f32 %v1639, %v1098
        %v1648 = vmul.f32 %v1640, %v1099
        %v1649 = vmul.f32 %v1641, %v1100
        %v1650 = vmul.f32 %v1642, %v1101
        %v1651 = vmul.f32 %v1643, %v1102
        %v1652 = vmul.f32 %v1644, %v1103
        %v1653 = vmul.f32 %v1645, %v1104
        %v1654 = vmul.f32 %v1646, %v1105
        %v1655 = vadd.f32 %v1631, %v1647
        %v1656 = vadd.f32 %v1632, %v1648
        %v1657 = vadd.f32 %v1633, %v1649
        %v1658 = vadd.f32 %v1634, %v1650
        %v1659 = vadd.f32 %v1635, %v1651
        %v1660 = vadd.f32 %v1636, %v1652
        %v1661 = vadd.f32 %v1637, %v1653
        %v1662 = vadd.f32 %v1638, %v1654
        %v1663 = vmul.f32 %v1639, %v1132
        %v1664 = vmul.f32 %v1640, %v1133
        %v1665 = vmul.f32 %v1641, %v1134
        %v1666 = vmul.f32 %v1642, %v1135
        %v1667 = vmul.f32 %v1643, %v1136
        %v1668 = vmul.f32 %v1644, %v1137
        %v1669 = vmul.f32 %v1645, %v1138
        %v1670 = vmul.f32 %v1646, %v1139
        %1679 = vrot.lane.b32.xlu0 %v1663, 127
        %v1680 = vpop.permute.xlu0 %1679
        %1681 = vrot.lane.b32.xlu0 %v1664, 127
        %v1682 = vpop.permute.xlu0 %1681
        %1683 = vrot.lane.b32.xlu0 %v1665, 127
        %v1684 = vpop.permute.xlu0 %1683
        %1685 = vrot.lane.b32.xlu0 %v1666, 127
        %v1686 = vpop.permute.xlu0 %1685
        %1687 = vrot.lane.b32.xlu0 %v1667, 127
        %v1688 = vpop.permute.xlu0 %1687
        %1689 = vrot.lane.b32.xlu0 %v1668, 127
        %v1690 = vpop.permute.xlu0 %1689
        %1691 = vrot.lane.b32.xlu0 %v1669, 127
        %v1692 = vpop.permute.xlu0 %1691
        %1693 = vrot.lane.b32.xlu0 %v1670, 127
        %v1694 = vpop.permute.xlu0 %1693
        %v1703 = vadd.f32 %v1655, %v1680
        %v1704 = vadd.f32 %v1656, %v1682
        %v1705 = vadd.f32 %v1657, %v1684
        %v1706 = vadd.f32 %v1658, %v1686
        %v1707 = vadd.f32 %v1659, %v1688
        %v1708 = vadd.f32 %v1660, %v1690
        %v1709 = vadd.f32 %v1661, %v1692
        %v1710 = vadd.f32 %v1662, %v1694
        %v1711 = vmul.f32 %v1639, %v1198
        %v1712 = vmul.f32 %v1640, %v1199
        %v1713 = vmul.f32 %v1641, %v1200
        %v1714 = vmul.f32 %v1642, %v1201
        %v1715 = vmul.f32 %v1643, %v1202
        %v1716 = vmul.f32 %v1644, %v1203
        %v1717 = vmul.f32 %v1645, %v1204
        %v1718 = vmul.f32 %v1646, %v1205
        %1727 = vrot.lane.b32.xlu0 %v1711, 126
        %v1728 = vpop.permute.xlu0 %1727
        %1729 = vrot.lane.b32.xlu0 %v1712, 126
        %v1730 = vpop.permute.xlu0 %1729
        %1731 = vrot.lane.b32.xlu0 %v1713, 126
        %v1732 = vpop.permute.xlu0 %1731
        %1733 = vrot.lane.b32.xlu0 %v1714, 126
        %v1734 = vpop.permute.xlu0 %1733
        %1735 = vrot.lane.b32.xlu0 %v1715, 126
        %v1736 = vpop.permute.xlu0 %1735
        %1737 = vrot.lane.b32.xlu0 %v1716, 126
        %v1738 = vpop.permute.xlu0 %1737
        %1739 = vrot.lane.b32.xlu0 %v1717, 126
        %v1740 = vpop.permute.xlu0 %1739
        %1741 = vrot.lane.b32.xlu0 %v1718, 126
        %v1742 = vpop.permute.xlu0 %1741
        %v1751 = vadd.f32 %v1703, %v1728
        %v1752 = vadd.f32 %v1704, %v1730
        %v1753 = vadd.f32 %v1705, %v1732
        %v1754 = vadd.f32 %v1706, %v1734
        %v1755 = vadd.f32 %v1707, %v1736
        %v1756 = vadd.f32 %v1708, %v1738
        %v1757 = vadd.f32 %v1709, %v1740
        %v1758 = vadd.f32 %v1710, %v1742
        %v1759 = vld [vmem:[#allocation2 + $0x3] sm:$0x1]
        %v1760 = vld [vmem:[#allocation2 + $0x1b] sm:$0x1]
        %v1761 = vld [vmem:[#allocation2 + $0x33] sm:$0x1]
        %v1762 = vld [vmem:[#allocation2 + $0x4b] sm:$0x1]
        %v1763 = vld [vmem:[#allocation2 + $0x63] sm:$0x1]
        %v1764 = vld [vmem:[#allocation2 + $0x7b] sm:$0x1]
        %v1765 = vld [vmem:[#allocation2 + $0x93] sm:$0x1]
        %v1766 = vld [vmem:[#allocation2 + $0xab] sm:$0x1]
        %v1767 = vmul.f32 %v1759, %v1272
        %v1768 = vmul.f32 %v1760, %v1273
        %v1769 = vmul.f32 %v1761, %v1274
        %v1770 = vmul.f32 %v1762, %v1275
        %v1771 = vmul.f32 %v1763, %v1276
        %v1772 = vmul.f32 %v1764, %v1277
        %v1773 = vmul.f32 %v1765, %v1278
        %v1774 = vmul.f32 %v1766, %v1279
        %v1775 = vadd.f32 %v1751, %v1767
        %v1776 = vadd.f32 %v1752, %v1768
        %v1777 = vadd.f32 %v1753, %v1769
        %v1778 = vadd.f32 %v1754, %v1770
        %v1779 = vadd.f32 %v1755, %v1771
        %v1780 = vadd.f32 %v1756, %v1772
        %v1781 = vadd.f32 %v1757, %v1773
        %v1782 = vadd.f32 %v1758, %v1774
        %v1783 = vmul.f32 %v1759, %v1306
        %v1784 = vmul.f32 %v1760, %v1307
        %v1785 = vmul.f32 %v1761, %v1308
        %v1786 = vmul.f32 %v1762, %v1309
        %v1787 = vmul.f32 %v1763, %v1310
        %v1788 = vmul.f32 %v1764, %v1311
        %v1789 = vmul.f32 %v1765, %v1312
        %v1790 = vmul.f32 %v1766, %v1313
        %1799 = vrot.lane.b32.xlu0 %v1783, 127
        %v1800 = vpop.permute.xlu0 %1799
        %1801 = vrot.lane.b32.xlu0 %v1784, 127
        %v1802 = vpop.permute.xlu0 %1801
        %1803 = vrot.lane.b32.xlu0 %v1785, 127
        %v1804 = vpop.permute.xlu0 %1803
        %1805 = vrot.lane.b32.xlu0 %v1786, 127
        %v1806 = vpop.permute.xlu0 %1805
        %1807 = vrot.lane.b32.xlu0 %v1787, 127
        %v1808 = vpop.permute.xlu0 %1807
        %1809 = vrot.lane.b32.xlu0 %v1788, 127
        %v1810 = vpop.permute.xlu0 %1809
        %1811 = vrot.lane.b32.xlu0 %v1789, 127
        %v1812 = vpop.permute.xlu0 %1811
        %1813 = vrot.lane.b32.xlu0 %v1790, 127
        %v1814 = vpop.permute.xlu0 %1813
        %v1823 = vadd.f32 %v1775, %v1800
        %v1824 = vadd.f32 %v1776, %v1802
        %v1825 = vadd.f32 %v1777, %v1804
        %v1826 = vadd.f32 %v1778, %v1806
        %v1827 = vadd.f32 %v1779, %v1808
        %v1828 = vadd.f32 %v1780, %v1810
        %v1829 = vadd.f32 %v1781, %v1812
        %v1830 = vadd.f32 %v1782, %v1814
        %v1831 = vmul.f32 %v1759, %v1372
        %v1832 = vmul.f32 %v1760, %v1373
        %v1833 = vmul.f32 %v1761, %v1374
        %v1834 = vmul.f32 %v1762, %v1375
        %v1835 = vmul.f32 %v1763, %v1376
        %v1836 = vmul.f32 %v1764, %v1377
        %v1837 = vmul.f32 %v1765, %v1378
        %v1838 = vmul.f32 %v1766, %v1379
        %1847 = vrot.lane.b32.xlu0 %v1831, 126
        %v1848 = vpop.permute.xlu0 %1847
        %1849 = vrot.lane.b32.xlu0 %v1832, 126
        %v1850 = vpop.permute.xlu0 %1849
        %1851 = vrot.lane.b32.xlu0 %v1833, 126
        %v1852 = vpop.permute.xlu0 %1851
        %1853 = vrot.lane.b32.xlu0 %v1834, 126
        %v1854 = vpop.permute.xlu0 %1853
        %1855 = vrot.lane.b32.xlu0 %v1835, 126
        %v1856 = vpop.permute.xlu0 %1855
        %1857 = vrot.lane.b32.xlu0 %v1836, 126
        %v1858 = vpop.permute.xlu0 %1857
        %1859 = vrot.lane.b32.xlu0 %v1837, 126
        %v1860 = vpop.permute.xlu0 %1859
        %1861 = vrot.lane.b32.xlu0 %v1838, 126
        %v1862 = vpop.permute.xlu0 %1861
        %v1871 = vadd.f32 %v1823, %v1848
        %v1872 = vadd.f32 %v1824, %v1850
        %v1873 = vadd.f32 %v1825, %v1852
        %v1874 = vadd.f32 %v1826, %v1854
        %v1875 = vadd.f32 %v1827, %v1856
        %v1876 = vadd.f32 %v1828, %v1858
        %v1877 = vadd.f32 %v1829, %v1860
        %v1878 = vadd.f32 %v1830, %v1862
        %v1879 = vadd.f32 %v1871, %v1439
        %v1880 = vadd.f32 %v1872, %v1440
        %v1881 = vadd.f32 %v1873, %v1441
        %v1882 = vadd.f32 %v1874, %v1442
        %v1883 = vadd.f32 %v1875, %v1443
        %v1884 = vadd.f32 %v1876, %v1444
        %v1885 = vadd.f32 %v1877, %v1445
        %v1886 = vadd.f32 %v1878, %v1446
        %v1887 = vmax.f32 %v1879, 0.0
        %v1888 = vmax.f32 %v1880, 0.0
        %v1889 = vmax.f32 %v1881, 0.0
        %v1890 = vmax.f32 %v1882, 0.0
        %v1891 = vmax.f32 %v1883, 0.0
        %v1892 = vmax.f32 %v1884, 0.0
        %v1893 = vmax.f32 %v1885, 0.0
        %v1894 = vmax.f32 %v1886, 0.0
        %v1895 = vmin.f32 %v1887, 6.0
        %v1896 = vmin.f32 %v1888, 6.0
        %v1897 = vmin.f32 %v1889, 6.0
        %v1898 = vmin.f32 %v1890, 6.0
        %v1899 = vmin.f32 %v1891, 6.0
        %v1900 = vmin.f32 %v1892, 6.0
        %v1901 = vmin.f32 %v1893, 6.0
        %v1902 = vmin.f32 %v1894, 6.0
        %v1903 = vmul.f32 %v1895, 1.7133749
        %v1904 = vmul.f32 %v1896, 1.7133749
        %v1905 = vmul.f32 %v1897, 1.7133749
        %v1906 = vmul.f32 %v1898, 1.7133749
        %v1907 = vmul.f32 %v1899, 1.7133749
        %v1908 = vmul.f32 %v1900, 1.7133749
        %v1909 = vmul.f32 %v1901, 1.7133749
        %v1910 = vmul.f32 %v1902, 1.7133749
        %v1919 = vrot.slane %v1904, 7
        %v1920 = vsel %vm1496, %v1919, %v1903
        %v1921 = vrot.slane %v1905, 6
        %v1922 = vsel %vm1499, %v1921, %v1920
        %v1923 = vrot.slane %v1906, 5
        %v1924 = vsel %vm1502, %v1923, %v1922
        %v1925 = vrot.slane %v1907, 4
        %v1926 = vsel %vm1505, %v1925, %v1924
        %v1927 = vrot.slane %v1908, 3
        %v1928 = vsel %vm1508, %v1927, %v1926
        %v1929 = vrot.slane %v1909, 2
        %v1930 = vsel %vm1511, %v1929, %v1928
        %v1931 = vrot.slane %v1910, 1
        %v1932 = vsel %vm1514, %v1931, %v1930
        %1933 = vrot.lane.b32.xlu0 %v1932, 16
        %v1934 = vpop.permute.xlu0 %1933
        %vm1936 = vcmask 261248
        %1937 = vst.msk [vmem:[#allocation3] sm:$0xff] %vm1936, %v1934
        %v1938 = vld [vmem:[#allocation2 + $0x2] sm:$0x1]
        %v1939 = vld [vmem:[#allocation2 + $0x1a] sm:$0x1]
        %v1940 = vld [vmem:[#allocation2 + $0x32] sm:$0x1]
        %v1941 = vld [vmem:[#allocation2 + $0x4a] sm:$0x1]
        %v1942 = vld [vmem:[#allocation2 + $0x62] sm:$0x1]
        %v1943 = vld [vmem:[#allocation2 + $0x7a] sm:$0x1]
        %v1944 = vld [vmem:[#allocation2 + $0x92] sm:$0x1]
        %v1945 = vld [vmem:[#allocation2 + $0xaa] sm:$0x1]
        %v1946 = vmul.f32 %v1938, %v924
        %v1947 = vmul.f32 %v1939, %v925
        %v1948 = vmul.f32 %v1940, %v926
        %v1949 = vmul.f32 %v1941, %v927
        %v1950 = vmul.f32 %v1942, %v928
        %v1951 = vmul.f32 %v1943, %v929
        %v1952 = vmul.f32 %v1944, %v930
        %v1953 = vmul.f32 %v1945, %v931
        %v1954 = vadd.f32 %v1946, 0.0
        %v1955 = vadd.f32 %v1947, 0.0
        %v1956 = vadd.f32 %v1948, 0.0
        %v1957 = vadd.f32 %v1949, 0.0
        %v1958 = vadd.f32 %v1950, 0.0
        %v1959 = vadd.f32 %v1951, 0.0
        %v1960 = vadd.f32 %v1952, 0.0
        %v1961 = vadd.f32 %v1953, 0.0
        %v1962 = vmul.f32 %v1938, %v958
        %v1963 = vmul.f32 %v1939, %v959
        %v1964 = vmul.f32 %v1940, %v960
        %v1965 = vmul.f32 %v1941, %v961
        %v1966 = vmul.f32 %v1942, %v962
        %v1967 = vmul.f32 %v1943, %v963
        %v1968 = vmul.f32 %v1944, %v964
        %v1969 = vmul.f32 %v1945, %v965
        %1978 = vrot.lane.b32.xlu0 %v1962, 127
        %v1979 = vpop.permute.xlu0 %1978
        %1980 = vrot.lane.b32.xlu0 %v1963, 127
        %v1981 = vpop.permute.xlu0 %1980
        %1982 = vrot.lane.b32.xlu0 %v1964, 127
        %v1983 = vpop.permute.xlu0 %1982
        %1984 = vrot.lane.b32.xlu0 %v1965, 127
        %v1985 = vpop.permute.xlu0 %1984
        %1986 = vrot.lane.b32.xlu0 %v1966, 127
        %v1987 = vpop.permute.xlu0 %1986
        %1988 = vrot.lane.b32.xlu0 %v1967, 127
        %v1989 = vpop.permute.xlu0 %1988
        %1990 = vrot.lane.b32.xlu0 %v1968, 127
        %v1991 = vpop.permute.xlu0 %1990
        %1992 = vrot.lane.b32.xlu0 %v1969, 127
        %v1993 = vpop.permute.xlu0 %1992
        %v2002 = vadd.f32 %v1954, %v1979
        %v2003 = vadd.f32 %v1955, %v1981
        %v2004 = vadd.f32 %v1956, %v1983
        %v2005 = vadd.f32 %v1957, %v1985
        %v2006 = vadd.f32 %v1958, %v1987
        %v2007 = vadd.f32 %v1959, %v1989
        %v2008 = vadd.f32 %v1960, %v1991
        %v2009 = vadd.f32 %v1961, %v1993
        %v2010 = vmul.f32 %v1938, %v1024
        %v2011 = vmul.f32 %v1939, %v1025
        %v2012 = vmul.f32 %v1940, %v1026
        %v2013 = vmul.f32 %v1941, %v1027
        %v2014 = vmul.f32 %v1942, %v1028
        %v2015 = vmul.f32 %v1943, %v1029
        %v2016 = vmul.f32 %v1944, %v1030
        %v2017 = vmul.f32 %v1945, %v1031
        %2026 = vrot.lane.b32.xlu0 %v2010, 126
        %v2027 = vpop.permute.xlu0 %2026
        %2028 = vrot.lane.b32.xlu0 %v2011, 126
        %v2029 = vpop.permute.xlu0 %2028
        %2030 = vrot.lane.b32.xlu0 %v2012, 126
        %v2031 = vpop.permute.xlu0 %2030
        %2032 = vrot.lane.b32.xlu0 %v2013, 126
        %v2033 = vpop.permute.xlu0 %2032
        %2034 = vrot.lane.b32.xlu0 %v2014, 126
        %v2035 = vpop.permute.xlu0 %2034
        %2036 = vrot.lane.b32.xlu0 %v2015, 126
        %v2037 = vpop.permute.xlu0 %2036
        %2038 = vrot.lane.b32.xlu0 %v2016, 126
        %v2039 = vpop.permute.xlu0 %2038
        %2040 = vrot.lane.b32.xlu0 %v2017, 126
        %v2041 = vpop.permute.xlu0 %2040
        %v2050 = vadd.f32 %v2002, %v2027
        %v2051 = vadd.f32 %v2003, %v2029
        %v2052 = vadd.f32 %v2004, %v2031
        %v2053 = vadd.f32 %v2005, %v2033
        %v2054 = vadd.f32 %v2006, %v2035
        %v2055 = vadd.f32 %v2007, %v2037
        %v2056 = vadd.f32 %v2008, %v2039
        %v2057 = vadd.f32 %v2009, %v2041
        %v2058 = vld [vmem:[#allocation2 + $0x3] sm:$0x1]
        %v2059 = vld [vmem:[#allocation2 + $0x1b] sm:$0x1]
        %v2060 = vld [vmem:[#allocation2 + $0x33] sm:$0x1]
        %v2061 = vld [vmem:[#allocation2 + $0x4b] sm:$0x1]
        %v2062 = vld [vmem:[#allocation2 + $0x63] sm:$0x1]
        %v2063 = vld [vmem:[#allocation2 + $0x7b] sm:$0x1]
        %v2064 = vld [vmem:[#allocation2 + $0x93] sm:$0x1]
        %v2065 = vld [vmem:[#allocation2 + $0xab] sm:$0x1]
        %v2066 = vmul.f32 %v2058, %v1098
        %v2067 = vmul.f32 %v2059, %v1099
        %v2068 = vmul.f32 %v2060, %v1100
        %v2069 = vmul.f32 %v2061, %v1101
        %v2070 = vmul.f32 %v2062, %v1102
        %v2071 = vmul.f32 %v2063, %v1103
        %v2072 = vmul.f32 %v2064, %v1104
        %v2073 = vmul.f32 %v2065, %v1105
        %v2074 = vadd.f32 %v2050, %v2066
        %v2075 = vadd.f32 %v2051, %v2067
        %v2076 = vadd.f32 %v2052, %v2068
        %v2077 = vadd.f32 %v2053, %v2069
        %v2078 = vadd.f32 %v2054, %v2070
        %v2079 = vadd.f32 %v2055, %v2071
        %v2080 = vadd.f32 %v2056, %v2072
        %v2081 = vadd.f32 %v2057, %v2073
        %v2082 = vmul.f32 %v2058, %v1132
        %v2083 = vmul.f32 %v2059, %v1133
        %v2084 = vmul.f32 %v2060, %v1134
        %v2085 = vmul.f32 %v2061, %v1135
        %v2086 = vmul.f32 %v2062, %v1136
        %v2087 = vmul.f32 %v2063, %v1137
        %v2088 = vmul.f32 %v2064, %v1138
        %v2089 = vmul.f32 %v2065, %v1139
        %2098 = vrot.lane.b32.xlu0 %v2082, 127
        %v2099 = vpop.permute.xlu0 %2098
        %2100 = vrot.lane.b32.xlu0 %v2083, 127
        %v2101 = vpop.permute.xlu0 %2100
        %2102 = vrot.lane.b32.xlu0 %v2084, 127
        %v2103 = vpop.permute.xlu0 %2102
        %2104 = vrot.lane.b32.xlu0 %v2085, 127
        %v2105 = vpop.permute.xlu0 %2104
        %2106 = vrot.lane.b32.xlu0 %v2086, 127
        %v2107 = vpop.permute.xlu0 %2106
        %2108 = vrot.lane.b32.xlu0 %v2087, 127
        %v2109 = vpop.permute.xlu0 %2108
        %2110 = vrot.lane.b32.xlu0 %v2088, 127
        %v2111 = vpop.permute.xlu0 %2110
        %2112 = vrot.lane.b32.xlu0 %v2089, 127
        %v2113 = vpop.permute.xlu0 %2112
        %v2122 = vadd.f32 %v2074, %v2099
        %v2123 = vadd.f32 %v2075, %v2101
        %v2124 = vadd.f32 %v2076, %v2103
        %v2125 = vadd.f32 %v2077, %v2105
        %v2126 = vadd.f32 %v2078, %v2107
        %v2127 = vadd.f32 %v2079, %v2109
        %v2128 = vadd.f32 %v2080, %v2111
        %v2129 = vadd.f32 %v2081, %v2113
        %v2130 = vmul.f32 %v2058, %v1198
        %v2131 = vmul.f32 %v2059, %v1199
        %v2132 = vmul.f32 %v2060, %v1200
        %v2133 = vmul.f32 %v2061, %v1201
        %v2134 = vmul.f32 %v2062, %v1202
        %v2135 = vmul.f32 %v2063, %v1203
        %v2136 = vmul.f32 %v2064, %v1204
        %v2137 = vmul.f32 %v2065, %v1205
        %2146 = vrot.lane.b32.xlu0 %v2130, 126
        %v2147 = vpop.permute.xlu0 %2146
        %2148 = vrot.lane.b32.xlu0 %v2131, 126
        %v2149 = vpop.permute.xlu0 %2148
        %2150 = vrot.lane.b32.xlu0 %v2132, 126
        %v2151 = vpop.permute.xlu0 %2150
        %2152 = vrot.lane.b32.xlu0 %v2133, 126
        %v2153 = vpop.permute.xlu0 %2152
        %2154 = vrot.lane.b32.xlu0 %v2134, 126
        %v2155 = vpop.permute.xlu0 %2154
        %2156 = vrot.lane.b32.xlu0 %v2135, 126
        %v2157 = vpop.permute.xlu0 %2156
        %2158 = vrot.lane.b32.xlu0 %v2136, 126
        %v2159 = vpop.permute.xlu0 %2158
        %2160 = vrot.lane.b32.xlu0 %v2137, 126
        %v2161 = vpop.permute.xlu0 %2160
        %v2170 = vadd.f32 %v2122, %v2147
        %v2171 = vadd.f32 %v2123, %v2149
        %v2172 = vadd.f32 %v2124, %v2151
        %v2173 = vadd.f32 %v2125, %v2153
        %v2174 = vadd.f32 %v2126, %v2155
        %v2175 = vadd.f32 %v2127, %v2157
        %v2176 = vadd.f32 %v2128, %v2159
        %v2177 = vadd.f32 %v2129, %v2161
        %v2178 = vld [vmem:[#allocation2 + $0x4] sm:$0x1]
        %v2179 = vld [vmem:[#allocation2 + $0x1c] sm:$0x1]
        %v2180 = vld [vmem:[#allocation2 + $0x34] sm:$0x1]
        %v2181 = vld [vmem:[#allocation2 + $0x4c] sm:$0x1]
        %v2182 = vld [vmem:[#allocation2 + $0x64] sm:$0x1]
        %v2183 = vld [vmem:[#allocation2 + $0x7c] sm:$0x1]
        %v2184 = vld [vmem:[#allocation2 + $0x94] sm:$0x1]
        %v2185 = vld [vmem:[#allocation2 + $0xac] sm:$0x1]
        %v2186 = vmul.f32 %v2178, %v1272
        %v2187 = vmul.f32 %v2179, %v1273
        %v2188 = vmul.f32 %v2180, %v1274
        %v2189 = vmul.f32 %v2181, %v1275
        %v2190 = vmul.f32 %v2182, %v1276
        %v2191 = vmul.f32 %v2183, %v1277
        %v2192 = vmul.f32 %v2184, %v1278
        %v2193 = vmul.f32 %v2185, %v1279
        %v2194 = vadd.f32 %v2170, %v2186
        %v2195 = vadd.f32 %v2171, %v2187
        %v2196 = vadd.f32 %v2172, %v2188
        %v2197 = vadd.f32 %v2173, %v2189
        %v2198 = vadd.f32 %v2174, %v2190
        %v2199 = vadd.f32 %v2175, %v2191
        %v2200 = vadd.f32 %v2176, %v2192
        %v2201 = vadd.f32 %v2177, %v2193
        %v2202 = vmul.f32 %v2178, %v1306
        %v2203 = vmul.f32 %v2179, %v1307
        %v2204 = vmul.f32 %v2180, %v1308
        %v2205 = vmul.f32 %v2181, %v1309
        %v2206 = vmul.f32 %v2182, %v1310
        %v2207 = vmul.f32 %v2183, %v1311
        %v2208 = vmul.f32 %v2184, %v1312
        %v2209 = vmul.f32 %v2185, %v1313
        %2218 = vrot.lane.b32.xlu0 %v2202, 127
        %v2219 = vpop.permute.xlu0 %2218
        %2220 = vrot.lane.b32.xlu0 %v2203, 127
        %v2221 = vpop.permute.xlu0 %2220
        %2222 = vrot.lane.b32.xlu0 %v2204, 127
        %v2223 = vpop.permute.xlu0 %2222
        %2224 = vrot.lane.b32.xlu0 %v2205, 127
        %v2225 = vpop.permute.xlu0 %2224
        %2226 = vrot.lane.b32.xlu0 %v2206, 127
        %v2227 = vpop.permute.xlu0 %2226
        %2228 = vrot.lane.b32.xlu0 %v2207, 127
        %v2229 = vpop.permute.xlu0 %2228
        %2230 = vrot.lane.b32.xlu0 %v2208, 127
        %v2231 = vpop.permute.xlu0 %2230
        %2232 = vrot.lane.b32.xlu0 %v2209, 127
        %v2233 = vpop.permute.xlu0 %2232
        %v2242 = vadd.f32 %v2194, %v2219
        %v2243 = vadd.f32 %v2195, %v2221
        %v2244 = vadd.f32 %v2196, %v2223
        %v2245 = vadd.f32 %v2197, %v2225
        %v2246 = vadd.f32 %v2198, %v2227
        %v2247 = vadd.f32 %v2199, %v2229
        %v2248 = vadd.f32 %v2200, %v2231
        %v2249 = vadd.f32 %v2201, %v2233
        %v2250 = vmul.f32 %v2178, %v1372
        %v2251 = vmul.f32 %v2179, %v1373
        %v2252 = vmul.f32 %v2180, %v1374
        %v2253 = vmul.f32 %v2181, %v1375
        %v2254 = vmul.f32 %v2182, %v1376
        %v2255 = vmul.f32 %v2183, %v1377
        %v2256 = vmul.f32 %v2184, %v1378
        %v2257 = vmul.f32 %v2185, %v1379
        %2266 = vrot.lane.b32.xlu0 %v2250, 126
        %v2267 = vpop.permute.xlu0 %2266
        %2268 = vrot.lane.b32.xlu0 %v2251, 126
        %v2269 = vpop.permute.xlu0 %2268
        %2270 = vrot.lane.b32.xlu0 %v2252, 126
        %v2271 = vpop.permute.xlu0 %2270
        %2272 = vrot.lane.b32.xlu0 %v2253, 126
        %v2273 = vpop.permute.xlu0 %2272
        %2274 = vrot.lane.b32.xlu0 %v2254, 126
        %v2275 = vpop.permute.xlu0 %2274
        %2276 = vrot.lane.b32.xlu0 %v2255, 126
        %v2277 = vpop.permute.xlu0 %2276
        %2278 = vrot.lane.b32.xlu0 %v2256, 126
        %v2279 = vpop.permute.xlu0 %2278
        %2280 = vrot.lane.b32.xlu0 %v2257, 126
        %v2281 = vpop.permute.xlu0 %2280
        %v2290 = vadd.f32 %v2242, %v2267
        %v2291 = vadd.f32 %v2243, %v2269
        %v2292 = vadd.f32 %v2244, %v2271
        %v2293 = vadd.f32 %v2245, %v2273
        %v2294 = vadd.f32 %v2246, %v2275
        %v2295 = vadd.f32 %v2247, %v2277
        %v2296 = vadd.f32 %v2248, %v2279
        %v2297 = vadd.f32 %v2249, %v2281
        %v2298 = vadd.f32 %v2290, %v1439
        %v2299 = vadd.f32 %v2291, %v1440
        %v2300 = vadd.f32 %v2292, %v1441
        %v2301 = vadd.f32 %v2293, %v1442
        %v2302 = vadd.f32 %v2294, %v1443
        %v2303 = vadd.f32 %v2295, %v1444
        %v2304 = vadd.f32 %v2296, %v1445
        %v2305 = vadd.f32 %v2297, %v1446
        %v2306 = vmax.f32 %v2298, 0.0
        %v2307 = vmax.f32 %v2299, 0.0
        %v2308 = vmax.f32 %v2300, 0.0
        %v2309 = vmax.f32 %v2301, 0.0
        %v2310 = vmax.f32 %v2302, 0.0
        %v2311 = vmax.f32 %v2303, 0.0
        %v2312 = vmax.f32 %v2304, 0.0
        %v2313 = vmax.f32 %v2305, 0.0
        %v2314 = vmin.f32 %v2306, 6.0
        %v2315 = vmin.f32 %v2307, 6.0
        %v2316 = vmin.f32 %v2308, 6.0
        %v2317 = vmin.f32 %v2309, 6.0
        %v2318 = vmin.f32 %v2310, 6.0
        %v2319 = vmin.f32 %v2311, 6.0
        %v2320 = vmin.f32 %v2312, 6.0
        %v2321 = vmin.f32 %v2313, 6.0
        %v2322 = vmul.f32 %v2314, 1.7133749
        %v2323 = vmul.f32 %v2315, 1.7133749
        %v2324 = vmul.f32 %v2316, 1.7133749
        %v2325 = vmul.f32 %v2317, 1.7133749
        %v2326 = vmul.f32 %v2318, 1.7133749
        %v2327 = vmul.f32 %v2319, 1.7133749
        %v2328 = vmul.f32 %v2320, 1.7133749
        %v2329 = vmul.f32 %v2321, 1.7133749
        %v2338 = vrot.slane %v2323, 7
        %v2339 = vsel %vm1496, %v2338, %v2322
        %v2340 = vrot.slane %v2324, 6
        %v2341 = vsel %vm1499, %v2340, %v2339
        %v2342 = vrot.slane %v2325, 5
        %v2343 = vsel %vm1502, %v2342, %v2341
        %v2344 = vrot.slane %v2326, 4
        %v2345 = vsel %vm1505, %v2344, %v2343
        %v2346 = vrot.slane %v2327, 3
        %v2347 = vsel %vm1508, %v2346, %v2345
        %v2348 = vrot.slane %v2328, 2
        %v2349 = vsel %vm1511, %v2348, %v2347
        %v2350 = vrot.slane %v2329, 1
        %v2351 = vsel %vm1514, %v2350, %v2349
        %2352 = vrot.lane.b32.xlu0 %v2351, 32
        %v2353 = vpop.permute.xlu0 %2352
        %vm2355 = vcmask 392448
        %2356 = vst.msk [vmem:[#allocation3] sm:$0xff] %vm2355, %v2353
        %v2357 = vld [vmem:[#allocation2 + $0x3] sm:$0x1]
        %v2358 = vld [vmem:[#allocation2 + $0x1b] sm:$0x1]
        %v2359 = vld [vmem:[#allocation2 + $0x33] sm:$0x1]
        %v2360 = vld [vmem:[#allocation2 + $0x4b] sm:$0x1]
        %v2361 = vld [vmem:[#allocation2 + $0x63] sm:$0x1]
        %v2362 = vld [vmem:[#allocation2 + $0x7b] sm:$0x1]
        %v2363 = vld [vmem:[#allocation2 + $0x93] sm:$0x1]
        %v2364 = vld [vmem:[#allocation2 + $0xab] sm:$0x1]
        %v2365 = vmul.f32 %v2357, %v924
        %v2366 = vmul.f32 %v2358, %v925
        %v2367 = vmul.f32 %v2359, %v926
        %v2368 = vmul.f32 %v2360, %v927
        %v2369 = vmul.f32 %v2361, %v928
        %v2370 = vmul.f32 %v2362, %v929
        %v2371 = vmul.f32 %v2363, %v930
        %v2372 = vmul.f32 %v2364, %v931
        %v2373 = vadd.f32 %v2365, 0.0
        %v2374 = vadd.f32 %v2366, 0.0
        %v2375 = vadd.f32 %v2367, 0.0
        %v2376 = vadd.f32 %v2368, 0.0
        %v2377 = vadd.f32 %v2369, 0.0
        %v2378 = vadd.f32 %v2370, 0.0
        %v2379 = vadd.f32 %v2371, 0.0
        %v2380 = vadd.f32 %v2372, 0.0
        %v2381 = vmul.f32 %v2357, %v958
        %v2382 = vmul.f32 %v2358, %v959
        %v2383 = vmul.f32 %v2359, %v960
        %v2384 = vmul.f32 %v2360, %v961
        %v2385 = vmul.f32 %v2361, %v962
        %v2386 = vmul.f32 %v2362, %v963
        %v2387 = vmul.f32 %v2363, %v964
        %v2388 = vmul.f32 %v2364, %v965
        %2397 = vrot.lane.b32.xlu0 %v2381, 127
        %v2398 = vpop.permute.xlu0 %2397
        %2399 = vrot.lane.b32.xlu0 %v2382, 127
        %v2400 = vpop.permute.xlu0 %2399
        %2401 = vrot.lane.b32.xlu0 %v2383, 127
        %v2402 = vpop.permute.xlu0 %2401
        %2403 = vrot.lane.b32.xlu0 %v2384, 127
        %v2404 = vpop.permute.xlu0 %2403
        %2405 = vrot.lane.b32.xlu0 %v2385, 127
        %v2406 = vpop.permute.xlu0 %2405
        %2407 = vrot.lane.b32.xlu0 %v2386, 127
        %v2408 = vpop.permute.xlu0 %2407
        %2409 = vrot.lane.b32.xlu0 %v2387, 127
        %v2410 = vpop.permute.xlu0 %2409
        %2411 = vrot.lane.b32.xlu0 %v2388, 127
        %v2412 = vpop.permute.xlu0 %2411
        %v2421 = vadd.f32 %v2373, %v2398
        %v2422 = vadd.f32 %v2374, %v2400
        %v2423 = vadd.f32 %v2375, %v2402
        %v2424 = vadd.f32 %v2376, %v2404
        %v2425 = vadd.f32 %v2377, %v2406
        %v2426 = vadd.f32 %v2378, %v2408
        %v2427 = vadd.f32 %v2379, %v2410
        %v2428 = vadd.f32 %v2380, %v2412
        %v2429 = vmul.f32 %v2357, %v1024
        %v2430 = vmul.f32 %v2358, %v1025
        %v2431 = vmul.f32 %v2359, %v1026
        %v2432 = vmul.f32 %v2360, %v1027
        %v2433 = vmul.f32 %v2361, %v1028
        %v2434 = vmul.f32 %v2362, %v1029
        %v2435 = vmul.f32 %v2363, %v1030
        %v2436 = vmul.f32 %v2364, %v1031
        %2445 = vrot.lane.b32.xlu0 %v2429, 126
        %v2446 = vpop.permute.xlu0 %2445
        %2447 = vrot.lane.b32.xlu0 %v2430, 126
        %v2448 = vpop.permute.xlu0 %2447
        %2449 = vrot.lane.b32.xlu0 %v2431, 126
        %v2450 = vpop.permute.xlu0 %2449
        %2451 = vrot.lane.b32.xlu0 %v2432, 126
        %v2452 = vpop.permute.xlu0 %2451
        %2453 = vrot.lane.b32.xlu0 %v2433, 126
        %v2454 = vpop.permute.xlu0 %2453
        %2455 = vrot.lane.b32.xlu0 %v2434, 126
        %v2456 = vpop.permute.xlu0 %2455
        %2457 = vrot.lane.b32.xlu0 %v2435, 126
        %v2458 = vpop.permute.xlu0 %2457
        %2459 = vrot.lane.b32.xlu0 %v2436, 126
        %v2460 = vpop.permute.xlu0 %2459
        %v2469 = vadd.f32 %v2421, %v2446
        %v2470 = vadd.f32 %v2422, %v2448
        %v2471 = vadd.f32 %v2423, %v2450
        %v2472 = vadd.f32 %v2424, %v2452
        %v2473 = vadd.f32 %v2425, %v2454
        %v2474 = vadd.f32 %v2426, %v2456
        %v2475 = vadd.f32 %v2427, %v2458
        %v2476 = vadd.f32 %v2428, %v2460
        %v2477 = vld [vmem:[#allocation2 + $0x4] sm:$0x1]
        %v2478 = vld [vmem:[#allocation2 + $0x1c] sm:$0x1]
        %v2479 = vld [vmem:[#allocation2 + $0x34] sm:$0x1]
        %v2480 = vld [vmem:[#allocation2 + $0x4c] sm:$0x1]
        %v2481 = vld [vmem:[#allocation2 + $0x64] sm:$0x1]
        %v2482 = vld [vmem:[#allocation2 + $0x7c] sm:$0x1]
        %v2483 = vld [vmem:[#allocation2 + $0x94] sm:$0x1]
        %v2484 = vld [vmem:[#allocation2 + $0xac] sm:$0x1]
        %v2485 = vmul.f32 %v2477, %v1098
        %v2486 = vmul.f32 %v2478, %v1099
        %v2487 = vmul.f32 %v2479, %v1100
        %v2488 = vmul.f32 %v2480, %v1101
        %v2489 = vmul.f32 %v2481, %v1102
        %v2490 = vmul.f32 %v2482, %v1103
        %v2491 = vmul.f32 %v2483, %v1104
        %v2492 = vmul.f32 %v2484, %v1105
        %v2493 = vadd.f32 %v2469, %v2485
        %v2494 = vadd.f32 %v2470, %v2486
        %v2495 = vadd.f32 %v2471, %v2487
        %v2496 = vadd.f32 %v2472, %v2488
        %v2497 = vadd.f32 %v2473, %v2489
        %v2498 = vadd.f32 %v2474, %v2490
        %v2499 = vadd.f32 %v2475, %v2491
        %v2500 = vadd.f32 %v2476, %v2492
        %v2501 = vmul.f32 %v2477, %v1132
        %v2502 = vmul.f32 %v2478, %v1133
        %v2503 = vmul.f32 %v2479, %v1134
        %v2504 = vmul.f32 %v2480, %v1135
        %v2505 = vmul.f32 %v2481, %v1136
        %v2506 = vmul.f32 %v2482, %v1137
        %v2507 = vmul.f32 %v2483, %v1138
        %v2508 = vmul.f32 %v2484, %v1139
        %2517 = vrot.lane.b32.xlu0 %v2501, 127
        %v2518 = vpop.permute.xlu0 %2517
        %2519 = vrot.lane.b32.xlu0 %v2502, 127
        %v2520 = vpop.permute.xlu0 %2519
        %2521 = vrot.lane.b32.xlu0 %v2503, 127
        %v2522 = vpop.permute.xlu0 %2521
        %2523 = vrot.lane.b32.xlu0 %v2504, 127
        %v2524 = vpop.permute.xlu0 %2523
        %2525 = vrot.lane.b32.xlu0 %v2505, 127
        %v2526 = vpop.permute.xlu0 %2525
        %2527 = vrot.lane.b32.xlu0 %v2506, 127
        %v2528 = vpop.permute.xlu0 %2527
        %2529 = vrot.lane.b32.xlu0 %v2507, 127
        %v2530 = vpop.permute.xlu0 %2529
        %2531 = vrot.lane.b32.xlu0 %v2508, 127
        %v2532 = vpop.permute.xlu0 %2531
        %v2541 = vadd.f32 %v2493, %v2518
        %v2542 = vadd.f32 %v2494, %v2520
        %v2543 = vadd.f32 %v2495, %v2522
        %v2544 = vadd.f32 %v2496, %v2524
        %v2545 = vadd.f32 %v2497, %v2526
        %v2546 = vadd.f32 %v2498, %v2528
        %v2547 = vadd.f32 %v2499, %v2530
        %v2548 = vadd.f32 %v2500, %v2532
        %v2549 = vmul.f32 %v2477, %v1198
        %v2550 = vmul.f32 %v2478, %v1199
        %v2551 = vmul.f32 %v2479, %v1200
        %v2552 = vmul.f32 %v2480, %v1201
        %v2553 = vmul.f32 %v2481, %v1202
        %v2554 = vmul.f32 %v2482, %v1203
        %v2555 = vmul.f32 %v2483, %v1204
        %v2556 = vmul.f32 %v2484, %v1205
        %2565 = vrot.lane.b32.xlu0 %v2549, 126
        %v2566 = vpop.permute.xlu0 %2565
        %2567 = vrot.lane.b32.xlu0 %v2550, 126
        %v2568 = vpop.permute.xlu0 %2567
        %2569 = vrot.lane.b32.xlu0 %v2551, 126
        %v2570 = vpop.permute.xlu0 %2569
        %2571 = vrot.lane.b32.xlu0 %v2552, 126
        %v2572 = vpop.permute.xlu0 %2571
        %2573 = vrot.lane.b32.xlu0 %v2553, 126
        %v2574 = vpop.permute.xlu0 %2573
        %2575 = vrot.lane.b32.xlu0 %v2554, 126
        %v2576 = vpop.permute.xlu0 %2575
        %2577 = vrot.lane.b32.xlu0 %v2555, 126
        %v2578 = vpop.permute.xlu0 %2577
        %2579 = vrot.lane.b32.xlu0 %v2556, 126
        %v2580 = vpop.permute.xlu0 %2579
        %v2589 = vadd.f32 %v2541, %v2566
        %v2590 = vadd.f32 %v2542, %v2568
        %v2591 = vadd.f32 %v2543, %v2570
        %v2592 = vadd.f32 %v2544, %v2572
        %v2593 = vadd.f32 %v2545, %v2574
        %v2594 = vadd.f32 %v2546, %v2576
        %v2595 = vadd.f32 %v2547, %v2578
        %v2596 = vadd.f32 %v2548, %v2580
        %v2597 = vld [vmem:[#allocation2 + $0x5] sm:$0x1]
        %v2598 = vld [vmem:[#allocation2 + $0x1d] sm:$0x1]
        %v2599 = vld [vmem:[#allocation2 + $0x35] sm:$0x1]
        %v2600 = vld [vmem:[#allocation2 + $0x4d] sm:$0x1]
        %v2601 = vld [vmem:[#allocation2 + $0x65] sm:$0x1]
        %v2602 = vld [vmem:[#allocation2 + $0x7d] sm:$0x1]
        %v2603 = vld [vmem:[#allocation2 + $0x95] sm:$0x1]
        %v2604 = vld [vmem:[#allocation2 + $0xad] sm:$0x1]
        %v2605 = vmul.f32 %v2597, %v1272
        %v2606 = vmul.f32 %v2598, %v1273
        %v2607 = vmul.f32 %v2599, %v1274
        %v2608 = vmul.f32 %v2600, %v1275
        %v2609 = vmul.f32 %v2601, %v1276
        %v2610 = vmul.f32 %v2602, %v1277
        %v2611 = vmul.f32 %v2603, %v1278
        %v2612 = vmul.f32 %v2604, %v1279
        %v2613 = vadd.f32 %v2589, %v2605
        %v2614 = vadd.f32 %v2590, %v2606
        %v2615 = vadd.f32 %v2591, %v2607
        %v2616 = vadd.f32 %v2592, %v2608
        %v2617 = vadd.f32 %v2593, %v2609
        %v2618 = vadd.f32 %v2594, %v2610
        %v2619 = vadd.f32 %v2595, %v2611
        %v2620 = vadd.f32 %v2596, %v2612
        %v2621 = vmul.f32 %v2597, %v1306
        %v2622 = vmul.f32 %v2598, %v1307
        %v2623 = vmul.f32 %v2599, %v1308
        %v2624 = vmul.f32 %v2600, %v1309
        %v2625 = vmul.f32 %v2601, %v1310
        %v2626 = vmul.f32 %v2602, %v1311
        %v2627 = vmul.f32 %v2603, %v1312
        %v2628 = vmul.f32 %v2604, %v1313
        %2637 = vrot.lane.b32.xlu0 %v2621, 127
        %v2638 = vpop.permute.xlu0 %2637
        %2639 = vrot.lane.b32.xlu0 %v2622, 127
        %v2640 = vpop.permute.xlu0 %2639
        %2641 = vrot.lane.b32.xlu0 %v2623, 127
        %v2642 = vpop.permute.xlu0 %2641
        %2643 = vrot.lane.b32.xlu0 %v2624, 127
        %v2644 = vpop.permute.xlu0 %2643
        %2645 = vrot.lane.b32.xlu0 %v2625, 127
        %v2646 = vpop.permute.xlu0 %2645
        %2647 = vrot.lane.b32.xlu0 %v2626, 127
        %v2648 = vpop.permute.xlu0 %2647
        %2649 = vrot.lane.b32.xlu0 %v2627, 127
        %v2650 = vpop.permute.xlu0 %2649
        %2651 = vrot.lane.b32.xlu0 %v2628, 127
        %v2652 = vpop.permute.xlu0 %2651
        %v2661 = vadd.f32 %v2613, %v2638
        %v2662 = vadd.f32 %v2614, %v2640
        %v2663 = vadd.f32 %v2615, %v2642
        %v2664 = vadd.f32 %v2616, %v2644
        %v2665 = vadd.f32 %v2617, %v2646
        %v2666 = vadd.f32 %v2618, %v2648
        %v2667 = vadd.f32 %v2619, %v2650
        %v2668 = vadd.f32 %v2620, %v2652
        %v2669 = vmul.f32 %v2597, %v1372
        %v2670 = vmul.f32 %v2598, %v1373
        %v2671 = vmul.f32 %v2599, %v1374
        %v2672 = vmul.f32 %v2600, %v1375
        %v2673 = vmul.f32 %v2601, %v1376
        %v2674 = vmul.f32 %v2602, %v1377
        %v2675 = vmul.f32 %v2603, %v1378
        %v2676 = vmul.f32 %v2604, %v1379
        %2685 = vrot.lane.b32.xlu0 %v2669, 126
        %v2686 = vpop.permute.xlu0 %2685
        %2687 = vrot.lane.b32.xlu0 %v2670, 126
        %v2688 = vpop.permute.xlu0 %2687
        %2689 = vrot.lane.b32.xlu0 %v2671, 126
        %v2690 = vpop.permute.xlu0 %2689
        %2691 = vrot.lane.b32.xlu0 %v2672, 126
        %v2692 = vpop.permute.xlu0 %2691
        %2693 = vrot.lane.b32.xlu0 %v2673, 126
        %v2694 = vpop.permute.xlu0 %2693
        %2695 = vrot.lane.b32.xlu0 %v2674, 126
        %v2696 = vpop.permute.xlu0 %2695
        %2697 = vrot.lane.b32.xlu0 %v2675, 126
        %v2698 = vpop.permute.xlu0 %2697
        %2699 = vrot.lane.b32.xlu0 %v2676, 126
        %v2700 = vpop.permute.xlu0 %2699
        %v2709 = vadd.f32 %v2661, %v2686
        %v2710 = vadd.f32 %v2662, %v2688
        %v2711 = vadd.f32 %v2663, %v2690
        %v2712 = vadd.f32 %v2664, %v2692
        %v2713 = vadd.f32 %v2665, %v2694
        %v2714 = vadd.f32 %v2666, %v2696
        %v2715 = vadd.f32 %v2667, %v2698
        %v2716 = vadd.f32 %v2668, %v2700
        %v2717 = vadd.f32 %v2709, %v1439
        %v2718 = vadd.f32 %v2710, %v1440
        %v2719 = vadd.f32 %v2711, %v1441
        %v2720 = vadd.f32 %v2712, %v1442
        %v2721 = vadd.f32 %v2713, %v1443
        %v2722 = vadd.f32 %v2714, %v1444
        %v2723 = vadd.f32 %v2715, %v1445
        %v2724 = vadd.f32 %v2716, %v1446
        %v2725 = vmax.f32 %v2717, 0.0
        %v2726 = vmax.f32 %v2718, 0.0
        %v2727 = vmax.f32 %v2719, 0.0
        %v2728 = vmax.f32 %v2720, 0.0
        %v2729 = vmax.f32 %v2721, 0.0
        %v2730 = vmax.f32 %v2722, 0.0
        %v2731 = vmax.f32 %v2723, 0.0
        %v2732 = vmax.f32 %v2724, 0.0
        %v2733 = vmin.f32 %v2725, 6.0
        %v2734 = vmin.f32 %v2726, 6.0
        %v2735 = vmin.f32 %v2727, 6.0
        %v2736 = vmin.f32 %v2728, 6.0
        %v2737 = vmin.f32 %v2729, 6.0
        %v2738 = vmin.f32 %v2730, 6.0
        %v2739 = vmin.f32 %v2731, 6.0
        %v2740 = vmin.f32 %v2732, 6.0
        %v2741 = vmul.f32 %v2733, 1.7133749
        %v2742 = vmul.f32 %v2734, 1.7133749
        %v2743 = vmul.f32 %v2735, 1.7133749
        %v2744 = vmul.f32 %v2736, 1.7133749
        %v2745 = vmul.f32 %v2737, 1.7133749
        %v2746 = vmul.f32 %v2738, 1.7133749
        %v2747 = vmul.f32 %v2739, 1.7133749
        %v2748 = vmul.f32 %v2740, 1.7133749
        %v2757 = vrot.slane %v2742, 7
        %v2758 = vsel %vm1496, %v2757, %v2741
        %v2759 = vrot.slane %v2743, 6
        %v2760 = vsel %vm1499, %v2759, %v2758
        %v2761 = vrot.slane %v2744, 5
        %v2762 = vsel %vm1502, %v2761, %v2760
        %v2763 = vrot.slane %v2745, 4
        %v2764 = vsel %vm1505, %v2763, %v2762
        %v2765 = vrot.slane %v2746, 3
        %v2766 = vsel %vm1508, %v2765, %v2764
        %v2767 = vrot.slane %v2747, 2
        %v2768 = vsel %vm1511, %v2767, %v2766
        %v2769 = vrot.slane %v2748, 1
        %v2770 = vsel %vm1514, %v2769, %v2768
        %2771 = vrot.lane.b32.xlu0 %v2770, 48
        %v2772 = vpop.permute.xlu0 %2771
        %vm2774 = vcmask 523648
        %2775 = vst.msk [vmem:[#allocation3] sm:$0xff] %vm2774, %v2772
        %v2776 = vld [vmem:[#allocation2 + $0x4] sm:$0x1]
        %v2777 = vld [vmem:[#allocation2 + $0x1c] sm:$0x1]
        %v2778 = vld [vmem:[#allocation2 + $0x34] sm:$0x1]
        %v2779 = vld [vmem:[#allocation2 + $0x4c] sm:$0x1]
        %v2780 = vld [vmem:[#allocation2 + $0x64] sm:$0x1]
        %v2781 = vld [vmem:[#allocation2 + $0x7c] sm:$0x1]
        %v2782 = vld [vmem:[#allocation2 + $0x94] sm:$0x1]
        %v2783 = vld [vmem:[#allocation2 + $0xac] sm:$0x1]
        %v2784 = vmul.f32 %v2776, %v924
        %v2785 = vmul.f32 %v2777, %v925
        %v2786 = vmul.f32 %v2778, %v926
        %v2787 = vmul.f32 %v2779, %v927
        %v2788 = vmul.f32 %v2780, %v928
        %v2789 = vmul.f32 %v2781, %v929
        %v2790 = vmul.f32 %v2782, %v930
        %v2791 = vmul.f32 %v2783, %v931
        %v2792 = vadd.f32 %v2784, 0.0
        %v2793 = vadd.f32 %v2785, 0.0
        %v2794 = vadd.f32 %v2786, 0.0
        %v2795 = vadd.f32 %v2787, 0.0
        %v2796 = vadd.f32 %v2788, 0.0
        %v2797 = vadd.f32 %v2789, 0.0
        %v2798 = vadd.f32 %v2790, 0.0
        %v2799 = vadd.f32 %v2791, 0.0
        %v2800 = vmul.f32 %v2776, %v958
        %v2801 = vmul.f32 %v2777, %v959
        %v2802 = vmul.f32 %v2778, %v960
        %v2803 = vmul.f32 %v2779, %v961
        %v2804 = vmul.f32 %v2780, %v962
        %v2805 = vmul.f32 %v2781, %v963
        %v2806 = vmul.f32 %v2782, %v964
        %v2807 = vmul.f32 %v2783, %v965
        %2816 = vrot.lane.b32.xlu0 %v2800, 127
        %v2817 = vpop.permute.xlu0 %2816
        %2818 = vrot.lane.b32.xlu0 %v2801, 127
        %v2819 = vpop.permute.xlu0 %2818
        %2820 = vrot.lane.b32.xlu0 %v2802, 127
        %v2821 = vpop.permute.xlu0 %2820
        %2822 = vrot.lane.b32.xlu0 %v2803, 127
        %v2823 = vpop.permute.xlu0 %2822
        %2824 = vrot.lane.b32.xlu0 %v2804, 127
        %v2825 = vpop.permute.xlu0 %2824
        %2826 = vrot.lane.b32.xlu0 %v2805, 127
        %v2827 = vpop.permute.xlu0 %2826
        %2828 = vrot.lane.b32.xlu0 %v2806, 127
        %v2829 = vpop.permute.xlu0 %2828
        %2830 = vrot.lane.b32.xlu0 %v2807, 127
        %v2831 = vpop.permute.xlu0 %2830
        %v2840 = vadd.f32 %v2792, %v2817
        %v2841 = vadd.f32 %v2793, %v2819
        %v2842 = vadd.f32 %v2794, %v2821
        %v2843 = vadd.f32 %v2795, %v2823
        %v2844 = vadd.f32 %v2796, %v2825
        %v2845 = vadd.f32 %v2797, %v2827
        %v2846 = vadd.f32 %v2798, %v2829
        %v2847 = vadd.f32 %v2799, %v2831
        %v2848 = vmul.f32 %v2776, %v1024
        %v2849 = vmul.f32 %v2777, %v1025
        %v2850 = vmul.f32 %v2778, %v1026
        %v2851 = vmul.f32 %v2779, %v1027
        %v2852 = vmul.f32 %v2780, %v1028
        %v2853 = vmul.f32 %v2781, %v1029
        %v2854 = vmul.f32 %v2782, %v1030
        %v2855 = vmul.f32 %v2783, %v1031
        %2864 = vrot.lane.b32.xlu0 %v2848, 126
        %v2865 = vpop.permute.xlu0 %2864
        %2866 = vrot.lane.b32.xlu0 %v2849, 126
        %v2867 = vpop.permute.xlu0 %2866
        %2868 = vrot.lane.b32.xlu0 %v2850, 126
        %v2869 = vpop.permute.xlu0 %2868
        %2870 = vrot.lane.b32.xlu0 %v2851, 126
        %v2871 = vpop.permute.xlu0 %2870
        %2872 = vrot.lane.b32.xlu0 %v2852, 126
        %v2873 = vpop.permute.xlu0 %2872
        %2874 = vrot.lane.b32.xlu0 %v2853, 126
        %v2875 = vpop.permute.xlu0 %2874
        %2876 = vrot.lane.b32.xlu0 %v2854, 126
        %v2877 = vpop.permute.xlu0 %2876
        %2878 = vrot.lane.b32.xlu0 %v2855, 126
        %v2879 = vpop.permute.xlu0 %2878
        %v2888 = vadd.f32 %v2840, %v2865
        %v2889 = vadd.f32 %v2841, %v2867
        %v2890 = vadd.f32 %v2842, %v2869
        %v2891 = vadd.f32 %v2843, %v2871
        %v2892 = vadd.f32 %v2844, %v2873
        %v2893 = vadd.f32 %v2845, %v2875
        %v2894 = vadd.f32 %v2846, %v2877
        %v2895 = vadd.f32 %v2847, %v2879
        %v2896 = vld [vmem:[#allocation2 + $0x5] sm:$0x1]
        %v2897 = vld [vmem:[#allocation2 + $0x1d] sm:$0x1]
        %v2898 = vld [vmem:[#allocation2 + $0x35] sm:$0x1]
        %v2899 = vld [vmem:[#allocation2 + $0x4d] sm:$0x1]
        %v2900 = vld [vmem:[#allocation2 + $0x65] sm:$0x1]
        %v2901 = vld [vmem:[#allocation2 + $0x7d] sm:$0x1]
        %v2902 = vld [vmem:[#allocation2 + $0x95] sm:$0x1]
        %v2903 = vld [vmem:[#allocation2 + $0xad] sm:$0x1]
        %v2904 = vmul.f32 %v2896, %v1098
        %v2905 = vmul.f32 %v2897, %v1099
        %v2906 = vmul.f32 %v2898, %v1100
        %v2907 = vmul.f32 %v2899, %v1101
        %v2908 = vmul.f32 %v2900, %v1102
        %v2909 = vmul.f32 %v2901, %v1103
        %v2910 = vmul.f32 %v2902, %v1104
        %v2911 = vmul.f32 %v2903, %v1105
        %v2912 = vadd.f32 %v2888, %v2904
        %v2913 = vadd.f32 %v2889, %v2905
        %v2914 = vadd.f32 %v2890, %v2906
        %v2915 = vadd.f32 %v2891, %v2907
        %v2916 = vadd.f32 %v2892, %v2908
        %v2917 = vadd.f32 %v2893, %v2909
        %v2918 = vadd.f32 %v2894, %v2910
        %v2919 = vadd.f32 %v2895, %v2911
        %v2920 = vmul.f32 %v2896, %v1132
        %v2921 = vmul.f32 %v2897, %v1133
        %v2922 = vmul.f32 %v2898, %v1134
        %v2923 = vmul.f32 %v2899, %v1135
        %v2924 = vmul.f32 %v2900, %v1136
        %v2925 = vmul.f32 %v2901, %v1137
        %v2926 = vmul.f32 %v2902, %v1138
        %v2927 = vmul.f32 %v2903, %v1139
        %2936 = vrot.lane.b32.xlu0 %v2920, 127
        %v2937 = vpop.permute.xlu0 %2936
        %2938 = vrot.lane.b32.xlu0 %v2921, 127
        %v2939 = vpop.permute.xlu0 %2938
        %2940 = vrot.lane.b32.xlu0 %v2922, 127
        %v2941 = vpop.permute.xlu0 %2940
        %2942 = vrot.lane.b32.xlu0 %v2923, 127
        %v2943 = vpop.permute.xlu0 %2942
        %2944 = vrot.lane.b32.xlu0 %v2924, 127
        %v2945 = vpop.permute.xlu0 %2944
        %2946 = vrot.lane.b32.xlu0 %v2925, 127
        %v2947 = vpop.permute.xlu0 %2946
        %2948 = vrot.lane.b32.xlu0 %v2926, 127
        %v2949 = vpop.permute.xlu0 %2948
        %2950 = vrot.lane.b32.xlu0 %v2927, 127
        %v2951 = vpop.permute.xlu0 %2950
        %v2960 = vadd.f32 %v2912, %v2937
        %v2961 = vadd.f32 %v2913, %v2939
        %v2962 = vadd.f32 %v2914, %v2941
        %v2963 = vadd.f32 %v2915, %v2943
        %v2964 = vadd.f32 %v2916, %v2945
        %v2965 = vadd.f32 %v2917, %v2947
        %v2966 = vadd.f32 %v2918, %v2949
        %v2967 = vadd.f32 %v2919, %v2951
        %v2968 = vmul.f32 %v2896, %v1198
        %v2969 = vmul.f32 %v2897, %v1199
        %v2970 = vmul.f32 %v2898, %v1200
        %v2971 = vmul.f32 %v2899, %v1201
        %v2972 = vmul.f32 %v2900, %v1202
        %v2973 = vmul.f32 %v2901, %v1203
        %v2974 = vmul.f32 %v2902, %v1204
        %v2975 = vmul.f32 %v2903, %v1205
        %2984 = vrot.lane.b32.xlu0 %v2968, 126
        %v2985 = vpop.permute.xlu0 %2984
        %2986 = vrot.lane.b32.xlu0 %v2969, 126
        %v2987 = vpop.permute.xlu0 %2986
        %2988 = vrot.lane.b32.xlu0 %v2970, 126
        %v2989 = vpop.permute.xlu0 %2988
        %2990 = vrot.lane.b32.xlu0 %v2971, 126
        %v2991 = vpop.permute.xlu0 %2990
        %2992 = vrot.lane.b32.xlu0 %v2972, 126
        %v2993 = vpop.permute.xlu0 %2992
        %2994 = vrot.lane.b32.xlu0 %v2973, 126
        %v2995 = vpop.permute.xlu0 %2994
        %2996 = vrot.lane.b32.xlu0 %v2974, 126
        %v2997 = vpop.permute.xlu0 %2996
        %2998 = vrot.lane.b32.xlu0 %v2975, 126
        %v2999 = vpop.permute.xlu0 %2998
        %v3008 = vadd.f32 %v2960, %v2985
        %v3009 = vadd.f32 %v2961, %v2987
        %v3010 = vadd.f32 %v2962, %v2989
        %v3011 = vadd.f32 %v2963, %v2991
        %v3012 = vadd.f32 %v2964, %v2993
        %v3013 = vadd.f32 %v2965, %v2995
        %v3014 = vadd.f32 %v2966, %v2997
        %v3015 = vadd.f32 %v2967, %v2999
        %v3016 = vld [vmem:[#allocation2 + $0x6] sm:$0x1]
        %v3017 = vld [vmem:[#allocation2 + $0x1e] sm:$0x1]
        %v3018 = vld [vmem:[#allocation2 + $0x36] sm:$0x1]
        %v3019 = vld [vmem:[#allocation2 + $0x4e] sm:$0x1]
        %v3020 = vld [vmem:[#allocation2 + $0x66] sm:$0x1]
        %v3021 = vld [vmem:[#allocation2 + $0x7e] sm:$0x1]
        %v3022 = vld [vmem:[#allocation2 + $0x96] sm:$0x1]
        %v3023 = vld [vmem:[#allocation2 + $0xae] sm:$0x1]
        %v3024 = vmul.f32 %v3016, %v1272
        %v3025 = vmul.f32 %v3017, %v1273
        %v3026 = vmul.f32 %v3018, %v1274
        %v3027 = vmul.f32 %v3019, %v1275
        %v3028 = vmul.f32 %v3020, %v1276
        %v3029 = vmul.f32 %v3021, %v1277
        %v3030 = vmul.f32 %v3022, %v1278
        %v3031 = vmul.f32 %v3023, %v1279
        %v3032 = vadd.f32 %v3008, %v3024
        %v3033 = vadd.f32 %v3009, %v3025
        %v3034 = vadd.f32 %v3010, %v3026
        %v3035 = vadd.f32 %v3011, %v3027
        %v3036 = vadd.f32 %v3012, %v3028
        %v3037 = vadd.f32 %v3013, %v3029
        %v3038 = vadd.f32 %v3014, %v3030
        %v3039 = vadd.f32 %v3015, %v3031
        %v3040 = vmul.f32 %v3016, %v1306
        %v3041 = vmul.f32 %v3017, %v1307
        %v3042 = vmul.f32 %v3018, %v1308
        %v3043 = vmul.f32 %v3019, %v1309
        %v3044 = vmul.f32 %v3020, %v1310
        %v3045 = vmul.f32 %v3021, %v1311
        %v3046 = vmul.f32 %v3022, %v1312
        %v3047 = vmul.f32 %v3023, %v1313
        %3056 = vrot.lane.b32.xlu0 %v3040, 127
        %v3057 = vpop.permute.xlu0 %3056
        %3058 = vrot.lane.b32.xlu0 %v3041, 127
        %v3059 = vpop.permute.xlu0 %3058
        %3060 = vrot.lane.b32.xlu0 %v3042, 127
        %v3061 = vpop.permute.xlu0 %3060
        %3062 = vrot.lane.b32.xlu0 %v3043, 127
        %v3063 = vpop.permute.xlu0 %3062
        %3064 = vrot.lane.b32.xlu0 %v3044, 127
        %v3065 = vpop.permute.xlu0 %3064
        %3066 = vrot.lane.b32.xlu0 %v3045, 127
        %v3067 = vpop.permute.xlu0 %3066
        %3068 = vrot.lane.b32.xlu0 %v3046, 127
        %v3069 = vpop.permute.xlu0 %3068
        %3070 = vrot.lane.b32.xlu0 %v3047, 127
        %v3071 = vpop.permute.xlu0 %3070
        %v3080 = vadd.f32 %v3032, %v3057
        %v3081 = vadd.f32 %v3033, %v3059
        %v3082 = vadd.f32 %v3034, %v3061
        %v3083 = vadd.f32 %v3035, %v3063
        %v3084 = vadd.f32 %v3036, %v3065
        %v3085 = vadd.f32 %v3037, %v3067
        %v3086 = vadd.f32 %v3038, %v3069
        %v3087 = vadd.f32 %v3039, %v3071
        %v3088 = vmul.f32 %v3016, %v1372
        %v3089 = vmul.f32 %v3017, %v1373
        %v3090 = vmul.f32 %v3018, %v1374
        %v3091 = vmul.f32 %v3019, %v1375
        %v3092 = vmul.f32 %v3020, %v1376
        %v3093 = vmul.f32 %v3021, %v1377
        %v3094 = vmul.f32 %v3022, %v1378
        %v3095 = vmul.f32 %v3023, %v1379
        %3104 = vrot.lane.b32.xlu0 %v3088, 126
        %v3105 = vpop.permute.xlu0 %3104
        %3106 = vrot.lane.b32.xlu0 %v3089, 126
        %v3107 = vpop.permute.xlu0 %3106
        %3108 = vrot.lane.b32.xlu0 %v3090, 126
        %v3109 = vpop.permute.xlu0 %3108
        %3110 = vrot.lane.b32.xlu0 %v3091, 126
        %v3111 = vpop.permute.xlu0 %3110
        %3112 = vrot.lane.b32.xlu0 %v3092, 126
        %v3113 = vpop.permute.xlu0 %3112
        %3114 = vrot.lane.b32.xlu0 %v3093, 126
        %v3115 = vpop.permute.xlu0 %3114
        %3116 = vrot.lane.b32.xlu0 %v3094, 126
        %v3117 = vpop.permute.xlu0 %3116
        %3118 = vrot.lane.b32.xlu0 %v3095, 126
        %v3119 = vpop.permute.xlu0 %3118
        %v3128 = vadd.f32 %v3080, %v3105
        %v3129 = vadd.f32 %v3081, %v3107
        %v3130 = vadd.f32 %v3082, %v3109
        %v3131 = vadd.f32 %v3083, %v3111
        %v3132 = vadd.f32 %v3084, %v3113
        %v3133 = vadd.f32 %v3085, %v3115
        %v3134 = vadd.f32 %v3086, %v3117
        %v3135 = vadd.f32 %v3087, %v3119
        %v3136 = vadd.f32 %v3128, %v1439
        %v3137 = vadd.f32 %v3129, %v1440
        %v3138 = vadd.f32 %v3130, %v1441
        %v3139 = vadd.f32 %v3131, %v1442
        %v3140 = vadd.f32 %v3132, %v1443
        %v3141 = vadd.f32 %v3133, %v1444
        %v3142 = vadd.f32 %v3134, %v1445
        %v3143 = vadd.f32 %v3135, %v1446
        %v3144 = vmax.f32 %v3136, 0.0
        %v3145 = vmax.f32 %v3137, 0.0
        %v3146 = vmax.f32 %v3138, 0.0
        %v3147 = vmax.f32 %v3139, 0.0
        %v3148 = vmax.f32 %v3140, 0.0
        %v3149 = vmax.f32 %v3141, 0.0
        %v3150 = vmax.f32 %v3142, 0.0
        %v3151 = vmax.f32 %v3143, 0.0
        %v3152 = vmin.f32 %v3144, 6.0
        %v3153 = vmin.f32 %v3145, 6.0
        %v3154 = vmin.f32 %v3146, 6.0
        %v3155 = vmin.f32 %v3147, 6.0
        %v3156 = vmin.f32 %v3148, 6.0
        %v3157 = vmin.f32 %v3149, 6.0
        %v3158 = vmin.f32 %v3150, 6.0
        %v3159 = vmin.f32 %v3151, 6.0
        %v3160 = vmul.f32 %v3152, 1.7133749
        %v3161 = vmul.f32 %v3153, 1.7133749
        %v3162 = vmul.f32 %v3154, 1.7133749
        %v3163 = vmul.f32 %v3155, 1.7133749
        %v3164 = vmul.f32 %v3156, 1.7133749
        %v3165 = vmul.f32 %v3157, 1.7133749
        %v3166 = vmul.f32 %v3158, 1.7133749
        %v3167 = vmul.f32 %v3159, 1.7133749
        %v3176 = vrot.slane %v3161, 7
        %v3177 = vsel %vm1496, %v3176, %v3160
        %v3178 = vrot.slane %v3162, 6
        %v3179 = vsel %vm1499, %v3178, %v3177
        %v3180 = vrot.slane %v3163, 5
        %v3181 = vsel %vm1502, %v3180, %v3179
        %v3182 = vrot.slane %v3164, 4
        %v3183 = vsel %vm1505, %v3182, %v3181
        %v3184 = vrot.slane %v3165, 3
        %v3185 = vsel %vm1508, %v3184, %v3183
        %v3186 = vrot.slane %v3166, 2
        %v3187 = vsel %vm1511, %v3186, %v3185
        %v3188 = vrot.slane %v3167, 1
        %v3189 = vsel %vm1514, %v3188, %v3187
        %3190 = vrot.lane.b32.xlu0 %v3189, 64
        %v3191 = vpop.permute.xlu0 %3190
        %vm3193 = vcmask 654848
        %3194 = vst.msk [vmem:[#allocation3] sm:$0xff] %vm3193, %v3191
        %v3195 = vld [vmem:[#allocation2 + $0x5] sm:$0x1]
        %v3196 = vld [vmem:[#allocation2 + $0x1d] sm:$0x1]
        %v3197 = vld [vmem:[#allocation2 + $0x35] sm:$0x1]
        %v3198 = vld [vmem:[#allocation2 + $0x4d] sm:$0x1]
        %v3199 = vld [vmem:[#allocation2 + $0x65] sm:$0x1]
        %v3200 = vld [vmem:[#allocation2 + $0x7d] sm:$0x1]
        %v3201 = vld [vmem:[#allocation2 + $0x95] sm:$0x1]
        %v3202 = vld [vmem:[#allocation2 + $0xad] sm:$0x1]
        %v3203 = vmul.f32 %v3195, %v924
        %v3204 = vmul.f32 %v3196, %v925
        %v3205 = vmul.f32 %v3197, %v926
        %v3206 = vmul.f32 %v3198, %v927
        %v3207 = vmul.f32 %v3199, %v928
        %v3208 = vmul.f32 %v3200, %v929
        %v3209 = vmul.f32 %v3201, %v930
        %v3210 = vmul.f32 %v3202, %v931
        %v3211 = vadd.f32 %v3203, 0.0
        %v3212 = vadd.f32 %v3204, 0.0
        %v3213 = vadd.f32 %v3205, 0.0
        %v3214 = vadd.f32 %v3206, 0.0
        %v3215 = vadd.f32 %v3207, 0.0
        %v3216 = vadd.f32 %v3208, 0.0
        %v3217 = vadd.f32 %v3209, 0.0
        %v3218 = vadd.f32 %v3210, 0.0
        %v3219 = vmul.f32 %v3195, %v958
        %v3220 = vmul.f32 %v3196, %v959
        %v3221 = vmul.f32 %v3197, %v960
        %v3222 = vmul.f32 %v3198, %v961
        %v3223 = vmul.f32 %v3199, %v962
        %v3224 = vmul.f32 %v3200, %v963
        %v3225 = vmul.f32 %v3201, %v964
        %v3226 = vmul.f32 %v3202, %v965
        %3235 = vrot.lane.b32.xlu0 %v3219, 127
        %v3236 = vpop.permute.xlu0 %3235
        %3237 = vrot.lane.b32.xlu0 %v3220, 127
        %v3238 = vpop.permute.xlu0 %3237
        %3239 = vrot.lane.b32.xlu0 %v3221, 127
        %v3240 = vpop.permute.xlu0 %3239
        %3241 = vrot.lane.b32.xlu0 %v3222, 127
        %v3242 = vpop.permute.xlu0 %3241
        %3243 = vrot.lane.b32.xlu0 %v3223, 127
        %v3244 = vpop.permute.xlu0 %3243
        %3245 = vrot.lane.b32.xlu0 %v3224, 127
        %v3246 = vpop.permute.xlu0 %3245
        %3247 = vrot.lane.b32.xlu0 %v3225, 127
        %v3248 = vpop.permute.xlu0 %3247
        %3249 = vrot.lane.b32.xlu0 %v3226, 127
        %v3250 = vpop.permute.xlu0 %3249
        %v3259 = vadd.f32 %v3211, %v3236
        %v3260 = vadd.f32 %v3212, %v3238
        %v3261 = vadd.f32 %v3213, %v3240
        %v3262 = vadd.f32 %v3214, %v3242
        %v3263 = vadd.f32 %v3215, %v3244
        %v3264 = vadd.f32 %v3216, %v3246
        %v3265 = vadd.f32 %v3217, %v3248
        %v3266 = vadd.f32 %v3218, %v3250
        %v3267 = vmul.f32 %v3195, %v1024
        %v3268 = vmul.f32 %v3196, %v1025
        %v3269 = vmul.f32 %v3197, %v1026
        %v3270 = vmul.f32 %v3198, %v1027
        %v3271 = vmul.f32 %v3199, %v1028
        %v3272 = vmul.f32 %v3200, %v1029
        %v3273 = vmul.f32 %v3201, %v1030
        %v3274 = vmul.f32 %v3202, %v1031
        %3283 = vrot.lane.b32.xlu0 %v3267, 126
        %v3284 = vpop.permute.xlu0 %3283
        %3285 = vrot.lane.b32.xlu0 %v3268, 126
        %v3286 = vpop.permute.xlu0 %3285
        %3287 = vrot.lane.b32.xlu0 %v3269, 126
        %v3288 = vpop.permute.xlu0 %3287
        %3289 = vrot.lane.b32.xlu0 %v3270, 126
        %v3290 = vpop.permute.xlu0 %3289
        %3291 = vrot.lane.b32.xlu0 %v3271, 126
        %v3292 = vpop.permute.xlu0 %3291
        %3293 = vrot.lane.b32.xlu0 %v3272, 126
        %v3294 = vpop.permute.xlu0 %3293
        %3295 = vrot.lane.b32.xlu0 %v3273, 126
        %v3296 = vpop.permute.xlu0 %3295
        %3297 = vrot.lane.b32.xlu0 %v3274, 126
        %v3298 = vpop.permute.xlu0 %3297
        %v3307 = vadd.f32 %v3259, %v3284
        %v3308 = vadd.f32 %v3260, %v3286
        %v3309 = vadd.f32 %v3261, %v3288
        %v3310 = vadd.f32 %v3262, %v3290
        %v3311 = vadd.f32 %v3263, %v3292
        %v3312 = vadd.f32 %v3264, %v3294
        %v3313 = vadd.f32 %v3265, %v3296
        %v3314 = vadd.f32 %v3266, %v3298
        %v3315 = vld [vmem:[#allocation2 + $0x6] sm:$0x1]
        %v3316 = vld [vmem:[#allocation2 + $0x1e] sm:$0x1]
        %v3317 = vld [vmem:[#allocation2 + $0x36] sm:$0x1]
        %v3318 = vld [vmem:[#allocation2 + $0x4e] sm:$0x1]
        %v3319 = vld [vmem:[#allocation2 + $0x66] sm:$0x1]
        %v3320 = vld [vmem:[#allocation2 + $0x7e] sm:$0x1]
        %v3321 = vld [vmem:[#allocation2 + $0x96] sm:$0x1]
        %v3322 = vld [vmem:[#allocation2 + $0xae] sm:$0x1]
        %v3323 = vmul.f32 %v3315, %v1098
        %v3324 = vmul.f32 %v3316, %v1099
        %v3325 = vmul.f32 %v3317, %v1100
        %v3326 = vmul.f32 %v3318, %v1101
        %v3327 = vmul.f32 %v3319, %v1102
        %v3328 = vmul.f32 %v3320, %v1103
        %v3329 = vmul.f32 %v3321, %v1104
        %v3330 = vmul.f32 %v3322, %v1105
        %v3331 = vadd.f32 %v3307, %v3323
        %v3332 = vadd.f32 %v3308, %v3324
        %v3333 = vadd.f32 %v3309, %v3325
        %v3334 = vadd.f32 %v3310, %v3326
        %v3335 = vadd.f32 %v3311, %v3327
        %v3336 = vadd.f32 %v3312, %v3328
        %v3337 = vadd.f32 %v3313, %v3329
        %v3338 = vadd.f32 %v3314, %v3330
        %v3339 = vmul.f32 %v3315, %v1132
        %v3340 = vmul.f32 %v3316, %v1133
        %v3341 = vmul.f32 %v3317, %v1134
        %v3342 = vmul.f32 %v3318, %v1135
        %v3343 = vmul.f32 %v3319, %v1136
        %v3344 = vmul.f32 %v3320, %v1137
        %v3345 = vmul.f32 %v3321, %v1138
        %v3346 = vmul.f32 %v3322, %v1139
        %3355 = vrot.lane.b32.xlu0 %v3339, 127
        %v3356 = vpop.permute.xlu0 %3355
        %3357 = vrot.lane.b32.xlu0 %v3340, 127
        %v3358 = vpop.permute.xlu0 %3357
        %3359 = vrot.lane.b32.xlu0 %v3341, 127
        %v3360 = vpop.permute.xlu0 %3359
        %3361 = vrot.lane.b32.xlu0 %v3342, 127
        %v3362 = vpop.permute.xlu0 %3361
        %3363 = vrot.lane.b32.xlu0 %v3343, 127
        %v3364 = vpop.permute.xlu0 %3363
        %3365 = vrot.lane.b32.xlu0 %v3344, 127
        %v3366 = vpop.permute.xlu0 %3365
        %3367 = vrot.lane.b32.xlu0 %v3345, 127
        %v3368 = vpop.permute.xlu0 %3367
        %3369 = vrot.lane.b32.xlu0 %v3346, 127
        %v3370 = vpop.permute.xlu0 %3369
        %v3379 = vadd.f32 %v3331, %v3356
        %v3380 = vadd.f32 %v3332, %v3358
        %v3381 = vadd.f32 %v3333, %v3360
        %v3382 = vadd.f32 %v3334, %v3362
        %v3383 = vadd.f32 %v3335, %v3364
        %v3384 = vadd.f32 %v3336, %v3366
        %v3385 = vadd.f32 %v3337, %v3368
        %v3386 = vadd.f32 %v3338, %v3370
        %v3387 = vmul.f32 %v3315, %v1198
        %v3388 = vmul.f32 %v3316, %v1199
        %v3389 = vmul.f32 %v3317, %v1200
        %v3390 = vmul.f32 %v3318, %v1201
        %v3391 = vmul.f32 %v3319, %v1202
        %v3392 = vmul.f32 %v3320, %v1203
        %v3393 = vmul.f32 %v3321, %v1204
        %v3394 = vmul.f32 %v3322, %v1205
        %3403 = vrot.lane.b32.xlu0 %v3387, 126
        %v3404 = vpop.permute.xlu0 %3403
        %3405 = vrot.lane.b32.xlu0 %v3388, 126
        %v3406 = vpop.permute.xlu0 %3405
        %3407 = vrot.lane.b32.xlu0 %v3389, 126
        %v3408 = vpop.permute.xlu0 %3407
        %3409 = vrot.lane.b32.xlu0 %v3390, 126
        %v3410 = vpop.permute.xlu0 %3409
        %3411 = vrot.lane.b32.xlu0 %v3391, 126
        %v3412 = vpop.permute.xlu0 %3411
        %3413 = vrot.lane.b32.xlu0 %v3392, 126
        %v3414 = vpop.permute.xlu0 %3413
        %3415 = vrot.lane.b32.xlu0 %v3393, 126
        %v3416 = vpop.permute.xlu0 %3415
        %3417 = vrot.lane.b32.xlu0 %v3394, 126
        %v3418 = vpop.permute.xlu0 %3417
        %v3427 = vadd.f32 %v3379, %v3404
        %v3428 = vadd.f32 %v3380, %v3406
        %v3429 = vadd.f32 %v3381, %v3408
        %v3430 = vadd.f32 %v3382, %v3410
        %v3431 = vadd.f32 %v3383, %v3412
        %v3432 = vadd.f32 %v3384, %v3414
        %v3433 = vadd.f32 %v3385, %v3416
        %v3434 = vadd.f32 %v3386, %v3418
        %v3435 = vld [vmem:[#allocation2 + $0x7] sm:$0x1]
        %v3436 = vld [vmem:[#allocation2 + $0x1f] sm:$0x1]
        %v3437 = vld [vmem:[#allocation2 + $0x37] sm:$0x1]
        %v3438 = vld [vmem:[#allocation2 + $0x4f] sm:$0x1]
        %v3439 = vld [vmem:[#allocation2 + $0x67] sm:$0x1]
        %v3440 = vld [vmem:[#allocation2 + $0x7f] sm:$0x1]
        %v3441 = vld [vmem:[#allocation2 + $0x97] sm:$0x1]
        %v3442 = vld [vmem:[#allocation2 + $0xaf] sm:$0x1]
        %v3443 = vmul.f32 %v3435, %v1272
        %v3444 = vmul.f32 %v3436, %v1273
        %v3445 = vmul.f32 %v3437, %v1274
        %v3446 = vmul.f32 %v3438, %v1275
        %v3447 = vmul.f32 %v3439, %v1276
        %v3448 = vmul.f32 %v3440, %v1277
        %v3449 = vmul.f32 %v3441, %v1278
        %v3450 = vmul.f32 %v3442, %v1279
        %v3451 = vadd.f32 %v3427, %v3443
        %v3452 = vadd.f32 %v3428, %v3444
        %v3453 = vadd.f32 %v3429, %v3445
        %v3454 = vadd.f32 %v3430, %v3446
        %v3455 = vadd.f32 %v3431, %v3447
        %v3456 = vadd.f32 %v3432, %v3448
        %v3457 = vadd.f32 %v3433, %v3449
        %v3458 = vadd.f32 %v3434, %v3450
        %v3459 = vmul.f32 %v3435, %v1306
        %v3460 = vmul.f32 %v3436, %v1307
        %v3461 = vmul.f32 %v3437, %v1308
        %v3462 = vmul.f32 %v3438, %v1309
        %v3463 = vmul.f32 %v3439, %v1310
        %v3464 = vmul.f32 %v3440, %v1311
        %v3465 = vmul.f32 %v3441, %v1312
        %v3466 = vmul.f32 %v3442, %v1313
        %3475 = vrot.lane.b32.xlu0 %v3459, 127
        %v3476 = vpop.permute.xlu0 %3475
        %3477 = vrot.lane.b32.xlu0 %v3460, 127
        %v3478 = vpop.permute.xlu0 %3477
        %3479 = vrot.lane.b32.xlu0 %v3461, 127
        %v3480 = vpop.permute.xlu0 %3479
        %3481 = vrot.lane.b32.xlu0 %v3462, 127
        %v3482 = vpop.permute.xlu0 %3481
        %3483 = vrot.lane.b32.xlu0 %v3463, 127
        %v3484 = vpop.permute.xlu0 %3483
        %3485 = vrot.lane.b32.xlu0 %v3464, 127
        %v3486 = vpop.permute.xlu0 %3485
        %3487 = vrot.lane.b32.xlu0 %v3465, 127
        %v3488 = vpop.permute.xlu0 %3487
        %3489 = vrot.lane.b32.xlu0 %v3466, 127
        %v3490 = vpop.permute.xlu0 %3489
        %v3499 = vadd.f32 %v3451, %v3476
        %v3500 = vadd.f32 %v3452, %v3478
        %v3501 = vadd.f32 %v3453, %v3480
        %v3502 = vadd.f32 %v3454, %v3482
        %v3503 = vadd.f32 %v3455, %v3484
        %v3504 = vadd.f32 %v3456, %v3486
        %v3505 = vadd.f32 %v3457, %v3488
        %v3506 = vadd.f32 %v3458, %v3490
        %v3507 = vmul.f32 %v3435, %v1372
        %v3508 = vmul.f32 %v3436, %v1373
        %v3509 = vmul.f32 %v3437, %v1374
        %v3510 = vmul.f32 %v3438, %v1375
        %v3511 = vmul.f32 %v3439, %v1376
        %v3512 = vmul.f32 %v3440, %v1377
        %v3513 = vmul.f32 %v3441, %v1378
        %v3514 = vmul.f32 %v3442, %v1379
        %3523 = vrot.lane.b32.xlu0 %v3507, 126
        %v3524 = vpop.permute.xlu0 %3523
        %3525 = vrot.lane.b32.xlu0 %v3508, 126
        %v3526 = vpop.permute.xlu0 %3525
        %3527 = vrot.lane.b32.xlu0 %v3509, 126
        %v3528 = vpop.permute.xlu0 %3527
        %3529 = vrot.lane.b32.xlu0 %v3510, 126
        %v3530 = vpop.permute.xlu0 %3529
        %3531 = vrot.lane.b32.xlu0 %v3511, 126
        %v3532 = vpop.permute.xlu0 %3531
        %3533 = vrot.lane.b32.xlu0 %v3512, 126
        %v3534 = vpop.permute.xlu0 %3533
        %3535 = vrot.lane.b32.xlu0 %v3513, 126
        %v3536 = vpop.permute.xlu0 %3535
        %3537 = vrot.lane.b32.xlu0 %v3514, 126
        %v3538 = vpop.permute.xlu0 %3537
        %v3547 = vadd.f32 %v3499, %v3524
        %v3548 = vadd.f32 %v3500, %v3526
        %v3549 = vadd.f32 %v3501, %v3528
        %v3550 = vadd.f32 %v3502, %v3530
        %v3551 = vadd.f32 %v3503, %v3532
        %v3552 = vadd.f32 %v3504, %v3534
        %v3553 = vadd.f32 %v3505, %v3536
        %v3554 = vadd.f32 %v3506, %v3538
        %v3555 = vadd.f32 %v3547, %v1439
        %v3556 = vadd.f32 %v3548, %v1440
        %v3557 = vadd.f32 %v3549, %v1441
        %v3558 = vadd.f32 %v3550, %v1442
        %v3559 = vadd.f32 %v3551, %v1443
        %v3560 = vadd.f32 %v3552, %v1444
        %v3561 = vadd.f32 %v3553, %v1445
        %v3562 = vadd.f32 %v3554, %v1446
        %v3563 = vmax.f32 %v3555, 0.0
        %v3564 = vmax.f32 %v3556, 0.0
        %v3565 = vmax.f32 %v3557, 0.0
        %v3566 = vmax.f32 %v3558, 0.0
        %v3567 = vmax.f32 %v3559, 0.0
        %v3568 = vmax.f32 %v3560, 0.0
        %v3569 = vmax.f32 %v3561, 0.0
        %v3570 = vmax.f32 %v3562, 0.0
        %v3571 = vmin.f32 %v3563, 6.0
        %v3572 = vmin.f32 %v3564, 6.0
        %v3573 = vmin.f32 %v3565, 6.0
        %v3574 = vmin.f32 %v3566, 6.0
        %v3575 = vmin.f32 %v3567, 6.0
        %v3576 = vmin.f32 %v3568, 6.0
        %v3577 = vmin.f32 %v3569, 6.0
        %v3578 = vmin.f32 %v3570, 6.0
        %v3579 = vmul.f32 %v3571, 1.7133749
        %v3580 = vmul.f32 %v3572, 1.7133749
        %v3581 = vmul.f32 %v3573, 1.7133749
        %v3582 = vmul.f32 %v3574, 1.7133749
        %v3583 = vmul.f32 %v3575, 1.7133749
        %v3584 = vmul.f32 %v3576, 1.7133749
        %v3585 = vmul.f32 %v3577, 1.7133749
        %v3586 = vmul.f32 %v3578, 1.7133749
        %v3595 = vrot.slane %v3580, 7
        %v3596 = vsel %vm1496, %v3595, %v3579
        %v3597 = vrot.slane %v3581, 6
        %v3598 = vsel %vm1499, %v3597, %v3596
        %v3599 = vrot.slane %v3582, 5
        %v3600 = vsel %vm1502, %v3599, %v3598
        %v3601 = vrot.slane %v3583, 4
        %v3602 = vsel %vm1505, %v3601, %v3600
        %v3603 = vrot.slane %v3584, 3
        %v3604 = vsel %vm1508, %v3603, %v3602
        %v3605 = vrot.slane %v3585, 2
        %v3606 = vsel %vm1511, %v3605, %v3604
        %v3607 = vrot.slane %v3586, 1
        %v3608 = vsel %vm1514, %v3607, %v3606
        %3609 = vrot.lane.b32.xlu0 %v3608, 80
        %v3610 = vpop.permute.xlu0 %3609
        %vm3612 = vcmask 786048
        %3613 = vst.msk [vmem:[#allocation3] sm:$0xff] %vm3612, %v3610
        %v3614 = vld [vmem:[#allocation2 + $0x6] sm:$0x1]
        %v3615 = vld [vmem:[#allocation2 + $0x1e] sm:$0x1]
        %v3616 = vld [vmem:[#allocation2 + $0x36] sm:$0x1]
        %v3617 = vld [vmem:[#allocation2 + $0x4e] sm:$0x1]
        %v3618 = vld [vmem:[#allocation2 + $0x66] sm:$0x1]
        %v3619 = vld [vmem:[#allocation2 + $0x7e] sm:$0x1]
        %v3620 = vld [vmem:[#allocation2 + $0x96] sm:$0x1]
        %v3621 = vld [vmem:[#allocation2 + $0xae] sm:$0x1]
        %v3622 = vmul.f32 %v3614, %v924
        %v3623 = vmul.f32 %v3615, %v925
        %v3624 = vmul.f32 %v3616, %v926
        %v3625 = vmul.f32 %v3617, %v927
        %v3626 = vmul.f32 %v3618, %v928
        %v3627 = vmul.f32 %v3619, %v929
        %v3628 = vmul.f32 %v3620, %v930
        %v3629 = vmul.f32 %v3621, %v931
        %v3630 = vadd.f32 %v3622, 0.0
        %v3631 = vadd.f32 %v3623, 0.0
        %v3632 = vadd.f32 %v3624, 0.0
        %v3633 = vadd.f32 %v3625, 0.0
        %v3634 = vadd.f32 %v3626, 0.0
        %v3635 = vadd.f32 %v3627, 0.0
        %v3636 = vadd.f32 %v3628, 0.0
        %v3637 = vadd.f32 %v3629, 0.0
        %v3638 = vmul.f32 %v3614, %v958
        %v3639 = vmul.f32 %v3615, %v959
        %v3640 = vmul.f32 %v3616, %v960
        %v3641 = vmul.f32 %v3617, %v961
        %v3642 = vmul.f32 %v3618, %v962
        %v3643 = vmul.f32 %v3619, %v963
        %v3644 = vmul.f32 %v3620, %v964
        %v3645 = vmul.f32 %v3621, %v965
        %3654 = vrot.lane.b32.xlu0 %v3638, 127
        %v3655 = vpop.permute.xlu0 %3654
        %3656 = vrot.lane.b32.xlu0 %v3639, 127
        %v3657 = vpop.permute.xlu0 %3656
        %3658 = vrot.lane.b32.xlu0 %v3640, 127
        %v3659 = vpop.permute.xlu0 %3658
        %3660 = vrot.lane.b32.xlu0 %v3641, 127
        %v3661 = vpop.permute.xlu0 %3660
        %3662 = vrot.lane.b32.xlu0 %v3642, 127
        %v3663 = vpop.permute.xlu0 %3662
        %3664 = vrot.lane.b32.xlu0 %v3643, 127
        %v3665 = vpop.permute.xlu0 %3664
        %3666 = vrot.lane.b32.xlu0 %v3644, 127
        %v3667 = vpop.permute.xlu0 %3666
        %3668 = vrot.lane.b32.xlu0 %v3645, 127
        %v3669 = vpop.permute.xlu0 %3668
        %v3678 = vadd.f32 %v3630, %v3655
        %v3679 = vadd.f32 %v3631, %v3657
        %v3680 = vadd.f32 %v3632, %v3659
        %v3681 = vadd.f32 %v3633, %v3661
        %v3682 = vadd.f32 %v3634, %v3663
        %v3683 = vadd.f32 %v3635, %v3665
        %v3684 = vadd.f32 %v3636, %v3667
        %v3685 = vadd.f32 %v3637, %v3669
        %v3686 = vmul.f32 %v3614, %v1024
        %v3687 = vmul.f32 %v3615, %v1025
        %v3688 = vmul.f32 %v3616, %v1026
        %v3689 = vmul.f32 %v3617, %v1027
        %v3690 = vmul.f32 %v3618, %v1028
        %v3691 = vmul.f32 %v3619, %v1029
        %v3692 = vmul.f32 %v3620, %v1030
        %v3693 = vmul.f32 %v3621, %v1031
        %3702 = vrot.lane.b32.xlu0 %v3686, 126
        %v3703 = vpop.permute.xlu0 %3702
        %3704 = vrot.lane.b32.xlu0 %v3687, 126
        %v3705 = vpop.permute.xlu0 %3704
        %3706 = vrot.lane.b32.xlu0 %v3688, 126
        %v3707 = vpop.permute.xlu0 %3706
        %3708 = vrot.lane.b32.xlu0 %v3689, 126
        %v3709 = vpop.permute.xlu0 %3708
        %3710 = vrot.lane.b32.xlu0 %v3690, 126
        %v3711 = vpop.permute.xlu0 %3710
        %3712 = vrot.lane.b32.xlu0 %v3691, 126
        %v3713 = vpop.permute.xlu0 %3712
        %3714 = vrot.lane.b32.xlu0 %v3692, 126
        %v3715 = vpop.permute.xlu0 %3714
        %3716 = vrot.lane.b32.xlu0 %v3693, 126
        %v3717 = vpop.permute.xlu0 %3716
        %v3726 = vadd.f32 %v3678, %v3703
        %v3727 = vadd.f32 %v3679, %v3705
        %v3728 = vadd.f32 %v3680, %v3707
        %v3729 = vadd.f32 %v3681, %v3709
        %v3730 = vadd.f32 %v3682, %v3711
        %v3731 = vadd.f32 %v3683, %v3713
        %v3732 = vadd.f32 %v3684, %v3715
        %v3733 = vadd.f32 %v3685, %v3717
        %v3734 = vld [vmem:[#allocation2 + $0x7] sm:$0x1]
        %v3735 = vld [vmem:[#allocation2 + $0x1f] sm:$0x1]
        %v3736 = vld [vmem:[#allocation2 + $0x37] sm:$0x1]
        %v3737 = vld [vmem:[#allocation2 + $0x4f] sm:$0x1]
        %v3738 = vld [vmem:[#allocation2 + $0x67] sm:$0x1]
        %v3739 = vld [vmem:[#allocation2 + $0x7f] sm:$0x1]
        %v3740 = vld [vmem:[#allocation2 + $0x97] sm:$0x1]
        %v3741 = vld [vmem:[#allocation2 + $0xaf] sm:$0x1]
        %v3742 = vmul.f32 %v3734, %v1098
        %v3743 = vmul.f32 %v3735, %v1099
        %v3744 = vmul.f32 %v3736, %v1100
        %v3745 = vmul.f32 %v3737, %v1101
        %v3746 = vmul.f32 %v3738, %v1102
        %v3747 = vmul.f32 %v3739, %v1103
        %v3748 = vmul.f32 %v3740, %v1104
        %v3749 = vmul.f32 %v3741, %v1105
        %v3750 = vadd.f32 %v3726, %v3742
        %v3751 = vadd.f32 %v3727, %v3743
        %v3752 = vadd.f32 %v3728, %v3744
        %v3753 = vadd.f32 %v3729, %v3745
        %v3754 = vadd.f32 %v3730, %v3746
        %v3755 = vadd.f32 %v3731, %v3747
        %v3756 = vadd.f32 %v3732, %v3748
        %v3757 = vadd.f32 %v3733, %v3749
        %v3758 = vmul.f32 %v3734, %v1132
        %v3759 = vmul.f32 %v3735, %v1133
        %v3760 = vmul.f32 %v3736, %v1134
        %v3761 = vmul.f32 %v3737, %v1135
        %v3762 = vmul.f32 %v3738, %v1136
        %v3763 = vmul.f32 %v3739, %v1137
        %v3764 = vmul.f32 %v3740, %v1138
        %v3765 = vmul.f32 %v3741, %v1139
        %3774 = vrot.lane.b32.xlu0 %v3758, 127
        %v3775 = vpop.permute.xlu0 %3774
        %3776 = vrot.lane.b32.xlu0 %v3759, 127
        %v3777 = vpop.permute.xlu0 %3776
        %3778 = vrot.lane.b32.xlu0 %v3760, 127
        %v3779 = vpop.permute.xlu0 %3778
        %3780 = vrot.lane.b32.xlu0 %v3761, 127
        %v3781 = vpop.permute.xlu0 %3780
        %3782 = vrot.lane.b32.xlu0 %v3762, 127
        %v3783 = vpop.permute.xlu0 %3782
        %3784 = vrot.lane.b32.xlu0 %v3763, 127
        %v3785 = vpop.permute.xlu0 %3784
        %3786 = vrot.lane.b32.xlu0 %v3764, 127
        %v3787 = vpop.permute.xlu0 %3786
        %3788 = vrot.lane.b32.xlu0 %v3765, 127
        %v3789 = vpop.permute.xlu0 %3788
        %v3798 = vadd.f32 %v3750, %v3775
        %v3799 = vadd.f32 %v3751, %v3777
        %v3800 = vadd.f32 %v3752, %v3779
        %v3801 = vadd.f32 %v3753, %v3781
        %v3802 = vadd.f32 %v3754, %v3783
        %v3803 = vadd.f32 %v3755, %v3785
        %v3804 = vadd.f32 %v3756, %v3787
        %v3805 = vadd.f32 %v3757, %v3789
        %v3806 = vmul.f32 %v3734, %v1198
        %v3807 = vmul.f32 %v3735, %v1199
        %v3808 = vmul.f32 %v3736, %v1200
        %v3809 = vmul.f32 %v3737, %v1201
        %v3810 = vmul.f32 %v3738, %v1202
        %v3811 = vmul.f32 %v3739, %v1203
        %v3812 = vmul.f32 %v3740, %v1204
        %v3813 = vmul.f32 %v3741, %v1205
        %3822 = vrot.lane.b32.xlu0 %v3806, 126
        %v3823 = vpop.permute.xlu0 %3822
        %3824 = vrot.lane.b32.xlu0 %v3807, 126
        %v3825 = vpop.permute.xlu0 %3824
        %3826 = vrot.lane.b32.xlu0 %v3808, 126
        %v3827 = vpop.permute.xlu0 %3826
        %3828 = vrot.lane.b32.xlu0 %v3809, 126
        %v3829 = vpop.permute.xlu0 %3828
        %3830 = vrot.lane.b32.xlu0 %v3810, 126
        %v3831 = vpop.permute.xlu0 %3830
        %3832 = vrot.lane.b32.xlu0 %v3811, 126
        %v3833 = vpop.permute.xlu0 %3832
        %3834 = vrot.lane.b32.xlu0 %v3812, 126
        %v3835 = vpop.permute.xlu0 %3834
        %3836 = vrot.lane.b32.xlu0 %v3813, 126
        %v3837 = vpop.permute.xlu0 %3836
        %v3846 = vadd.f32 %v3798, %v3823
        %v3847 = vadd.f32 %v3799, %v3825
        %v3848 = vadd.f32 %v3800, %v3827
        %v3849 = vadd.f32 %v3801, %v3829
        %v3850 = vadd.f32 %v3802, %v3831
        %v3851 = vadd.f32 %v3803, %v3833
        %v3852 = vadd.f32 %v3804, %v3835
        %v3853 = vadd.f32 %v3805, %v3837
        %v3854 = vld [vmem:[#allocation2 + $0x8] sm:$0x1]
        %v3855 = vld [vmem:[#allocation2 + $0x20] sm:$0x1]
        %v3856 = vld [vmem:[#allocation2 + $0x38] sm:$0x1]
        %v3857 = vld [vmem:[#allocation2 + $0x50] sm:$0x1]
        %v3858 = vld [vmem:[#allocation2 + $0x68] sm:$0x1]
        %v3859 = vld [vmem:[#allocation2 + $0x80] sm:$0x1]
        %v3860 = vld [vmem:[#allocation2 + $0x98] sm:$0x1]
        %v3861 = vld [vmem:[#allocation2 + $0xb0] sm:$0x1]
        %v3862 = vmul.f32 %v3854, %v1272
        %v3863 = vmul.f32 %v3855, %v1273
        %v3864 = vmul.f32 %v3856, %v1274
        %v3865 = vmul.f32 %v3857, %v1275
        %v3866 = vmul.f32 %v3858, %v1276
        %v3867 = vmul.f32 %v3859, %v1277
        %v3868 = vmul.f32 %v3860, %v1278
        %v3869 = vmul.f32 %v3861, %v1279
        %v3870 = vadd.f32 %v3846, %v3862
        %v3871 = vadd.f32 %v3847, %v3863
        %v3872 = vadd.f32 %v3848, %v3864
        %v3873 = vadd.f32 %v3849, %v3865
        %v3874 = vadd.f32 %v3850, %v3866
        %v3875 = vadd.f32 %v3851, %v3867
        %v3876 = vadd.f32 %v3852, %v3868
        %v3877 = vadd.f32 %v3853, %v3869
        %v3878 = vmul.f32 %v3854, %v1306
        %v3879 = vmul.f32 %v3855, %v1307
        %v3880 = vmul.f32 %v3856, %v1308
        %v3881 = vmul.f32 %v3857, %v1309
        %v3882 = vmul.f32 %v3858, %v1310
        %v3883 = vmul.f32 %v3859, %v1311
        %v3884 = vmul.f32 %v3860, %v1312
        %v3885 = vmul.f32 %v3861, %v1313
        %3894 = vrot.lane.b32.xlu0 %v3878, 127
        %v3895 = vpop.permute.xlu0 %3894
        %3896 = vrot.lane.b32.xlu0 %v3879, 127
        %v3897 = vpop.permute.xlu0 %3896
        %3898 = vrot.lane.b32.xlu0 %v3880, 127
        %v3899 = vpop.permute.xlu0 %3898
        %3900 = vrot.lane.b32.xlu0 %v3881, 127
        %v3901 = vpop.permute.xlu0 %3900
        %3902 = vrot.lane.b32.xlu0 %v3882, 127
        %v3903 = vpop.permute.xlu0 %3902
        %3904 = vrot.lane.b32.xlu0 %v3883, 127
        %v3905 = vpop.permute.xlu0 %3904
        %3906 = vrot.lane.b32.xlu0 %v3884, 127
        %v3907 = vpop.permute.xlu0 %3906
        %3908 = vrot.lane.b32.xlu0 %v3885, 127
        %v3909 = vpop.permute.xlu0 %3908
        %v3918 = vadd.f32 %v3870, %v3895
        %v3919 = vadd.f32 %v3871, %v3897
        %v3920 = vadd.f32 %v3872, %v3899
        %v3921 = vadd.f32 %v3873, %v3901
        %v3922 = vadd.f32 %v3874, %v3903
        %v3923 = vadd.f32 %v3875, %v3905
        %v3924 = vadd.f32 %v3876, %v3907
        %v3925 = vadd.f32 %v3877, %v3909
        %v3926 = vmul.f32 %v3854, %v1372
        %v3927 = vmul.f32 %v3855, %v1373
        %v3928 = vmul.f32 %v3856, %v1374
        %v3929 = vmul.f32 %v3857, %v1375
        %v3930 = vmul.f32 %v3858, %v1376
        %v3931 = vmul.f32 %v3859, %v1377
        %v3932 = vmul.f32 %v3860, %v1378
        %v3933 = vmul.f32 %v3861, %v1379
        %3942 = vrot.lane.b32.xlu0 %v3926, 126
        %v3943 = vpop.permute.xlu0 %3942
        %3944 = vrot.lane.b32.xlu0 %v3927, 126
        %v3945 = vpop.permute.xlu0 %3944
        %3946 = vrot.lane.b32.xlu0 %v3928, 126
        %v3947 = vpop.permute.xlu0 %3946
        %3948 = vrot.lane.b32.xlu0 %v3929, 126
        %v3949 = vpop.permute.xlu0 %3948
        %3950 = vrot.lane.b32.xlu0 %v3930, 126
        %v3951 = vpop.permute.xlu0 %3950
        %3952 = vrot.lane.b32.xlu0 %v3931, 126
        %v3953 = vpop.permute.xlu0 %3952
        %3954 = vrot.lane.b32.xlu0 %v3932, 126
        %v3955 = vpop.permute.xlu0 %3954
        %3956 = vrot.lane.b32.xlu0 %v3933, 126
        %v3957 = vpop.permute.xlu0 %3956
        %v3966 = vadd.f32 %v3918, %v3943
        %v3967 = vadd.f32 %v3919, %v3945
        %v3968 = vadd.f32 %v3920, %v3947
        %v3969 = vadd.f32 %v3921, %v3949
        %v3970 = vadd.f32 %v3922, %v3951
        %v3971 = vadd.f32 %v3923, %v3953
        %v3972 = vadd.f32 %v3924, %v3955
        %v3973 = vadd.f32 %v3925, %v3957
        %v3974 = vadd.f32 %v3966, %v1439
        %v3975 = vadd.f32 %v3967, %v1440
        %v3976 = vadd.f32 %v3968, %v1441
        %v3977 = vadd.f32 %v3969, %v1442
        %v3978 = vadd.f32 %v3970, %v1443
        %v3979 = vadd.f32 %v3971, %v1444
        %v3980 = vadd.f32 %v3972, %v1445
        %v3981 = vadd.f32 %v3973, %v1446
        %v3982 = vmax.f32 %v3974, 0.0
        %v3983 = vmax.f32 %v3975, 0.0
        %v3984 = vmax.f32 %v3976, 0.0
        %v3985 = vmax.f32 %v3977, 0.0
        %v3986 = vmax.f32 %v3978, 0.0
        %v3987 = vmax.f32 %v3979, 0.0
        %v3988 = vmax.f32 %v3980, 0.0
        %v3989 = vmax.f32 %v3981, 0.0
        %v3990 = vmin.f32 %v3982, 6.0
        %v3991 = vmin.f32 %v3983, 6.0
        %v3992 = vmin.f32 %v3984, 6.0
        %v3993 = vmin.f32 %v3985, 6.0
        %v3994 = vmin.f32 %v3986, 6.0
        %v3995 = vmin.f32 %v3987, 6.0
        %v3996 = vmin.f32 %v3988, 6.0
        %v3997 = vmin.f32 %v3989, 6.0
        %v3998 = vmul.f32 %v3990, 1.7133749
        %v3999 = vmul.f32 %v3991, 1.7133749
        %v4000 = vmul.f32 %v3992, 1.7133749
        %v4001 = vmul.f32 %v3993, 1.7133749
        %v4002 = vmul.f32 %v3994, 1.7133749
        %v4003 = vmul.f32 %v3995, 1.7133749
        %v4004 = vmul.f32 %v3996, 1.7133749
        %v4005 = vmul.f32 %v3997, 1.7133749
        %v4014 = vrot.slane %v3999, 7
        %v4015 = vsel %vm1496, %v4014, %v3998
        %v4016 = vrot.slane %v4000, 6
        %v4017 = vsel %vm1499, %v4016, %v4015
        %v4018 = vrot.slane %v4001, 5
        %v4019 = vsel %vm1502, %v4018, %v4017
        %v4020 = vrot.slane %v4002, 4
        %v4021 = vsel %vm1505, %v4020, %v4019
        %v4022 = vrot.slane %v4003, 3
        %v4023 = vsel %vm1508, %v4022, %v4021
        %v4024 = vrot.slane %v4004, 2
        %v4025 = vsel %vm1511, %v4024, %v4023
        %v4026 = vrot.slane %v4005, 1
        %v4027 = vsel %vm1514, %v4026, %v4025
        %4028 = vrot.lane.b32.xlu0 %v4027, 96
        %v4029 = vpop.permute.xlu0 %4028
        %vm4031 = vcmask 917248
        %4032 = vst.msk [vmem:[#allocation3] sm:$0xff] %vm4031, %v4029
        %v4033 = vld [vmem:[#allocation2 + $0x7] sm:$0x1]
        %v4034 = vld [vmem:[#allocation2 + $0x1f] sm:$0x1]
        %v4035 = vld [vmem:[#allocation2 + $0x37] sm:$0x1]
        %v4036 = vld [vmem:[#allocation2 + $0x4f] sm:$0x1]
        %v4037 = vld [vmem:[#allocation2 + $0x67] sm:$0x1]
        %v4038 = vld [vmem:[#allocation2 + $0x7f] sm:$0x1]
        %v4039 = vld [vmem:[#allocation2 + $0x97] sm:$0x1]
        %v4040 = vld [vmem:[#allocation2 + $0xaf] sm:$0x1]
        %v4041 = vmul.f32 %v4033, %v924
        %v4042 = vmul.f32 %v4034, %v925
        %v4043 = vmul.f32 %v4035, %v926
        %v4044 = vmul.f32 %v4036, %v927
        %v4045 = vmul.f32 %v4037, %v928
        %v4046 = vmul.f32 %v4038, %v929
        %v4047 = vmul.f32 %v4039, %v930
        %v4048 = vmul.f32 %v4040, %v931
        %v4049 = vadd.f32 %v4041, 0.0
        %v4050 = vadd.f32 %v4042, 0.0
        %v4051 = vadd.f32 %v4043, 0.0
        %v4052 = vadd.f32 %v4044, 0.0
        %v4053 = vadd.f32 %v4045, 0.0
        %v4054 = vadd.f32 %v4046, 0.0
        %v4055 = vadd.f32 %v4047, 0.0
        %v4056 = vadd.f32 %v4048, 0.0
        %v4057 = vmul.f32 %v4033, %v958
        %v4058 = vmul.f32 %v4034, %v959
        %v4059 = vmul.f32 %v4035, %v960
        %v4060 = vmul.f32 %v4036, %v961
        %v4061 = vmul.f32 %v4037, %v962
        %v4062 = vmul.f32 %v4038, %v963
        %v4063 = vmul.f32 %v4039, %v964
        %v4064 = vmul.f32 %v4040, %v965
        %4073 = vrot.lane.b32.xlu0 %v4057, 127
        %v4074 = vpop.permute.xlu0 %4073
        %4075 = vrot.lane.b32.xlu0 %v4058, 127
        %v4076 = vpop.permute.xlu0 %4075
        %4077 = vrot.lane.b32.xlu0 %v4059, 127
        %v4078 = vpop.permute.xlu0 %4077
        %4079 = vrot.lane.b32.xlu0 %v4060, 127
        %v4080 = vpop.permute.xlu0 %4079
        %4081 = vrot.lane.b32.xlu0 %v4061, 127
        %v4082 = vpop.permute.xlu0 %4081
        %4083 = vrot.lane.b32.xlu0 %v4062, 127
        %v4084 = vpop.permute.xlu0 %4083
        %4085 = vrot.lane.b32.xlu0 %v4063, 127
        %v4086 = vpop.permute.xlu0 %4085
        %4087 = vrot.lane.b32.xlu0 %v4064, 127
        %v4088 = vpop.permute.xlu0 %4087
        %v4097 = vadd.f32 %v4049, %v4074
        %v4098 = vadd.f32 %v4050, %v4076
        %v4099 = vadd.f32 %v4051, %v4078
        %v4100 = vadd.f32 %v4052, %v4080
        %v4101 = vadd.f32 %v4053, %v4082
        %v4102 = vadd.f32 %v4054, %v4084
        %v4103 = vadd.f32 %v4055, %v4086
        %v4104 = vadd.f32 %v4056, %v4088
        %v4105 = vmul.f32 %v4033, %v1024
        %v4106 = vmul.f32 %v4034, %v1025
        %v4107 = vmul.f32 %v4035, %v1026
        %v4108 = vmul.f32 %v4036, %v1027
        %v4109 = vmul.f32 %v4037, %v1028
        %v4110 = vmul.f32 %v4038, %v1029
        %v4111 = vmul.f32 %v4039, %v1030
        %v4112 = vmul.f32 %v4040, %v1031
        %4121 = vrot.lane.b32.xlu0 %v4105, 126
        %v4122 = vpop.permute.xlu0 %4121
        %4123 = vrot.lane.b32.xlu0 %v4106, 126
        %v4124 = vpop.permute.xlu0 %4123
        %4125 = vrot.lane.b32.xlu0 %v4107, 126
        %v4126 = vpop.permute.xlu0 %4125
        %4127 = vrot.lane.b32.xlu0 %v4108, 126
        %v4128 = vpop.permute.xlu0 %4127
        %4129 = vrot.lane.b32.xlu0 %v4109, 126
        %v4130 = vpop.permute.xlu0 %4129
        %4131 = vrot.lane.b32.xlu0 %v4110, 126
        %v4132 = vpop.permute.xlu0 %4131
        %4133 = vrot.lane.b32.xlu0 %v4111, 126
        %v4134 = vpop.permute.xlu0 %4133
        %4135 = vrot.lane.b32.xlu0 %v4112, 126
        %v4136 = vpop.permute.xlu0 %4135
        %v4145 = vadd.f32 %v4097, %v4122
        %v4146 = vadd.f32 %v4098, %v4124
        %v4147 = vadd.f32 %v4099, %v4126
        %v4148 = vadd.f32 %v4100, %v4128
        %v4149 = vadd.f32 %v4101, %v4130
        %v4150 = vadd.f32 %v4102, %v4132
        %v4151 = vadd.f32 %v4103, %v4134
        %v4152 = vadd.f32 %v4104, %v4136
        %v4153 = vld [vmem:[#allocation2 + $0x8] sm:$0x1]
        %v4154 = vld [vmem:[#allocation2 + $0x20] sm:$0x1]
        %v4155 = vld [vmem:[#allocation2 + $0x38] sm:$0x1]
        %v4156 = vld [vmem:[#allocation2 + $0x50] sm:$0x1]
        %v4157 = vld [vmem:[#allocation2 + $0x68] sm:$0x1]
        %v4158 = vld [vmem:[#allocation2 + $0x80] sm:$0x1]
        %v4159 = vld [vmem:[#allocation2 + $0x98] sm:$0x1]
        %v4160 = vld [vmem:[#allocation2 + $0xb0] sm:$0x1]
        %v4161 = vmul.f32 %v4153, %v1098
        %v4162 = vmul.f32 %v4154, %v1099
        %v4163 = vmul.f32 %v4155, %v1100
        %v4164 = vmul.f32 %v4156, %v1101
        %v4165 = vmul.f32 %v4157, %v1102
        %v4166 = vmul.f32 %v4158, %v1103
        %v4167 = vmul.f32 %v4159, %v1104
        %v4168 = vmul.f32 %v4160, %v1105
        %v4169 = vadd.f32 %v4145, %v4161
        %v4170 = vadd.f32 %v4146, %v4162
        %v4171 = vadd.f32 %v4147, %v4163
        %v4172 = vadd.f32 %v4148, %v4164
        %v4173 = vadd.f32 %v4149, %v4165
        %v4174 = vadd.f32 %v4150, %v4166
        %v4175 = vadd.f32 %v4151, %v4167
        %v4176 = vadd.f32 %v4152, %v4168
        %v4177 = vmul.f32 %v4153, %v1132
        %v4178 = vmul.f32 %v4154, %v1133
        %v4179 = vmul.f32 %v4155, %v1134
        %v4180 = vmul.f32 %v4156, %v1135
        %v4181 = vmul.f32 %v4157, %v1136
        %v4182 = vmul.f32 %v4158, %v1137
        %v4183 = vmul.f32 %v4159, %v1138
        %v4184 = vmul.f32 %v4160, %v1139
        %4193 = vrot.lane.b32.xlu0 %v4177, 127
        %v4194 = vpop.permute.xlu0 %4193
        %4195 = vrot.lane.b32.xlu0 %v4178, 127
        %v4196 = vpop.permute.xlu0 %4195
        %4197 = vrot.lane.b32.xlu0 %v4179, 127
        %v4198 = vpop.permute.xlu0 %4197
        %4199 = vrot.lane.b32.xlu0 %v4180, 127
        %v4200 = vpop.permute.xlu0 %4199
        %4201 = vrot.lane.b32.xlu0 %v4181, 127
        %v4202 = vpop.permute.xlu0 %4201
        %4203 = vrot.lane.b32.xlu0 %v4182, 127
        %v4204 = vpop.permute.xlu0 %4203
        %4205 = vrot.lane.b32.xlu0 %v4183, 127
        %v4206 = vpop.permute.xlu0 %4205
        %4207 = vrot.lane.b32.xlu0 %v4184, 127
        %v4208 = vpop.permute.xlu0 %4207
        %v4217 = vadd.f32 %v4169, %v4194
        %v4218 = vadd.f32 %v4170, %v4196
        %v4219 = vadd.f32 %v4171, %v4198
        %v4220 = vadd.f32 %v4172, %v4200
        %v4221 = vadd.f32 %v4173, %v4202
        %v4222 = vadd.f32 %v4174, %v4204
        %v4223 = vadd.f32 %v4175, %v4206
        %v4224 = vadd.f32 %v4176, %v4208
        %v4225 = vmul.f32 %v4153, %v1198
        %v4226 = vmul.f32 %v4154, %v1199
        %v4227 = vmul.f32 %v4155, %v1200
        %v4228 = vmul.f32 %v4156, %v1201
        %v4229 = vmul.f32 %v4157, %v1202
        %v4230 = vmul.f32 %v4158, %v1203
        %v4231 = vmul.f32 %v4159, %v1204
        %v4232 = vmul.f32 %v4160, %v1205
        %4241 = vrot.lane.b32.xlu0 %v4225, 126
        %v4242 = vpop.permute.xlu0 %4241
        %4243 = vrot.lane.b32.xlu0 %v4226, 126
        %v4244 = vpop.permute.xlu0 %4243
        %4245 = vrot.lane.b32.xlu0 %v4227, 126
        %v4246 = vpop.permute.xlu0 %4245
        %4247 = vrot.lane.b32.xlu0 %v4228, 126
        %v4248 = vpop.permute.xlu0 %4247
        %4249 = vrot.lane.b32.xlu0 %v4229, 126
        %v4250 = vpop.permute.xlu0 %4249
        %4251 = vrot.lane.b32.xlu0 %v4230, 126
        %v4252 = vpop.permute.xlu0 %4251
        %4253 = vrot.lane.b32.xlu0 %v4231, 126
        %v4254 = vpop.permute.xlu0 %4253
        %4255 = vrot.lane.b32.xlu0 %v4232, 126
        %v4256 = vpop.permute.xlu0 %4255
        %v4265 = vadd.f32 %v4217, %v4242
        %v4266 = vadd.f32 %v4218, %v4244
        %v4267 = vadd.f32 %v4219, %v4246
        %v4268 = vadd.f32 %v4220, %v4248
        %v4269 = vadd.f32 %v4221, %v4250
        %v4270 = vadd.f32 %v4222, %v4252
        %v4271 = vadd.f32 %v4223, %v4254
        %v4272 = vadd.f32 %v4224, %v4256
        %v4273 = vld [vmem:[#allocation2 + $0x9] sm:$0x1]
        %v4274 = vld [vmem:[#allocation2 + $0x21] sm:$0x1]
        %v4275 = vld [vmem:[#allocation2 + $0x39] sm:$0x1]
        %v4276 = vld [vmem:[#allocation2 + $0x51] sm:$0x1]
        %v4277 = vld [vmem:[#allocation2 + $0x69] sm:$0x1]
        %v4278 = vld [vmem:[#allocation2 + $0x81] sm:$0x1]
        %v4279 = vld [vmem:[#allocation2 + $0x99] sm:$0x1]
        %v4280 = vld [vmem:[#allocation2 + $0xb1] sm:$0x1]
        %v4281 = vmul.f32 %v4273, %v1272
        %v4282 = vmul.f32 %v4274, %v1273
        %v4283 = vmul.f32 %v4275, %v1274
        %v4284 = vmul.f32 %v4276, %v1275
        %v4285 = vmul.f32 %v4277, %v1276
        %v4286 = vmul.f32 %v4278, %v1277
        %v4287 = vmul.f32 %v4279, %v1278
        %v4288 = vmul.f32 %v4280, %v1279
        %v4289 = vadd.f32 %v4265, %v4281
        %v4290 = vadd.f32 %v4266, %v4282
        %v4291 = vadd.f32 %v4267, %v4283
        %v4292 = vadd.f32 %v4268, %v4284
        %v4293 = vadd.f32 %v4269, %v4285
        %v4294 = vadd.f32 %v4270, %v4286
        %v4295 = vadd.f32 %v4271, %v4287
        %v4296 = vadd.f32 %v4272, %v4288
        %v4297 = vmul.f32 %v4273, %v1306
        %v4298 = vmul.f32 %v4274, %v1307
        %v4299 = vmul.f32 %v4275, %v1308
        %v4300 = vmul.f32 %v4276, %v1309
        %v4301 = vmul.f32 %v4277, %v1310
        %v4302 = vmul.f32 %v4278, %v1311
        %v4303 = vmul.f32 %v4279, %v1312
        %v4304 = vmul.f32 %v4280, %v1313
        %4313 = vrot.lane.b32.xlu0 %v4297, 127
        %v4314 = vpop.permute.xlu0 %4313
        %4315 = vrot.lane.b32.xlu0 %v4298, 127
        %v4316 = vpop.permute.xlu0 %4315
        %4317 = vrot.lane.b32.xlu0 %v4299, 127
        %v4318 = vpop.permute.xlu0 %4317
        %4319 = vrot.lane.b32.xlu0 %v4300, 127
        %v4320 = vpop.permute.xlu0 %4319
        %4321 = vrot.lane.b32.xlu0 %v4301, 127
        %v4322 = vpop.permute.xlu0 %4321
        %4323 = vrot.lane.b32.xlu0 %v4302, 127
        %v4324 = vpop.permute.xlu0 %4323
        %4325 = vrot.lane.b32.xlu0 %v4303, 127
        %v4326 = vpop.permute.xlu0 %4325
        %4327 = vrot.lane.b32.xlu0 %v4304, 127
        %v4328 = vpop.permute.xlu0 %4327
        %v4337 = vadd.f32 %v4289, %v4314
        %v4338 = vadd.f32 %v4290, %v4316
        %v4339 = vadd.f32 %v4291, %v4318
        %v4340 = vadd.f32 %v4292, %v4320
        %v4341 = vadd.f32 %v4293, %v4322
        %v4342 = vadd.f32 %v4294, %v4324
        %v4343 = vadd.f32 %v4295, %v4326
        %v4344 = vadd.f32 %v4296, %v4328
        %v4345 = vmul.f32 %v4273, %v1372
        %v4346 = vmul.f32 %v4274, %v1373
        %v4347 = vmul.f32 %v4275, %v1374
        %v4348 = vmul.f32 %v4276, %v1375
        %v4349 = vmul.f32 %v4277, %v1376
        %v4350 = vmul.f32 %v4278, %v1377
        %v4351 = vmul.f32 %v4279, %v1378
        %v4352 = vmul.f32 %v4280, %v1379
        %4361 = vrot.lane.b32.xlu0 %v4345, 126
        %v4362 = vpop.permute.xlu0 %4361
        %4363 = vrot.lane.b32.xlu0 %v4346, 126
        %v4364 = vpop.permute.xlu0 %4363
        %4365 = vrot.lane.b32.xlu0 %v4347, 126
        %v4366 = vpop.permute.xlu0 %4365
        %4367 = vrot.lane.b32.xlu0 %v4348, 126
        %v4368 = vpop.permute.xlu0 %4367
        %4369 = vrot.lane.b32.xlu0 %v4349, 126
        %v4370 = vpop.permute.xlu0 %4369
        %4371 = vrot.lane.b32.xlu0 %v4350, 126
        %v4372 = vpop.permute.xlu0 %4371
        %4373 = vrot.lane.b32.xlu0 %v4351, 126
        %v4374 = vpop.permute.xlu0 %4373
        %4375 = vrot.lane.b32.xlu0 %v4352, 126
        %v4376 = vpop.permute.xlu0 %4375
        %v4385 = vadd.f32 %v4337, %v4362
        %v4386 = vadd.f32 %v4338, %v4364
        %v4387 = vadd.f32 %v4339, %v4366
        %v4388 = vadd.f32 %v4340, %v4368
        %v4389 = vadd.f32 %v4341, %v4370
        %v4390 = vadd.f32 %v4342, %v4372
        %v4391 = vadd.f32 %v4343, %v4374
        %v4392 = vadd.f32 %v4344, %v4376
        %v4393 = vadd.f32 %v4385, %v1439
        %v4394 = vadd.f32 %v4386, %v1440
        %v4395 = vadd.f32 %v4387, %v1441
        %v4396 = vadd.f32 %v4388, %v1442
        %v4397 = vadd.f32 %v4389, %v1443
        %v4398 = vadd.f32 %v4390, %v1444
        %v4399 = vadd.f32 %v4391, %v1445
        %v4400 = vadd.f32 %v4392, %v1446
        %v4401 = vmax.f32 %v4393, 0.0
        %v4402 = vmax.f32 %v4394, 0.0
        %v4403 = vmax.f32 %v4395, 0.0
        %v4404 = vmax.f32 %v4396, 0.0
        %v4405 = vmax.f32 %v4397, 0.0
        %v4406 = vmax.f32 %v4398, 0.0
        %v4407 = vmax.f32 %v4399, 0.0
        %v4408 = vmax.f32 %v4400, 0.0
        %v4409 = vmin.f32 %v4401, 6.0
        %v4410 = vmin.f32 %v4402, 6.0
        %v4411 = vmin.f32 %v4403, 6.0
        %v4412 = vmin.f32 %v4404, 6.0
        %v4413 = vmin.f32 %v4405, 6.0
        %v4414 = vmin.f32 %v4406, 6.0
        %v4415 = vmin.f32 %v4407, 6.0
        %v4416 = vmin.f32 %v4408, 6.0
        %v4417 = vmul.f32 %v4409, 1.7133749
        %v4418 = vmul.f32 %v4410, 1.7133749
        %v4419 = vmul.f32 %v4411, 1.7133749
        %v4420 = vmul.f32 %v4412, 1.7133749
        %v4421 = vmul.f32 %v4413, 1.7133749
        %v4422 = vmul.f32 %v4414, 1.7133749
        %v4423 = vmul.f32 %v4415, 1.7133749
        %v4424 = vmul.f32 %v4416, 1.7133749
        %v4433 = vrot.slane %v4418, 7
        %v4434 = vsel %vm1496, %v4433, %v4417
        %v4435 = vrot.slane %v4419, 6
        %v4436 = vsel %vm1499, %v4435, %v4434
        %v4437 = vrot.slane %v4420, 5
        %v4438 = vsel %vm1502, %v4437, %v4436
        %v4439 = vrot.slane %v4421, 4
        %v4440 = vsel %vm1505, %v4439, %v4438
        %v4441 = vrot.slane %v4422, 3
        %v4442 = vsel %vm1508, %v4441, %v4440
        %v4443 = vrot.slane %v4423, 2
        %v4444 = vsel %vm1511, %v4443, %v4442
        %v4445 = vrot.slane %v4424, 1
        %v4446 = vsel %vm1514, %v4445, %v4444
        %4447 = vrot.lane.b32.xlu0 %v4446, 112
        %v4448 = vpop.permute.xlu0 %4447
        %vm4450 = vcmask 1048448
        %4451 = vst.msk [vmem:[#allocation3] sm:$0xff] %vm4450, %v4448
        %v4452 = vld [vmem:[#allocation2 + $0x8] sm:$0x1]
        %v4453 = vld [vmem:[#allocation2 + $0x20] sm:$0x1]
        %v4454 = vld [vmem:[#allocation2 + $0x38] sm:$0x1]
        %v4455 = vld [vmem:[#allocation2 + $0x50] sm:$0x1]
        %v4456 = vld [vmem:[#allocation2 + $0x68] sm:$0x1]
        %v4457 = vld [vmem:[#allocation2 + $0x80] sm:$0x1]
        %v4458 = vld [vmem:[#allocation2 + $0x98] sm:$0x1]
        %v4459 = vld [vmem:[#allocation2 + $0xb0] sm:$0x1]
        %v4460 = vmul.f32 %v4452, %v924
        %v4461 = vmul.f32 %v4453, %v925
        %v4462 = vmul.f32 %v4454, %v926
        %v4463 = vmul.f32 %v4455, %v927
        %v4464 = vmul.f32 %v4456, %v928
        %v4465 = vmul.f32 %v4457, %v929
        %v4466 = vmul.f32 %v4458, %v930
        %v4467 = vmul.f32 %v4459, %v931
        %v4468 = vadd.f32 %v4460, 0.0
        %v4469 = vadd.f32 %v4461, 0.0
        %v4470 = vadd.f32 %v4462, 0.0
        %v4471 = vadd.f32 %v4463, 0.0
        %v4472 = vadd.f32 %v4464, 0.0
        %v4473 = vadd.f32 %v4465, 0.0
        %v4474 = vadd.f32 %v4466, 0.0
        %v4475 = vadd.f32 %v4467, 0.0
        %v4476 = vmul.f32 %v4452, %v958
        %v4477 = vmul.f32 %v4453, %v959
        %v4478 = vmul.f32 %v4454, %v960
        %v4479 = vmul.f32 %v4455, %v961
        %v4480 = vmul.f32 %v4456, %v962
        %v4481 = vmul.f32 %v4457, %v963
        %v4482 = vmul.f32 %v4458, %v964
        %v4483 = vmul.f32 %v4459, %v965
        %4492 = vrot.lane.b32.xlu0 %v4476, 127
        %v4493 = vpop.permute.xlu0 %4492
        %4494 = vrot.lane.b32.xlu0 %v4477, 127
        %v4495 = vpop.permute.xlu0 %4494
        %4496 = vrot.lane.b32.xlu0 %v4478, 127
        %v4497 = vpop.permute.xlu0 %4496
        %4498 = vrot.lane.b32.xlu0 %v4479, 127
        %v4499 = vpop.permute.xlu0 %4498
        %4500 = vrot.lane.b32.xlu0 %v4480, 127
        %v4501 = vpop.permute.xlu0 %4500
        %4502 = vrot.lane.b32.xlu0 %v4481, 127
        %v4503 = vpop.permute.xlu0 %4502
        %4504 = vrot.lane.b32.xlu0 %v4482, 127
        %v4505 = vpop.permute.xlu0 %4504
        %4506 = vrot.lane.b32.xlu0 %v4483, 127
        %v4507 = vpop.permute.xlu0 %4506
        %v4516 = vadd.f32 %v4468, %v4493
        %v4517 = vadd.f32 %v4469, %v4495
        %v4518 = vadd.f32 %v4470, %v4497
        %v4519 = vadd.f32 %v4471, %v4499
        %v4520 = vadd.f32 %v4472, %v4501
        %v4521 = vadd.f32 %v4473, %v4503
        %v4522 = vadd.f32 %v4474, %v4505
        %v4523 = vadd.f32 %v4475, %v4507
        %v4524 = vmul.f32 %v4452, %v1024
        %v4525 = vmul.f32 %v4453, %v1025
        %v4526 = vmul.f32 %v4454, %v1026
        %v4527 = vmul.f32 %v4455, %v1027
        %v4528 = vmul.f32 %v4456, %v1028
        %v4529 = vmul.f32 %v4457, %v1029
        %v4530 = vmul.f32 %v4458, %v1030
        %v4531 = vmul.f32 %v4459, %v1031
        %4540 = vrot.lane.b32.xlu0 %v4524, 126
        %v4541 = vpop.permute.xlu0 %4540
        %4542 = vrot.lane.b32.xlu0 %v4525, 126
        %v4543 = vpop.permute.xlu0 %4542
        %4544 = vrot.lane.b32.xlu0 %v4526, 126
        %v4545 = vpop.permute.xlu0 %4544
        %4546 = vrot.lane.b32.xlu0 %v4527, 126
        %v4547 = vpop.permute.xlu0 %4546
        %4548 = vrot.lane.b32.xlu0 %v4528, 126
        %v4549 = vpop.permute.xlu0 %4548
        %4550 = vrot.lane.b32.xlu0 %v4529, 126
        %v4551 = vpop.permute.xlu0 %4550
        %4552 = vrot.lane.b32.xlu0 %v4530, 126
        %v4553 = vpop.permute.xlu0 %4552
        %4554 = vrot.lane.b32.xlu0 %v4531, 126
        %v4555 = vpop.permute.xlu0 %4554
        %v4564 = vadd.f32 %v4516, %v4541
        %v4565 = vadd.f32 %v4517, %v4543
        %v4566 = vadd.f32 %v4518, %v4545
        %v4567 = vadd.f32 %v4519, %v4547
        %v4568 = vadd.f32 %v4520, %v4549
        %v4569 = vadd.f32 %v4521, %v4551
        %v4570 = vadd.f32 %v4522, %v4553
        %v4571 = vadd.f32 %v4523, %v4555
        %v4572 = vld [vmem:[#allocation2 + $0x9] sm:$0x1]
        %v4573 = vld [vmem:[#allocation2 + $0x21] sm:$0x1]
        %v4574 = vld [vmem:[#allocation2 + $0x39] sm:$0x1]
        %v4575 = vld [vmem:[#allocation2 + $0x51] sm:$0x1]
        %v4576 = vld [vmem:[#allocation2 + $0x69] sm:$0x1]
        %v4577 = vld [vmem:[#allocation2 + $0x81] sm:$0x1]
        %v4578 = vld [vmem:[#allocation2 + $0x99] sm:$0x1]
        %v4579 = vld [vmem:[#allocation2 + $0xb1] sm:$0x1]
        %v4580 = vmul.f32 %v4572, %v1098
        %v4581 = vmul.f32 %v4573, %v1099
        %v4582 = vmul.f32 %v4574, %v1100
        %v4583 = vmul.f32 %v4575, %v1101
        %v4584 = vmul.f32 %v4576, %v1102
        %v4585 = vmul.f32 %v4577, %v1103
        %v4586 = vmul.f32 %v4578, %v1104
        %v4587 = vmul.f32 %v4579, %v1105
        %v4588 = vadd.f32 %v4564, %v4580
        %v4589 = vadd.f32 %v4565, %v4581
        %v4590 = vadd.f32 %v4566, %v4582
        %v4591 = vadd.f32 %v4567, %v4583
        %v4592 = vadd.f32 %v4568, %v4584
        %v4593 = vadd.f32 %v4569, %v4585
        %v4594 = vadd.f32 %v4570, %v4586
        %v4595 = vadd.f32 %v4571, %v4587
        %v4596 = vmul.f32 %v4572, %v1132
        %v4597 = vmul.f32 %v4573, %v1133
        %v4598 = vmul.f32 %v4574, %v1134
        %v4599 = vmul.f32 %v4575, %v1135
        %v4600 = vmul.f32 %v4576, %v1136
        %v4601 = vmul.f32 %v4577, %v1137
        %v4602 = vmul.f32 %v4578, %v1138
        %v4603 = vmul.f32 %v4579, %v1139
        %4612 = vrot.lane.b32.xlu0 %v4596, 127
        %v4613 = vpop.permute.xlu0 %4612
        %4614 = vrot.lane.b32.xlu0 %v4597, 127
        %v4615 = vpop.permute.xlu0 %4614
        %4616 = vrot.lane.b32.xlu0 %v4598, 127
        %v4617 = vpop.permute.xlu0 %4616
        %4618 = vrot.lane.b32.xlu0 %v4599, 127
        %v4619 = vpop.permute.xlu0 %4618
        %4620 = vrot.lane.b32.xlu0 %v4600, 127
        %v4621 = vpop.permute.xlu0 %4620
        %4622 = vrot.lane.b32.xlu0 %v4601, 127
        %v4623 = vpop.permute.xlu0 %4622
        %4624 = vrot.lane.b32.xlu0 %v4602, 127
        %v4625 = vpop.permute.xlu0 %4624
        %4626 = vrot.lane.b32.xlu0 %v4603, 127
        %v4627 = vpop.permute.xlu0 %4626
        %v4636 = vadd.f32 %v4588, %v4613
        %v4637 = vadd.f32 %v4589, %v4615
        %v4638 = vadd.f32 %v4590, %v4617
        %v4639 = vadd.f32 %v4591, %v4619
        %v4640 = vadd.f32 %v4592, %v4621
        %v4641 = vadd.f32 %v4593, %v4623
        %v4642 = vadd.f32 %v4594, %v4625
        %v4643 = vadd.f32 %v4595, %v4627
        %v4644 = vmul.f32 %v4572, %v1198
        %v4645 = vmul.f32 %v4573, %v1199
        %v4646 = vmul.f32 %v4574, %v1200
        %v4647 = vmul.f32 %v4575, %v1201
        %v4648 = vmul.f32 %v4576, %v1202
        %v4649 = vmul.f32 %v4577, %v1203
        %v4650 = vmul.f32 %v4578, %v1204
        %v4651 = vmul.f32 %v4579, %v1205
        %4660 = vrot.lane.b32.xlu0 %v4644, 126
        %v4661 = vpop.permute.xlu0 %4660
        %4662 = vrot.lane.b32.xlu0 %v4645, 126
        %v4663 = vpop.permute.xlu0 %4662
        %4664 = vrot.lane.b32.xlu0 %v4646, 126
        %v4665 = vpop.permute.xlu0 %4664
        %4666 = vrot.lane.b32.xlu0 %v4647, 126
        %v4667 = vpop.permute.xlu0 %4666
        %4668 = vrot.lane.b32.xlu0 %v4648, 126
        %v4669 = vpop.permute.xlu0 %4668
        %4670 = vrot.lane.b32.xlu0 %v4649, 126
        %v4671 = vpop.permute.xlu0 %4670
        %4672 = vrot.lane.b32.xlu0 %v4650, 126
        %v4673 = vpop.permute.xlu0 %4672
        %4674 = vrot.lane.b32.xlu0 %v4651, 126
        %v4675 = vpop.permute.xlu0 %4674
        %v4684 = vadd.f32 %v4636, %v4661
        %v4685 = vadd.f32 %v4637, %v4663
        %v4686 = vadd.f32 %v4638, %v4665
        %v4687 = vadd.f32 %v4639, %v4667
        %v4688 = vadd.f32 %v4640, %v4669
        %v4689 = vadd.f32 %v4641, %v4671
        %v4690 = vadd.f32 %v4642, %v4673
        %v4691 = vadd.f32 %v4643, %v4675
        %v4692 = vld [vmem:[#allocation2 + $0xa] sm:$0x1]
        %v4693 = vld [vmem:[#allocation2 + $0x22] sm:$0x1]
        %v4694 = vld [vmem:[#allocation2 + $0x3a] sm:$0x1]
        %v4695 = vld [vmem:[#allocation2 + $0x52] sm:$0x1]
        %v4696 = vld [vmem:[#allocation2 + $0x6a] sm:$0x1]
        %v4697 = vld [vmem:[#allocation2 + $0x82] sm:$0x1]
        %v4698 = vld [vmem:[#allocation2 + $0x9a] sm:$0x1]
        %v4699 = vld [vmem:[#allocation2 + $0xb2] sm:$0x1]
        %v4700 = vmul.f32 %v4692, %v1272
        %v4701 = vmul.f32 %v4693, %v1273
        %v4702 = vmul.f32 %v4694, %v1274
        %v4703 = vmul.f32 %v4695, %v1275
        %v4704 = vmul.f32 %v4696, %v1276
        %v4705 = vmul.f32 %v4697, %v1277
        %v4706 = vmul.f32 %v4698, %v1278
        %v4707 = vmul.f32 %v4699, %v1279
        %v4708 = vadd.f32 %v4684, %v4700
        %v4709 = vadd.f32 %v4685, %v4701
        %v4710 = vadd.f32 %v4686, %v4702
        %v4711 = vadd.f32 %v4687, %v4703
        %v4712 = vadd.f32 %v4688, %v4704
        %v4713 = vadd.f32 %v4689, %v4705
        %v4714 = vadd.f32 %v4690, %v4706
        %v4715 = vadd.f32 %v4691, %v4707
        %v4716 = vmul.f32 %v4692, %v1306
        %v4717 = vmul.f32 %v4693, %v1307
        %v4718 = vmul.f32 %v4694, %v1308
        %v4719 = vmul.f32 %v4695, %v1309
        %v4720 = vmul.f32 %v4696, %v1310
        %v4721 = vmul.f32 %v4697, %v1311
        %v4722 = vmul.f32 %v4698, %v1312
        %v4723 = vmul.f32 %v4699, %v1313
        %4732 = vrot.lane.b32.xlu0 %v4716, 127
        %v4733 = vpop.permute.xlu0 %4732
        %4734 = vrot.lane.b32.xlu0 %v4717, 127
        %v4735 = vpop.permute.xlu0 %4734
        %4736 = vrot.lane.b32.xlu0 %v4718, 127
        %v4737 = vpop.permute.xlu0 %4736
        %4738 = vrot.lane.b32.xlu0 %v4719, 127
        %v4739 = vpop.permute.xlu0 %4738
        %4740 = vrot.lane.b32.xlu0 %v4720, 127
        %v4741 = vpop.permute.xlu0 %4740
        %4742 = vrot.lane.b32.xlu0 %v4721, 127
        %v4743 = vpop.permute.xlu0 %4742
        %4744 = vrot.lane.b32.xlu0 %v4722, 127
        %v4745 = vpop.permute.xlu0 %4744
        %4746 = vrot.lane.b32.xlu0 %v4723, 127
        %v4747 = vpop.permute.xlu0 %4746
        %v4756 = vadd.f32 %v4708, %v4733
        %v4757 = vadd.f32 %v4709, %v4735
        %v4758 = vadd.f32 %v4710, %v4737
        %v4759 = vadd.f32 %v4711, %v4739
        %v4760 = vadd.f32 %v4712, %v4741
        %v4761 = vadd.f32 %v4713, %v4743
        %v4762 = vadd.f32 %v4714, %v4745
        %v4763 = vadd.f32 %v4715, %v4747
        %v4764 = vmul.f32 %v4692, %v1372
        %v4765 = vmul.f32 %v4693, %v1373
        %v4766 = vmul.f32 %v4694, %v1374
        %v4767 = vmul.f32 %v4695, %v1375
        %v4768 = vmul.f32 %v4696, %v1376
        %v4769 = vmul.f32 %v4697, %v1377
        %v4770 = vmul.f32 %v4698, %v1378
        %v4771 = vmul.f32 %v4699, %v1379
        %4780 = vrot.lane.b32.xlu0 %v4764, 126
        %v4781 = vpop.permute.xlu0 %4780
        %4782 = vrot.lane.b32.xlu0 %v4765, 126
        %v4783 = vpop.permute.xlu0 %4782
        %4784 = vrot.lane.b32.xlu0 %v4766, 126
        %v4785 = vpop.permute.xlu0 %4784
        %4786 = vrot.lane.b32.xlu0 %v4767, 126
        %v4787 = vpop.permute.xlu0 %4786
        %4788 = vrot.lane.b32.xlu0 %v4768, 126
        %v4789 = vpop.permute.xlu0 %4788
        %4790 = vrot.lane.b32.xlu0 %v4769, 126
        %v4791 = vpop.permute.xlu0 %4790
        %4792 = vrot.lane.b32.xlu0 %v4770, 126
        %v4793 = vpop.permute.xlu0 %4792
        %4794 = vrot.lane.b32.xlu0 %v4771, 126
        %v4795 = vpop.permute.xlu0 %4794
        %v4804 = vadd.f32 %v4756, %v4781
        %v4805 = vadd.f32 %v4757, %v4783
        %v4806 = vadd.f32 %v4758, %v4785
        %v4807 = vadd.f32 %v4759, %v4787
        %v4808 = vadd.f32 %v4760, %v4789
        %v4809 = vadd.f32 %v4761, %v4791
        %v4810 = vadd.f32 %v4762, %v4793
        %v4811 = vadd.f32 %v4763, %v4795
        %v4812 = vadd.f32 %v4804, %v1439
        %v4813 = vadd.f32 %v4805, %v1440
        %v4814 = vadd.f32 %v4806, %v1441
        %v4815 = vadd.f32 %v4807, %v1442
        %v4816 = vadd.f32 %v4808, %v1443
        %v4817 = vadd.f32 %v4809, %v1444
        %v4818 = vadd.f32 %v4810, %v1445
        %v4819 = vadd.f32 %v4811, %v1446
        %v4820 = vmax.f32 %v4812, 0.0
        %v4821 = vmax.f32 %v4813, 0.0
        %v4822 = vmax.f32 %v4814, 0.0
        %v4823 = vmax.f32 %v4815, 0.0
        %v4824 = vmax.f32 %v4816, 0.0
        %v4825 = vmax.f32 %v4817, 0.0
        %v4826 = vmax.f32 %v4818, 0.0
        %v4827 = vmax.f32 %v4819, 0.0
        %v4828 = vmin.f32 %v4820, 6.0
        %v4829 = vmin.f32 %v4821, 6.0
        %v4830 = vmin.f32 %v4822, 6.0
        %v4831 = vmin.f32 %v4823, 6.0
        %v4832 = vmin.f32 %v4824, 6.0
        %v4833 = vmin.f32 %v4825, 6.0
        %v4834 = vmin.f32 %v4826, 6.0
        %v4835 = vmin.f32 %v4827, 6.0
        %v4836 = vmul.f32 %v4828, 1.7133749
        %v4837 = vmul.f32 %v4829, 1.7133749
        %v4838 = vmul.f32 %v4830, 1.7133749
        %v4839 = vmul.f32 %v4831, 1.7133749
        %v4840 = vmul.f32 %v4832, 1.7133749
        %v4841 = vmul.f32 %v4833, 1.7133749
        %v4842 = vmul.f32 %v4834, 1.7133749
        %v4843 = vmul.f32 %v4835, 1.7133749
        %v4852 = vrot.slane %v4837, 7
        %v4853 = vsel %vm1496, %v4852, %v4836
        %v4854 = vrot.slane %v4838, 6
        %v4855 = vsel %vm1499, %v4854, %v4853
        %v4856 = vrot.slane %v4839, 5
        %v4857 = vsel %vm1502, %v4856, %v4855
        %v4858 = vrot.slane %v4840, 4
        %v4859 = vsel %vm1505, %v4858, %v4857
        %v4860 = vrot.slane %v4841, 3
        %v4861 = vsel %vm1508, %v4860, %v4859
        %v4862 = vrot.slane %v4842, 2
        %v4863 = vsel %vm1511, %v4862, %v4861
        %v4864 = vrot.slane %v4843, 1
        %v4865 = vsel %vm1514, %v4864, %v4863
        %4867 = vst.msk [vmem:[#allocation3 + $0x8] sm:$0xff] %vm1517, %v4865
        %v4868 = vld [vmem:[#allocation2 + $0x9] sm:$0x1]
        %v4869 = vld [vmem:[#allocation2 + $0x21] sm:$0x1]
        %v4870 = vld [vmem:[#allocation2 + $0x39] sm:$0x1]
        %v4871 = vld [vmem:[#allocation2 + $0x51] sm:$0x1]
        %v4872 = vld [vmem:[#allocation2 + $0x69] sm:$0x1]
        %v4873 = vld [vmem:[#allocation2 + $0x81] sm:$0x1]
        %v4874 = vld [vmem:[#allocation2 + $0x99] sm:$0x1]
        %v4875 = vld [vmem:[#allocation2 + $0xb1] sm:$0x1]
        %v4876 = vmul.f32 %v4868, %v924
        %v4877 = vmul.f32 %v4869, %v925
        %v4878 = vmul.f32 %v4870, %v926
        %v4879 = vmul.f32 %v4871, %v927
        %v4880 = vmul.f32 %v4872, %v928
        %v4881 = vmul.f32 %v4873, %v929
        %v4882 = vmul.f32 %v4874, %v930
        %v4883 = vmul.f32 %v4875, %v931
        %v4884 = vadd.f32 %v4876, 0.0
        %v4885 = vadd.f32 %v4877, 0.0
        %v4886 = vadd.f32 %v4878, 0.0
        %v4887 = vadd.f32 %v4879, 0.0
        %v4888 = vadd.f32 %v4880, 0.0
        %v4889 = vadd.f32 %v4881, 0.0
        %v4890 = vadd.f32 %v4882, 0.0
        %v4891 = vadd.f32 %v4883, 0.0
        %v4892 = vmul.f32 %v4868, %v958
        %v4893 = vmul.f32 %v4869, %v959
        %v4894 = vmul.f32 %v4870, %v960
        %v4895 = vmul.f32 %v4871, %v961
        %v4896 = vmul.f32 %v4872, %v962
        %v4897 = vmul.f32 %v4873, %v963
        %v4898 = vmul.f32 %v4874, %v964
        %v4899 = vmul.f32 %v4875, %v965
        %4908 = vrot.lane.b32.xlu0 %v4892, 127
        %v4909 = vpop.permute.xlu0 %4908
        %4910 = vrot.lane.b32.xlu0 %v4893, 127
        %v4911 = vpop.permute.xlu0 %4910
        %4912 = vrot.lane.b32.xlu0 %v4894, 127
        %v4913 = vpop.permute.xlu0 %4912
        %4914 = vrot.lane.b32.xlu0 %v4895, 127
        %v4915 = vpop.permute.xlu0 %4914
        %4916 = vrot.lane.b32.xlu0 %v4896, 127
        %v4917 = vpop.permute.xlu0 %4916
        %4918 = vrot.lane.b32.xlu0 %v4897, 127
        %v4919 = vpop.permute.xlu0 %4918
        %4920 = vrot.lane.b32.xlu0 %v4898, 127
        %v4921 = vpop.permute.xlu0 %4920
        %4922 = vrot.lane.b32.xlu0 %v4899, 127
        %v4923 = vpop.permute.xlu0 %4922
        %v4932 = vadd.f32 %v4884, %v4909
        %v4933 = vadd.f32 %v4885, %v4911
        %v4934 = vadd.f32 %v4886, %v4913
        %v4935 = vadd.f32 %v4887, %v4915
        %v4936 = vadd.f32 %v4888, %v4917
        %v4937 = vadd.f32 %v4889, %v4919
        %v4938 = vadd.f32 %v4890, %v4921
        %v4939 = vadd.f32 %v4891, %v4923
        %v4940 = vmul.f32 %v4868, %v1024
        %v4941 = vmul.f32 %v4869, %v1025
        %v4942 = vmul.f32 %v4870, %v1026
        %v4943 = vmul.f32 %v4871, %v1027
        %v4944 = vmul.f32 %v4872, %v1028
        %v4945 = vmul.f32 %v4873, %v1029
        %v4946 = vmul.f32 %v4874, %v1030
        %v4947 = vmul.f32 %v4875, %v1031
        %4956 = vrot.lane.b32.xlu0 %v4940, 126
        %v4957 = vpop.permute.xlu0 %4956
        %4958 = vrot.lane.b32.xlu0 %v4941, 126
        %v4959 = vpop.permute.xlu0 %4958
        %4960 = vrot.lane.b32.xlu0 %v4942, 126
        %v4961 = vpop.permute.xlu0 %4960
        %4962 = vrot.lane.b32.xlu0 %v4943, 126
        %v4963 = vpop.permute.xlu0 %4962
        %4964 = vrot.lane.b32.xlu0 %v4944, 126
        %v4965 = vpop.permute.xlu0 %4964
        %4966 = vrot.lane.b32.xlu0 %v4945, 126
        %v4967 = vpop.permute.xlu0 %4966
        %4968 = vrot.lane.b32.xlu0 %v4946, 126
        %v4969 = vpop.permute.xlu0 %4968
        %4970 = vrot.lane.b32.xlu0 %v4947, 126
        %v4971 = vpop.permute.xlu0 %4970
        %v4980 = vadd.f32 %v4932, %v4957
        %v4981 = vadd.f32 %v4933, %v4959
        %v4982 = vadd.f32 %v4934, %v4961
        %v4983 = vadd.f32 %v4935, %v4963
        %v4984 = vadd.f32 %v4936, %v4965
        %v4985 = vadd.f32 %v4937, %v4967
        %v4986 = vadd.f32 %v4938, %v4969
        %v4987 = vadd.f32 %v4939, %v4971
        %v4988 = vld [vmem:[#allocation2 + $0xa] sm:$0x1]
        %v4989 = vld [vmem:[#allocation2 + $0x22] sm:$0x1]
        %v4990 = vld [vmem:[#allocation2 + $0x3a] sm:$0x1]
        %v4991 = vld [vmem:[#allocation2 + $0x52] sm:$0x1]
        %v4992 = vld [vmem:[#allocation2 + $0x6a] sm:$0x1]
        %v4993 = vld [vmem:[#allocation2 + $0x82] sm:$0x1]
        %v4994 = vld [vmem:[#allocation2 + $0x9a] sm:$0x1]
        %v4995 = vld [vmem:[#allocation2 + $0xb2] sm:$0x1]
        %v4996 = vmul.f32 %v4988, %v1098
        %v4997 = vmul.f32 %v4989, %v1099
        %v4998 = vmul.f32 %v4990, %v1100
        %v4999 = vmul.f32 %v4991, %v1101
        %v5000 = vmul.f32 %v4992, %v1102
        %v5001 = vmul.f32 %v4993, %v1103
        %v5002 = vmul.f32 %v4994, %v1104
        %v5003 = vmul.f32 %v4995, %v1105
        %v5004 = vadd.f32 %v4980, %v4996
        %v5005 = vadd.f32 %v4981, %v4997
        %v5006 = vadd.f32 %v4982, %v4998
        %v5007 = vadd.f32 %v4983, %v4999
        %v5008 = vadd.f32 %v4984, %v5000
        %v5009 = vadd.f32 %v4985, %v5001
        %v5010 = vadd.f32 %v4986, %v5002
        %v5011 = vadd.f32 %v4987, %v5003
        %v5012 = vmul.f32 %v4988, %v1132
        %v5013 = vmul.f32 %v4989, %v1133
        %v5014 = vmul.f32 %v4990, %v1134
        %v5015 = vmul.f32 %v4991, %v1135
        %v5016 = vmul.f32 %v4992, %v1136
        %v5017 = vmul.f32 %v4993, %v1137
        %v5018 = vmul.f32 %v4994, %v1138
        %v5019 = vmul.f32 %v4995, %v1139
        %5028 = vrot.lane.b32.xlu0 %v5012, 127
        %v5029 = vpop.permute.xlu0 %5028
        %5030 = vrot.lane.b32.xlu0 %v5013, 127
        %v5031 = vpop.permute.xlu0 %5030
        %5032 = vrot.lane.b32.xlu0 %v5014, 127
        %v5033 = vpop.permute.xlu0 %5032
        %5034 = vrot.lane.b32.xlu0 %v5015, 127
        %v5035 = vpop.permute.xlu0 %5034
        %5036 = vrot.lane.b32.xlu0 %v5016, 127
        %v5037 = vpop.permute.xlu0 %5036
        %5038 = vrot.lane.b32.xlu0 %v5017, 127
        %v5039 = vpop.permute.xlu0 %5038
        %5040 = vrot.lane.b32.xlu0 %v5018, 127
        %v5041 = vpop.permute.xlu0 %5040
        %5042 = vrot.lane.b32.xlu0 %v5019, 127
        %v5043 = vpop.permute.xlu0 %5042
        %v5052 = vadd.f32 %v5004, %v5029
        %v5053 = vadd.f32 %v5005, %v5031
        %v5054 = vadd.f32 %v5006, %v5033
        %v5055 = vadd.f32 %v5007, %v5035
        %v5056 = vadd.f32 %v5008, %v5037
        %v5057 = vadd.f32 %v5009, %v5039
        %v5058 = vadd.f32 %v5010, %v5041
        %v5059 = vadd.f32 %v5011, %v5043
        %v5060 = vmul.f32 %v4988, %v1198
        %v5061 = vmul.f32 %v4989, %v1199
        %v5062 = vmul.f32 %v4990, %v1200
        %v5063 = vmul.f32 %v4991, %v1201
        %v5064 = vmul.f32 %v4992, %v1202
        %v5065 = vmul.f32 %v4993, %v1203
        %v5066 = vmul.f32 %v4994, %v1204
        %v5067 = vmul.f32 %v4995, %v1205
        %5076 = vrot.lane.b32.xlu0 %v5060, 126
        %v5077 = vpop.permute.xlu0 %5076
        %5078 = vrot.lane.b32.xlu0 %v5061, 126
        %v5079 = vpop.permute.xlu0 %5078
        %5080 = vrot.lane.b32.xlu0 %v5062, 126
        %v5081 = vpop.permute.xlu0 %5080
        %5082 = vrot.lane.b32.xlu0 %v5063, 126
        %v5083 = vpop.permute.xlu0 %5082
        %5084 = vrot.lane.b32.xlu0 %v5064, 126
        %v5085 = vpop.permute.xlu0 %5084
        %5086 = vrot.lane.b32.xlu0 %v5065, 126
        %v5087 = vpop.permute.xlu0 %5086
        %5088 = vrot.lane.b32.xlu0 %v5066, 126
        %v5089 = vpop.permute.xlu0 %5088
        %5090 = vrot.lane.b32.xlu0 %v5067, 126
        %v5091 = vpop.permute.xlu0 %5090
        %v5100 = vadd.f32 %v5052, %v5077
        %v5101 = vadd.f32 %v5053, %v5079
        %v5102 = vadd.f32 %v5054, %v5081
        %v5103 = vadd.f32 %v5055, %v5083
        %v5104 = vadd.f32 %v5056, %v5085
        %v5105 = vadd.f32 %v5057, %v5087
        %v5106 = vadd.f32 %v5058, %v5089
        %v5107 = vadd.f32 %v5059, %v5091
        %v5108 = vld [vmem:[#allocation2 + $0xb] sm:$0x1]
        %v5109 = vld [vmem:[#allocation2 + $0x23] sm:$0x1]
        %v5110 = vld [vmem:[#allocation2 + $0x3b] sm:$0x1]
        %v5111 = vld [vmem:[#allocation2 + $0x53] sm:$0x1]
        %v5112 = vld [vmem:[#allocation2 + $0x6b] sm:$0x1]
        %v5113 = vld [vmem:[#allocation2 + $0x83] sm:$0x1]
        %v5114 = vld [vmem:[#allocation2 + $0x9b] sm:$0x1]
        %v5115 = vld [vmem:[#allocation2 + $0xb3] sm:$0x1]
        %v5116 = vmul.f32 %v5108, %v1272
        %v5117 = vmul.f32 %v5109, %v1273
        %v5118 = vmul.f32 %v5110, %v1274
        %v5119 = vmul.f32 %v5111, %v1275
        %v5120 = vmul.f32 %v5112, %v1276
        %v5121 = vmul.f32 %v5113, %v1277
        %v5122 = vmul.f32 %v5114, %v1278
        %v5123 = vmul.f32 %v5115, %v1279
        %v5124 = vadd.f32 %v5100, %v5116
        %v5125 = vadd.f32 %v5101, %v5117
        %v5126 = vadd.f32 %v5102, %v5118
        %v5127 = vadd.f32 %v5103, %v5119
        %v5128 = vadd.f32 %v5104, %v5120
        %v5129 = vadd.f32 %v5105, %v5121
        %v5130 = vadd.f32 %v5106, %v5122
        %v5131 = vadd.f32 %v5107, %v5123
        %v5132 = vmul.f32 %v5108, %v1306
        %v5133 = vmul.f32 %v5109, %v1307
        %v5134 = vmul.f32 %v5110, %v1308
        %v5135 = vmul.f32 %v5111, %v1309
        %v5136 = vmul.f32 %v5112, %v1310
        %v5137 = vmul.f32 %v5113, %v1311
        %v5138 = vmul.f32 %v5114, %v1312
        %v5139 = vmul.f32 %v5115, %v1313
        %5148 = vrot.lane.b32.xlu0 %v5132, 127
        %v5149 = vpop.permute.xlu0 %5148
        %5150 = vrot.lane.b32.xlu0 %v5133, 127
        %v5151 = vpop.permute.xlu0 %5150
        %5152 = vrot.lane.b32.xlu0 %v5134, 127
        %v5153 = vpop.permute.xlu0 %5152
        %5154 = vrot.lane.b32.xlu0 %v5135, 127
        %v5155 = vpop.permute.xlu0 %5154
        %5156 = vrot.lane.b32.xlu0 %v5136, 127
        %v5157 = vpop.permute.xlu0 %5156
        %5158 = vrot.lane.b32.xlu0 %v5137, 127
        %v5159 = vpop.permute.xlu0 %5158
        %5160 = vrot.lane.b32.xlu0 %v5138, 127
        %v5161 = vpop.permute.xlu0 %5160
        %5162 = vrot.lane.b32.xlu0 %v5139, 127
        %v5163 = vpop.permute.xlu0 %5162
        %v5172 = vadd.f32 %v5124, %v5149
        %v5173 = vadd.f32 %v5125, %v5151
        %v5174 = vadd.f32 %v5126, %v5153
        %v5175 = vadd.f32 %v5127, %v5155
        %v5176 = vadd.f32 %v5128, %v5157
        %v5177 = vadd.f32 %v5129, %v5159
        %v5178 = vadd.f32 %v5130, %v5161
        %v5179 = vadd.f32 %v5131, %v5163
        %v5180 = vmul.f32 %v5108, %v1372
        %v5181 = vmul.f32 %v5109, %v1373
        %v5182 = vmul.f32 %v5110, %v1374
        %v5183 = vmul.f32 %v5111, %v1375
        %v5184 = vmul.f32 %v5112, %v1376
        %v5185 = vmul.f32 %v5113, %v1377
        %v5186 = vmul.f32 %v5114, %v1378
        %v5187 = vmul.f32 %v5115, %v1379
        %5196 = vrot.lane.b32.xlu0 %v5180, 126
        %v5197 = vpop.permute.xlu0 %5196
        %5198 = vrot.lane.b32.xlu0 %v5181, 126
        %v5199 = vpop.permute.xlu0 %5198
        %5200 = vrot.lane.b32.xlu0 %v5182, 126
        %v5201 = vpop.permute.xlu0 %5200
        %5202 = vrot.lane.b32.xlu0 %v5183, 126
        %v5203 = vpop.permute.xlu0 %5202
        %5204 = vrot.lane.b32.xlu0 %v5184, 126
        %v5205 = vpop.permute.xlu0 %5204
        %5206 = vrot.lane.b32.xlu0 %v5185, 126
        %v5207 = vpop.permute.xlu0 %5206
        %5208 = vrot.lane.b32.xlu0 %v5186, 126
        %v5209 = vpop.permute.xlu0 %5208
        %5210 = vrot.lane.b32.xlu0 %v5187, 126
        %v5211 = vpop.permute.xlu0 %5210
        %v5220 = vadd.f32 %v5172, %v5197
        %v5221 = vadd.f32 %v5173, %v5199
        %v5222 = vadd.f32 %v5174, %v5201
        %v5223 = vadd.f32 %v5175, %v5203
        %v5224 = vadd.f32 %v5176, %v5205
        %v5225 = vadd.f32 %v5177, %v5207
        %v5226 = vadd.f32 %v5178, %v5209
        %v5227 = vadd.f32 %v5179, %v5211
        %v5228 = vadd.f32 %v5220, %v1439
        %v5229 = vadd.f32 %v5221, %v1440
        %v5230 = vadd.f32 %v5222, %v1441
        %v5231 = vadd.f32 %v5223, %v1442
        %v5232 = vadd.f32 %v5224, %v1443
        %v5233 = vadd.f32 %v5225, %v1444
        %v5234 = vadd.f32 %v5226, %v1445
        %v5235 = vadd.f32 %v5227, %v1446
        %v5236 = vmax.f32 %v5228, 0.0
        %v5237 = vmax.f32 %v5229, 0.0
        %v5238 = vmax.f32 %v5230, 0.0
        %v5239 = vmax.f32 %v5231, 0.0
        %v5240 = vmax.f32 %v5232, 0.0
        %v5241 = vmax.f32 %v5233, 0.0
        %v5242 = vmax.f32 %v5234, 0.0
        %v5243 = vmax.f32 %v5235, 0.0
        %v5244 = vmin.f32 %v5236, 6.0
        %v5245 = vmin.f32 %v5237, 6.0
        %v5246 = vmin.f32 %v5238, 6.0
        %v5247 = vmin.f32 %v5239, 6.0
        %v5248 = vmin.f32 %v5240, 6.0
        %v5249 = vmin.f32 %v5241, 6.0
        %v5250 = vmin.f32 %v5242, 6.0
        %v5251 = vmin.f32 %v5243, 6.0
        %v5252 = vmul.f32 %v5244, 1.7133749
        %v5253 = vmul.f32 %v5245, 1.7133749
        %v5254 = vmul.f32 %v5246, 1.7133749
        %v5255 = vmul.f32 %v5247, 1.7133749
        %v5256 = vmul.f32 %v5248, 1.7133749
        %v5257 = vmul.f32 %v5249, 1.7133749
        %v5258 = vmul.f32 %v5250, 1.7133749
        %v5259 = vmul.f32 %v5251, 1.7133749
        %v5268 = vrot.slane %v5253, 7
        %v5269 = vsel %vm1496, %v5268, %v5252
        %v5270 = vrot.slane %v5254, 6
        %v5271 = vsel %vm1499, %v5270, %v5269
        %v5272 = vrot.slane %v5255, 5
        %v5273 = vsel %vm1502, %v5272, %v5271
        %v5274 = vrot.slane %v5256, 4
        %v5275 = vsel %vm1505, %v5274, %v5273
        %v5276 = vrot.slane %v5257, 3
        %v5277 = vsel %vm1508, %v5276, %v5275
        %v5278 = vrot.slane %v5258, 2
        %v5279 = vsel %vm1511, %v5278, %v5277
        %v5280 = vrot.slane %v5259, 1
        %v5281 = vsel %vm1514, %v5280, %v5279
        %5282 = vrot.lane.b32.xlu0 %v5281, 16
        %v5283 = vpop.permute.xlu0 %5282
        %5285 = vst.msk [vmem:[#allocation3 + $0x8] sm:$0xff] %vm1936, %v5283
        %v5286 = vld [vmem:[#allocation2 + $0xa] sm:$0x1]
        %v5287 = vld [vmem:[#allocation2 + $0x22] sm:$0x1]
        %v5288 = vld [vmem:[#allocation2 + $0x3a] sm:$0x1]
        %v5289 = vld [vmem:[#allocation2 + $0x52] sm:$0x1]
        %v5290 = vld [vmem:[#allocation2 + $0x6a] sm:$0x1]
        %v5291 = vld [vmem:[#allocation2 + $0x82] sm:$0x1]
        %v5292 = vld [vmem:[#allocation2 + $0x9a] sm:$0x1]
        %v5293 = vld [vmem:[#allocation2 + $0xb2] sm:$0x1]
        %v5294 = vmul.f32 %v5286, %v924
        %v5295 = vmul.f32 %v5287, %v925
        %v5296 = vmul.f32 %v5288, %v926
        %v5297 = vmul.f32 %v5289, %v927
        %v5298 = vmul.f32 %v5290, %v928
        %v5299 = vmul.f32 %v5291, %v929
        %v5300 = vmul.f32 %v5292, %v930
        %v5301 = vmul.f32 %v5293, %v931
        %v5302 = vadd.f32 %v5294, 0.0
        %v5303 = vadd.f32 %v5295, 0.0
        %v5304 = vadd.f32 %v5296, 0.0
        %v5305 = vadd.f32 %v5297, 0.0
        %v5306 = vadd.f32 %v5298, 0.0
        %v5307 = vadd.f32 %v5299, 0.0
        %v5308 = vadd.f32 %v5300, 0.0
        %v5309 = vadd.f32 %v5301, 0.0
        %v5310 = vmul.f32 %v5286, %v958
        %v5311 = vmul.f32 %v5287, %v959
        %v5312 = vmul.f32 %v5288, %v960
        %v5313 = vmul.f32 %v5289, %v961
        %v5314 = vmul.f32 %v5290, %v962
        %v5315 = vmul.f32 %v5291, %v963
        %v5316 = vmul.f32 %v5292, %v964
        %v5317 = vmul.f32 %v5293, %v965
        %5326 = vrot.lane.b32.xlu0 %v5310, 127
        %v5327 = vpop.permute.xlu0 %5326
        %5328 = vrot.lane.b32.xlu0 %v5311, 127
        %v5329 = vpop.permute.xlu0 %5328
        %5330 = vrot.lane.b32.xlu0 %v5312, 127
        %v5331 = vpop.permute.xlu0 %5330
        %5332 = vrot.lane.b32.xlu0 %v5313, 127
        %v5333 = vpop.permute.xlu0 %5332
        %5334 = vrot.lane.b32.xlu0 %v5314, 127
        %v5335 = vpop.permute.xlu0 %5334
        %5336 = vrot.lane.b32.xlu0 %v5315, 127
        %v5337 = vpop.permute.xlu0 %5336
        %5338 = vrot.lane.b32.xlu0 %v5316, 127
        %v5339 = vpop.permute.xlu0 %5338
        %5340 = vrot.lane.b32.xlu0 %v5317, 127
        %v5341 = vpop.permute.xlu0 %5340
        %v5350 = vadd.f32 %v5302, %v5327
        %v5351 = vadd.f32 %v5303, %v5329
        %v5352 = vadd.f32 %v5304, %v5331
        %v5353 = vadd.f32 %v5305, %v5333
        %v5354 = vadd.f32 %v5306, %v5335
        %v5355 = vadd.f32 %v5307, %v5337
        %v5356 = vadd.f32 %v5308, %v5339
        %v5357 = vadd.f32 %v5309, %v5341
        %v5358 = vmul.f32 %v5286, %v1024
        %v5359 = vmul.f32 %v5287, %v1025
        %v5360 = vmul.f32 %v5288, %v1026
        %v5361 = vmul.f32 %v5289, %v1027
        %v5362 = vmul.f32 %v5290, %v1028
        %v5363 = vmul.f32 %v5291, %v1029
        %v5364 = vmul.f32 %v5292, %v1030
        %v5365 = vmul.f32 %v5293, %v1031
        %5374 = vrot.lane.b32.xlu0 %v5358, 126
        %v5375 = vpop.permute.xlu0 %5374
        %5376 = vrot.lane.b32.xlu0 %v5359, 126
        %v5377 = vpop.permute.xlu0 %5376
        %5378 = vrot.lane.b32.xlu0 %v5360, 126
        %v5379 = vpop.permute.xlu0 %5378
        %5380 = vrot.lane.b32.xlu0 %v5361, 126
        %v5381 = vpop.permute.xlu0 %5380
        %5382 = vrot.lane.b32.xlu0 %v5362, 126
        %v5383 = vpop.permute.xlu0 %5382
        %5384 = vrot.lane.b32.xlu0 %v5363, 126
        %v5385 = vpop.permute.xlu0 %5384
        %5386 = vrot.lane.b32.xlu0 %v5364, 126
        %v5387 = vpop.permute.xlu0 %5386
        %5388 = vrot.lane.b32.xlu0 %v5365, 126
        %v5389 = vpop.permute.xlu0 %5388
        %v5398 = vadd.f32 %v5350, %v5375
        %v5399 = vadd.f32 %v5351, %v5377
        %v5400 = vadd.f32 %v5352, %v5379
        %v5401 = vadd.f32 %v5353, %v5381
        %v5402 = vadd.f32 %v5354, %v5383
        %v5403 = vadd.f32 %v5355, %v5385
        %v5404 = vadd.f32 %v5356, %v5387
        %v5405 = vadd.f32 %v5357, %v5389
        %v5406 = vld [vmem:[#allocation2 + $0xb] sm:$0x1]
        %v5407 = vld [vmem:[#allocation2 + $0x23] sm:$0x1]
        %v5408 = vld [vmem:[#allocation2 + $0x3b] sm:$0x1]
        %v5409 = vld [vmem:[#allocation2 + $0x53] sm:$0x1]
        %v5410 = vld [vmem:[#allocation2 + $0x6b] sm:$0x1]
        %v5411 = vld [vmem:[#allocation2 + $0x83] sm:$0x1]
        %v5412 = vld [vmem:[#allocation2 + $0x9b] sm:$0x1]
        %v5413 = vld [vmem:[#allocation2 + $0xb3] sm:$0x1]
        %v5414 = vmul.f32 %v5406, %v1098
        %v5415 = vmul.f32 %v5407, %v1099
        %v5416 = vmul.f32 %v5408, %v1100
        %v5417 = vmul.f32 %v5409, %v1101
        %v5418 = vmul.f32 %v5410, %v1102
        %v5419 = vmul.f32 %v5411, %v1103
        %v5420 = vmul.f32 %v5412, %v1104
        %v5421 = vmul.f32 %v5413, %v1105
        %v5422 = vadd.f32 %v5398, %v5414
        %v5423 = vadd.f32 %v5399, %v5415
        %v5424 = vadd.f32 %v5400, %v5416
        %v5425 = vadd.f32 %v5401, %v5417
        %v5426 = vadd.f32 %v5402, %v5418
        %v5427 = vadd.f32 %v5403, %v5419
        %v5428 = vadd.f32 %v5404, %v5420
        %v5429 = vadd.f32 %v5405, %v5421
        %v5430 = vmul.f32 %v5406, %v1132
        %v5431 = vmul.f32 %v5407, %v1133
        %v5432 = vmul.f32 %v5408, %v1134
        %v5433 = vmul.f32 %v5409, %v1135
        %v5434 = vmul.f32 %v5410, %v1136
        %v5435 = vmul.f32 %v5411, %v1137
        %v5436 = vmul.f32 %v5412, %v1138
        %v5437 = vmul.f32 %v5413, %v1139
        %5446 = vrot.lane.b32.xlu0 %v5430, 127
        %v5447 = vpop.permute.xlu0 %5446
        %5448 = vrot.lane.b32.xlu0 %v5431, 127
        %v5449 = vpop.permute.xlu0 %5448
        %5450 = vrot.lane.b32.xlu0 %v5432, 127
        %v5451 = vpop.permute.xlu0 %5450
        %5452 = vrot.lane.b32.xlu0 %v5433, 127
        %v5453 = vpop.permute.xlu0 %5452
        %5454 = vrot.lane.b32.xlu0 %v5434, 127
        %v5455 = vpop.permute.xlu0 %5454
        %5456 = vrot.lane.b32.xlu0 %v5435, 127
        %v5457 = vpop.permute.xlu0 %5456
        %5458 = vrot.lane.b32.xlu0 %v5436, 127
        %v5459 = vpop.permute.xlu0 %5458
        %5460 = vrot.lane.b32.xlu0 %v5437, 127
        %v5461 = vpop.permute.xlu0 %5460
        %v5470 = vadd.f32 %v5422, %v5447
        %v5471 = vadd.f32 %v5423, %v5449
        %v5472 = vadd.f32 %v5424, %v5451
        %v5473 = vadd.f32 %v5425, %v5453
        %v5474 = vadd.f32 %v5426, %v5455
        %v5475 = vadd.f32 %v5427, %v5457
        %v5476 = vadd.f32 %v5428, %v5459
        %v5477 = vadd.f32 %v5429, %v5461
        %v5478 = vmul.f32 %v5406, %v1198
        %v5479 = vmul.f32 %v5407, %v1199
        %v5480 = vmul.f32 %v5408, %v1200
        %v5481 = vmul.f32 %v5409, %v1201
        %v5482 = vmul.f32 %v5410, %v1202
        %v5483 = vmul.f32 %v5411, %v1203
        %v5484 = vmul.f32 %v5412, %v1204
        %v5485 = vmul.f32 %v5413, %v1205
        %5494 = vrot.lane.b32.xlu0 %v5478, 126
        %v5495 = vpop.permute.xlu0 %5494
        %5496 = vrot.lane.b32.xlu0 %v5479, 126
        %v5497 = vpop.permute.xlu0 %5496
        %5498 = vrot.lane.b32.xlu0 %v5480, 126
        %v5499 = vpop.permute.xlu0 %5498
        %5500 = vrot.lane.b32.xlu0 %v5481, 126
        %v5501 = vpop.permute.xlu0 %5500
        %5502 = vrot.lane.b32.xlu0 %v5482, 126
        %v5503 = vpop.permute.xlu0 %5502
        %5504 = vrot.lane.b32.xlu0 %v5483, 126
        %v5505 = vpop.permute.xlu0 %5504
        %5506 = vrot.lane.b32.xlu0 %v5484, 126
        %v5507 = vpop.permute.xlu0 %5506
        %5508 = vrot.lane.b32.xlu0 %v5485, 126
        %v5509 = vpop.permute.xlu0 %5508
        %v5518 = vadd.f32 %v5470, %v5495
        %v5519 = vadd.f32 %v5471, %v5497
        %v5520 = vadd.f32 %v5472, %v5499
        %v5521 = vadd.f32 %v5473, %v5501
        %v5522 = vadd.f32 %v5474, %v5503
        %v5523 = vadd.f32 %v5475, %v5505
        %v5524 = vadd.f32 %v5476, %v5507
        %v5525 = vadd.f32 %v5477, %v5509
        %v5526 = vld [vmem:[#allocation2 + $0xc] sm:$0x1]
        %v5527 = vld [vmem:[#allocation2 + $0x24] sm:$0x1]
        %v5528 = vld [vmem:[#allocation2 + $0x3c] sm:$0x1]
        %v5529 = vld [vmem:[#allocation2 + $0x54] sm:$0x1]
        %v5530 = vld [vmem:[#allocation2 + $0x6c] sm:$0x1]
        %v5531 = vld [vmem:[#allocation2 + $0x84] sm:$0x1]
        %v5532 = vld [vmem:[#allocation2 + $0x9c] sm:$0x1]
        %v5533 = vld [vmem:[#allocation2 + $0xb4] sm:$0x1]
        %v5534 = vmul.f32 %v5526, %v1272
        %v5535 = vmul.f32 %v5527, %v1273
        %v5536 = vmul.f32 %v5528, %v1274
        %v5537 = vmul.f32 %v5529, %v1275
        %v5538 = vmul.f32 %v5530, %v1276
        %v5539 = vmul.f32 %v5531, %v1277
        %v5540 = vmul.f32 %v5532, %v1278
        %v5541 = vmul.f32 %v5533, %v1279
        %v5542 = vadd.f32 %v5518, %v5534
        %v5543 = vadd.f32 %v5519, %v5535
        %v5544 = vadd.f32 %v5520, %v5536
        %v5545 = vadd.f32 %v5521, %v5537
        %v5546 = vadd.f32 %v5522, %v5538
        %v5547 = vadd.f32 %v5523, %v5539
        %v5548 = vadd.f32 %v5524, %v5540
        %v5549 = vadd.f32 %v5525, %v5541
        %v5550 = vmul.f32 %v5526, %v1306
        %v5551 = vmul.f32 %v5527, %v1307
        %v5552 = vmul.f32 %v5528, %v1308
        %v5553 = vmul.f32 %v5529, %v1309
        %v5554 = vmul.f32 %v5530, %v1310
        %v5555 = vmul.f32 %v5531, %v1311
        %v5556 = vmul.f32 %v5532, %v1312
        %v5557 = vmul.f32 %v5533, %v1313
        %5566 = vrot.lane.b32.xlu0 %v5550, 127
        %v5567 = vpop.permute.xlu0 %5566
        %5568 = vrot.lane.b32.xlu0 %v5551, 127
        %v5569 = vpop.permute.xlu0 %5568
        %5570 = vrot.lane.b32.xlu0 %v5552, 127
        %v5571 = vpop.permute.xlu0 %5570
        %5572 = vrot.lane.b32.xlu0 %v5553, 127
        %v5573 = vpop.permute.xlu0 %5572
        %5574 = vrot.lane.b32.xlu0 %v5554, 127
        %v5575 = vpop.permute.xlu0 %5574
        %5576 = vrot.lane.b32.xlu0 %v5555, 127
        %v5577 = vpop.permute.xlu0 %5576
        %5578 = vrot.lane.b32.xlu0 %v5556, 127
        %v5579 = vpop.permute.xlu0 %5578
        %5580 = vrot.lane.b32.xlu0 %v5557, 127
        %v5581 = vpop.permute.xlu0 %5580
        %v5590 = vadd.f32 %v5542, %v5567
        %v5591 = vadd.f32 %v5543, %v5569
        %v5592 = vadd.f32 %v5544, %v5571
        %v5593 = vadd.f32 %v5545, %v5573
        %v5594 = vadd.f32 %v5546, %v5575
        %v5595 = vadd.f32 %v5547, %v5577
        %v5596 = vadd.f32 %v5548, %v5579
        %v5597 = vadd.f32 %v5549, %v5581
        %v5598 = vmul.f32 %v5526, %v1372
        %v5599 = vmul.f32 %v5527, %v1373
        %v5600 = vmul.f32 %v5528, %v1374
        %v5601 = vmul.f32 %v5529, %v1375
        %v5602 = vmul.f32 %v5530, %v1376
        %v5603 = vmul.f32 %v5531, %v1377
        %v5604 = vmul.f32 %v5532, %v1378
        %v5605 = vmul.f32 %v5533, %v1379
        %5614 = vrot.lane.b32.xlu0 %v5598, 126
        %v5615 = vpop.permute.xlu0 %5614
        %5616 = vrot.lane.b32.xlu0 %v5599, 126
        %v5617 = vpop.permute.xlu0 %5616
        %5618 = vrot.lane.b32.xlu0 %v5600, 126
        %v5619 = vpop.permute.xlu0 %5618
        %5620 = vrot.lane.b32.xlu0 %v5601, 126
        %v5621 = vpop.permute.xlu0 %5620
        %5622 = vrot.lane.b32.xlu0 %v5602, 126
        %v5623 = vpop.permute.xlu0 %5622
        %5624 = vrot.lane.b32.xlu0 %v5603, 126
        %v5625 = vpop.permute.xlu0 %5624
        %5626 = vrot.lane.b32.xlu0 %v5604, 126
        %v5627 = vpop.permute.xlu0 %5626
        %5628 = vrot.lane.b32.xlu0 %v5605, 126
        %v5629 = vpop.permute.xlu0 %5628
        %v5638 = vadd.f32 %v5590, %v5615
        %v5639 = vadd.f32 %v5591, %v5617
        %v5640 = vadd.f32 %v5592, %v5619
        %v5641 = vadd.f32 %v5593, %v5621
        %v5642 = vadd.f32 %v5594, %v5623
        %v5643 = vadd.f32 %v5595, %v5625
        %v5644 = vadd.f32 %v5596, %v5627
        %v5645 = vadd.f32 %v5597, %v5629
        %v5646 = vadd.f32 %v5638, %v1439
        %v5647 = vadd.f32 %v5639, %v1440
        %v5648 = vadd.f32 %v5640, %v1441
        %v5649 = vadd.f32 %v5641, %v1442
        %v5650 = vadd.f32 %v5642, %v1443
        %v5651 = vadd.f32 %v5643, %v1444
        %v5652 = vadd.f32 %v5644, %v1445
        %v5653 = vadd.f32 %v5645, %v1446
        %v5654 = vmax.f32 %v5646, 0.0
        %v5655 = vmax.f32 %v5647, 0.0
        %v5656 = vmax.f32 %v5648, 0.0
        %v5657 = vmax.f32 %v5649, 0.0
        %v5658 = vmax.f32 %v5650, 0.0
        %v5659 = vmax.f32 %v5651, 0.0
        %v5660 = vmax.f32 %v5652, 0.0
        %v5661 = vmax.f32 %v5653, 0.0
        %v5662 = vmin.f32 %v5654, 6.0
        %v5663 = vmin.f32 %v5655, 6.0
        %v5664 = vmin.f32 %v5656, 6.0
        %v5665 = vmin.f32 %v5657, 6.0
        %v5666 = vmin.f32 %v5658, 6.0
        %v5667 = vmin.f32 %v5659, 6.0
        %v5668 = vmin.f32 %v5660, 6.0
        %v5669 = vmin.f32 %v5661, 6.0
        %v5670 = vmul.f32 %v5662, 1.7133749
        %v5671 = vmul.f32 %v5663, 1.7133749
        %v5672 = vmul.f32 %v5664, 1.7133749
        %v5673 = vmul.f32 %v5665, 1.7133749
        %v5674 = vmul.f32 %v5666, 1.7133749
        %v5675 = vmul.f32 %v5667, 1.7133749
        %v5676 = vmul.f32 %v5668, 1.7133749
        %v5677 = vmul.f32 %v5669, 1.7133749
        %v5686 = vrot.slane %v5671, 7
        %v5687 = vsel %vm1496, %v5686, %v5670
        %v5688 = vrot.slane %v5672, 6
        %v5689 = vsel %vm1499, %v5688, %v5687
        %v5690 = vrot.slane %v5673, 5
        %v5691 = vsel %vm1502, %v5690, %v5689
        %v5692 = vrot.slane %v5674, 4
        %v5693 = vsel %vm1505, %v5692, %v5691
        %v5694 = vrot.slane %v5675, 3
        %v5695 = vsel %vm1508, %v5694, %v5693
        %v5696 = vrot.slane %v5676, 2
        %v5697 = vsel %vm1511, %v5696, %v5695
        %v5698 = vrot.slane %v5677, 1
        %v5699 = vsel %vm1514, %v5698, %v5697
        %5700 = vrot.lane.b32.xlu0 %v5699, 32
        %v5701 = vpop.permute.xlu0 %5700
        %5703 = vst.msk [vmem:[#allocation3 + $0x8] sm:$0xff] %vm2355, %v5701
        %v5704 = vld [vmem:[#allocation2 + $0xb] sm:$0x1]
        %v5705 = vld [vmem:[#allocation2 + $0x23] sm:$0x1]
        %v5706 = vld [vmem:[#allocation2 + $0x3b] sm:$0x1]
        %v5707 = vld [vmem:[#allocation2 + $0x53] sm:$0x1]
        %v5708 = vld [vmem:[#allocation2 + $0x6b] sm:$0x1]
        %v5709 = vld [vmem:[#allocation2 + $0x83] sm:$0x1]
        %v5710 = vld [vmem:[#allocation2 + $0x9b] sm:$0x1]
        %v5711 = vld [vmem:[#allocation2 + $0xb3] sm:$0x1]
        %v5712 = vmul.f32 %v5704, %v924
        %v5713 = vmul.f32 %v5705, %v925
        %v5714 = vmul.f32 %v5706, %v926
        %v5715 = vmul.f32 %v5707, %v927
        %v5716 = vmul.f32 %v5708, %v928
        %v5717 = vmul.f32 %v5709, %v929
        %v5718 = vmul.f32 %v5710, %v930
        %v5719 = vmul.f32 %v5711, %v931
        %v5720 = vadd.f32 %v5712, 0.0
        %v5721 = vadd.f32 %v5713, 0.0
        %v5722 = vadd.f32 %v5714, 0.0
        %v5723 = vadd.f32 %v5715, 0.0
        %v5724 = vadd.f32 %v5716, 0.0
        %v5725 = vadd.f32 %v5717, 0.0
        %v5726 = vadd.f32 %v5718, 0.0
        %v5727 = vadd.f32 %v5719, 0.0
        %v5728 = vmul.f32 %v5704, %v958
        %v5729 = vmul.f32 %v5705, %v959
        %v5730 = vmul.f32 %v5706, %v960
        %v5731 = vmul.f32 %v5707, %v961
        %v5732 = vmul.f32 %v5708, %v962
        %v5733 = vmul.f32 %v5709, %v963
        %v5734 = vmul.f32 %v5710, %v964
        %v5735 = vmul.f32 %v5711, %v965
        %5744 = vrot.lane.b32.xlu0 %v5728, 127
        %v5745 = vpop.permute.xlu0 %5744
        %5746 = vrot.lane.b32.xlu0 %v5729, 127
        %v5747 = vpop.permute.xlu0 %5746
        %5748 = vrot.lane.b32.xlu0 %v5730, 127
        %v5749 = vpop.permute.xlu0 %5748
        %5750 = vrot.lane.b32.xlu0 %v5731, 127
        %v5751 = vpop.permute.xlu0 %5750
        %5752 = vrot.lane.b32.xlu0 %v5732, 127
        %v5753 = vpop.permute.xlu0 %5752
        %5754 = vrot.lane.b32.xlu0 %v5733, 127
        %v5755 = vpop.permute.xlu0 %5754
        %5756 = vrot.lane.b32.xlu0 %v5734, 127
        %v5757 = vpop.permute.xlu0 %5756
        %5758 = vrot.lane.b32.xlu0 %v5735, 127
        %v5759 = vpop.permute.xlu0 %5758
        %v5768 = vadd.f32 %v5720, %v5745
        %v5769 = vadd.f32 %v5721, %v5747
        %v5770 = vadd.f32 %v5722, %v5749
        %v5771 = vadd.f32 %v5723, %v5751
        %v5772 = vadd.f32 %v5724, %v5753
        %v5773 = vadd.f32 %v5725, %v5755
        %v5774 = vadd.f32 %v5726, %v5757
        %v5775 = vadd.f32 %v5727, %v5759
        %v5776 = vmul.f32 %v5704, %v1024
        %v5777 = vmul.f32 %v5705, %v1025
        %v5778 = vmul.f32 %v5706, %v1026
        %v5779 = vmul.f32 %v5707, %v1027
        %v5780 = vmul.f32 %v5708, %v1028
        %v5781 = vmul.f32 %v5709, %v1029
        %v5782 = vmul.f32 %v5710, %v1030
        %v5783 = vmul.f32 %v5711, %v1031
        %5792 = vrot.lane.b32.xlu0 %v5776, 126
        %v5793 = vpop.permute.xlu0 %5792
        %5794 = vrot.lane.b32.xlu0 %v5777, 126
        %v5795 = vpop.permute.xlu0 %5794
        %5796 = vrot.lane.b32.xlu0 %v5778, 126
        %v5797 = vpop.permute.xlu0 %5796
        %5798 = vrot.lane.b32.xlu0 %v5779, 126
        %v5799 = vpop.permute.xlu0 %5798
        %5800 = vrot.lane.b32.xlu0 %v5780, 126
        %v5801 = vpop.permute.xlu0 %5800
        %5802 = vrot.lane.b32.xlu0 %v5781, 126
        %v5803 = vpop.permute.xlu0 %5802
        %5804 = vrot.lane.b32.xlu0 %v5782, 126
        %v5805 = vpop.permute.xlu0 %5804
        %5806 = vrot.lane.b32.xlu0 %v5783, 126
        %v5807 = vpop.permute.xlu0 %5806
        %v5816 = vadd.f32 %v5768, %v5793
        %v5817 = vadd.f32 %v5769, %v5795
        %v5818 = vadd.f32 %v5770, %v5797
        %v5819 = vadd.f32 %v5771, %v5799
        %v5820 = vadd.f32 %v5772, %v5801
        %v5821 = vadd.f32 %v5773, %v5803
        %v5822 = vadd.f32 %v5774, %v5805
        %v5823 = vadd.f32 %v5775, %v5807
        %v5824 = vld [vmem:[#allocation2 + $0xc] sm:$0x1]
        %v5825 = vld [vmem:[#allocation2 + $0x24] sm:$0x1]
        %v5826 = vld [vmem:[#allocation2 + $0x3c] sm:$0x1]
        %v5827 = vld [vmem:[#allocation2 + $0x54] sm:$0x1]
        %v5828 = vld [vmem:[#allocation2 + $0x6c] sm:$0x1]
        %v5829 = vld [vmem:[#allocation2 + $0x84] sm:$0x1]
        %v5830 = vld [vmem:[#allocation2 + $0x9c] sm:$0x1]
        %v5831 = vld [vmem:[#allocation2 + $0xb4] sm:$0x1]
        %v5832 = vmul.f32 %v5824, %v1098
        %v5833 = vmul.f32 %v5825, %v1099
        %v5834 = vmul.f32 %v5826, %v1100
        %v5835 = vmul.f32 %v5827, %v1101
        %v5836 = vmul.f32 %v5828, %v1102
        %v5837 = vmul.f32 %v5829, %v1103
        %v5838 = vmul.f32 %v5830, %v1104
        %v5839 = vmul.f32 %v5831, %v1105
        %v5840 = vadd.f32 %v5816, %v5832
        %v5841 = vadd.f32 %v5817, %v5833
        %v5842 = vadd.f32 %v5818, %v5834
        %v5843 = vadd.f32 %v5819, %v5835
        %v5844 = vadd.f32 %v5820, %v5836
        %v5845 = vadd.f32 %v5821, %v5837
        %v5846 = vadd.f32 %v5822, %v5838
        %v5847 = vadd.f32 %v5823, %v5839
        %v5848 = vmul.f32 %v5824, %v1132
        %v5849 = vmul.f32 %v5825, %v1133
        %v5850 = vmul.f32 %v5826, %v1134
        %v5851 = vmul.f32 %v5827, %v1135
        %v5852 = vmul.f32 %v5828, %v1136
        %v5853 = vmul.f32 %v5829, %v1137
        %v5854 = vmul.f32 %v5830, %v1138
        %v5855 = vmul.f32 %v5831, %v1139
        %5864 = vrot.lane.b32.xlu0 %v5848, 127
        %v5865 = vpop.permute.xlu0 %5864
        %5866 = vrot.lane.b32.xlu0 %v5849, 127
        %v5867 = vpop.permute.xlu0 %5866
        %5868 = vrot.lane.b32.xlu0 %v5850, 127
        %v5869 = vpop.permute.xlu0 %5868
        %5870 = vrot.lane.b32.xlu0 %v5851, 127
        %v5871 = vpop.permute.xlu0 %5870
        %5872 = vrot.lane.b32.xlu0 %v5852, 127
        %v5873 = vpop.permute.xlu0 %5872
        %5874 = vrot.lane.b32.xlu0 %v5853, 127
        %v5875 = vpop.permute.xlu0 %5874
        %5876 = vrot.lane.b32.xlu0 %v5854, 127
        %v5877 = vpop.permute.xlu0 %5876
        %5878 = vrot.lane.b32.xlu0 %v5855, 127
        %v5879 = vpop.permute.xlu0 %5878
        %v5888 = vadd.f32 %v5840, %v5865
        %v5889 = vadd.f32 %v5841, %v5867
        %v5890 = vadd.f32 %v5842, %v5869
        %v5891 = vadd.f32 %v5843, %v5871
        %v5892 = vadd.f32 %v5844, %v5873
        %v5893 = vadd.f32 %v5845, %v5875
        %v5894 = vadd.f32 %v5846, %v5877
        %v5895 = vadd.f32 %v5847, %v5879
        %v5896 = vmul.f32 %v5824, %v1198
        %v5897 = vmul.f32 %v5825, %v1199
        %v5898 = vmul.f32 %v5826, %v1200
        %v5899 = vmul.f32 %v5827, %v1201
        %v5900 = vmul.f32 %v5828, %v1202
        %v5901 = vmul.f32 %v5829, %v1203
        %v5902 = vmul.f32 %v5830, %v1204
        %v5903 = vmul.f32 %v5831, %v1205
        %5912 = vrot.lane.b32.xlu0 %v5896, 126
        %v5913 = vpop.permute.xlu0 %5912
        %5914 = vrot.lane.b32.xlu0 %v5897, 126
        %v5915 = vpop.permute.xlu0 %5914
        %5916 = vrot.lane.b32.xlu0 %v5898, 126
        %v5917 = vpop.permute.xlu0 %5916
        %5918 = vrot.lane.b32.xlu0 %v5899, 126
        %v5919 = vpop.permute.xlu0 %5918
        %5920 = vrot.lane.b32.xlu0 %v5900, 126
        %v5921 = vpop.permute.xlu0 %5920
        %5922 = vrot.lane.b32.xlu0 %v5901, 126
        %v5923 = vpop.permute.xlu0 %5922
        %5924 = vrot.lane.b32.xlu0 %v5902, 126
        %v5925 = vpop.permute.xlu0 %5924
        %5926 = vrot.lane.b32.xlu0 %v5903, 126
        %v5927 = vpop.permute.xlu0 %5926
        %v5936 = vadd.f32 %v5888, %v5913
        %v5937 = vadd.f32 %v5889, %v5915
        %v5938 = vadd.f32 %v5890, %v5917
        %v5939 = vadd.f32 %v5891, %v5919
        %v5940 = vadd.f32 %v5892, %v5921
        %v5941 = vadd.f32 %v5893, %v5923
        %v5942 = vadd.f32 %v5894, %v5925
        %v5943 = vadd.f32 %v5895, %v5927
        %v5944 = vld [vmem:[#allocation2 + $0xd] sm:$0x1]
        %v5945 = vld [vmem:[#allocation2 + $0x25] sm:$0x1]
        %v5946 = vld [vmem:[#allocation2 + $0x3d] sm:$0x1]
        %v5947 = vld [vmem:[#allocation2 + $0x55] sm:$0x1]
        %v5948 = vld [vmem:[#allocation2 + $0x6d] sm:$0x1]
        %v5949 = vld [vmem:[#allocation2 + $0x85] sm:$0x1]
        %v5950 = vld [vmem:[#allocation2 + $0x9d] sm:$0x1]
        %v5951 = vld [vmem:[#allocation2 + $0xb5] sm:$0x1]
        %v5952 = vmul.f32 %v5944, %v1272
        %v5953 = vmul.f32 %v5945, %v1273
        %v5954 = vmul.f32 %v5946, %v1274
        %v5955 = vmul.f32 %v5947, %v1275
        %v5956 = vmul.f32 %v5948, %v1276
        %v5957 = vmul.f32 %v5949, %v1277
        %v5958 = vmul.f32 %v5950, %v1278
        %v5959 = vmul.f32 %v5951, %v1279
        %v5960 = vadd.f32 %v5936, %v5952
        %v5961 = vadd.f32 %v5937, %v5953
        %v5962 = vadd.f32 %v5938, %v5954
        %v5963 = vadd.f32 %v5939, %v5955
        %v5964 = vadd.f32 %v5940, %v5956
        %v5965 = vadd.f32 %v5941, %v5957
        %v5966 = vadd.f32 %v5942, %v5958
        %v5967 = vadd.f32 %v5943, %v5959
        %v5968 = vmul.f32 %v5944, %v1306
        %v5969 = vmul.f32 %v5945, %v1307
        %v5970 = vmul.f32 %v5946, %v1308
        %v5971 = vmul.f32 %v5947, %v1309
        %v5972 = vmul.f32 %v5948, %v1310
        %v5973 = vmul.f32 %v5949, %v1311
        %v5974 = vmul.f32 %v5950, %v1312
        %v5975 = vmul.f32 %v5951, %v1313
        %5984 = vrot.lane.b32.xlu0 %v5968, 127
        %v5985 = vpop.permute.xlu0 %5984
        %5986 = vrot.lane.b32.xlu0 %v5969, 127
        %v5987 = vpop.permute.xlu0 %5986
        %5988 = vrot.lane.b32.xlu0 %v5970, 127
        %v5989 = vpop.permute.xlu0 %5988
        %5990 = vrot.lane.b32.xlu0 %v5971, 127
        %v5991 = vpop.permute.xlu0 %5990
        %5992 = vrot.lane.b32.xlu0 %v5972, 127
        %v5993 = vpop.permute.xlu0 %5992
        %5994 = vrot.lane.b32.xlu0 %v5973, 127
        %v5995 = vpop.permute.xlu0 %5994
        %5996 = vrot.lane.b32.xlu0 %v5974, 127
        %v5997 = vpop.permute.xlu0 %5996
        %5998 = vrot.lane.b32.xlu0 %v5975, 127
        %v5999 = vpop.permute.xlu0 %5998
        %v6008 = vadd.f32 %v5960, %v5985
        %v6009 = vadd.f32 %v5961, %v5987
        %v6010 = vadd.f32 %v5962, %v5989
        %v6011 = vadd.f32 %v5963, %v5991
        %v6012 = vadd.f32 %v5964, %v5993
        %v6013 = vadd.f32 %v5965, %v5995
        %v6014 = vadd.f32 %v5966, %v5997
        %v6015 = vadd.f32 %v5967, %v5999
        %v6016 = vmul.f32 %v5944, %v1372
        %v6017 = vmul.f32 %v5945, %v1373
        %v6018 = vmul.f32 %v5946, %v1374
        %v6019 = vmul.f32 %v5947, %v1375
        %v6020 = vmul.f32 %v5948, %v1376
        %v6021 = vmul.f32 %v5949, %v1377
        %v6022 = vmul.f32 %v5950, %v1378
        %v6023 = vmul.f32 %v5951, %v1379
        %6032 = vrot.lane.b32.xlu0 %v6016, 126
        %v6033 = vpop.permute.xlu0 %6032
        %6034 = vrot.lane.b32.xlu0 %v6017, 126
        %v6035 = vpop.permute.xlu0 %6034
        %6036 = vrot.lane.b32.xlu0 %v6018, 126
        %v6037 = vpop.permute.xlu0 %6036
        %6038 = vrot.lane.b32.xlu0 %v6019, 126
        %v6039 = vpop.permute.xlu0 %6038
        %6040 = vrot.lane.b32.xlu0 %v6020, 126
        %v6041 = vpop.permute.xlu0 %6040
        %6042 = vrot.lane.b32.xlu0 %v6021, 126
        %v6043 = vpop.permute.xlu0 %6042
        %6044 = vrot.lane.b32.xlu0 %v6022, 126
        %v6045 = vpop.permute.xlu0 %6044
        %6046 = vrot.lane.b32.xlu0 %v6023, 126
        %v6047 = vpop.permute.xlu0 %6046
        %v6056 = vadd.f32 %v6008, %v6033
        %v6057 = vadd.f32 %v6009, %v6035
        %v6058 = vadd.f32 %v6010, %v6037
        %v6059 = vadd.f32 %v6011, %v6039
        %v6060 = vadd.f32 %v6012, %v6041
        %v6061 = vadd.f32 %v6013, %v6043
        %v6062 = vadd.f32 %v6014, %v6045
        %v6063 = vadd.f32 %v6015, %v6047
        %v6064 = vadd.f32 %v6056, %v1439
        %v6065 = vadd.f32 %v6057, %v1440
        %v6066 = vadd.f32 %v6058, %v1441
        %v6067 = vadd.f32 %v6059, %v1442
        %v6068 = vadd.f32 %v6060, %v1443
        %v6069 = vadd.f32 %v6061, %v1444
        %v6070 = vadd.f32 %v6062, %v1445
        %v6071 = vadd.f32 %v6063, %v1446
        %v6072 = vmax.f32 %v6064, 0.0
        %v6073 = vmax.f32 %v6065, 0.0
        %v6074 = vmax.f32 %v6066, 0.0
        %v6075 = vmax.f32 %v6067, 0.0
        %v6076 = vmax.f32 %v6068, 0.0
        %v6077 = vmax.f32 %v6069, 0.0
        %v6078 = vmax.f32 %v6070, 0.0
        %v6079 = vmax.f32 %v6071, 0.0
        %v6080 = vmin.f32 %v6072, 6.0
        %v6081 = vmin.f32 %v6073, 6.0
        %v6082 = vmin.f32 %v6074, 6.0
        %v6083 = vmin.f32 %v6075, 6.0
        %v6084 = vmin.f32 %v6076, 6.0
        %v6085 = vmin.f32 %v6077, 6.0
        %v6086 = vmin.f32 %v6078, 6.0
        %v6087 = vmin.f32 %v6079, 6.0
        %v6088 = vmul.f32 %v6080, 1.7133749
        %v6089 = vmul.f32 %v6081, 1.7133749
        %v6090 = vmul.f32 %v6082, 1.7133749
        %v6091 = vmul.f32 %v6083, 1.7133749
        %v6092 = vmul.f32 %v6084, 1.7133749
        %v6093 = vmul.f32 %v6085, 1.7133749
        %v6094 = vmul.f32 %v6086, 1.7133749
        %v6095 = vmul.f32 %v6087, 1.7133749
        %v6104 = vrot.slane %v6089, 7
        %v6105 = vsel %vm1496, %v6104, %v6088
        %v6106 = vrot.slane %v6090, 6
        %v6107 = vsel %vm1499, %v6106, %v6105
        %v6108 = vrot.slane %v6091, 5
        %v6109 = vsel %vm1502, %v6108, %v6107
        %v6110 = vrot.slane %v6092, 4
        %v6111 = vsel %vm1505, %v6110, %v6109
        %v6112 = vrot.slane %v6093, 3
        %v6113 = vsel %vm1508, %v6112, %v6111
        %v6114 = vrot.slane %v6094, 2
        %v6115 = vsel %vm1511, %v6114, %v6113
        %v6116 = vrot.slane %v6095, 1
        %v6117 = vsel %vm1514, %v6116, %v6115
        %6118 = vrot.lane.b32.xlu0 %v6117, 48
        %v6119 = vpop.permute.xlu0 %6118
        %6121 = vst.msk [vmem:[#allocation3 + $0x8] sm:$0xff] %vm2774, %v6119
        %v6122 = vld [vmem:[#allocation2 + $0xc] sm:$0x1]
        %v6123 = vld [vmem:[#allocation2 + $0x24] sm:$0x1]
        %v6124 = vld [vmem:[#allocation2 + $0x3c] sm:$0x1]
        %v6125 = vld [vmem:[#allocation2 + $0x54] sm:$0x1]
        %v6126 = vld [vmem:[#allocation2 + $0x6c] sm:$0x1]
        %v6127 = vld [vmem:[#allocation2 + $0x84] sm:$0x1]
        %v6128 = vld [vmem:[#allocation2 + $0x9c] sm:$0x1]
        %v6129 = vld [vmem:[#allocation2 + $0xb4] sm:$0x1]
        %v6130 = vmul.f32 %v6122, %v924
        %v6131 = vmul.f32 %v6123, %v925
        %v6132 = vmul.f32 %v6124, %v926
        %v6133 = vmul.f32 %v6125, %v927
        %v6134 = vmul.f32 %v6126, %v928
        %v6135 = vmul.f32 %v6127, %v929
        %v6136 = vmul.f32 %v6128, %v930
        %v6137 = vmul.f32 %v6129, %v931
        %v6138 = vadd.f32 %v6130, 0.0
        %v6139 = vadd.f32 %v6131, 0.0
        %v6140 = vadd.f32 %v6132, 0.0
        %v6141 = vadd.f32 %v6133, 0.0
        %v6142 = vadd.f32 %v6134, 0.0
        %v6143 = vadd.f32 %v6135, 0.0
        %v6144 = vadd.f32 %v6136, 0.0
        %v6145 = vadd.f32 %v6137, 0.0
        %v6146 = vmul.f32 %v6122, %v958
        %v6147 = vmul.f32 %v6123, %v959
        %v6148 = vmul.f32 %v6124, %v960
        %v6149 = vmul.f32 %v6125, %v961
        %v6150 = vmul.f32 %v6126, %v962
        %v6151 = vmul.f32 %v6127, %v963
        %v6152 = vmul.f32 %v6128, %v964
        %v6153 = vmul.f32 %v6129, %v965
        %6162 = vrot.lane.b32.xlu0 %v6146, 127
        %v6163 = vpop.permute.xlu0 %6162
        %6164 = vrot.lane.b32.xlu0 %v6147, 127
        %v6165 = vpop.permute.xlu0 %6164
        %6166 = vrot.lane.b32.xlu0 %v6148, 127
        %v6167 = vpop.permute.xlu0 %6166
        %6168 = vrot.lane.b32.xlu0 %v6149, 127
        %v6169 = vpop.permute.xlu0 %6168
        %6170 = vrot.lane.b32.xlu0 %v6150, 127
        %v6171 = vpop.permute.xlu0 %6170
        %6172 = vrot.lane.b32.xlu0 %v6151, 127
        %v6173 = vpop.permute.xlu0 %6172
        %6174 = vrot.lane.b32.xlu0 %v6152, 127
        %v6175 = vpop.permute.xlu0 %6174
        %6176 = vrot.lane.b32.xlu0 %v6153, 127
        %v6177 = vpop.permute.xlu0 %6176
        %v6186 = vadd.f32 %v6138, %v6163
        %v6187 = vadd.f32 %v6139, %v6165
        %v6188 = vadd.f32 %v6140, %v6167
        %v6189 = vadd.f32 %v6141, %v6169
        %v6190 = vadd.f32 %v6142, %v6171
        %v6191 = vadd.f32 %v6143, %v6173
        %v6192 = vadd.f32 %v6144, %v6175
        %v6193 = vadd.f32 %v6145, %v6177
        %v6194 = vmul.f32 %v6122, %v1024
        %v6195 = vmul.f32 %v6123, %v1025
        %v6196 = vmul.f32 %v6124, %v1026
        %v6197 = vmul.f32 %v6125, %v1027
        %v6198 = vmul.f32 %v6126, %v1028
        %v6199 = vmul.f32 %v6127, %v1029
        %v6200 = vmul.f32 %v6128, %v1030
        %v6201 = vmul.f32 %v6129, %v1031
        %6210 = vrot.lane.b32.xlu0 %v6194, 126
        %v6211 = vpop.permute.xlu0 %6210
        %6212 = vrot.lane.b32.xlu0 %v6195, 126
        %v6213 = vpop.permute.xlu0 %6212
        %6214 = vrot.lane.b32.xlu0 %v6196, 126
        %v6215 = vpop.permute.xlu0 %6214
        %6216 = vrot.lane.b32.xlu0 %v6197, 126
        %v6217 = vpop.permute.xlu0 %6216
        %6218 = vrot.lane.b32.xlu0 %v6198, 126
        %v6219 = vpop.permute.xlu0 %6218
        %6220 = vrot.lane.b32.xlu0 %v6199, 126
        %v6221 = vpop.permute.xlu0 %6220
        %6222 = vrot.lane.b32.xlu0 %v6200, 126
        %v6223 = vpop.permute.xlu0 %6222
        %6224 = vrot.lane.b32.xlu0 %v6201, 126
        %v6225 = vpop.permute.xlu0 %6224
        %v6234 = vadd.f32 %v6186, %v6211
        %v6235 = vadd.f32 %v6187, %v6213
        %v6236 = vadd.f32 %v6188, %v6215
        %v6237 = vadd.f32 %v6189, %v6217
        %v6238 = vadd.f32 %v6190, %v6219
        %v6239 = vadd.f32 %v6191, %v6221
        %v6240 = vadd.f32 %v6192, %v6223
        %v6241 = vadd.f32 %v6193, %v6225
        %v6242 = vld [vmem:[#allocation2 + $0xd] sm:$0x1]
        %v6243 = vld [vmem:[#allocation2 + $0x25] sm:$0x1]
        %v6244 = vld [vmem:[#allocation2 + $0x3d] sm:$0x1]
        %v6245 = vld [vmem:[#allocation2 + $0x55] sm:$0x1]
        %v6246 = vld [vmem:[#allocation2 + $0x6d] sm:$0x1]
        %v6247 = vld [vmem:[#allocation2 + $0x85] sm:$0x1]
        %v6248 = vld [vmem:[#allocation2 + $0x9d] sm:$0x1]
        %v6249 = vld [vmem:[#allocation2 + $0xb5] sm:$0x1]
        %v6250 = vmul.f32 %v6242, %v1098
        %v6251 = vmul.f32 %v6243, %v1099
        %v6252 = vmul.f32 %v6244, %v1100
        %v6253 = vmul.f32 %v6245, %v1101
        %v6254 = vmul.f32 %v6246, %v1102
        %v6255 = vmul.f32 %v6247, %v1103
        %v6256 = vmul.f32 %v6248, %v1104
        %v6257 = vmul.f32 %v6249, %v1105
        %v6258 = vadd.f32 %v6234, %v6250
        %v6259 = vadd.f32 %v6235, %v6251
        %v6260 = vadd.f32 %v6236, %v6252
        %v6261 = vadd.f32 %v6237, %v6253
        %v6262 = vadd.f32 %v6238, %v6254
        %v6263 = vadd.f32 %v6239, %v6255
        %v6264 = vadd.f32 %v6240, %v6256
        %v6265 = vadd.f32 %v6241, %v6257
        %v6266 = vmul.f32 %v6242, %v1132
        %v6267 = vmul.f32 %v6243, %v1133
        %v6268 = vmul.f32 %v6244, %v1134
        %v6269 = vmul.f32 %v6245, %v1135
        %v6270 = vmul.f32 %v6246, %v1136
        %v6271 = vmul.f32 %v6247, %v1137
        %v6272 = vmul.f32 %v6248, %v1138
        %v6273 = vmul.f32 %v6249, %v1139
        %6282 = vrot.lane.b32.xlu0 %v6266, 127
        %v6283 = vpop.permute.xlu0 %6282
        %6284 = vrot.lane.b32.xlu0 %v6267, 127
        %v6285 = vpop.permute.xlu0 %6284
        %6286 = vrot.lane.b32.xlu0 %v6268, 127
        %v6287 = vpop.permute.xlu0 %6286
        %6288 = vrot.lane.b32.xlu0 %v6269, 127
        %v6289 = vpop.permute.xlu0 %6288
        %6290 = vrot.lane.b32.xlu0 %v6270, 127
        %v6291 = vpop.permute.xlu0 %6290
        %6292 = vrot.lane.b32.xlu0 %v6271, 127
        %v6293 = vpop.permute.xlu0 %6292
        %6294 = vrot.lane.b32.xlu0 %v6272, 127
        %v6295 = vpop.permute.xlu0 %6294
        %6296 = vrot.lane.b32.xlu0 %v6273, 127
        %v6297 = vpop.permute.xlu0 %6296
        %v6306 = vadd.f32 %v6258, %v6283
        %v6307 = vadd.f32 %v6259, %v6285
        %v6308 = vadd.f32 %v6260, %v6287
        %v6309 = vadd.f32 %v6261, %v6289
        %v6310 = vadd.f32 %v6262, %v6291
        %v6311 = vadd.f32 %v6263, %v6293
        %v6312 = vadd.f32 %v6264, %v6295
        %v6313 = vadd.f32 %v6265, %v6297
        %v6314 = vmul.f32 %v6242, %v1198
        %v6315 = vmul.f32 %v6243, %v1199
        %v6316 = vmul.f32 %v6244, %v1200
        %v6317 = vmul.f32 %v6245, %v1201
        %v6318 = vmul.f32 %v6246, %v1202
        %v6319 = vmul.f32 %v6247, %v1203
        %v6320 = vmul.f32 %v6248, %v1204
        %v6321 = vmul.f32 %v6249, %v1205
        %6330 = vrot.lane.b32.xlu0 %v6314, 126
        %v6331 = vpop.permute.xlu0 %6330
        %6332 = vrot.lane.b32.xlu0 %v6315, 126
        %v6333 = vpop.permute.xlu0 %6332
        %6334 = vrot.lane.b32.xlu0 %v6316, 126
        %v6335 = vpop.permute.xlu0 %6334
        %6336 = vrot.lane.b32.xlu0 %v6317, 126
        %v6337 = vpop.permute.xlu0 %6336
        %6338 = vrot.lane.b32.xlu0 %v6318, 126
        %v6339 = vpop.permute.xlu0 %6338
        %6340 = vrot.lane.b32.xlu0 %v6319, 126
        %v6341 = vpop.permute.xlu0 %6340
        %6342 = vrot.lane.b32.xlu0 %v6320, 126
        %v6343 = vpop.permute.xlu0 %6342
        %6344 = vrot.lane.b32.xlu0 %v6321, 126
        %v6345 = vpop.permute.xlu0 %6344
        %v6354 = vadd.f32 %v6306, %v6331
        %v6355 = vadd.f32 %v6307, %v6333
        %v6356 = vadd.f32 %v6308, %v6335
        %v6357 = vadd.f32 %v6309, %v6337
        %v6358 = vadd.f32 %v6310, %v6339
        %v6359 = vadd.f32 %v6311, %v6341
        %v6360 = vadd.f32 %v6312, %v6343
        %v6361 = vadd.f32 %v6313, %v6345
        %v6362 = vld [vmem:[#allocation2 + $0xe] sm:$0x1]
        %v6363 = vld [vmem:[#allocation2 + $0x26] sm:$0x1]
        %v6364 = vld [vmem:[#allocation2 + $0x3e] sm:$0x1]
        %v6365 = vld [vmem:[#allocation2 + $0x56] sm:$0x1]
        %v6366 = vld [vmem:[#allocation2 + $0x6e] sm:$0x1]
        %v6367 = vld [vmem:[#allocation2 + $0x86] sm:$0x1]
        %v6368 = vld [vmem:[#allocation2 + $0x9e] sm:$0x1]
        %v6369 = vld [vmem:[#allocation2 + $0xb6] sm:$0x1]
        %v6370 = vmul.f32 %v6362, %v1272
        %v6371 = vmul.f32 %v6363, %v1273
        %v6372 = vmul.f32 %v6364, %v1274
        %v6373 = vmul.f32 %v6365, %v1275
        %v6374 = vmul.f32 %v6366, %v1276
        %v6375 = vmul.f32 %v6367, %v1277
        %v6376 = vmul.f32 %v6368, %v1278
        %v6377 = vmul.f32 %v6369, %v1279
        %v6378 = vadd.f32 %v6354, %v6370
        %v6379 = vadd.f32 %v6355, %v6371
        %v6380 = vadd.f32 %v6356, %v6372
        %v6381 = vadd.f32 %v6357, %v6373
        %v6382 = vadd.f32 %v6358, %v6374
        %v6383 = vadd.f32 %v6359, %v6375
        %v6384 = vadd.f32 %v6360, %v6376
        %v6385 = vadd.f32 %v6361, %v6377
        %v6386 = vmul.f32 %v6362, %v1306
        %v6387 = vmul.f32 %v6363, %v1307
        %v6388 = vmul.f32 %v6364, %v1308
        %v6389 = vmul.f32 %v6365, %v1309
        %v6390 = vmul.f32 %v6366, %v1310
        %v6391 = vmul.f32 %v6367, %v1311
        %v6392 = vmul.f32 %v6368, %v1312
        %v6393 = vmul.f32 %v6369, %v1313
        %6402 = vrot.lane.b32.xlu0 %v6386, 127
        %v6403 = vpop.permute.xlu0 %6402
        %6404 = vrot.lane.b32.xlu0 %v6387, 127
        %v6405 = vpop.permute.xlu0 %6404
        %6406 = vrot.lane.b32.xlu0 %v6388, 127
        %v6407 = vpop.permute.xlu0 %6406
        %6408 = vrot.lane.b32.xlu0 %v6389, 127
        %v6409 = vpop.permute.xlu0 %6408
        %6410 = vrot.lane.b32.xlu0 %v6390, 127
        %v6411 = vpop.permute.xlu0 %6410
        %6412 = vrot.lane.b32.xlu0 %v6391, 127
        %v6413 = vpop.permute.xlu0 %6412
        %6414 = vrot.lane.b32.xlu0 %v6392, 127
        %v6415 = vpop.permute.xlu0 %6414
        %6416 = vrot.lane.b32.xlu0 %v6393, 127
        %v6417 = vpop.permute.xlu0 %6416
        %v6426 = vadd.f32 %v6378, %v6403
        %v6427 = vadd.f32 %v6379, %v6405
        %v6428 = vadd.f32 %v6380, %v6407
        %v6429 = vadd.f32 %v6381, %v6409
        %v6430 = vadd.f32 %v6382, %v6411
        %v6431 = vadd.f32 %v6383, %v6413
        %v6432 = vadd.f32 %v6384, %v6415
        %v6433 = vadd.f32 %v6385, %v6417
        %v6434 = vmul.f32 %v6362, %v1372
        %v6435 = vmul.f32 %v6363, %v1373
        %v6436 = vmul.f32 %v6364, %v1374
        %v6437 = vmul.f32 %v6365, %v1375
        %v6438 = vmul.f32 %v6366, %v1376
        %v6439 = vmul.f32 %v6367, %v1377
        %v6440 = vmul.f32 %v6368, %v1378
        %v6441 = vmul.f32 %v6369, %v1379
        %6450 = vrot.lane.b32.xlu0 %v6434, 126
        %v6451 = vpop.permute.xlu0 %6450
        %6452 = vrot.lane.b32.xlu0 %v6435, 126
        %v6453 = vpop.permute.xlu0 %6452
        %6454 = vrot.lane.b32.xlu0 %v6436, 126
        %v6455 = vpop.permute.xlu0 %6454
        %6456 = vrot.lane.b32.xlu0 %v6437, 126
        %v6457 = vpop.permute.xlu0 %6456
        %6458 = vrot.lane.b32.xlu0 %v6438, 126
        %v6459 = vpop.permute.xlu0 %6458
        %6460 = vrot.lane.b32.xlu0 %v6439, 126
        %v6461 = vpop.permute.xlu0 %6460
        %6462 = vrot.lane.b32.xlu0 %v6440, 126
        %v6463 = vpop.permute.xlu0 %6462
        %6464 = vrot.lane.b32.xlu0 %v6441, 126
        %v6465 = vpop.permute.xlu0 %6464
        %v6474 = vadd.f32 %v6426, %v6451
        %v6475 = vadd.f32 %v6427, %v6453
        %v6476 = vadd.f32 %v6428, %v6455
        %v6477 = vadd.f32 %v6429, %v6457
        %v6478 = vadd.f32 %v6430, %v6459
        %v6479 = vadd.f32 %v6431, %v6461
        %v6480 = vadd.f32 %v6432, %v6463
        %v6481 = vadd.f32 %v6433, %v6465
        %v6482 = vadd.f32 %v6474, %v1439
        %v6483 = vadd.f32 %v6475, %v1440
        %v6484 = vadd.f32 %v6476, %v1441
        %v6485 = vadd.f32 %v6477, %v1442
        %v6486 = vadd.f32 %v6478, %v1443
        %v6487 = vadd.f32 %v6479, %v1444
        %v6488 = vadd.f32 %v6480, %v1445
        %v6489 = vadd.f32 %v6481, %v1446
        %v6490 = vmax.f32 %v6482, 0.0
        %v6491 = vmax.f32 %v6483, 0.0
        %v6492 = vmax.f32 %v6484, 0.0
        %v6493 = vmax.f32 %v6485, 0.0
        %v6494 = vmax.f32 %v6486, 0.0
        %v6495 = vmax.f32 %v6487, 0.0
        %v6496 = vmax.f32 %v6488, 0.0
        %v6497 = vmax.f32 %v6489, 0.0
        %v6498 = vmin.f32 %v6490, 6.0
        %v6499 = vmin.f32 %v6491, 6.0
        %v6500 = vmin.f32 %v6492, 6.0
        %v6501 = vmin.f32 %v6493, 6.0
        %v6502 = vmin.f32 %v6494, 6.0
        %v6503 = vmin.f32 %v6495, 6.0
        %v6504 = vmin.f32 %v6496, 6.0
        %v6505 = vmin.f32 %v6497, 6.0
        %v6506 = vmul.f32 %v6498, 1.7133749
        %v6507 = vmul.f32 %v6499, 1.7133749
        %v6508 = vmul.f32 %v6500, 1.7133749
        %v6509 = vmul.f32 %v6501, 1.7133749
        %v6510 = vmul.f32 %v6502, 1.7133749
        %v6511 = vmul.f32 %v6503, 1.7133749
        %v6512 = vmul.f32 %v6504, 1.7133749
        %v6513 = vmul.f32 %v6505, 1.7133749
        %v6522 = vrot.slane %v6507, 7
        %v6523 = vsel %vm1496, %v6522, %v6506
        %v6524 = vrot.slane %v6508, 6
        %v6525 = vsel %vm1499, %v6524, %v6523
        %v6526 = vrot.slane %v6509, 5
        %v6527 = vsel %vm1502, %v6526, %v6525
        %v6528 = vrot.slane %v6510, 4
        %v6529 = vsel %vm1505, %v6528, %v6527
        %v6530 = vrot.slane %v6511, 3
        %v6531 = vsel %vm1508, %v6530, %v6529
        %v6532 = vrot.slane %v6512, 2
        %v6533 = vsel %vm1511, %v6532, %v6531
        %v6534 = vrot.slane %v6513, 1
        %v6535 = vsel %vm1514, %v6534, %v6533
        %6536 = vrot.lane.b32.xlu0 %v6535, 64
        %v6537 = vpop.permute.xlu0 %6536
        %6539 = vst.msk [vmem:[#allocation3 + $0x8] sm:$0xff] %vm3193, %v6537
        %v6540 = vld [vmem:[#allocation2 + $0xd] sm:$0x1]
        %v6541 = vld [vmem:[#allocation2 + $0x25] sm:$0x1]
        %v6542 = vld [vmem:[#allocation2 + $0x3d] sm:$0x1]
        %v6543 = vld [vmem:[#allocation2 + $0x55] sm:$0x1]
        %v6544 = vld [vmem:[#allocation2 + $0x6d] sm:$0x1]
        %v6545 = vld [vmem:[#allocation2 + $0x85] sm:$0x1]
        %v6546 = vld [vmem:[#allocation2 + $0x9d] sm:$0x1]
        %v6547 = vld [vmem:[#allocation2 + $0xb5] sm:$0x1]
        %v6548 = vmul.f32 %v6540, %v924
        %v6549 = vmul.f32 %v6541, %v925
        %v6550 = vmul.f32 %v6542, %v926
        %v6551 = vmul.f32 %v6543, %v927
        %v6552 = vmul.f32 %v6544, %v928
        %v6553 = vmul.f32 %v6545, %v929
        %v6554 = vmul.f32 %v6546, %v930
        %v6555 = vmul.f32 %v6547, %v931
        %v6556 = vadd.f32 %v6548, 0.0
        %v6557 = vadd.f32 %v6549, 0.0
        %v6558 = vadd.f32 %v6550, 0.0
        %v6559 = vadd.f32 %v6551, 0.0
        %v6560 = vadd.f32 %v6552, 0.0
        %v6561 = vadd.f32 %v6553, 0.0
        %v6562 = vadd.f32 %v6554, 0.0
        %v6563 = vadd.f32 %v6555, 0.0
        %v6564 = vmul.f32 %v6540, %v958
        %v6565 = vmul.f32 %v6541, %v959
        %v6566 = vmul.f32 %v6542, %v960
        %v6567 = vmul.f32 %v6543, %v961
        %v6568 = vmul.f32 %v6544, %v962
        %v6569 = vmul.f32 %v6545, %v963
        %v6570 = vmul.f32 %v6546, %v964
        %v6571 = vmul.f32 %v6547, %v965
        %6580 = vrot.lane.b32.xlu0 %v6564, 127
        %v6581 = vpop.permute.xlu0 %6580
        %6582 = vrot.lane.b32.xlu0 %v6565, 127
        %v6583 = vpop.permute.xlu0 %6582
        %6584 = vrot.lane.b32.xlu0 %v6566, 127
        %v6585 = vpop.permute.xlu0 %6584
        %6586 = vrot.lane.b32.xlu0 %v6567, 127
        %v6587 = vpop.permute.xlu0 %6586
        %6588 = vrot.lane.b32.xlu0 %v6568, 127
        %v6589 = vpop.permute.xlu0 %6588
        %6590 = vrot.lane.b32.xlu0 %v6569, 127
        %v6591 = vpop.permute.xlu0 %6590
        %6592 = vrot.lane.b32.xlu0 %v6570, 127
        %v6593 = vpop.permute.xlu0 %6592
        %6594 = vrot.lane.b32.xlu0 %v6571, 127
        %v6595 = vpop.permute.xlu0 %6594
        %v6604 = vadd.f32 %v6556, %v6581
        %v6605 = vadd.f32 %v6557, %v6583
        %v6606 = vadd.f32 %v6558, %v6585
        %v6607 = vadd.f32 %v6559, %v6587
        %v6608 = vadd.f32 %v6560, %v6589
        %v6609 = vadd.f32 %v6561, %v6591
        %v6610 = vadd.f32 %v6562, %v6593
        %v6611 = vadd.f32 %v6563, %v6595
        %v6612 = vmul.f32 %v6540, %v1024
        %v6613 = vmul.f32 %v6541, %v1025
        %v6614 = vmul.f32 %v6542, %v1026
        %v6615 = vmul.f32 %v6543, %v1027
        %v6616 = vmul.f32 %v6544, %v1028
        %v6617 = vmul.f32 %v6545, %v1029
        %v6618 = vmul.f32 %v6546, %v1030
        %v6619 = vmul.f32 %v6547, %v1031
        %6628 = vrot.lane.b32.xlu0 %v6612, 126
        %v6629 = vpop.permute.xlu0 %6628
        %6630 = vrot.lane.b32.xlu0 %v6613, 126
        %v6631 = vpop.permute.xlu0 %6630
        %6632 = vrot.lane.b32.xlu0 %v6614, 126
        %v6633 = vpop.permute.xlu0 %6632
        %6634 = vrot.lane.b32.xlu0 %v6615, 126
        %v6635 = vpop.permute.xlu0 %6634
        %6636 = vrot.lane.b32.xlu0 %v6616, 126
        %v6637 = vpop.permute.xlu0 %6636
        %6638 = vrot.lane.b32.xlu0 %v6617, 126
        %v6639 = vpop.permute.xlu0 %6638
        %6640 = vrot.lane.b32.xlu0 %v6618, 126
        %v6641 = vpop.permute.xlu0 %6640
        %6642 = vrot.lane.b32.xlu0 %v6619, 126
        %v6643 = vpop.permute.xlu0 %6642
        %v6652 = vadd.f32 %v6604, %v6629
        %v6653 = vadd.f32 %v6605, %v6631
        %v6654 = vadd.f32 %v6606, %v6633
        %v6655 = vadd.f32 %v6607, %v6635
        %v6656 = vadd.f32 %v6608, %v6637
        %v6657 = vadd.f32 %v6609, %v6639
        %v6658 = vadd.f32 %v6610, %v6641
        %v6659 = vadd.f32 %v6611, %v6643
        %v6660 = vld [vmem:[#allocation2 + $0xe] sm:$0x1]
        %v6661 = vld [vmem:[#allocation2 + $0x26] sm:$0x1]
        %v6662 = vld [vmem:[#allocation2 + $0x3e] sm:$0x1]
        %v6663 = vld [vmem:[#allocation2 + $0x56] sm:$0x1]
        %v6664 = vld [vmem:[#allocation2 + $0x6e] sm:$0x1]
        %v6665 = vld [vmem:[#allocation2 + $0x86] sm:$0x1]
        %v6666 = vld [vmem:[#allocation2 + $0x9e] sm:$0x1]
        %v6667 = vld [vmem:[#allocation2 + $0xb6] sm:$0x1]
        %v6668 = vmul.f32 %v6660, %v1098
        %v6669 = vmul.f32 %v6661, %v1099
        %v6670 = vmul.f32 %v6662, %v1100
        %v6671 = vmul.f32 %v6663, %v1101
        %v6672 = vmul.f32 %v6664, %v1102
        %v6673 = vmul.f32 %v6665, %v1103
        %v6674 = vmul.f32 %v6666, %v1104
        %v6675 = vmul.f32 %v6667, %v1105
        %v6676 = vadd.f32 %v6652, %v6668
        %v6677 = vadd.f32 %v6653, %v6669
        %v6678 = vadd.f32 %v6654, %v6670
        %v6679 = vadd.f32 %v6655, %v6671
        %v6680 = vadd.f32 %v6656, %v6672
        %v6681 = vadd.f32 %v6657, %v6673
        %v6682 = vadd.f32 %v6658, %v6674
        %v6683 = vadd.f32 %v6659, %v6675
        %v6684 = vmul.f32 %v6660, %v1132
        %v6685 = vmul.f32 %v6661, %v1133
        %v6686 = vmul.f32 %v6662, %v1134
        %v6687 = vmul.f32 %v6663, %v1135
        %v6688 = vmul.f32 %v6664, %v1136
        %v6689 = vmul.f32 %v6665, %v1137
        %v6690 = vmul.f32 %v6666, %v1138
        %v6691 = vmul.f32 %v6667, %v1139
        %6700 = vrot.lane.b32.xlu0 %v6684, 127
        %v6701 = vpop.permute.xlu0 %6700
        %6702 = vrot.lane.b32.xlu0 %v6685, 127
        %v6703 = vpop.permute.xlu0 %6702
        %6704 = vrot.lane.b32.xlu0 %v6686, 127
        %v6705 = vpop.permute.xlu0 %6704
        %6706 = vrot.lane.b32.xlu0 %v6687, 127
        %v6707 = vpop.permute.xlu0 %6706
        %6708 = vrot.lane.b32.xlu0 %v6688, 127
        %v6709 = vpop.permute.xlu0 %6708
        %6710 = vrot.lane.b32.xlu0 %v6689, 127
        %v6711 = vpop.permute.xlu0 %6710
        %6712 = vrot.lane.b32.xlu0 %v6690, 127
        %v6713 = vpop.permute.xlu0 %6712
        %6714 = vrot.lane.b32.xlu0 %v6691, 127
        %v6715 = vpop.permute.xlu0 %6714
        %v6724 = vadd.f32 %v6676, %v6701
        %v6725 = vadd.f32 %v6677, %v6703
        %v6726 = vadd.f32 %v6678, %v6705
        %v6727 = vadd.f32 %v6679, %v6707
        %v6728 = vadd.f32 %v6680, %v6709
        %v6729 = vadd.f32 %v6681, %v6711
        %v6730 = vadd.f32 %v6682, %v6713
        %v6731 = vadd.f32 %v6683, %v6715
        %v6732 = vmul.f32 %v6660, %v1198
        %v6733 = vmul.f32 %v6661, %v1199
        %v6734 = vmul.f32 %v6662, %v1200
        %v6735 = vmul.f32 %v6663, %v1201
        %v6736 = vmul.f32 %v6664, %v1202
        %v6737 = vmul.f32 %v6665, %v1203
        %v6738 = vmul.f32 %v6666, %v1204
        %v6739 = vmul.f32 %v6667, %v1205
        %6748 = vrot.lane.b32.xlu0 %v6732, 126
        %v6749 = vpop.permute.xlu0 %6748
        %6750 = vrot.lane.b32.xlu0 %v6733, 126
        %v6751 = vpop.permute.xlu0 %6750
        %6752 = vrot.lane.b32.xlu0 %v6734, 126
        %v6753 = vpop.permute.xlu0 %6752
        %6754 = vrot.lane.b32.xlu0 %v6735, 126
        %v6755 = vpop.permute.xlu0 %6754
        %6756 = vrot.lane.b32.xlu0 %v6736, 126
        %v6757 = vpop.permute.xlu0 %6756
        %6758 = vrot.lane.b32.xlu0 %v6737, 126
        %v6759 = vpop.permute.xlu0 %6758
        %6760 = vrot.lane.b32.xlu0 %v6738, 126
        %v6761 = vpop.permute.xlu0 %6760
        %6762 = vrot.lane.b32.xlu0 %v6739, 126
        %v6763 = vpop.permute.xlu0 %6762
        %v6772 = vadd.f32 %v6724, %v6749
        %v6773 = vadd.f32 %v6725, %v6751
        %v6774 = vadd.f32 %v6726, %v6753
        %v6775 = vadd.f32 %v6727, %v6755
        %v6776 = vadd.f32 %v6728, %v6757
        %v6777 = vadd.f32 %v6729, %v6759
        %v6778 = vadd.f32 %v6730, %v6761
        %v6779 = vadd.f32 %v6731, %v6763
        %v6780 = vld [vmem:[#allocation2 + $0xf] sm:$0x1]
        %v6781 = vld [vmem:[#allocation2 + $0x27] sm:$0x1]
        %v6782 = vld [vmem:[#allocation2 + $0x3f] sm:$0x1]
        %v6783 = vld [vmem:[#allocation2 + $0x57] sm:$0x1]
        %v6784 = vld [vmem:[#allocation2 + $0x6f] sm:$0x1]
        %v6785 = vld [vmem:[#allocation2 + $0x87] sm:$0x1]
        %v6786 = vld [vmem:[#allocation2 + $0x9f] sm:$0x1]
        %v6787 = vld [vmem:[#allocation2 + $0xb7] sm:$0x1]
        %v6788 = vmul.f32 %v6780, %v1272
        %v6789 = vmul.f32 %v6781, %v1273
        %v6790 = vmul.f32 %v6782, %v1274
        %v6791 = vmul.f32 %v6783, %v1275
        %v6792 = vmul.f32 %v6784, %v1276
        %v6793 = vmul.f32 %v6785, %v1277
        %v6794 = vmul.f32 %v6786, %v1278
        %v6795 = vmul.f32 %v6787, %v1279
        %v6796 = vadd.f32 %v6772, %v6788
        %v6797 = vadd.f32 %v6773, %v6789
        %v6798 = vadd.f32 %v6774, %v6790
        %v6799 = vadd.f32 %v6775, %v6791
        %v6800 = vadd.f32 %v6776, %v6792
        %v6801 = vadd.f32 %v6777, %v6793
        %v6802 = vadd.f32 %v6778, %v6794
        %v6803 = vadd.f32 %v6779, %v6795
        %v6804 = vmul.f32 %v6780, %v1306
        %v6805 = vmul.f32 %v6781, %v1307
        %v6806 = vmul.f32 %v6782, %v1308
        %v6807 = vmul.f32 %v6783, %v1309
        %v6808 = vmul.f32 %v6784, %v1310
        %v6809 = vmul.f32 %v6785, %v1311
        %v6810 = vmul.f32 %v6786, %v1312
        %v6811 = vmul.f32 %v6787, %v1313
        %6820 = vrot.lane.b32.xlu0 %v6804, 127
        %v6821 = vpop.permute.xlu0 %6820
        %6822 = vrot.lane.b32.xlu0 %v6805, 127
        %v6823 = vpop.permute.xlu0 %6822
        %6824 = vrot.lane.b32.xlu0 %v6806, 127
        %v6825 = vpop.permute.xlu0 %6824
        %6826 = vrot.lane.b32.xlu0 %v6807, 127
        %v6827 = vpop.permute.xlu0 %6826
        %6828 = vrot.lane.b32.xlu0 %v6808, 127
        %v6829 = vpop.permute.xlu0 %6828
        %6830 = vrot.lane.b32.xlu0 %v6809, 127
        %v6831 = vpop.permute.xlu0 %6830
        %6832 = vrot.lane.b32.xlu0 %v6810, 127
        %v6833 = vpop.permute.xlu0 %6832
        %6834 = vrot.lane.b32.xlu0 %v6811, 127
        %v6835 = vpop.permute.xlu0 %6834
        %v6844 = vadd.f32 %v6796, %v6821
        %v6845 = vadd.f32 %v6797, %v6823
        %v6846 = vadd.f32 %v6798, %v6825
        %v6847 = vadd.f32 %v6799, %v6827
        %v6848 = vadd.f32 %v6800, %v6829
        %v6849 = vadd.f32 %v6801, %v6831
        %v6850 = vadd.f32 %v6802, %v6833
        %v6851 = vadd.f32 %v6803, %v6835
        %v6852 = vmul.f32 %v6780, %v1372
        %v6853 = vmul.f32 %v6781, %v1373
        %v6854 = vmul.f32 %v6782, %v1374
        %v6855 = vmul.f32 %v6783, %v1375
        %v6856 = vmul.f32 %v6784, %v1376
        %v6857 = vmul.f32 %v6785, %v1377
        %v6858 = vmul.f32 %v6786, %v1378
        %v6859 = vmul.f32 %v6787, %v1379
        %6868 = vrot.lane.b32.xlu0 %v6852, 126
        %v6869 = vpop.permute.xlu0 %6868
        %6870 = vrot.lane.b32.xlu0 %v6853, 126
        %v6871 = vpop.permute.xlu0 %6870
        %6872 = vrot.lane.b32.xlu0 %v6854, 126
        %v6873 = vpop.permute.xlu0 %6872
        %6874 = vrot.lane.b32.xlu0 %v6855, 126
        %v6875 = vpop.permute.xlu0 %6874
        %6876 = vrot.lane.b32.xlu0 %v6856, 126
        %v6877 = vpop.permute.xlu0 %6876
        %6878 = vrot.lane.b32.xlu0 %v6857, 126
        %v6879 = vpop.permute.xlu0 %6878
        %6880 = vrot.lane.b32.xlu0 %v6858, 126
        %v6881 = vpop.permute.xlu0 %6880
        %6882 = vrot.lane.b32.xlu0 %v6859, 126
        %v6883 = vpop.permute.xlu0 %6882
        %v6892 = vadd.f32 %v6844, %v6869
        %v6893 = vadd.f32 %v6845, %v6871
        %v6894 = vadd.f32 %v6846, %v6873
        %v6895 = vadd.f32 %v6847, %v6875
        %v6896 = vadd.f32 %v6848, %v6877
        %v6897 = vadd.f32 %v6849, %v6879
        %v6898 = vadd.f32 %v6850, %v6881
        %v6899 = vadd.f32 %v6851, %v6883
        %v6900 = vadd.f32 %v6892, %v1439
        %v6901 = vadd.f32 %v6893, %v1440
        %v6902 = vadd.f32 %v6894, %v1441
        %v6903 = vadd.f32 %v6895, %v1442
        %v6904 = vadd.f32 %v6896, %v1443
        %v6905 = vadd.f32 %v6897, %v1444
        %v6906 = vadd.f32 %v6898, %v1445
        %v6907 = vadd.f32 %v6899, %v1446
        %v6908 = vmax.f32 %v6900, 0.0
        %v6909 = vmax.f32 %v6901, 0.0
        %v6910 = vmax.f32 %v6902, 0.0
        %v6911 = vmax.f32 %v6903, 0.0
        %v6912 = vmax.f32 %v6904, 0.0
        %v6913 = vmax.f32 %v6905, 0.0
        %v6914 = vmax.f32 %v6906, 0.0
        %v6915 = vmax.f32 %v6907, 0.0
        %v6916 = vmin.f32 %v6908, 6.0
        %v6917 = vmin.f32 %v6909, 6.0
        %v6918 = vmin.f32 %v6910, 6.0
        %v6919 = vmin.f32 %v6911, 6.0
        %v6920 = vmin.f32 %v6912, 6.0
        %v6921 = vmin.f32 %v6913, 6.0
        %v6922 = vmin.f32 %v6914, 6.0
        %v6923 = vmin.f32 %v6915, 6.0
        %v6924 = vmul.f32 %v6916, 1.7133749
        %v6925 = vmul.f32 %v6917, 1.7133749
        %v6926 = vmul.f32 %v6918, 1.7133749
        %v6927 = vmul.f32 %v6919, 1.7133749
        %v6928 = vmul.f32 %v6920, 1.7133749
        %v6929 = vmul.f32 %v6921, 1.7133749
        %v6930 = vmul.f32 %v6922, 1.7133749
        %v6931 = vmul.f32 %v6923, 1.7133749
        %v6940 = vrot.slane %v6925, 7
        %v6941 = vsel %vm1496, %v6940, %v6924
        %v6942 = vrot.slane %v6926, 6
        %v6943 = vsel %vm1499, %v6942, %v6941
        %v6944 = vrot.slane %v6927, 5
        %v6945 = vsel %vm1502, %v6944, %v6943
        %v6946 = vrot.slane %v6928, 4
        %v6947 = vsel %vm1505, %v6946, %v6945
        %v6948 = vrot.slane %v6929, 3
        %v6949 = vsel %vm1508, %v6948, %v6947
        %v6950 = vrot.slane %v6930, 2
        %v6951 = vsel %vm1511, %v6950, %v6949
        %v6952 = vrot.slane %v6931, 1
        %v6953 = vsel %vm1514, %v6952, %v6951
        %6954 = vrot.lane.b32.xlu0 %v6953, 80
        %v6955 = vpop.permute.xlu0 %6954
        %6957 = vst.msk [vmem:[#allocation3 + $0x8] sm:$0xff] %vm3612, %v6955
        %v6958 = vld [vmem:[#allocation2 + $0xe] sm:$0x1]
        %v6959 = vld [vmem:[#allocation2 + $0x26] sm:$0x1]
        %v6960 = vld [vmem:[#allocation2 + $0x3e] sm:$0x1]
        %v6961 = vld [vmem:[#allocation2 + $0x56] sm:$0x1]
        %v6962 = vld [vmem:[#allocation2 + $0x6e] sm:$0x1]
        %v6963 = vld [vmem:[#allocation2 + $0x86] sm:$0x1]
        %v6964 = vld [vmem:[#allocation2 + $0x9e] sm:$0x1]
        %v6965 = vld [vmem:[#allocation2 + $0xb6] sm:$0x1]
        %v6966 = vmul.f32 %v6958, %v924
        %v6967 = vmul.f32 %v6959, %v925
        %v6968 = vmul.f32 %v6960, %v926
        %v6969 = vmul.f32 %v6961, %v927
        %v6970 = vmul.f32 %v6962, %v928
        %v6971 = vmul.f32 %v6963, %v929
        %v6972 = vmul.f32 %v6964, %v930
        %v6973 = vmul.f32 %v6965, %v931
        %v6974 = vadd.f32 %v6966, 0.0
        %v6975 = vadd.f32 %v6967, 0.0
        %v6976 = vadd.f32 %v6968, 0.0
        %v6977 = vadd.f32 %v6969, 0.0
        %v6978 = vadd.f32 %v6970, 0.0
        %v6979 = vadd.f32 %v6971, 0.0
        %v6980 = vadd.f32 %v6972, 0.0
        %v6981 = vadd.f32 %v6973, 0.0
        %v6982 = vmul.f32 %v6958, %v958
        %v6983 = vmul.f32 %v6959, %v959
        %v6984 = vmul.f32 %v6960, %v960
        %v6985 = vmul.f32 %v6961, %v961
        %v6986 = vmul.f32 %v6962, %v962
        %v6987 = vmul.f32 %v6963, %v963
        %v6988 = vmul.f32 %v6964, %v964
        %v6989 = vmul.f32 %v6965, %v965
        %6998 = vrot.lane.b32.xlu0 %v6982, 127
        %v6999 = vpop.permute.xlu0 %6998
        %7000 = vrot.lane.b32.xlu0 %v6983, 127
        %v7001 = vpop.permute.xlu0 %7000
        %7002 = vrot.lane.b32.xlu0 %v6984, 127
        %v7003 = vpop.permute.xlu0 %7002
        %7004 = vrot.lane.b32.xlu0 %v6985, 127
        %v7005 = vpop.permute.xlu0 %7004
        %7006 = vrot.lane.b32.xlu0 %v6986, 127
        %v7007 = vpop.permute.xlu0 %7006
        %7008 = vrot.lane.b32.xlu0 %v6987, 127
        %v7009 = vpop.permute.xlu0 %7008
        %7010 = vrot.lane.b32.xlu0 %v6988, 127
        %v7011 = vpop.permute.xlu0 %7010
        %7012 = vrot.lane.b32.xlu0 %v6989, 127
        %v7013 = vpop.permute.xlu0 %7012
        %v7022 = vadd.f32 %v6974, %v6999
        %v7023 = vadd.f32 %v6975, %v7001
        %v7024 = vadd.f32 %v6976, %v7003
        %v7025 = vadd.f32 %v6977, %v7005
        %v7026 = vadd.f32 %v6978, %v7007
        %v7027 = vadd.f32 %v6979, %v7009
        %v7028 = vadd.f32 %v6980, %v7011
        %v7029 = vadd.f32 %v6981, %v7013
        %v7030 = vmul.f32 %v6958, %v1024
        %v7031 = vmul.f32 %v6959, %v1025
        %v7032 = vmul.f32 %v6960, %v1026
        %v7033 = vmul.f32 %v6961, %v1027
        %v7034 = vmul.f32 %v6962, %v1028
        %v7035 = vmul.f32 %v6963, %v1029
        %v7036 = vmul.f32 %v6964, %v1030
        %v7037 = vmul.f32 %v6965, %v1031
        %7046 = vrot.lane.b32.xlu0 %v7030, 126
        %v7047 = vpop.permute.xlu0 %7046
        %7048 = vrot.lane.b32.xlu0 %v7031, 126
        %v7049 = vpop.permute.xlu0 %7048
        %7050 = vrot.lane.b32.xlu0 %v7032, 126
        %v7051 = vpop.permute.xlu0 %7050
        %7052 = vrot.lane.b32.xlu0 %v7033, 126
        %v7053 = vpop.permute.xlu0 %7052
        %7054 = vrot.lane.b32.xlu0 %v7034, 126
        %v7055 = vpop.permute.xlu0 %7054
        %7056 = vrot.lane.b32.xlu0 %v7035, 126
        %v7057 = vpop.permute.xlu0 %7056
        %7058 = vrot.lane.b32.xlu0 %v7036, 126
        %v7059 = vpop.permute.xlu0 %7058
        %7060 = vrot.lane.b32.xlu0 %v7037, 126
        %v7061 = vpop.permute.xlu0 %7060
        %v7070 = vadd.f32 %v7022, %v7047
        %v7071 = vadd.f32 %v7023, %v7049
        %v7072 = vadd.f32 %v7024, %v7051
        %v7073 = vadd.f32 %v7025, %v7053
        %v7074 = vadd.f32 %v7026, %v7055
        %v7075 = vadd.f32 %v7027, %v7057
        %v7076 = vadd.f32 %v7028, %v7059
        %v7077 = vadd.f32 %v7029, %v7061
        %v7078 = vld [vmem:[#allocation2 + $0xf] sm:$0x1]
        %v7079 = vld [vmem:[#allocation2 + $0x27] sm:$0x1]
        %v7080 = vld [vmem:[#allocation2 + $0x3f] sm:$0x1]
        %v7081 = vld [vmem:[#allocation2 + $0x57] sm:$0x1]
        %v7082 = vld [vmem:[#allocation2 + $0x6f] sm:$0x1]
        %v7083 = vld [vmem:[#allocation2 + $0x87] sm:$0x1]
        %v7084 = vld [vmem:[#allocation2 + $0x9f] sm:$0x1]
        %v7085 = vld [vmem:[#allocation2 + $0xb7] sm:$0x1]
        %v7086 = vmul.f32 %v7078, %v1098
        %v7087 = vmul.f32 %v7079, %v1099
        %v7088 = vmul.f32 %v7080, %v1100
        %v7089 = vmul.f32 %v7081, %v1101
        %v7090 = vmul.f32 %v7082, %v1102
        %v7091 = vmul.f32 %v7083, %v1103
        %v7092 = vmul.f32 %v7084, %v1104
        %v7093 = vmul.f32 %v7085, %v1105
        %v7094 = vadd.f32 %v7070, %v7086
        %v7095 = vadd.f32 %v7071, %v7087
        %v7096 = vadd.f32 %v7072, %v7088
        %v7097 = vadd.f32 %v7073, %v7089
        %v7098 = vadd.f32 %v7074, %v7090
        %v7099 = vadd.f32 %v7075, %v7091
        %v7100 = vadd.f32 %v7076, %v7092
        %v7101 = vadd.f32 %v7077, %v7093
        %v7102 = vmul.f32 %v7078, %v1132
        %v7103 = vmul.f32 %v7079, %v1133
        %v7104 = vmul.f32 %v7080, %v1134
        %v7105 = vmul.f32 %v7081, %v1135
        %v7106 = vmul.f32 %v7082, %v1136
        %v7107 = vmul.f32 %v7083, %v1137
        %v7108 = vmul.f32 %v7084, %v1138
        %v7109 = vmul.f32 %v7085, %v1139
        %7118 = vrot.lane.b32.xlu0 %v7102, 127
        %v7119 = vpop.permute.xlu0 %7118
        %7120 = vrot.lane.b32.xlu0 %v7103, 127
        %v7121 = vpop.permute.xlu0 %7120
        %7122 = vrot.lane.b32.xlu0 %v7104, 127
        %v7123 = vpop.permute.xlu0 %7122
        %7124 = vrot.lane.b32.xlu0 %v7105, 127
        %v7125 = vpop.permute.xlu0 %7124
        %7126 = vrot.lane.b32.xlu0 %v7106, 127
        %v7127 = vpop.permute.xlu0 %7126
        %7128 = vrot.lane.b32.xlu0 %v7107, 127
        %v7129 = vpop.permute.xlu0 %7128
        %7130 = vrot.lane.b32.xlu0 %v7108, 127
        %v7131 = vpop.permute.xlu0 %7130
        %7132 = vrot.lane.b32.xlu0 %v7109, 127
        %v7133 = vpop.permute.xlu0 %7132
        %v7142 = vadd.f32 %v7094, %v7119
        %v7143 = vadd.f32 %v7095, %v7121
        %v7144 = vadd.f32 %v7096, %v7123
        %v7145 = vadd.f32 %v7097, %v7125
        %v7146 = vadd.f32 %v7098, %v7127
        %v7147 = vadd.f32 %v7099, %v7129
        %v7148 = vadd.f32 %v7100, %v7131
        %v7149 = vadd.f32 %v7101, %v7133
        %v7150 = vmul.f32 %v7078, %v1198
        %v7151 = vmul.f32 %v7079, %v1199
        %v7152 = vmul.f32 %v7080, %v1200
        %v7153 = vmul.f32 %v7081, %v1201
        %v7154 = vmul.f32 %v7082, %v1202
        %v7155 = vmul.f32 %v7083, %v1203
        %v7156 = vmul.f32 %v7084, %v1204
        %v7157 = vmul.f32 %v7085, %v1205
        %7166 = vrot.lane.b32.xlu0 %v7150, 126
        %v7167 = vpop.permute.xlu0 %7166
        %7168 = vrot.lane.b32.xlu0 %v7151, 126
        %v7169 = vpop.permute.xlu0 %7168
        %7170 = vrot.lane.b32.xlu0 %v7152, 126
        %v7171 = vpop.permute.xlu0 %7170
        %7172 = vrot.lane.b32.xlu0 %v7153, 126
        %v7173 = vpop.permute.xlu0 %7172
        %7174 = vrot.lane.b32.xlu0 %v7154, 126
        %v7175 = vpop.permute.xlu0 %7174
        %7176 = vrot.lane.b32.xlu0 %v7155, 126
        %v7177 = vpop.permute.xlu0 %7176
        %7178 = vrot.lane.b32.xlu0 %v7156, 126
        %v7179 = vpop.permute.xlu0 %7178
        %7180 = vrot.lane.b32.xlu0 %v7157, 126
        %v7181 = vpop.permute.xlu0 %7180
        %v7190 = vadd.f32 %v7142, %v7167
        %v7191 = vadd.f32 %v7143, %v7169
        %v7192 = vadd.f32 %v7144, %v7171
        %v7193 = vadd.f32 %v7145, %v7173
        %v7194 = vadd.f32 %v7146, %v7175
        %v7195 = vadd.f32 %v7147, %v7177
        %v7196 = vadd.f32 %v7148, %v7179
        %v7197 = vadd.f32 %v7149, %v7181
        %v7198 = vld [vmem:[#allocation2 + $0x10] sm:$0x1]
        %v7199 = vld [vmem:[#allocation2 + $0x28] sm:$0x1]
        %v7200 = vld [vmem:[#allocation2 + $0x40] sm:$0x1]
        %v7201 = vld [vmem:[#allocation2 + $0x58] sm:$0x1]
        %v7202 = vld [vmem:[#allocation2 + $0x70] sm:$0x1]
        %v7203 = vld [vmem:[#allocation2 + $0x88] sm:$0x1]
        %v7204 = vld [vmem:[#allocation2 + $0xa0] sm:$0x1]
        %v7205 = vld [vmem:[#allocation2 + $0xb8] sm:$0x1]
        %v7206 = vmul.f32 %v7198, %v1272
        %v7207 = vmul.f32 %v7199, %v1273
        %v7208 = vmul.f32 %v7200, %v1274
        %v7209 = vmul.f32 %v7201, %v1275
        %v7210 = vmul.f32 %v7202, %v1276
        %v7211 = vmul.f32 %v7203, %v1277
        %v7212 = vmul.f32 %v7204, %v1278
        %v7213 = vmul.f32 %v7205, %v1279
        %v7214 = vadd.f32 %v7190, %v7206
        %v7215 = vadd.f32 %v7191, %v7207
        %v7216 = vadd.f32 %v7192, %v7208
        %v7217 = vadd.f32 %v7193, %v7209
        %v7218 = vadd.f32 %v7194, %v7210
        %v7219 = vadd.f32 %v7195, %v7211
        %v7220 = vadd.f32 %v7196, %v7212
        %v7221 = vadd.f32 %v7197, %v7213
        %v7222 = vmul.f32 %v7198, %v1306
        %v7223 = vmul.f32 %v7199, %v1307
        %v7224 = vmul.f32 %v7200, %v1308
        %v7225 = vmul.f32 %v7201, %v1309
        %v7226 = vmul.f32 %v7202, %v1310
        %v7227 = vmul.f32 %v7203, %v1311
        %v7228 = vmul.f32 %v7204, %v1312
        %v7229 = vmul.f32 %v7205, %v1313
        %7238 = vrot.lane.b32.xlu0 %v7222, 127
        %v7239 = vpop.permute.xlu0 %7238
        %7240 = vrot.lane.b32.xlu0 %v7223, 127
        %v7241 = vpop.permute.xlu0 %7240
        %7242 = vrot.lane.b32.xlu0 %v7224, 127
        %v7243 = vpop.permute.xlu0 %7242
        %7244 = vrot.lane.b32.xlu0 %v7225, 127
        %v7245 = vpop.permute.xlu0 %7244
        %7246 = vrot.lane.b32.xlu0 %v7226, 127
        %v7247 = vpop.permute.xlu0 %7246
        %7248 = vrot.lane.b32.xlu0 %v7227, 127
        %v7249 = vpop.permute.xlu0 %7248
        %7250 = vrot.lane.b32.xlu0 %v7228, 127
        %v7251 = vpop.permute.xlu0 %7250
        %7252 = vrot.lane.b32.xlu0 %v7229, 127
        %v7253 = vpop.permute.xlu0 %7252
        %v7262 = vadd.f32 %v7214, %v7239
        %v7263 = vadd.f32 %v7215, %v7241
        %v7264 = vadd.f32 %v7216, %v7243
        %v7265 = vadd.f32 %v7217, %v7245
        %v7266 = vadd.f32 %v7218, %v7247
        %v7267 = vadd.f32 %v7219, %v7249
        %v7268 = vadd.f32 %v7220, %v7251
        %v7269 = vadd.f32 %v7221, %v7253
        %v7270 = vmul.f32 %v7198, %v1372
        %v7271 = vmul.f32 %v7199, %v1373
        %v7272 = vmul.f32 %v7200, %v1374
        %v7273 = vmul.f32 %v7201, %v1375
        %v7274 = vmul.f32 %v7202, %v1376
        %v7275 = vmul.f32 %v7203, %v1377
        %v7276 = vmul.f32 %v7204, %v1378
        %v7277 = vmul.f32 %v7205, %v1379
        %7286 = vrot.lane.b32.xlu0 %v7270, 126
        %v7287 = vpop.permute.xlu0 %7286
        %7288 = vrot.lane.b32.xlu0 %v7271, 126
        %v7289 = vpop.permute.xlu0 %7288
        %7290 = vrot.lane.b32.xlu0 %v7272, 126
        %v7291 = vpop.permute.xlu0 %7290
        %7292 = vrot.lane.b32.xlu0 %v7273, 126
        %v7293 = vpop.permute.xlu0 %7292
        %7294 = vrot.lane.b32.xlu0 %v7274, 126
        %v7295 = vpop.permute.xlu0 %7294
        %7296 = vrot.lane.b32.xlu0 %v7275, 126
        %v7297 = vpop.permute.xlu0 %7296
        %7298 = vrot.lane.b32.xlu0 %v7276, 126
        %v7299 = vpop.permute.xlu0 %7298
        %7300 = vrot.lane.b32.xlu0 %v7277, 126
        %v7301 = vpop.permute.xlu0 %7300
        %v7310 = vadd.f32 %v7262, %v7287
        %v7311 = vadd.f32 %v7263, %v7289
        %v7312 = vadd.f32 %v7264, %v7291
        %v7313 = vadd.f32 %v7265, %v7293
        %v7314 = vadd.f32 %v7266, %v7295
        %v7315 = vadd.f32 %v7267, %v7297
        %v7316 = vadd.f32 %v7268, %v7299
        %v7317 = vadd.f32 %v7269, %v7301
        %v7318 = vadd.f32 %v7310, %v1439
        %v7319 = vadd.f32 %v7311, %v1440
        %v7320 = vadd.f32 %v7312, %v1441
        %v7321 = vadd.f32 %v7313, %v1442
        %v7322 = vadd.f32 %v7314, %v1443
        %v7323 = vadd.f32 %v7315, %v1444
        %v7324 = vadd.f32 %v7316, %v1445
        %v7325 = vadd.f32 %v7317, %v1446
        %v7326 = vmax.f32 %v7318, 0.0
        %v7327 = vmax.f32 %v7319, 0.0
        %v7328 = vmax.f32 %v7320, 0.0
        %v7329 = vmax.f32 %v7321, 0.0
        %v7330 = vmax.f32 %v7322, 0.0
        %v7331 = vmax.f32 %v7323, 0.0
        %v7332 = vmax.f32 %v7324, 0.0
        %v7333 = vmax.f32 %v7325, 0.0
        %v7334 = vmin.f32 %v7326, 6.0
        %v7335 = vmin.f32 %v7327, 6.0
        %v7336 = vmin.f32 %v7328, 6.0
        %v7337 = vmin.f32 %v7329, 6.0
        %v7338 = vmin.f32 %v7330, 6.0
        %v7339 = vmin.f32 %v7331, 6.0
        %v7340 = vmin.f32 %v7332, 6.0
        %v7341 = vmin.f32 %v7333, 6.0
        %v7342 = vmul.f32 %v7334, 1.7133749
        %v7343 = vmul.f32 %v7335, 1.7133749
        %v7344 = vmul.f32 %v7336, 1.7133749
        %v7345 = vmul.f32 %v7337, 1.7133749
        %v7346 = vmul.f32 %v7338, 1.7133749
        %v7347 = vmul.f32 %v7339, 1.7133749
        %v7348 = vmul.f32 %v7340, 1.7133749
        %v7349 = vmul.f32 %v7341, 1.7133749
        %v7358 = vrot.slane %v7343, 7
        %v7359 = vsel %vm1496, %v7358, %v7342
        %v7360 = vrot.slane %v7344, 6
        %v7361 = vsel %vm1499, %v7360, %v7359
        %v7362 = vrot.slane %v7345, 5
        %v7363 = vsel %vm1502, %v7362, %v7361
        %v7364 = vrot.slane %v7346, 4
        %v7365 = vsel %vm1505, %v7364, %v7363
        %v7366 = vrot.slane %v7347, 3
        %v7367 = vsel %vm1508, %v7366, %v7365
        %v7368 = vrot.slane %v7348, 2
        %v7369 = vsel %vm1511, %v7368, %v7367
        %v7370 = vrot.slane %v7349, 1
        %v7371 = vsel %vm1514, %v7370, %v7369
        %7372 = vrot.lane.b32.xlu0 %v7371, 96
        %v7373 = vpop.permute.xlu0 %7372
        %7375 = vst.msk [vmem:[#allocation3 + $0x8] sm:$0xff] %vm4031, %v7373
        %v7376 = vld [vmem:[#allocation2 + $0xf] sm:$0x1]
        %v7377 = vld [vmem:[#allocation2 + $0x27] sm:$0x1]
        %v7378 = vld [vmem:[#allocation2 + $0x3f] sm:$0x1]
        %v7379 = vld [vmem:[#allocation2 + $0x57] sm:$0x1]
        %v7380 = vld [vmem:[#allocation2 + $0x6f] sm:$0x1]
        %v7381 = vld [vmem:[#allocation2 + $0x87] sm:$0x1]
        %v7382 = vld [vmem:[#allocation2 + $0x9f] sm:$0x1]
        %v7383 = vld [vmem:[#allocation2 + $0xb7] sm:$0x1]
        %v7384 = vmul.f32 %v7376, %v924
        %v7385 = vmul.f32 %v7377, %v925
        %v7386 = vmul.f32 %v7378, %v926
        %v7387 = vmul.f32 %v7379, %v927
        %v7388 = vmul.f32 %v7380, %v928
        %v7389 = vmul.f32 %v7381, %v929
        %v7390 = vmul.f32 %v7382, %v930
        %v7391 = vmul.f32 %v7383, %v931
        %v7392 = vadd.f32 %v7384, 0.0
        %v7393 = vadd.f32 %v7385, 0.0
        %v7394 = vadd.f32 %v7386, 0.0
        %v7395 = vadd.f32 %v7387, 0.0
        %v7396 = vadd.f32 %v7388, 0.0
        %v7397 = vadd.f32 %v7389, 0.0
        %v7398 = vadd.f32 %v7390, 0.0
        %v7399 = vadd.f32 %v7391, 0.0
        %v7400 = vmul.f32 %v7376, %v958
        %v7401 = vmul.f32 %v7377, %v959
        %v7402 = vmul.f32 %v7378, %v960
        %v7403 = vmul.f32 %v7379, %v961
        %v7404 = vmul.f32 %v7380, %v962
        %v7405 = vmul.f32 %v7381, %v963
        %v7406 = vmul.f32 %v7382, %v964
        %v7407 = vmul.f32 %v7383, %v965
        %7416 = vrot.lane.b32.xlu0 %v7400, 127
        %v7417 = vpop.permute.xlu0 %7416
        %7418 = vrot.lane.b32.xlu0 %v7401, 127
        %v7419 = vpop.permute.xlu0 %7418
        %7420 = vrot.lane.b32.xlu0 %v7402, 127
        %v7421 = vpop.permute.xlu0 %7420
        %7422 = vrot.lane.b32.xlu0 %v7403, 127
        %v7423 = vpop.permute.xlu0 %7422
        %7424 = vrot.lane.b32.xlu0 %v7404, 127
        %v7425 = vpop.permute.xlu0 %7424
        %7426 = vrot.lane.b32.xlu0 %v7405, 127
        %v7427 = vpop.permute.xlu0 %7426
        %7428 = vrot.lane.b32.xlu0 %v7406, 127
        %v7429 = vpop.permute.xlu0 %7428
        %7430 = vrot.lane.b32.xlu0 %v7407, 127
        %v7431 = vpop.permute.xlu0 %7430
        %v7440 = vadd.f32 %v7392, %v7417
        %v7441 = vadd.f32 %v7393, %v7419
        %v7442 = vadd.f32 %v7394, %v7421
        %v7443 = vadd.f32 %v7395, %v7423
        %v7444 = vadd.f32 %v7396, %v7425
        %v7445 = vadd.f32 %v7397, %v7427
        %v7446 = vadd.f32 %v7398, %v7429
        %v7447 = vadd.f32 %v7399, %v7431
        %v7448 = vmul.f32 %v7376, %v1024
        %v7449 = vmul.f32 %v7377, %v1025
        %v7450 = vmul.f32 %v7378, %v1026
        %v7451 = vmul.f32 %v7379, %v1027
        %v7452 = vmul.f32 %v7380, %v1028
        %v7453 = vmul.f32 %v7381, %v1029
        %v7454 = vmul.f32 %v7382, %v1030
        %v7455 = vmul.f32 %v7383, %v1031
        %7464 = vrot.lane.b32.xlu0 %v7448, 126
        %v7465 = vpop.permute.xlu0 %7464
        %7466 = vrot.lane.b32.xlu0 %v7449, 126
        %v7467 = vpop.permute.xlu0 %7466
        %7468 = vrot.lane.b32.xlu0 %v7450, 126
        %v7469 = vpop.permute.xlu0 %7468
        %7470 = vrot.lane.b32.xlu0 %v7451, 126
        %v7471 = vpop.permute.xlu0 %7470
        %7472 = vrot.lane.b32.xlu0 %v7452, 126
        %v7473 = vpop.permute.xlu0 %7472
        %7474 = vrot.lane.b32.xlu0 %v7453, 126
        %v7475 = vpop.permute.xlu0 %7474
        %7476 = vrot.lane.b32.xlu0 %v7454, 126
        %v7477 = vpop.permute.xlu0 %7476
        %7478 = vrot.lane.b32.xlu0 %v7455, 126
        %v7479 = vpop.permute.xlu0 %7478
        %v7488 = vadd.f32 %v7440, %v7465
        %v7489 = vadd.f32 %v7441, %v7467
        %v7490 = vadd.f32 %v7442, %v7469
        %v7491 = vadd.f32 %v7443, %v7471
        %v7492 = vadd.f32 %v7444, %v7473
        %v7493 = vadd.f32 %v7445, %v7475
        %v7494 = vadd.f32 %v7446, %v7477
        %v7495 = vadd.f32 %v7447, %v7479
        %v7496 = vld [vmem:[#allocation2 + $0x10] sm:$0x1]
        %v7497 = vld [vmem:[#allocation2 + $0x28] sm:$0x1]
        %v7498 = vld [vmem:[#allocation2 + $0x40] sm:$0x1]
        %v7499 = vld [vmem:[#allocation2 + $0x58] sm:$0x1]
        %v7500 = vld [vmem:[#allocation2 + $0x70] sm:$0x1]
        %v7501 = vld [vmem:[#allocation2 + $0x88] sm:$0x1]
        %v7502 = vld [vmem:[#allocation2 + $0xa0] sm:$0x1]
        %v7503 = vld [vmem:[#allocation2 + $0xb8] sm:$0x1]
        %v7504 = vmul.f32 %v7496, %v1098
        %v7505 = vmul.f32 %v7497, %v1099
        %v7506 = vmul.f32 %v7498, %v1100
        %v7507 = vmul.f32 %v7499, %v1101
        %v7508 = vmul.f32 %v7500, %v1102
        %v7509 = vmul.f32 %v7501, %v1103
        %v7510 = vmul.f32 %v7502, %v1104
        %v7511 = vmul.f32 %v7503, %v1105
        %v7512 = vadd.f32 %v7488, %v7504
        %v7513 = vadd.f32 %v7489, %v7505
        %v7514 = vadd.f32 %v7490, %v7506
        %v7515 = vadd.f32 %v7491, %v7507
        %v7516 = vadd.f32 %v7492, %v7508
        %v7517 = vadd.f32 %v7493, %v7509
        %v7518 = vadd.f32 %v7494, %v7510
        %v7519 = vadd.f32 %v7495, %v7511
        %v7520 = vmul.f32 %v7496, %v1132
        %v7521 = vmul.f32 %v7497, %v1133
        %v7522 = vmul.f32 %v7498, %v1134
        %v7523 = vmul.f32 %v7499, %v1135
        %v7524 = vmul.f32 %v7500, %v1136
        %v7525 = vmul.f32 %v7501, %v1137
        %v7526 = vmul.f32 %v7502, %v1138
        %v7527 = vmul.f32 %v7503, %v1139
        %7536 = vrot.lane.b32.xlu0 %v7520, 127
        %v7537 = vpop.permute.xlu0 %7536
        %7538 = vrot.lane.b32.xlu0 %v7521, 127
        %v7539 = vpop.permute.xlu0 %7538
        %7540 = vrot.lane.b32.xlu0 %v7522, 127
        %v7541 = vpop.permute.xlu0 %7540
        %7542 = vrot.lane.b32.xlu0 %v7523, 127
        %v7543 = vpop.permute.xlu0 %7542
        %7544 = vrot.lane.b32.xlu0 %v7524, 127
        %v7545 = vpop.permute.xlu0 %7544
        %7546 = vrot.lane.b32.xlu0 %v7525, 127
        %v7547 = vpop.permute.xlu0 %7546
        %7548 = vrot.lane.b32.xlu0 %v7526, 127
        %v7549 = vpop.permute.xlu0 %7548
        %7550 = vrot.lane.b32.xlu0 %v7527, 127
        %v7551 = vpop.permute.xlu0 %7550
        %v7560 = vadd.f32 %v7512, %v7537
        %v7561 = vadd.f32 %v7513, %v7539
        %v7562 = vadd.f32 %v7514, %v7541
        %v7563 = vadd.f32 %v7515, %v7543
        %v7564 = vadd.f32 %v7516, %v7545
        %v7565 = vadd.f32 %v7517, %v7547
        %v7566 = vadd.f32 %v7518, %v7549
        %v7567 = vadd.f32 %v7519, %v7551
        %v7568 = vmul.f32 %v7496, %v1198
        %v7569 = vmul.f32 %v7497, %v1199
        %v7570 = vmul.f32 %v7498, %v1200
        %v7571 = vmul.f32 %v7499, %v1201
        %v7572 = vmul.f32 %v7500, %v1202
        %v7573 = vmul.f32 %v7501, %v1203
        %v7574 = vmul.f32 %v7502, %v1204
        %v7575 = vmul.f32 %v7503, %v1205
        %7584 = vrot.lane.b32.xlu0 %v7568, 126
        %v7585 = vpop.permute.xlu0 %7584
        %7586 = vrot.lane.b32.xlu0 %v7569, 126
        %v7587 = vpop.permute.xlu0 %7586
        %7588 = vrot.lane.b32.xlu0 %v7570, 126
        %v7589 = vpop.permute.xlu0 %7588
        %7590 = vrot.lane.b32.xlu0 %v7571, 126
        %v7591 = vpop.permute.xlu0 %7590
        %7592 = vrot.lane.b32.xlu0 %v7572, 126
        %v7593 = vpop.permute.xlu0 %7592
        %7594 = vrot.lane.b32.xlu0 %v7573, 126
        %v7595 = vpop.permute.xlu0 %7594
        %7596 = vrot.lane.b32.xlu0 %v7574, 126
        %v7597 = vpop.permute.xlu0 %7596
        %7598 = vrot.lane.b32.xlu0 %v7575, 126
        %v7599 = vpop.permute.xlu0 %7598
        %v7608 = vadd.f32 %v7560, %v7585
        %v7609 = vadd.f32 %v7561, %v7587
        %v7610 = vadd.f32 %v7562, %v7589
        %v7611 = vadd.f32 %v7563, %v7591
        %v7612 = vadd.f32 %v7564, %v7593
        %v7613 = vadd.f32 %v7565, %v7595
        %v7614 = vadd.f32 %v7566, %v7597
        %v7615 = vadd.f32 %v7567, %v7599
        %v7616 = vld [vmem:[#allocation2 + $0x11] sm:$0x1]
        %v7617 = vld [vmem:[#allocation2 + $0x29] sm:$0x1]
        %v7618 = vld [vmem:[#allocation2 + $0x41] sm:$0x1]
        %v7619 = vld [vmem:[#allocation2 + $0x59] sm:$0x1]
        %v7620 = vld [vmem:[#allocation2 + $0x71] sm:$0x1]
        %v7621 = vld [vmem:[#allocation2 + $0x89] sm:$0x1]
        %v7622 = vld [vmem:[#allocation2 + $0xa1] sm:$0x1]
        %v7623 = vld [vmem:[#allocation2 + $0xb9] sm:$0x1]
        %v7624 = vmul.f32 %v7616, %v1272
        %v7625 = vmul.f32 %v7617, %v1273
        %v7626 = vmul.f32 %v7618, %v1274
        %v7627 = vmul.f32 %v7619, %v1275
        %v7628 = vmul.f32 %v7620, %v1276
        %v7629 = vmul.f32 %v7621, %v1277
        %v7630 = vmul.f32 %v7622, %v1278
        %v7631 = vmul.f32 %v7623, %v1279
        %v7632 = vadd.f32 %v7608, %v7624
        %v7633 = vadd.f32 %v7609, %v7625
        %v7634 = vadd.f32 %v7610, %v7626
        %v7635 = vadd.f32 %v7611, %v7627
        %v7636 = vadd.f32 %v7612, %v7628
        %v7637 = vadd.f32 %v7613, %v7629
        %v7638 = vadd.f32 %v7614, %v7630
        %v7639 = vadd.f32 %v7615, %v7631
        %v7640 = vmul.f32 %v7616, %v1306
        %v7641 = vmul.f32 %v7617, %v1307
        %v7642 = vmul.f32 %v7618, %v1308
        %v7643 = vmul.f32 %v7619, %v1309
        %v7644 = vmul.f32 %v7620, %v1310
        %v7645 = vmul.f32 %v7621, %v1311
        %v7646 = vmul.f32 %v7622, %v1312
        %v7647 = vmul.f32 %v7623, %v1313
        %7656 = vrot.lane.b32.xlu0 %v7640, 127
        %v7657 = vpop.permute.xlu0 %7656
        %7658 = vrot.lane.b32.xlu0 %v7641, 127
        %v7659 = vpop.permute.xlu0 %7658
        %7660 = vrot.lane.b32.xlu0 %v7642, 127
        %v7661 = vpop.permute.xlu0 %7660
        %7662 = vrot.lane.b32.xlu0 %v7643, 127
        %v7663 = vpop.permute.xlu0 %7662
        %7664 = vrot.lane.b32.xlu0 %v7644, 127
        %v7665 = vpop.permute.xlu0 %7664
        %7666 = vrot.lane.b32.xlu0 %v7645, 127
        %v7667 = vpop.permute.xlu0 %7666
        %7668 = vrot.lane.b32.xlu0 %v7646, 127
        %v7669 = vpop.permute.xlu0 %7668
        %7670 = vrot.lane.b32.xlu0 %v7647, 127
        %v7671 = vpop.permute.xlu0 %7670
        %v7680 = vadd.f32 %v7632, %v7657
        %v7681 = vadd.f32 %v7633, %v7659
        %v7682 = vadd.f32 %v7634, %v7661
        %v7683 = vadd.f32 %v7635, %v7663
        %v7684 = vadd.f32 %v7636, %v7665
        %v7685 = vadd.f32 %v7637, %v7667
        %v7686 = vadd.f32 %v7638, %v7669
        %v7687 = vadd.f32 %v7639, %v7671
        %v7688 = vmul.f32 %v7616, %v1372
        %v7689 = vmul.f32 %v7617, %v1373
        %v7690 = vmul.f32 %v7618, %v1374
        %v7691 = vmul.f32 %v7619, %v1375
        %v7692 = vmul.f32 %v7620, %v1376
        %v7693 = vmul.f32 %v7621, %v1377
        %v7694 = vmul.f32 %v7622, %v1378
        %v7695 = vmul.f32 %v7623, %v1379
        %7704 = vrot.lane.b32.xlu0 %v7688, 126
        %v7705 = vpop.permute.xlu0 %7704
        %7706 = vrot.lane.b32.xlu0 %v7689, 126
        %v7707 = vpop.permute.xlu0 %7706
        %7708 = vrot.lane.b32.xlu0 %v7690, 126
        %v7709 = vpop.permute.xlu0 %7708
        %7710 = vrot.lane.b32.xlu0 %v7691, 126
        %v7711 = vpop.permute.xlu0 %7710
        %7712 = vrot.lane.b32.xlu0 %v7692, 126
        %v7713 = vpop.permute.xlu0 %7712
        %7714 = vrot.lane.b32.xlu0 %v7693, 126
        %v7715 = vpop.permute.xlu0 %7714
        %7716 = vrot.lane.b32.xlu0 %v7694, 126
        %v7717 = vpop.permute.xlu0 %7716
        %7718 = vrot.lane.b32.xlu0 %v7695, 126
        %v7719 = vpop.permute.xlu0 %7718
        %v7728 = vadd.f32 %v7680, %v7705
        %v7729 = vadd.f32 %v7681, %v7707
        %v7730 = vadd.f32 %v7682, %v7709
        %v7731 = vadd.f32 %v7683, %v7711
        %v7732 = vadd.f32 %v7684, %v7713
        %v7733 = vadd.f32 %v7685, %v7715
        %v7734 = vadd.f32 %v7686, %v7717
        %v7735 = vadd.f32 %v7687, %v7719
        %v7736 = vadd.f32 %v7728, %v1439
        %v7737 = vadd.f32 %v7729, %v1440
        %v7738 = vadd.f32 %v7730, %v1441
        %v7739 = vadd.f32 %v7731, %v1442
        %v7740 = vadd.f32 %v7732, %v1443
        %v7741 = vadd.f32 %v7733, %v1444
        %v7742 = vadd.f32 %v7734, %v1445
        %v7743 = vadd.f32 %v7735, %v1446
        %v7744 = vmax.f32 %v7736, 0.0
        %v7745 = vmax.f32 %v7737, 0.0
        %v7746 = vmax.f32 %v7738, 0.0
        %v7747 = vmax.f32 %v7739, 0.0
        %v7748 = vmax.f32 %v7740, 0.0
        %v7749 = vmax.f32 %v7741, 0.0
        %v7750 = vmax.f32 %v7742, 0.0
        %v7751 = vmax.f32 %v7743, 0.0
        %v7752 = vmin.f32 %v7744, 6.0
        %v7753 = vmin.f32 %v7745, 6.0
        %v7754 = vmin.f32 %v7746, 6.0
        %v7755 = vmin.f32 %v7747, 6.0
        %v7756 = vmin.f32 %v7748, 6.0
        %v7757 = vmin.f32 %v7749, 6.0
        %v7758 = vmin.f32 %v7750, 6.0
        %v7759 = vmin.f32 %v7751, 6.0
        %v7760 = vmul.f32 %v7752, 1.7133749
        %v7761 = vmul.f32 %v7753, 1.7133749
        %v7762 = vmul.f32 %v7754, 1.7133749
        %v7763 = vmul.f32 %v7755, 1.7133749
        %v7764 = vmul.f32 %v7756, 1.7133749
        %v7765 = vmul.f32 %v7757, 1.7133749
        %v7766 = vmul.f32 %v7758, 1.7133749
        %v7767 = vmul.f32 %v7759, 1.7133749
        %v7776 = vrot.slane %v7761, 7
        %v7777 = vsel %vm1496, %v7776, %v7760
        %v7778 = vrot.slane %v7762, 6
        %v7779 = vsel %vm1499, %v7778, %v7777
        %v7780 = vrot.slane %v7763, 5
        %v7781 = vsel %vm1502, %v7780, %v7779
        %v7782 = vrot.slane %v7764, 4
        %v7783 = vsel %vm1505, %v7782, %v7781
        %v7784 = vrot.slane %v7765, 3
        %v7785 = vsel %vm1508, %v7784, %v7783
        %v7786 = vrot.slane %v7766, 2
        %v7787 = vsel %vm1511, %v7786, %v7785
        %v7788 = vrot.slane %v7767, 1
        %v7789 = vsel %vm1514, %v7788, %v7787
        %7790 = vrot.lane.b32.xlu0 %v7789, 112
        %v7791 = vpop.permute.xlu0 %7790
        %7793 = vst.msk [vmem:[#allocation3 + $0x8] sm:$0xff] %vm4450, %v7791
        %v7794 = vld [vmem:[%s5] sm:$0x3]
        %v7795 = vld [vmem:[#allocation3] sm:$0xff]
        %v7796 = vld [vmem:[#allocation3 + $0x8] sm:$0xff]
        %v7797 = vpack.c.bf16 %v7795, %v7795
        %v7798 = vpack.c.bf16 %v7796, %v7796
        %v7799 = vld [vmem:[%s6] sm:$0xf]
        %7801 = vset.pattern.permute.xlu0 0
        %7802 = vperm.xlu0 %7801, %v7799
        %v7803 = vpop.permute.xlu0 %7802
        %vm7805 = vcmask 64512
        %v7807 = vsel %vm7805, %v7794, 0
        %vm7809 = vcmask 1043456
        %v7811 = vsel %vm7809, %v7797, 0
        %v7814 = vsel %vm7809, %v7798, 0
        %7816 = vmatpush.bf16.msra.mxu0 0
        %7817 = vmatpush.bf16.msra.mxu0 0
        %7818 = vmatpush.bf16.msra.mxu0 0
        %7819 = vmatpush.bf16.msra.mxu0 0
        %7820 = vmatpush.bf16.msra.mxu0 0
        %7821 = vmatpush.bf16.msra.mxu0 0
        %7822 = vmatpush.bf16.msra.mxu0 0
        %7823 = vmatpush.bf16.msra.mxu0 %v7811
        %7824 = vmatmul.bf16.gmra.mxu0 %v7807
        %v7825 = vpop.f32.mrf.mxu0
        %v7826 = vadd.f32 %v7803, %v7825
        %v7827 = vpop.f32.mrf.mxu0
        %7828 = vdwg.mxu0
        %7829 = vmatpush.bf16.msra.mxu0 0
        %7830 = vmatpush.bf16.msra.mxu0 0
        %7831 = vmatpush.bf16.msra.mxu0 0
        %7832 = vmatpush.bf16.msra.mxu0 0
        %7833 = vmatpush.bf16.msra.mxu0 0
        %7834 = vmatpush.bf16.msra.mxu0 0
        %7835 = vmatpush.bf16.msra.mxu0 0
        %7836 = vmatpush.bf16.msra.mxu0 %v7814
        %7837 = vmatmul.bf16.gmra.mxu0 %v7807
        %v7838 = vpop.f32.mrf.mxu0
        %v7839 = vadd.f32 %v7803, %v7838
        %v7840 = vpop.f32.mrf.mxu0
        %7841 = vdwg.mxu0
        %v7842 = vmul.f32 %v7826, 0.2
        %v7843 = vmul.f32 %v7839, 0.2
        %7844 = vst [vmem:[#allocation1] ss:$2 sm:$0xff] %v281
        %v7845 = vld.sshfl [vmem:[#allocation1] sm:$0xff pattern:$0x75316420]
        %v7846 = vld.sshfl [vmem:[#allocation1 + $0x8] sm:$0xff pattern:$0x75316420]
        %v7849 = vadd.f32 %v7842, %v7845
        %v7850 = vadd.f32 %v7843, %v7846
        %v7853 = vrot.slane %v7850, 4
        %v7854 = vsel %vm7809, %v7849, %v7853
        %7856 = vst [vmem:[%s271] sm:$0xff] %v7854
        %s7857 = sand.u32 %s181, 1
        %s7858 = scalar_lea.sflag [#allocation5], %s7857
        %s7859 = sand.u32 %s181, 1
        %s7860 = smul.addr %s7859, 8
        %s7861 = scalar_lea.vmem [#allocation4], %s7860
        // Predicated region
        $region49: #{tpu_custom_call.1} parent=47 // pred_check
          %p7862 = pneg %p191
        $region50: #{tpu_custom_call.1} parent=47 // pred_check_branch
          %7864 = sbr.rel (%p7862) target = $region52
        $region51: #{tpu_custom_call.1} parent=47 // pred_region
          %7866 = vsyncadd %s7858, 0
          %s7867 = smul.addr %s21, 2
          %s7868 = smul.addr %s7867, 4
          %s7869 = scalar_lea.hbm %s7, %s7868
          %s7871 = sshll.u32 %s7861, 4
          %s7872 = int_to_ptr.vmem [resolvable:$true] %s7871
          %s7873 = sshll.u32 %s7869, 4
          %s7874 = int_to_ptr.hbm [resolvable:$true] %s7873
          %7876 = dma.vmem_to_hbm [thread:$0]  %s7872, 128, %s7874, %s7858
        $region52: #{tpu_custom_call.1} parent=47 // pred_fallthru
          _
      $region48: #{tpu_custom_call.1} parent=5 // pred_fallthru
        _
      %p7877 = scmp.le.s32.totalorder 2, %s16
      // Predicated region
      $region53: #{tpu_custom_call.1} parent=5 // pred_check
        %p7878 = pneg %p7877
      $region54: #{tpu_custom_call.1} parent=5 // pred_check_branch
        %7880 = sbr.rel (%p7878) target = $region56
      $region55: #{tpu_custom_call.1} parent=5 // pred_region
        %s7881 = ssub.s32 %s16, 2
        // Predicated region
        $region57: #{tpu_custom_call.1} parent=55 // pred_check
          %p7882 = pneg %p197
        $region58: #{tpu_custom_call.1} parent=55 // pred_check_branch
          %7884 = sbr.rel (%p7882) target = $region60
        $region59: #{tpu_custom_call.1} parent=55 // pred_region
          %s7885 = sand.u32 %s182, 1
          %s7886 = scalar_lea.sflag [#allocation5], %s7885
          %s7887 = sand.u32 %s182, 1
          %s7888 = smul.addr %s7887, 8
          %s7889 = scalar_lea.vmem [#allocation4], %s7888
          %7891 = dma.done %s7886, 128
        $region60: #{tpu_custom_call.1} parent=55 // pred_fallthru
          _
      $region56: #{tpu_custom_call.1} parent=5 // pred_fallthru
        _
    $region6: #{tpu_custom_call.1} parent=1 // loop_footer
      %s20 = sadd.s32 1, %s16
    $region7: #{tpu_custom_call.1} parent=1 // loop_footer_branch
      %15 = sbr.rel target = $region3
    $region8: #{tpu_custom_call.1} parent=1 // loop_exit
      _
    %7892 = vsyncpa [#allocation5], 1
    %s7893 = scalar_lea.sflag [#allocation5], 1
    %7894 = vsyncpa %s7893, 1

</llo_original>
